<compile_context>
chip_gen: v6e
topology: v6e:2x2x1
jax: 0.10.0
libtpu: 0.0.40
codegen_flags: <defaults>
</compile_context>

<pallas_src>
import functools

import jax
import jax.numpy as jnp
from jax.experimental import pallas as pl
from jax.experimental.pallas import tpu as pltpu


# ----------------------------------------------------------------------------
# Fused Pallas kernel: conv1+ReLU -> conv2+ReLU -> global avg pool -> FC
# ----------------------------------------------------------------------------
def _fused_forward_kernel(x_ref, w1_ref, b1_ref, w2_ref, b2_ref, wf_ref, bf_ref,
                          out_ref, xpad_ref, h1pad_ref, *, H, W, Cin, C1, C2):
    """One grid step == one image. Everything stays in VMEM.

    x_ref    : (1, H, W, Cin)          input image block (NHWC, f32)
    w1_ref   : (9*Cin, C1)             conv1 weights, rows ordered (ky, kx, cin)
    b1_ref   : (1, C1)
    w2_ref   : (9*C1, C2)              conv2 weights, rows ordered (ky, kx, c1)
    b2_ref   : (1, C2)
    wf_ref   : (C2, N), bf_ref: (1, N) classifier
    out_ref  : (1, 1, N)               logits block for this image
    xpad_ref : VMEM (H+2, W+2, Cin)    zero-padded conv1 input scratch
    h1pad_ref: VMEM (H+2, W+2, C1)     zero-padded conv1 output scratch
    """
    f32 = jnp.float32

    # ---- conv1: 3x3, stride 1, pad 1, + bias + ReLU (in-kernel im2col) ----
    xpad_ref[...] = jnp.zeros_like(xpad_ref)
    xpad_ref[1:H + 1, 1:W + 1, :] = x_ref[0]
    acc1 = jnp.zeros((H * W, C1), f32)
    for t in range(9):                      # 9 static taps, unrolled at trace time
        ky, kx = divmod(t, 3)
        patch = xpad_ref[ky:ky + H, kx:kx + W, :].reshape(H * W, Cin)
        acc1 = acc1 + jnp.dot(patch, w1_ref[t * Cin:(t + 1) * Cin, :],
                              preferred_element_type=f32)
    h1 = jnp.maximum(acc1 + b1_ref[...], 0.0)            # (H*W, C1), VMEM only

    # ---- conv2: 3x3, stride 1, pad 1, + bias + ReLU ----
    h1pad_ref[...] = jnp.zeros_like(h1pad_ref)
    h1pad_ref[1:H + 1, 1:W + 1, :] = h1.reshape(H, W, C1)
    acc2 = jnp.zeros((H * W, C2), f32)
    for t in range(9):
        ky, kx = divmod(t, 3)
        patch = h1pad_ref[ky:ky + H, kx:kx + W, :].reshape(H * W, C1)
        acc2 = acc2 + jnp.dot(patch, w2_ref[t * C1:(t + 1) * C1, :],
                              preferred_element_type=f32)
    h2 = jnp.maximum(acc2 + b2_ref[...], 0.0)            # (H*W, C2), VMEM only

    # ---- global average pool (pooling=True): reduce over leading/sublane axis ----
    pooled = jnp.sum(h2, axis=0, keepdims=True) * (1.0 / float(H * W))   # (1, C2)

    # TODO(synk): F.dropout with training=False is the identity; no dropout emitted.
    # ---- classifier FC(dim_h, 80), relu=False ----
    logits = jnp.dot(pooled, wf_ref[...], preferred_element_type=f32) + bf_ref[...]
    out_ref[0] = logits


def fused_forward(x_nhwc, prep):
    """Single fused pallas_call. x_nhwc: (B, H, W, Cin) f32 -> logits (B, N)."""
    B, H, W, Cin = x_nhwc.shape
    C1 = prep["b1"].shape[-1]
    C2 = prep["b2"].shape[-1]
    N = prep["bf"].shape[-1]

    kernel = functools.partial(_fused_forward_kernel,
                               H=H, W=W, Cin=Cin, C1=C1, C2=C2)
    out = pl.pallas_call(
        kernel,
        out_shape=jax.ShapeDtypeStruct((B, 1, N), jnp.float32),
        grid_spec=pltpu.PrefetchScalarGridSpec(
            num_scalar_prefetch=0,
            grid=(B,),
            in_specs=[
                pl.BlockSpec((1, H, W, Cin), lambda b: (b, 0, 0, 0)),   # image b
                pl.BlockSpec((9 * Cin, C1), lambda b: (0, 0)),          # w1 (resident)
                pl.BlockSpec((1, C1), lambda b: (0, 0)),                # b1
                pl.BlockSpec((9 * C1, C2), lambda b: (0, 0)),           # w2 (resident)
                pl.BlockSpec((1, C2), lambda b: (0, 0)),                # b2
                pl.BlockSpec((C2, N), lambda b: (0, 0)),                # wf (resident)
                pl.BlockSpec((1, N), lambda b: (0, 0)),                 # bf
            ],
            out_specs=pl.BlockSpec((1, 1, N), lambda b: (b, 0, 0)),
            scratch_shapes=[
                pltpu.VMEM((H + 2, W + 2, Cin), jnp.float32),   # padded conv1 input
                pltpu.VMEM((H + 2, W + 2, C1), jnp.float32),    # padded conv1 output
            ],
        ),
        compiler_params=pltpu.CompilerParams(
            dimension_semantics=("parallel",)),                 # batch split across TCs
    )(x_nhwc, prep["w1f"], prep["b1"], prep["w2f"], prep["b2"],
      prep["wf"], prep["bf"])
    return out.reshape(B, N)


# ----------------------------------------------------------------------------
# Parameter setup (one-time prep: reshape/cast hoisted out of the forward)
# ----------------------------------------------------------------------------
def init_params(key, c_in, c1, dim_h, num_classes):
    k1, k2, k3, k4, k5, k6 = jax.random.split(key, 6)
    return {
        "w1": 0.1 * jax.random.normal(k1, (3, 3, c_in, c1), jnp.float32),
        "b1": 0.05 * jax.random.normal(k2, (c1,), jnp.float32),
        "w2": 0.1 * jax.random.normal(k3, (3, 3, c1, dim_h), jnp.float32),
        "b2": 0.05 * jax.random.normal(k4, (dim_h,), jnp.float32),
        "wf": 0.1 * jax.random.normal(k5, (dim_h, num_classes), jnp.float32),
        "bf": 0.05 * jax.random.normal(k6, (num_classes,), jnp.float32),
    }


def prepare_params(params):
    """Flatten conv weights to (9*Cin, Cout) tap-major (ky,kx,cin) and 2-D biases."""
    cin = params["w1"].shape[2]
    c1 = params["w1"].shape[3]
    c2 = params["w2"].shape[3]
    n = params["wf"].shape[1]
    return {
        "w1f": params["w1"].reshape(9 * cin, c1).astype(jnp.float32),
        "b1": params["b1"].reshape(1, c1).astype(jnp.float32),
        "w2f": params["w2"].reshape(9 * c1, c2).astype(jnp.float32),
        "b2": params["b2"].reshape(1, c2).astype(jnp.float32),
        "wf": params["wf"].astype(jnp.float32),
        "bf": params["bf"].reshape(1, n).astype(jnp.float32),
    }


@jax.jit
def baseline_v1_forward(x_nchw, prep):
    # NCHW (PyTorch convention) -> NHWC for the kernel (layout plumbing only).
    x = jnp.transpose(x_nchw, (0, 2, 3, 1)).astype(jnp.float32)
    return fused_forward(x, prep)


# ----------------------------------------------------------------------------
# Pure-JAX reference (sanity check of the fused Pallas pipeline)
# ----------------------------------------------------------------------------
def reference_forward(x_nchw, params):
    x = jnp.transpose(x_nchw, (0, 2, 3, 1)).astype(jnp.float32)

    def conv(h, w, b):
        dn = jax.lax.conv_dimension_numbers(h.shape, w.shape, ("NHWC", "HWIO", "NHWC"))
        y = jax.lax.conv_general_dilated(h, w, (1, 1), ((1, 1), (1, 1)),
                                         dimension_numbers=dn)
        return jax.nn.relu(y + b)

    h = conv(x, params["w1"], params["b1"])
    h = conv(h, params["w2"], params["b2"])
    h = jnp.mean(h, axis=(1, 2))
    return h @ params["wf"] + params["bf"]


if __name__ == "__main__":
    key = jax.random.PRNGKey(0)
    B, C_IN, H, W = 2, 4, 16, 16
    C1, DIM_H, NUM_CLASSES = 16, 32, 80

    kx, kp = jax.random.split(key)
    x_nchw = jax.random.normal(kx, (B, C_IN, H, W), jnp.float32)
    params = init_params(kp, C_IN, C1, DIM_H, NUM_CLASSES)
    prep = prepare_params(params)

    out = baseline_v1_forward(x_nchw, prep)
    out = jax.block_until_ready(out)
    assert out.shape == (B, NUM_CLASSES), out.shape

    ref = jax.block_until_ready(reference_forward(x_nchw, params))
    # Both paths use default TPU matmul precision; 2e-2 leaves headroom for the
    # different f32 accumulation decompositions while still catching layout bugs.
    max_err = float(jnp.max(jnp.abs(out - ref)))
    if max_err > 2e-2:
        raise AssertionError(f"Pallas output mismatch vs reference: max_err={max_err}")

    print("KERNEL_OK")
</pallas_src>

<mosaic_0001>
module attributes {stable_mosaic.version = 11 : i64} {
  func.func @_fused_forward_kernel(%arg0: i32, %arg1: memref<1x16x16x4xf32, #tpu.memory_space<vmem>>, %arg2: memref<36x16xf32, #tpu.memory_space<vmem>>, %arg3: memref<1x16xf32, #tpu.memory_space<vmem>>, %arg4: memref<144x32xf32, #tpu.memory_space<vmem>>, %arg5: memref<1x32xf32, #tpu.memory_space<vmem>>, %arg6: memref<32x80xf32, #tpu.memory_space<vmem>>, %arg7: memref<1x80xf32, #tpu.memory_space<vmem>>, %arg8: memref<1x1x80xf32, #tpu.memory_space<vmem>>, %arg9: memref<18x18x4xf32, #tpu.memory_space<vmem>>, %arg10: memref<18x18x16xf32, #tpu.memory_space<vmem>>) attributes {dimension_semantics = [#tpu.dimension_semantics<parallel>], iteration_bounds = array<i64: 2>, scalar_prefetch = 0 : i64, scratch_operands = 2 : i64, tpu.core_type = #tpu.core_type<tc>, window_params = [{transform_indices = @transform_0, window_bounds = array<i64: 1, 16, 16, 4>}, {pipeline_mode = #tpu.pipeline_mode<synchronous>, transform_indices = @transform_1, window_bounds = array<i64: 36, 16>}, {pipeline_mode = #tpu.pipeline_mode<synchronous>, transform_indices = @transform_2, window_bounds = array<i64: 1, 16>}, {pipeline_mode = #tpu.pipeline_mode<synchronous>, transform_indices = @transform_3, window_bounds = array<i64: 144, 32>}, {pipeline_mode = #tpu.pipeline_mode<synchronous>, transform_indices = @transform_4, window_bounds = array<i64: 1, 32>}, {pipeline_mode = #tpu.pipeline_mode<synchronous>, transform_indices = @transform_5, window_bounds = array<i64: 32, 80>}, {pipeline_mode = #tpu.pipeline_mode<synchronous>, transform_indices = @transform_6, window_bounds = array<i64: 1, 80>}, {transform_indices = @transform_7, window_bounds = array<i64: 1, 1, 80>}]} {
    %cst = arith.constant 0.000000e+00 : f32
    %0 = vector.broadcast %cst : f32 to vector<18x18x4xf32>
    %c0 = arith.constant 0 : index
    %c0_0 = arith.constant 0 : index
    %c0_1 = arith.constant 0 : index
    %1 = vector.load %arg9[%c0, %c0_0, %c0_1] : memref<18x18x4xf32, #tpu.memory_space<vmem>>, vector<18x18x4xf32>
    tpu.vector_store %arg9[%c0, %c0_0, %c0_1], %0 {strides = array<i32>} : memref<18x18x4xf32, #tpu.memory_space<vmem>>, vector<18x18x4xf32>,
    %c0_2 = arith.constant 0 : index
    %c0_3 = arith.constant 0 : index
    %c0_4 = arith.constant 0 : index
    %c0_5 = arith.constant 0 : index
    %2 = vector.load %arg1[%c0_2, %c0_3, %c0_4, %c0_5] : memref<1x16x16x4xf32, #tpu.memory_space<vmem>>, vector<1x16x16x4xf32>
    %3 = vector.shape_cast %2 : vector<1x16x16x4xf32> to vector<16x16x4xf32>
    %c1 = arith.constant 1 : index
    %c1_6 = arith.constant 1 : index
    %c0_7 = arith.constant 0 : index
    %4 = vector.load %arg9[%c1, %c1_6, %c0_7] : memref<18x18x4xf32, #tpu.memory_space<vmem>>, vector<16x16x4xf32>
    tpu.vector_store %arg9[%c1, %c1_6, %c0_7], %3 {strides = array<i32>} : memref<18x18x4xf32, #tpu.memory_space<vmem>>, vector<16x16x4xf32>,
    %cst_8 = arith.constant 0.000000e+00 : f32
    %5 = vector.broadcast %cst_8 : f32 to vector<256x16xf32>
    %c0_9 = arith.constant 0 : index
    %c0_10 = arith.constant 0 : index
    %c0_11 = arith.constant 0 : index
    %6 = vector.load %arg9[%c0_9, %c0_10, %c0_11] : memref<18x18x4xf32, #tpu.memory_space<vmem>>, vector<16x16x4xf32>
    %7 = vector.shape_cast %6 : vector<16x16x4xf32> to vector<256x4xf32>
    %c0_12 = arith.constant 0 : index
    %c0_13 = arith.constant 0 : index
    %8 = vector.load %arg2[%c0_12, %c0_13] : memref<36x16xf32, #tpu.memory_space<vmem>>, vector<4x16xf32>
    %cst_14 = arith.constant dense<0.000000e+00> : vector<256x16xf32>
    %9 = tpu.matmul %7, %8, %cst_14 {dimension_numbers = #tpu.dot_dimension_numbers<[1], [0], [0], [1], [0, 0, 1, 1], [], []>} : vector<256x4xf32>, vector<4x16xf32>, vector<256x16xf32> -> vector<256x16xf32>
    %10 = arith.addf %5, %9 : vector<256x16xf32>
    %c0_15 = arith.constant 0 : index
    %c1_16 = arith.constant 1 : index
    %c0_17 = arith.constant 0 : index
    %11 = vector.load %arg9[%c0_15, %c1_16, %c0_17] : memref<18x18x4xf32, #tpu.memory_space<vmem>>, vector<16x16x4xf32>
    %12 = vector.shape_cast %11 : vector<16x16x4xf32> to vector<256x4xf32>
    %c4 = arith.constant 4 : index
    %c0_18 = arith.constant 0 : index
    %13 = vector.load %arg2[%c4, %c0_18] : memref<36x16xf32, #tpu.memory_space<vmem>>, vector<4x16xf32>
    %cst_19 = arith.constant dense<0.000000e+00> : vector<256x16xf32>
    %14 = tpu.matmul %12, %13, %cst_19 {dimension_numbers = #tpu.dot_dimension_numbers<[1], [0], [0], [1], [0, 0, 1, 1], [], []>} : vector<256x4xf32>, vector<4x16xf32>, vector<256x16xf32> -> vector<256x16xf32>
    %15 = arith.addf %10, %14 : vector<256x16xf32>
    %c0_20 = arith.constant 0 : index
    %c2 = arith.constant 2 : index
    %c0_21 = arith.constant 0 : index
    %16 = vector.load %arg9[%c0_20, %c2, %c0_21] : memref<18x18x4xf32, #tpu.memory_space<vmem>>, vector<16x16x4xf32>
    %17 = vector.shape_cast %16 : vector<16x16x4xf32> to vector<256x4xf32>
    %c8 = arith.constant 8 : index
    %c0_22 = arith.constant 0 : index
    %18 = vector.load %arg2[%c8, %c0_22] : memref<36x16xf32, #tpu.memory_space<vmem>>, vector<4x16xf32>
    %cst_23 = arith.constant dense<0.000000e+00> : vector<256x16xf32>
    %19 = tpu.matmul %17, %18, %cst_23 {dimension_numbers = #tpu.dot_dimension_numbers<[1], [0], [0], [1], [0, 0, 1, 1], [], []>} : vector<256x4xf32>, vector<4x16xf32>, vector<256x16xf32> -> vector<256x16xf32>
    %20 = arith.addf %15, %19 : vector<256x16xf32>
    %c1_24 = arith.constant 1 : index
    %c0_25 = arith.constant 0 : index
    %c0_26 = arith.constant 0 : index
    %21 = vector.load %arg9[%c1_24, %c0_25, %c0_26] : memref<18x18x4xf32, #tpu.memory_space<vmem>>, vector<16x16x4xf32>
    %22 = vector.shape_cast %21 : vector<16x16x4xf32> to vector<256x4xf32>
    %c12 = arith.constant 12 : index
    %c0_27 = arith.constant 0 : index
    %23 = vector.load %arg2[%c12, %c0_27] : memref<36x16xf32, #tpu.memory_space<vmem>>, vector<4x16xf32>
    %cst_28 = arith.constant dense<0.000000e+00> : vector<256x16xf32>
    %24 = tpu.matmul %22, %23, %cst_28 {dimension_numbers = #tpu.dot_dimension_numbers<[1], [0], [0], [1], [0, 0, 1, 1], [], []>} : vector<256x4xf32>, vector<4x16xf32>, vector<256x16xf32> -> vector<256x16xf32>
    %25 = arith.addf %20, %24 : vector<256x16xf32>
    %c1_29 = arith.constant 1 : index
    %c1_30 = arith.constant 1 : index
    %c0_31 = arith.constant 0 : index
    %26 = vector.load %arg9[%c1_29, %c1_30, %c0_31] : memref<18x18x4xf32, #tpu.memory_space<vmem>>, vector<16x16x4xf32>
    %27 = vector.shape_cast %26 : vector<16x16x4xf32> to vector<256x4xf32>
    %c16 = arith.constant 16 : index
    %c0_32 = arith.constant 0 : index
    %28 = vector.load %arg2[%c16, %c0_32] : memref<36x16xf32, #tpu.memory_space<vmem>>, vector<4x16xf32>
    %cst_33 = arith.constant dense<0.000000e+00> : vector<256x16xf32>
    %29 = tpu.matmul %27, %28, %cst_33 {dimension_numbers = #tpu.dot_dimension_numbers<[1], [0], [0], [1], [0, 0, 1, 1], [], []>} : vector<256x4xf32>, vector<4x16xf32>, vector<256x16xf32> -> vector<256x16xf32>
    %30 = arith.addf %25, %29 : vector<256x16xf32>
    %c1_34 = arith.constant 1 : index
    %c2_35 = arith.constant 2 : index
    %c0_36 = arith.constant 0 : index
    %31 = vector.load %arg9[%c1_34, %c2_35, %c0_36] : memref<18x18x4xf32, #tpu.memory_space<vmem>>, vector<16x16x4xf32>
    %32 = vector.shape_cast %31 : vector<16x16x4xf32> to vector<256x4xf32>
    %c20 = arith.constant 20 : index
    %c0_37 = arith.constant 0 : index
    %33 = vector.load %arg2[%c20, %c0_37] : memref<36x16xf32, #tpu.memory_space<vmem>>, vector<4x16xf32>
    %cst_38 = arith.constant dense<0.000000e+00> : vector<256x16xf32>
    %34 = tpu.matmul %32, %33, %cst_38 {dimension_numbers = #tpu.dot_dimension_numbers<[1], [0], [0], [1], [0, 0, 1, 1], [], []>} : vector<256x4xf32>, vector<4x16xf32>, vector<256x16xf32> -> vector<256x16xf32>
    %35 = arith.addf %30, %34 : vector<256x16xf32>
    %c2_39 = arith.constant 2 : index
    %c0_40 = arith.constant 0 : index
    %c0_41 = arith.constant 0 : index
    %36 = vector.load %arg9[%c2_39, %c0_40, %c0_41] : memref<18x18x4xf32, #tpu.memory_space<vmem>>, vector<16x16x4xf32>
    %37 = vector.shape_cast %36 : vector<16x16x4xf32> to vector<256x4xf32>
    %c24 = arith.constant 24 : index
    %c0_42 = arith.constant 0 : index
    %38 = vector.load %arg2[%c24, %c0_42] : memref<36x16xf32, #tpu.memory_space<vmem>>, vector<4x16xf32>
    %cst_43 = arith.constant dense<0.000000e+00> : vector<256x16xf32>
    %39 = tpu.matmul %37, %38, %cst_43 {dimension_numbers = #tpu.dot_dimension_numbers<[1], [0], [0], [1], [0, 0, 1, 1], [], []>} : vector<256x4xf32>, vector<4x16xf32>, vector<256x16xf32> -> vector<256x16xf32>
    %40 = arith.addf %35, %39 : vector<256x16xf32>
    %c2_44 = arith.constant 2 : index
    %c1_45 = arith.constant 1 : index
    %c0_46 = arith.constant 0 : index
    %41 = vector.load %arg9[%c2_44, %c1_45, %c0_46] : memref<18x18x4xf32, #tpu.memory_space<vmem>>, vector<16x16x4xf32>
    %42 = vector.shape_cast %41 : vector<16x16x4xf32> to vector<256x4xf32>
    %c28 = arith.constant 28 : index
    %c0_47 = arith.constant 0 : index
    %43 = vector.load %arg2[%c28, %c0_47] : memref<36x16xf32, #tpu.memory_space<vmem>>, vector<4x16xf32>
    %cst_48 = arith.constant dense<0.000000e+00> : vector<256x16xf32>
    %44 = tpu.matmul %42, %43, %cst_48 {dimension_numbers = #tpu.dot_dimension_numbers<[1], [0], [0], [1], [0, 0, 1, 1], [], []>} : vector<256x4xf32>, vector<4x16xf32>, vector<256x16xf32> -> vector<256x16xf32>
    %45 = arith.addf %40, %44 : vector<256x16xf32>
    %c2_49 = arith.constant 2 : index
    %c2_50 = arith.constant 2 : index
    %c0_51 = arith.constant 0 : index
    %46 = vector.load %arg9[%c2_49, %c2_50, %c0_51] : memref<18x18x4xf32, #tpu.memory_space<vmem>>, vector<16x16x4xf32>
    %47 = vector.shape_cast %46 : vector<16x16x4xf32> to vector<256x4xf32>
    %c32 = arith.constant 32 : index
    %c0_52 = arith.constant 0 : index
    %48 = vector.load %arg2[%c32, %c0_52] : memref<36x16xf32, #tpu.memory_space<vmem>>, vector<4x16xf32>
    %cst_53 = arith.constant dense<0.000000e+00> : vector<256x16xf32>
    %49 = tpu.matmul %47, %48, %cst_53 {dimension_numbers = #tpu.dot_dimension_numbers<[1], [0], [0], [1], [0, 0, 1, 1], [], []>} : vector<256x4xf32>, vector<4x16xf32>, vector<256x16xf32> -> vector<256x16xf32>
    %50 = arith.addf %45, %49 : vector<256x16xf32>
    %c0_54 = arith.constant 0 : index
    %c0_55 = arith.constant 0 : index
    %51 = vector.load %arg3[%c0_54, %c0_55] : memref<1x16xf32, #tpu.memory_space<vmem>>, vector<1x16xf32>
    %52 = vector.broadcast %51 : vector<1x16xf32> to vector<256x16xf32>
    %53 = arith.addf %50, %52 : vector<256x16xf32>
    %cst_56 = arith.constant 0.000000e+00 : f32
    %54 = vector.broadcast %cst_56 : f32 to vector<256x16xf32>
    %55 = arith.maximumf %53, %54 : vector<256x16xf32>
    %cst_57 = arith.constant 0.000000e+00 : f32
    %56 = vector.broadcast %cst_57 : f32 to vector<18x18x16xf32>
    %c0_58 = arith.constant 0 : index
    %c0_59 = arith.constant 0 : index
    %c0_60 = arith.constant 0 : index
    %57 = vector.load %arg10[%c0_58, %c0_59, %c0_60] : memref<18x18x16xf32, #tpu.memory_space<vmem>>, vector<18x18x16xf32>
    tpu.vector_store %arg10[%c0_58, %c0_59, %c0_60], %56 {strides = array<i32>} : memref<18x18x16xf32, #tpu.memory_space<vmem>>, vector<18x18x16xf32>,
    %58 = vector.shape_cast %55 : vector<256x16xf32> to vector<16x16x16xf32>
    %c1_61 = arith.constant 1 : index
    %c1_62 = arith.constant 1 : index
    %c0_63 = arith.constant 0 : index
    %59 = vector.load %arg10[%c1_61, %c1_62, %c0_63] : memref<18x18x16xf32, #tpu.memory_space<vmem>>, vector<16x16x16xf32>
    tpu.vector_store %arg10[%c1_61, %c1_62, %c0_63], %58 {strides = array<i32>} : memref<18x18x16xf32, #tpu.memory_space<vmem>>, vector<16x16x16xf32>,
    %cst_64 = arith.constant 0.000000e+00 : f32
    %60 = vector.broadcast %cst_64 : f32 to vector<256x32xf32>
    %c0_65 = arith.constant 0 : index
    %c0_66 = arith.constant 0 : index
    %c0_67 = arith.constant 0 : index
    %61 = vector.load %arg10[%c0_65, %c0_66, %c0_67] : memref<18x18x16xf32, #tpu.memory_space<vmem>>, vector<16x16x16xf32>
    %62 = vector.shape_cast %61 : vector<16x16x16xf32> to vector<256x16xf32>
    %c0_68 = arith.constant 0 : index
    %c0_69 = arith.constant 0 : index
    %63 = vector.load %arg4[%c0_68, %c0_69] : memref<144x32xf32, #tpu.memory_space<vmem>>, vector<16x32xf32>
    %cst_70 = arith.constant dense<0.000000e+00> : vector<256x32xf32>
    %64 = tpu.matmul %62, %63, %cst_70 {dimension_numbers = #tpu.dot_dimension_numbers<[1], [0], [0], [1], [0, 0, 1, 1], [], []>} : vector<256x16xf32>, vector<16x32xf32>, vector<256x32xf32> -> vector<256x32xf32>
    %65 = arith.addf %60, %64 : vector<256x32xf32>
    %c0_71 = arith.constant 0 : index
    %c1_72 = arith.constant 1 : index
    %c0_73 = arith.constant 0 : index
    %66 = vector.load %arg10[%c0_71, %c1_72, %c0_73] : memref<18x18x16xf32, #tpu.memory_space<vmem>>, vector<16x16x16xf32>
    %67 = vector.shape_cast %66 : vector<16x16x16xf32> to vector<256x16xf32>
    %c16_74 = arith.constant 16 : index
    %c0_75 = arith.constant 0 : index
    %68 = vector.load %arg4[%c16_74, %c0_75] : memref<144x32xf32, #tpu.memory_space<vmem>>, vector<16x32xf32>
    %cst_76 = arith.constant dense<0.000000e+00> : vector<256x32xf32>
    %69 = tpu.matmul %67, %68, %cst_76 {dimension_numbers = #tpu.dot_dimension_numbers<[1], [0], [0], [1], [0, 0, 1, 1], [], []>} : vector<256x16xf32>, vector<16x32xf32>, vector<256x32xf32> -> vector<256x32xf32>
    %70 = arith.addf %65, %69 : vector<256x32xf32>
    %c0_77 = arith.constant 0 : index
    %c2_78 = arith.constant 2 : index
    %c0_79 = arith.constant 0 : index
    %71 = vector.load %arg10[%c0_77, %c2_78, %c0_79] : memref<18x18x16xf32, #tpu.memory_space<vmem>>, vector<16x16x16xf32>
    %72 = vector.shape_cast %71 : vector<16x16x16xf32> to vector<256x16xf32>
    %c32_80 = arith.constant 32 : index
    %c0_81 = arith.constant 0 : index
    %73 = vector.load %arg4[%c32_80, %c0_81] : memref<144x32xf32, #tpu.memory_space<vmem>>, vector<16x32xf32>
    %cst_82 = arith.constant dense<0.000000e+00> : vector<256x32xf32>
    %74 = tpu.matmul %72, %73, %cst_82 {dimension_numbers = #tpu.dot_dimension_numbers<[1], [0], [0], [1], [0, 0, 1, 1], [], []>} : vector<256x16xf32>, vector<16x32xf32>, vector<256x32xf32> -> vector<256x32xf32>
    %75 = arith.addf %70, %74 : vector<256x32xf32>
    %c1_83 = arith.constant 1 : index
    %c0_84 = arith.constant 0 : index
    %c0_85 = arith.constant 0 : index
    %76 = vector.load %arg10[%c1_83, %c0_84, %c0_85] : memref<18x18x16xf32, #tpu.memory_space<vmem>>, vector<16x16x16xf32>
    %77 = vector.shape_cast %76 : vector<16x16x16xf32> to vector<256x16xf32>
    %c48 = arith.constant 48 : index
    %c0_86 = arith.constant 0 : index
    %78 = vector.load %arg4[%c48, %c0_86] : memref<144x32xf32, #tpu.memory_space<vmem>>, vector<16x32xf32>
    %cst_87 = arith.constant dense<0.000000e+00> : vector<256x32xf32>
    %79 = tpu.matmul %77, %78, %cst_87 {dimension_numbers = #tpu.dot_dimension_numbers<[1], [0], [0], [1], [0, 0, 1, 1], [], []>} : vector<256x16xf32>, vector<16x32xf32>, vector<256x32xf32> -> vector<256x32xf32>
    %80 = arith.addf %75, %79 : vector<256x32xf32>
    %c1_88 = arith.constant 1 : index
    %c1_89 = arith.constant 1 : index
    %c0_90 = arith.constant 0 : index
    %81 = vector.load %arg10[%c1_88, %c1_89, %c0_90] : memref<18x18x16xf32, #tpu.memory_space<vmem>>, vector<16x16x16xf32>
    %82 = vector.shape_cast %81 : vector<16x16x16xf32> to vector<256x16xf32>
    %c64 = arith.constant 64 : index
    %c0_91 = arith.constant 0 : index
    %83 = vector.load %arg4[%c64, %c0_91] : memref<144x32xf32, #tpu.memory_space<vmem>>, vector<16x32xf32>
    %cst_92 = arith.constant dense<0.000000e+00> : vector<256x32xf32>
    %84 = tpu.matmul %82, %83, %cst_92 {dimension_numbers = #tpu.dot_dimension_numbers<[1], [0], [0], [1], [0, 0, 1, 1], [], []>} : vector<256x16xf32>, vector<16x32xf32>, vector<256x32xf32> -> vector<256x32xf32>
    %85 = arith.addf %80, %84 : vector<256x32xf32>
    %c1_93 = arith.constant 1 : index
    %c2_94 = arith.constant 2 : index
    %c0_95 = arith.constant 0 : index
    %86 = vector.load %arg10[%c1_93, %c2_94, %c0_95] : memref<18x18x16xf32, #tpu.memory_space<vmem>>, vector<16x16x16xf32>
    %87 = vector.shape_cast %86 : vector<16x16x16xf32> to vector<256x16xf32>
    %c80 = arith.constant 80 : index
    %c0_96 = arith.constant 0 : index
    %88 = vector.load %arg4[%c80, %c0_96] : memref<144x32xf32, #tpu.memory_space<vmem>>, vector<16x32xf32>
    %cst_97 = arith.constant dense<0.000000e+00> : vector<256x32xf32>
    %89 = tpu.matmul %87, %88, %cst_97 {dimension_numbers = #tpu.dot_dimension_numbers<[1], [0], [0], [1], [0, 0, 1, 1], [], []>} : vector<256x16xf32>, vector<16x32xf32>, vector<256x32xf32> -> vector<256x32xf32>
    %90 = arith.addf %85, %89 : vector<256x32xf32>
    %c2_98 = arith.constant 2 : index
    %c0_99 = arith.constant 0 : index
    %c0_100 = arith.constant 0 : index
    %91 = vector.load %arg10[%c2_98, %c0_99, %c0_100] : memref<18x18x16xf32, #tpu.memory_space<vmem>>, vector<16x16x16xf32>
    %92 = vector.shape_cast %91 : vector<16x16x16xf32> to vector<256x16xf32>
    %c96 = arith.constant 96 : index
    %c0_101 = arith.constant 0 : index
    %93 = vector.load %arg4[%c96, %c0_101] : memref<144x32xf32, #tpu.memory_space<vmem>>, vector<16x32xf32>
    %cst_102 = arith.constant dense<0.000000e+00> : vector<256x32xf32>
    %94 = tpu.matmul %92, %93, %cst_102 {dimension_numbers = #tpu.dot_dimension_numbers<[1], [0], [0], [1], [0, 0, 1, 1], [], []>} : vector<256x16xf32>, vector<16x32xf32>, vector<256x32xf32> -> vector<256x32xf32>
    %95 = arith.addf %90, %94 : vector<256x32xf32>
    %c2_103 = arith.constant 2 : index
    %c1_104 = arith.constant 1 : index
    %c0_105 = arith.constant 0 : index
    %96 = vector.load %arg10[%c2_103, %c1_104, %c0_105] : memref<18x18x16xf32, #tpu.memory_space<vmem>>, vector<16x16x16xf32>
    %97 = vector.shape_cast %96 : vector<16x16x16xf32> to vector<256x16xf32>
    %c112 = arith.constant 112 : index
    %c0_106 = arith.constant 0 : index
    %98 = vector.load %arg4[%c112, %c0_106] : memref<144x32xf32, #tpu.memory_space<vmem>>, vector<16x32xf32>
    %cst_107 = arith.constant dense<0.000000e+00> : vector<256x32xf32>
    %99 = tpu.matmul %97, %98, %cst_107 {dimension_numbers = #tpu.dot_dimension_numbers<[1], [0], [0], [1], [0, 0, 1, 1], [], []>} : vector<256x16xf32>, vector<16x32xf32>, vector<256x32xf32> -> vector<256x32xf32>
    %100 = arith.addf %95, %99 : vector<256x32xf32>
    %c2_108 = arith.constant 2 : index
    %c2_109 = arith.constant 2 : index
    %c0_110 = arith.constant 0 : index
    %101 = vector.load %arg10[%c2_108, %c2_109, %c0_110] : memref<18x18x16xf32, #tpu.memory_space<vmem>>, vector<16x16x16xf32>
    %102 = vector.shape_cast %101 : vector<16x16x16xf32> to vector<256x16xf32>
    %c128 = arith.constant 128 : index
    %c0_111 = arith.constant 0 : index
    %103 = vector.load %arg4[%c128, %c0_111] : memref<144x32xf32, #tpu.memory_space<vmem>>, vector<16x32xf32>
    %cst_112 = arith.constant dense<0.000000e+00> : vector<256x32xf32>
    %104 = tpu.matmul %102, %103, %cst_112 {dimension_numbers = #tpu.dot_dimension_numbers<[1], [0], [0], [1], [0, 0, 1, 1], [], []>} : vector<256x16xf32>, vector<16x32xf32>, vector<256x32xf32> -> vector<256x32xf32>
    %105 = arith.addf %100, %104 : vector<256x32xf32>
    %c0_113 = arith.constant 0 : index
    %c0_114 = arith.constant 0 : index
    %106 = vector.load %arg5[%c0_113, %c0_114] : memref<1x32xf32, #tpu.memory_space<vmem>>, vector<1x32xf32>
    %107 = vector.broadcast %106 : vector<1x32xf32> to vector<256x32xf32>
    %108 = arith.addf %105, %107 : vector<256x32xf32>
    %cst_115 = arith.constant 0.000000e+00 : f32
    %109 = vector.broadcast %cst_115 : f32 to vector<256x32xf32>
    %110 = arith.maximumf %108, %109 : vector<256x32xf32>
    %cst_116 = arith.constant dense<0.000000e+00> : vector<32xf32>
    %111 = vector.multi_reduction <add>, %110, %cst_116 [0] : vector<256x32xf32> to vector<32xf32>
    %112 = vector.shape_cast %111 : vector<32xf32> to vector<1x32xf32>
    %cst_117 = arith.constant 3.906250e-03 : f32
    %113 = vector.broadcast %cst_117 : f32 to vector<1x32xf32>
    %114 = arith.mulf %112, %113 : vector<1x32xf32>
    %c0_118 = arith.constant 0 : index
    %c0_119 = arith.constant 0 : index
    %115 = vector.load %arg6[%c0_118, %c0_119] : memref<32x80xf32, #tpu.memory_space<vmem>>, vector<32x80xf32>
    %cst_120 = arith.constant dense<0.000000e+00> : vector<1x80xf32>
    %116 = tpu.matmul %114, %115, %cst_120 {dimension_numbers = #tpu.dot_dimension_numbers<[1], [0], [0], [1], [0, 0, 1, 1], [], []>} : vector<1x32xf32>, vector<32x80xf32>, vector<1x80xf32> -> vector<1x80xf32>
    %c0_121 = arith.constant 0 : index
    %c0_122 = arith.constant 0 : index
    %117 = vector.load %arg7[%c0_121, %c0_122] : memref<1x80xf32, #tpu.memory_space<vmem>>, vector<1x80xf32>
    %118 = arith.addf %116, %117 : vector<1x80xf32>
    %c0_123 = arith.constant 0 : index
    %c0_124 = arith.constant 0 : index
    %c0_125 = arith.constant 0 : index
    %119 = vector.load %arg8[%c0_123, %c0_124, %c0_125] : memref<1x1x80xf32, #tpu.memory_space<vmem>>, vector<1x1x80xf32>
    %120 = vector.shape_cast %119 : vector<1x1x80xf32> to vector<1x80xf32>
    %121 = vector.shape_cast %118 : vector<1x80xf32> to vector<1x1x80xf32>
    tpu.vector_store %arg8[%c0_123, %c0_124, %c0_125], %121 {strides = array<i32>} : memref<1x1x80xf32, #tpu.memory_space<vmem>>, vector<1x1x80xf32>,
    return
  }
  func.func @transform_0(%arg0: i32) -> (i32, i32, i32, i32) {
    %c0_i32 = arith.constant 0 : i32
    %c0_i32_0 = arith.constant 0 : i32
    %c0_i32_1 = arith.constant 0 : i32
    %c0_i32_2 = arith.constant 0 : i32
    return %arg0, %c0_i32, %c0_i32_0, %c0_i32_1 : i32, i32, i32, i32
  }
  func.func @transform_1(%arg0: i32) -> (i32, i32) {
    %c0_i32 = arith.constant 0 : i32
    %c0_i32_0 = arith.constant 0 : i32
    %c0_i32_1 = arith.constant 0 : i32
    return %c0_i32, %c0_i32_0 : i32, i32
  }
  func.func @transform_2(%arg0: i32) -> (i32, i32) {
    %c0_i32 = arith.constant 0 : i32
    %c0_i32_0 = arith.constant 0 : i32
    %c0_i32_1 = arith.constant 0 : i32
    return %c0_i32, %c0_i32_0 : i32, i32
  }
  func.func @transform_3(%arg0: i32) -> (i32, i32) {
    %c0_i32 = arith.constant 0 : i32
    %c0_i32_0 = arith.constant 0 : i32
    %c0_i32_1 = arith.constant 0 : i32
    return %c0_i32, %c0_i32_0 : i32, i32
  }
  func.func @transform_4(%arg0: i32) -> (i32, i32) {
    %c0_i32 = arith.constant 0 : i32
    %c0_i32_0 = arith.constant 0 : i32
    %c0_i32_1 = arith.constant 0 : i32
    return %c0_i32, %c0_i32_0 : i32, i32
  }
  func.func @transform_5(%arg0: i32) -> (i32, i32) {
    %c0_i32 = arith.constant 0 : i32
    %c0_i32_0 = arith.constant 0 : i32
    %c0_i32_1 = arith.constant 0 : i32
    return %c0_i32, %c0_i32_0 : i32, i32
  }
  func.func @transform_6(%arg0: i32) -> (i32, i32) {
    %c0_i32 = arith.constant 0 : i32
    %c0_i32_0 = arith.constant 0 : i32
    %c0_i32_1 = arith.constant 0 : i32
    return %c0_i32, %c0_i32_0 : i32, i32
  }
  func.func @transform_7(%arg0: i32) -> (i32, i32, i32) {
    %c0_i32 = arith.constant 0 : i32
    %c0_i32_0 = arith.constant 0 : i32
    %c0_i32_1 = arith.constant 0 : i32
    return %arg0, %c0_i32, %c0_i32_0 : i32, i32, i32
  }
}

</mosaic_0001>

<llo_original>
// kernel: baseline_v1_forward.1
$region0: #{baseline_v1_forward.1}
  #allocation0 [shape = 'u32[]', space=smem, size = 0x4, offset = 0x4, fixed_abs, tag = 'smem constant byte address 0x4 - core index']
  #allocation1 [shape = 'u32[144,128]{1,0:T(1,128)}', space=vmem, size = 0x12000, scoped, tag = 'internal scratch']
  #allocation2 [shape = 'f32[18,18,4]{2,1,0:T(8,128)}', space=vmem, size = 0x36000, scoped, tag = 'scratch operand']
  #allocation3 [shape = 'f32[18,18,16]{2,1,0:T(8,128)}', space=vmem, size = 0x36000, scoped, tag = 'scratch operand']
  %s0 = inlined_call_operand.vmem [shape: f32[2,16,16,4], index: 0, kind: input, shape index: {}]
  %s1 = inlined_call_operand.vmem [shape: f32[36,16], index: 1, kind: input, shape index: {}]
  %s2 = inlined_call_operand.vmem [shape: f32[1,16], index: 2, kind: input, shape index: {}]
  %s3 = inlined_call_operand.vmem [shape: f32[144,32], index: 3, kind: input, shape index: {}]
  %s4 = inlined_call_operand.vmem [shape: f32[1,32], index: 4, kind: input, shape index: {}]
  %s5 = inlined_call_operand.vmem [shape: f32[32,80], index: 5, kind: input, shape index: {}]
  %s6 = inlined_call_operand.vmem [shape: f32[1,80], index: 6, kind: input, shape index: {}]
  %s7 = inlined_call_operand.hbm [shape: f32[2,1,80], index: 7, kind: output, shape index: {}]
  %s8 = sld [smem:[#allocation0]]
  $region61: #{baseline_v1_forward.1} parent=0
    _
  %s10 = ssub.s32 1, %s8
  %s11 = scalar_select 0, %s10, %s8
  $region1: #{baseline_v1_forward.1} parent=0
    #allocation4 [shape = 'u8[1024]{0}', space=vmem, size = 0x400, scoped, tag = 'output window, operand 0']
    #allocation5 [shape = 's32[2]{0}', space=sflag, size = 0x8, scoped, tag = 'scoped memory for baseline_v1_forward.1']
    %12 = vsyncpa [#allocation5], 0
    %s13 = scalar_lea.sflag [#allocation5], 1
    %14 = vsyncpa %s13, 0
    loop: start=0, step=1, limit=4
    $region2: #{baseline_v1_forward.1} parent=1 // loop_pre_header
      _
    $region3: #{baseline_v1_forward.1} parent=1 // loop_header
      %s16 = sphi 0, %s20
      %p17 = scmp.ge.s32.totalorder %s16, 4
      %s26 = sphi 0, %s28
      %s29 = sphi 0, %s26
      %s30 = sphi 0, %s29
      %s46 = sphi 0, %s30
      %s50 = sphi 0, %s50
      %s52 = sphi 0, %s50
      %s53 = sphi 0, %s52
      %s67 = sphi 0, %s53
      %s71 = sphi 0, %s71
      %s73 = sphi 0, %s71
      %s74 = sphi 0, %s73
      %s88 = sphi 0, %s74
      %s92 = sphi 0, %s92
      %s94 = sphi 0, %s92
      %s95 = sphi 0, %s94
      %s109 = sphi 0, %s95
      %s113 = sphi 0, %s113
      %s115 = sphi 0, %s113
      %s116 = sphi 0, %s115
      %s130 = sphi 0, %s116
      %s134 = sphi 0, %s134
      %s136 = sphi 0, %s134
      %s137 = sphi 0, %s136
      %s151 = sphi 0, %s137
      %s155 = sphi 0, %s155
      %s157 = sphi 0, %s155
      %s158 = sphi 0, %s157
      %s172 = sphi 0, %s158
      %s178 = sphi 0, %s180
      %s181 = sphi 0, %s178
      %s182 = sphi 0, %s181
      %s198 = sphi 0, %s182
    $region4: #{baseline_v1_forward.1} parent=1 // loop_header_branch
      %19 = sbr.rel (%p17) target = $region8
    $region5: #{baseline_v1_forward.1} parent=1 // loop_body
      %s21 = ssub.s32 %s16, 1
      %s22 = ssub.s32 %s16, 2
      %s23 = sadd.s32 %s16, 1
      %s24 = ssub.s32 %s16, %s23
      %p25 = scmp.eq.s32.totalorder %s24, 0
      %s27 = sadd.s32 %s26, 1
      %s28 = scalar_select %p25, %s26, %s27
      %p31 = pneg %p25
      %p32 = scmp.eq.s32.totalorder %s16, 1
      %p33 = por %p31, %p32
      %p34 = scmp.ne.s32.totalorder %s26, %s29
      %p35 = scmp.eq.s32.totalorder %s16, 0
      %p36 = por %p34, %p35
      %p37 = scmp.ne.s32.totalorder %s26, %s29
      %p38 = scmp.eq.s32.totalorder %s21, 1
      %p39 = por %p37, %p38
      %p40 = scmp.ne.s32.totalorder %s29, %s30
      %p41 = scmp.eq.s32.totalorder %s21, 0
      %p42 = por %p40, %p41
      %p43 = scmp.ne.s32.totalorder %s29, %s30
      %p44 = scmp.eq.s32.totalorder %s22, 1
      %p45 = por %p43, %p44
      %p47 = scmp.ne.s32.totalorder %s30, %s46
      %p48 = scmp.eq.s32.totalorder %s22, 0
      %p49 = por %p47, %p48
      %s51 = sadd.s32 %s50, 1
      %p54 = scmp.eq.s32.totalorder %s16, 1
      %p55 = scmp.ne.s32.totalorder %s50, %s52
      %p56 = scmp.eq.s32.totalorder %s16, 0
      %p57 = por %p55, %p56
      %p58 = scmp.ne.s32.totalorder %s50, %s52
      %p59 = scmp.eq.s32.totalorder %s21, 1
      %p60 = por %p58, %p59
      %p61 = scmp.ne.s32.totalorder %s52, %s53
      %p62 = scmp.eq.s32.totalorder %s21, 0
      %p63 = por %p61, %p62
      %p64 = scmp.ne.s32.totalorder %s52, %s53
      %p65 = scmp.eq.s32.totalorder %s22, 1
      %p66 = por %p64, %p65
      %p68 = scmp.ne.s32.totalorder %s53, %s67
      %p69 = scmp.eq.s32.totalorder %s22, 0
      %p70 = por %p68, %p69
      %s72 = sadd.s32 %s71, 1
      %p75 = scmp.eq.s32.totalorder %s16, 1
      %p76 = scmp.ne.s32.totalorder %s71, %s73
      %p77 = scmp.eq.s32.totalorder %s16, 0
      %p78 = por %p76, %p77
      %p79 = scmp.ne.s32.totalorder %s71, %s73
      %p80 = scmp.eq.s32.totalorder %s21, 1
      %p81 = por %p79, %p80
      %p82 = scmp.ne.s32.totalorder %s73, %s74
      %p83 = scmp.eq.s32.totalorder %s21, 0
      %p84 = por %p82, %p83
      %p85 = scmp.ne.s32.totalorder %s73, %s74
      %p86 = scmp.eq.s32.totalorder %s22, 1
      %p87 = por %p85, %p86
      %p89 = scmp.ne.s32.totalorder %s74, %s88
      %p90 = scmp.eq.s32.totalorder %s22, 0
      %p91 = por %p89, %p90
      %s93 = sadd.s32 %s92, 1
      %p96 = scmp.eq.s32.totalorder %s16, 1
      %p97 = scmp.ne.s32.totalorder %s92, %s94
      %p98 = scmp.eq.s32.totalorder %s16, 0
      %p99 = por %p97, %p98
      %p100 = scmp.ne.s32.totalorder %s92, %s94
      %p101 = scmp.eq.s32.totalorder %s21, 1
      %p102 = por %p100, %p101
      %p103 = scmp.ne.s32.totalorder %s94, %s95
      %p104 = scmp.eq.s32.totalorder %s21, 0
      %p105 = por %p103, %p104
      %p106 = scmp.ne.s32.totalorder %s94, %s95
      %p107 = scmp.eq.s32.totalorder %s22, 1
      %p108 = por %p106, %p107
      %p110 = scmp.ne.s32.totalorder %s95, %s109
      %p111 = scmp.eq.s32.totalorder %s22, 0
      %p112 = por %p110, %p111
      %s114 = sadd.s32 %s113, 1
      %p117 = scmp.eq.s32.totalorder %s16, 1
      %p118 = scmp.ne.s32.totalorder %s113, %s115
      %p119 = scmp.eq.s32.totalorder %s16, 0
      %p120 = por %p118, %p119
      %p121 = scmp.ne.s32.totalorder %s113, %s115
      %p122 = scmp.eq.s32.totalorder %s21, 1
      %p123 = por %p121, %p122
      %p124 = scmp.ne.s32.totalorder %s115, %s116
      %p125 = scmp.eq.s32.totalorder %s21, 0
      %p126 = por %p124, %p125
      %p127 = scmp.ne.s32.totalorder %s115, %s116
      %p128 = scmp.eq.s32.totalorder %s22, 1
      %p129 = por %p127, %p128
      %p131 = scmp.ne.s32.totalorder %s116, %s130
      %p132 = scmp.eq.s32.totalorder %s22, 0
      %p133 = por %p131, %p132
      %s135 = sadd.s32 %s134, 1
      %p138 = scmp.eq.s32.totalorder %s16, 1
      %p139 = scmp.ne.s32.totalorder %s134, %s136
      %p140 = scmp.eq.s32.totalorder %s16, 0
      %p141 = por %p139, %p140
      %p142 = scmp.ne.s32.totalorder %s134, %s136
      %p143 = scmp.eq.s32.totalorder %s21, 1
      %p144 = por %p142, %p143
      %p145 = scmp.ne.s32.totalorder %s136, %s137
      %p146 = scmp.eq.s32.totalorder %s21, 0
      %p147 = por %p145, %p146
      %p148 = scmp.ne.s32.totalorder %s136, %s137
      %p149 = scmp.eq.s32.totalorder %s22, 1
      %p150 = por %p148, %p149
      %p152 = scmp.ne.s32.totalorder %s137, %s151
      %p153 = scmp.eq.s32.totalorder %s22, 0
      %p154 = por %p152, %p153
      %s156 = sadd.s32 %s155, 1
      %p159 = scmp.eq.s32.totalorder %s16, 1
      %p160 = scmp.ne.s32.totalorder %s155, %s157
      %p161 = scmp.eq.s32.totalorder %s16, 0
      %p162 = por %p160, %p161
      %p163 = scmp.ne.s32.totalorder %s155, %s157
      %p164 = scmp.eq.s32.totalorder %s21, 1
      %p165 = por %p163, %p164
      %p166 = scmp.ne.s32.totalorder %s157, %s158
      %p167 = scmp.eq.s32.totalorder %s21, 0
      %p168 = por %p166, %p167
      %p169 = scmp.ne.s32.totalorder %s157, %s158
      %p170 = scmp.eq.s32.totalorder %s22, 1
      %p171 = por %p169, %p170
      %p173 = scmp.ne.s32.totalorder %s158, %s172
      %p174 = scmp.eq.s32.totalorder %s22, 0
      %p175 = por %p173, %p174
      %s176 = ssub.s32 %s16, %s23
      %p177 = scmp.eq.s32.totalorder %s176, 0
      %s179 = sadd.s32 %s178, 1
      %s180 = scalar_select %p177, %s178, %s179
      %p183 = pneg %p177
      %p184 = scmp.eq.s32.totalorder %s16, 1
      %p185 = por %p183, %p184
      %p186 = scmp.ne.s32.totalorder %s178, %s181
      %p187 = scmp.eq.s32.totalorder %s16, 0
      %p188 = por %p186, %p187
      %p189 = scmp.ne.s32.totalorder %s178, %s181
      %p190 = scmp.eq.s32.totalorder %s21, 1
      %p191 = por %p189, %p190
      %p192 = scmp.ne.s32.totalorder %s181, %s182
      %p193 = scmp.eq.s32.totalorder %s21, 0
      %p194 = por %p192, %p193
      %p195 = scmp.ne.s32.totalorder %s181, %s182
      %p196 = scmp.eq.s32.totalorder %s22, 1
      %p197 = por %p195, %p196
      %p199 = scmp.ne.s32.totalorder %s182, %s198
      %p200 = scmp.eq.s32.totalorder %s22, 0
      %p201 = por %p199, %p200
      %p202 = scmp.le.s32.totalorder 1, %s16
      %p203 = scmp.lt.s32.totalorder %s16, 3
      %p204 = pnand %p202, %p203
      %p205 = pneg %p204
      // Predicated region
      $region9: #{baseline_v1_forward.1} parent=5 // pred_check
        _
      $region10: #{baseline_v1_forward.1} parent=5 // pred_check_branch
        %207 = sbr.rel (%p204) target = $region12
      $region11: #{baseline_v1_forward.1} parent=5 // pred_region
        %s208 = ssub.s32 %s16, 1
        // Predicated region
        $region13: #{baseline_v1_forward.1} parent=11 // pred_check
          %p209 = pneg %p63
        $region14: #{baseline_v1_forward.1} parent=11 // pred_check_branch
          %211 = sbr.rel (%p209) target = $region16
        $region15: #{baseline_v1_forward.1} parent=11 // pred_region
          _
        $region16: #{baseline_v1_forward.1} parent=11 // pred_fallthru
          _
        // Predicated region
        $region17: #{baseline_v1_forward.1} parent=11 // pred_check
          %p212 = pneg %p84
        $region18: #{baseline_v1_forward.1} parent=11 // pred_check_branch
          %214 = sbr.rel (%p212) target = $region20
        $region19: #{baseline_v1_forward.1} parent=11 // pred_region
          _
        $region20: #{baseline_v1_forward.1} parent=11 // pred_fallthru
          _
        // Predicated region
        $region21: #{baseline_v1_forward.1} parent=11 // pred_check
          %p215 = pneg %p105
        $region22: #{baseline_v1_forward.1} parent=11 // pred_check_branch
          %217 = sbr.rel (%p215) target = $region24
        $region23: #{baseline_v1_forward.1} parent=11 // pred_region
          _
        $region24: #{baseline_v1_forward.1} parent=11 // pred_fallthru
          _
        // Predicated region
        $region25: #{baseline_v1_forward.1} parent=11 // pred_check
          %p218 = pneg %p126
        $region26: #{baseline_v1_forward.1} parent=11 // pred_check_branch
          %220 = sbr.rel (%p218) target = $region28
        $region27: #{baseline_v1_forward.1} parent=11 // pred_region
          _
        $region28: #{baseline_v1_forward.1} parent=11 // pred_fallthru
          _
        // Predicated region
        $region29: #{baseline_v1_forward.1} parent=11 // pred_check
          %p221 = pneg %p147
        $region30: #{baseline_v1_forward.1} parent=11 // pred_check_branch
          %223 = sbr.rel (%p221) target = $region32
        $region31: #{baseline_v1_forward.1} parent=11 // pred_region
          _
        $region32: #{baseline_v1_forward.1} parent=11 // pred_fallthru
          _
        // Predicated region
        $region33: #{baseline_v1_forward.1} parent=11 // pred_check
          %p224 = pneg %p168
        $region34: #{baseline_v1_forward.1} parent=11 // pred_check_branch
          %226 = sbr.rel (%p224) target = $region36
        $region35: #{baseline_v1_forward.1} parent=11 // pred_region
          _
        $region36: #{baseline_v1_forward.1} parent=11 // pred_fallthru
          _
      $region12: #{baseline_v1_forward.1} parent=5 // pred_fallthru
        _
      %p227 = scmp.lt.s32.totalorder %s16, 2
      // Predicated region
      $region37: #{baseline_v1_forward.1} parent=5 // pred_check
        %p228 = pneg %p227
      $region38: #{baseline_v1_forward.1} parent=5 // pred_check_branch
        %230 = sbr.rel (%p228) target = $region40
      $region39: #{baseline_v1_forward.1} parent=5 // pred_region
        // Predicated region
        $region41: #{baseline_v1_forward.1} parent=39 // pred_check
          %p231 = pneg %p36
        $region42: #{baseline_v1_forward.1} parent=39 // pred_check_branch
          %233 = sbr.rel (%p231) target = $region44
        $region43: #{baseline_v1_forward.1} parent=39 // pred_region
          %p234 = scmp.lt.s32.totalorder %s16, 1
          %s235 = scalar_select %p234, %s16, 1
          %s236 = smul.addr %s235, 32
          %s237 = smul.addr %s236, 8
          %s238 = scalar_lea.vmem %s0, %s237
        $region44: #{baseline_v1_forward.1} parent=39 // pred_fallthru
          _
      $region40: #{baseline_v1_forward.1} parent=5 // pred_fallthru
        _
      %p239 = scmp.le.s32.totalorder 1, %s16
      %p240 = scmp.lt.s32.totalorder %s16, 3
      %p241 = pnand %p239, %p240
      %p242 = pneg %p241
      // Predicated region
      $region45: #{baseline_v1_forward.1} parent=5 // pred_check
        _
      $region46: #{baseline_v1_forward.1} parent=5 // pred_check_branch
        %244 = sbr.rel (%p241) target = $region48
      $region47: #{baseline_v1_forward.1} parent=5 // pred_region
        %s245 = ssub.s32 %s16, 1
        %p246 = scmp.lt.s32.totalorder %s21, 1
        %s247 = scalar_select %p246, %s21, 1
        %s248 = smul.addr %s247, 32
        %s249 = smul.addr %s248, 8
        %s250 = scalar_lea.vmem %s0, %s249
        %p251 = pneg %p42
        %p252 = pneg %p39
        %p253 = pneg %p63
        %p254 = pneg %p60
        %p255 = pneg %p84
        %p256 = pneg %p81
        %p257 = pneg %p105
        %p258 = pneg %p102
        %p259 = pneg %p126
        %p260 = pneg %p123
        %p261 = pneg %p147
        %p262 = pneg %p144
        %p263 = pneg %p168
        %p264 = pneg %p165
        %p265 = pneg %p194
        %p266 = pneg %p191
        %s267 = sand.u32 %s181, 1
        %s268 = scalar_lea.sflag [#allocation5], %s267
        %s269 = sand.u32 %s181, 1
        %s270 = scalar_lea.vmem [#allocation4], %s269
        %p271 = scmp.lt.s32.totalorder %s21, 1
        %s272 = scalar_select %p271, %s21, 1
        %s273 = smul.addr %s272, 32
        %s274 = smul.addr %s273, 8
        %s275 = scalar_lea.vmem %s0, %s274
        %vm276 = vcmask 31744
        %277 = vst.msk [vmem:[#allocation2] sm:$0xff] %vm276, 0.0
        %278 = vst.msk [vmem:[#allocation2 + $0x8] sm:$0xff] %vm276, 0.0
        %vm279 = vcmask 25600
        %280 = vst.msk [vmem:[#allocation2 + $0x10] sm:$0x3] %vm279, 0.0
        %281 = vst.msk [vmem:[#allocation2 + $0x18] sm:$0xff] %vm276, 0.0
        %282 = vst.msk [vmem:[#allocation2 + $0x20] sm:$0xff] %vm276, 0.0
        %283 = vst.msk [vmem:[#allocation2 + $0x28] sm:$0x3] %vm279, 0.0
        %284 = vst.msk [vmem:[#allocation2 + $0x30] sm:$0xff] %vm276, 0.0
        %285 = vst.msk [vmem:[#allocation2 + $0x38] sm:$0xff] %vm276, 0.0
        %286 = vst.msk [vmem:[#allocation2 + $0x40] sm:$0x3] %vm279, 0.0
        %287 = vst.msk [vmem:[#allocation2 + $0x48] sm:$0xff] %vm276, 0.0
        %288 = vst.msk [vmem:[#allocation2 + $0x50] sm:$0xff] %vm276, 0.0
        %289 = vst.msk [vmem:[#allocation2 + $0x58] sm:$0x3] %vm279, 0.0
        %290 = vst.msk [vmem:[#allocation2 + $0x60] sm:$0xff] %vm276, 0.0
        %291 = vst.msk [vmem:[#allocation2 + $0x68] sm:$0xff] %vm276, 0.0
        %292 = vst.msk [vmem:[#allocation2 + $0x70] sm:$0x3] %vm279, 0.0
        %293 = vst.msk [vmem:[#allocation2 + $0x78] sm:$0xff] %vm276, 0.0
        %294 = vst.msk [vmem:[#allocation2 + $0x80] sm:$0xff] %vm276, 0.0
        %295 = vst.msk [vmem:[#allocation2 + $0x88] sm:$0x3] %vm279, 0.0
        %296 = vst.msk [vmem:[#allocation2 + $0x90] sm:$0xff] %vm276, 0.0
        %297 = vst.msk [vmem:[#allocation2 + $0x98] sm:$0xff] %vm276, 0.0
        %298 = vst.msk [vmem:[#allocation2 + $0xa0] sm:$0x3] %vm279, 0.0
        %299 = vst.msk [vmem:[#allocation2 + $0xa8] sm:$0xff] %vm276, 0.0
        %300 = vst.msk [vmem:[#allocation2 + $0xb0] sm:$0xff] %vm276, 0.0
        %301 = vst.msk [vmem:[#allocation2 + $0xb8] sm:$0x3] %vm279, 0.0
        %302 = vst.msk [vmem:[#allocation2 + $0xc0] sm:$0xff] %vm276, 0.0
        %303 = vst.msk [vmem:[#allocation2 + $0xc8] sm:$0xff] %vm276, 0.0
        %304 = vst.msk [vmem:[#allocation2 + $0xd0] sm:$0x3] %vm279, 0.0
        %305 = vst.msk [vmem:[#allocation2 + $0xd8] sm:$0xff] %vm276, 0.0
        %306 = vst.msk [vmem:[#allocation2 + $0xe0] sm:$0xff] %vm276, 0.0
        %307 = vst.msk [vmem:[#allocation2 + $0xe8] sm:$0x3] %vm279, 0.0
        %308 = vst.msk [vmem:[#allocation2 + $0xf0] sm:$0xff] %vm276, 0.0
        %309 = vst.msk [vmem:[#allocation2 + $0xf8] sm:$0xff] %vm276, 0.0
        %310 = vst.msk [vmem:[#allocation2 + $0x100] sm:$0x3] %vm279, 0.0
        %311 = vst.msk [vmem:[#allocation2 + $0x108] sm:$0xff] %vm276, 0.0
        %312 = vst.msk [vmem:[#allocation2 + $0x110] sm:$0xff] %vm276, 0.0
        %313 = vst.msk [vmem:[#allocation2 + $0x118] sm:$0x3] %vm279, 0.0
        %314 = vst.msk [vmem:[#allocation2 + $0x120] sm:$0xff] %vm276, 0.0
        %315 = vst.msk [vmem:[#allocation2 + $0x128] sm:$0xff] %vm276, 0.0
        %316 = vst.msk [vmem:[#allocation2 + $0x130] sm:$0x3] %vm279, 0.0
        %317 = vst.msk [vmem:[#allocation2 + $0x138] sm:$0xff] %vm276, 0.0
        %318 = vst.msk [vmem:[#allocation2 + $0x140] sm:$0xff] %vm276, 0.0
        %319 = vst.msk [vmem:[#allocation2 + $0x148] sm:$0x3] %vm279, 0.0
        %320 = vst.msk [vmem:[#allocation2 + $0x150] sm:$0xff] %vm276, 0.0
        %321 = vst.msk [vmem:[#allocation2 + $0x158] sm:$0xff] %vm276, 0.0
        %322 = vst.msk [vmem:[#allocation2 + $0x160] sm:$0x3] %vm279, 0.0
        %323 = vst.msk [vmem:[#allocation2 + $0x168] sm:$0xff] %vm276, 0.0
        %324 = vst.msk [vmem:[#allocation2 + $0x170] sm:$0xff] %vm276, 0.0
        %325 = vst.msk [vmem:[#allocation2 + $0x178] sm:$0x3] %vm279, 0.0
        %326 = vst.msk [vmem:[#allocation2 + $0x180] sm:$0xff] %vm276, 0.0
        %327 = vst.msk [vmem:[#allocation2 + $0x188] sm:$0xff] %vm276, 0.0
        %328 = vst.msk [vmem:[#allocation2 + $0x190] sm:$0x3] %vm279, 0.0
        %329 = vst.msk [vmem:[#allocation2 + $0x198] sm:$0xff] %vm276, 0.0
        %330 = vst.msk [vmem:[#allocation2 + $0x1a0] sm:$0xff] %vm276, 0.0
        %331 = vst.msk [vmem:[#allocation2 + $0x1a8] sm:$0x3] %vm279, 0.0
        %v332 = vld [vmem:[%s275] sm:$0xff]
        %v333 = vld [vmem:[%s275 + $0x8] sm:$0xff]
        %v334 = vld [vmem:[%s275 + $0x10] sm:$0xff]
        %v335 = vld [vmem:[%s275 + $0x18] sm:$0xff]
        %v336 = vld [vmem:[%s275 + $0x20] sm:$0xff]
        %v337 = vld [vmem:[%s275 + $0x28] sm:$0xff]
        %v338 = vld [vmem:[%s275 + $0x30] sm:$0xff]
        %v339 = vld [vmem:[%s275 + $0x38] sm:$0xff]
        %v340 = vld [vmem:[%s275 + $0x40] sm:$0xff]
        %v341 = vld [vmem:[%s275 + $0x48] sm:$0xff]
        %v342 = vld [vmem:[%s275 + $0x50] sm:$0xff]
        %v343 = vld [vmem:[%s275 + $0x58] sm:$0xff]
        %v344 = vld [vmem:[%s275 + $0x60] sm:$0xff]
        %v345 = vld [vmem:[%s275 + $0x68] sm:$0xff]
        %v346 = vld [vmem:[%s275 + $0x70] sm:$0xff]
        %v347 = vld [vmem:[%s275 + $0x78] sm:$0xff]
        %v348 = vld [vmem:[%s275 + $0x80] sm:$0xff]
        %v349 = vld [vmem:[%s275 + $0x88] sm:$0xff]
        %v350 = vld [vmem:[%s275 + $0x90] sm:$0xff]
        %v351 = vld [vmem:[%s275 + $0x98] sm:$0xff]
        %v352 = vld [vmem:[%s275 + $0xa0] sm:$0xff]
        %v353 = vld [vmem:[%s275 + $0xa8] sm:$0xff]
        %v354 = vld [vmem:[%s275 + $0xb0] sm:$0xff]
        %v355 = vld [vmem:[%s275 + $0xb8] sm:$0xff]
        %v356 = vld [vmem:[%s275 + $0xc0] sm:$0xff]
        %v357 = vld [vmem:[%s275 + $0xc8] sm:$0xff]
        %v358 = vld [vmem:[%s275 + $0xd0] sm:$0xff]
        %v359 = vld [vmem:[%s275 + $0xd8] sm:$0xff]
        %v360 = vld [vmem:[%s275 + $0xe0] sm:$0xff]
        %v361 = vld [vmem:[%s275 + $0xe8] sm:$0xff]
        %v362 = vld [vmem:[%s275 + $0xf0] sm:$0xff]
        %v363 = vld [vmem:[%s275 + $0xf8] sm:$0xff]
        %s364 = scalar_lea.vmem [#allocation2], 24
        %365 = vst.msk [vmem:[%s364 + $0x1] sm:$0xff] %vm276, %v332
        %366 = vst.msk [vmem:[%s364 + $0x9] sm:$0xff] %vm276, %v333
        %367 = vst.msk [vmem:[%s364 + $0x19] sm:$0xff] %vm276, %v334
        %368 = vst.msk [vmem:[%s364 + $0x21] sm:$0xff] %vm276, %v335
        %369 = vst.msk [vmem:[%s364 + $0x31] sm:$0xff] %vm276, %v336
        %370 = vst.msk [vmem:[%s364 + $0x39] sm:$0xff] %vm276, %v337
        %371 = vst.msk [vmem:[%s364 + $0x49] sm:$0xff] %vm276, %v338
        %372 = vst.msk [vmem:[%s364 + $0x51] sm:$0xff] %vm276, %v339
        %373 = vst.msk [vmem:[%s364 + $0x61] sm:$0xff] %vm276, %v340
        %374 = vst.msk [vmem:[%s364 + $0x69] sm:$0xff] %vm276, %v341
        %375 = vst.msk [vmem:[%s364 + $0x79] sm:$0xff] %vm276, %v342
        %376 = vst.msk [vmem:[%s364 + $0x81] sm:$0xff] %vm276, %v343
        %377 = vst.msk [vmem:[%s364 + $0x91] sm:$0xff] %vm276, %v344
        %378 = vst.msk [vmem:[%s364 + $0x99] sm:$0xff] %vm276, %v345
        %379 = vst.msk [vmem:[%s364 + $0xa9] sm:$0xff] %vm276, %v346
        %380 = vst.msk [vmem:[%s364 + $0xb1] sm:$0xff] %vm276, %v347
        %381 = vst.msk [vmem:[%s364 + $0xc1] sm:$0xff] %vm276, %v348
        %382 = vst.msk [vmem:[%s364 + $0xc9] sm:$0xff] %vm276, %v349
        %383 = vst.msk [vmem:[%s364 + $0xd9] sm:$0xff] %vm276, %v350
        %384 = vst.msk [vmem:[%s364 + $0xe1] sm:$0xff] %vm276, %v351
        %385 = vst.msk [vmem:[%s364 + $0xf1] sm:$0xff] %vm276, %v352
        %386 = vst.msk [vmem:[%s364 + $0xf9] sm:$0xff] %vm276, %v353
        %387 = vst.msk [vmem:[%s364 + $0x109] sm:$0xff] %vm276, %v354
        %388 = vst.msk [vmem:[%s364 + $0x111] sm:$0xff] %vm276, %v355
        %389 = vst.msk [vmem:[%s364 + $0x121] sm:$0xff] %vm276, %v356
        %390 = vst.msk [vmem:[%s364 + $0x129] sm:$0xff] %vm276, %v357
        %391 = vst.msk [vmem:[%s364 + $0x139] sm:$0xff] %vm276, %v358
        %392 = vst.msk [vmem:[%s364 + $0x141] sm:$0xff] %vm276, %v359
        %393 = vst.msk [vmem:[%s364 + $0x151] sm:$0xff] %vm276, %v360
        %394 = vst.msk [vmem:[%s364 + $0x159] sm:$0xff] %vm276, %v361
        %395 = vst.msk [vmem:[%s364 + $0x169] sm:$0xff] %vm276, %v362
        %396 = vst.msk [vmem:[%s364 + $0x171] sm:$0xff] %vm276, %v363
        %v397 = vld [vmem:[#allocation2] sm:$0xff]
        %v398 = vld [vmem:[#allocation2 + $0x8] sm:$0xff]
        %v399 = vld [vmem:[#allocation2 + $0x18] sm:$0xff]
        %v400 = vld [vmem:[#allocation2 + $0x20] sm:$0xff]
        %v401 = vld [vmem:[#allocation2 + $0x30] sm:$0xff]
        %v402 = vld [vmem:[#allocation2 + $0x38] sm:$0xff]
        %v403 = vld [vmem:[#allocation2 + $0x48] sm:$0xff]
        %v404 = vld [vmem:[#allocation2 + $0x50] sm:$0xff]
        %v405 = vld [vmem:[#allocation2 + $0x60] sm:$0xff]
        %v406 = vld [vmem:[#allocation2 + $0x68] sm:$0xff]
        %v407 = vld [vmem:[#allocation2 + $0x78] sm:$0xff]
        %v408 = vld [vmem:[#allocation2 + $0x80] sm:$0xff]
        %v409 = vld [vmem:[#allocation2 + $0x90] sm:$0xff]
        %v410 = vld [vmem:[#allocation2 + $0x98] sm:$0xff]
        %v411 = vld [vmem:[#allocation2 + $0xa8] sm:$0xff]
        %v412 = vld [vmem:[#allocation2 + $0xb0] sm:$0xff]
        %v413 = vld [vmem:[#allocation2 + $0xc0] sm:$0xff]
        %v414 = vld [vmem:[#allocation2 + $0xc8] sm:$0xff]
        %v415 = vld [vmem:[#allocation2 + $0xd8] sm:$0xff]
        %v416 = vld [vmem:[#allocation2 + $0xe0] sm:$0xff]
        %v417 = vld [vmem:[#allocation2 + $0xf0] sm:$0xff]
        %v418 = vld [vmem:[#allocation2 + $0xf8] sm:$0xff]
        %v419 = vld [vmem:[#allocation2 + $0x108] sm:$0xff]
        %v420 = vld [vmem:[#allocation2 + $0x110] sm:$0xff]
        %v421 = vld [vmem:[#allocation2 + $0x120] sm:$0xff]
        %v422 = vld [vmem:[#allocation2 + $0x128] sm:$0xff]
        %v423 = vld [vmem:[#allocation2 + $0x138] sm:$0xff]
        %v424 = vld [vmem:[#allocation2 + $0x140] sm:$0xff]
        %v425 = vld [vmem:[#allocation2 + $0x150] sm:$0xff]
        %v426 = vld [vmem:[#allocation2 + $0x158] sm:$0xff]
        %v427 = vld [vmem:[#allocation2 + $0x168] sm:$0xff]
        %v428 = vld [vmem:[#allocation2 + $0x170] sm:$0xff]
        %v429 = vld [vmem:[%s1] sm:$0xf]
        %v430 = vld [vmem:[#allocation2 + $0x1] sm:$0xff]
        %v431 = vld [vmem:[#allocation2 + $0x9] sm:$0xff]
        %v432 = vld [vmem:[#allocation2 + $0x19] sm:$0xff]
        %v433 = vld [vmem:[#allocation2 + $0x21] sm:$0xff]
        %v434 = vld [vmem:[#allocation2 + $0x31] sm:$0xff]
        %v435 = vld [vmem:[#allocation2 + $0x39] sm:$0xff]
        %v436 = vld [vmem:[#allocation2 + $0x49] sm:$0xff]
        %v437 = vld [vmem:[#allocation2 + $0x51] sm:$0xff]
        %v438 = vld [vmem:[#allocation2 + $0x61] sm:$0xff]
        %v439 = vld [vmem:[#allocation2 + $0x69] sm:$0xff]
        %v440 = vld [vmem:[#allocation2 + $0x79] sm:$0xff]
        %v441 = vld [vmem:[#allocation2 + $0x81] sm:$0xff]
        %v442 = vld [vmem:[#allocation2 + $0x91] sm:$0xff]
        %v443 = vld [vmem:[#allocation2 + $0x99] sm:$0xff]
        %v444 = vld [vmem:[#allocation2 + $0xa9] sm:$0xff]
        %v445 = vld [vmem:[#allocation2 + $0xb1] sm:$0xff]
        %v446 = vld [vmem:[#allocation2 + $0xc1] sm:$0xff]
        %v447 = vld [vmem:[#allocation2 + $0xc9] sm:$0xff]
        %v448 = vld [vmem:[#allocation2 + $0xd9] sm:$0xff]
        %v449 = vld [vmem:[#allocation2 + $0xe1] sm:$0xff]
        %v450 = vld [vmem:[#allocation2 + $0xf1] sm:$0xff]
        %v451 = vld [vmem:[#allocation2 + $0xf9] sm:$0xff]
        %v452 = vld [vmem:[#allocation2 + $0x109] sm:$0xff]
        %v453 = vld [vmem:[#allocation2 + $0x111] sm:$0xff]
        %v454 = vld [vmem:[#allocation2 + $0x121] sm:$0xff]
        %v455 = vld [vmem:[#allocation2 + $0x129] sm:$0xff]
        %v456 = vld [vmem:[#allocation2 + $0x139] sm:$0xff]
        %v457 = vld [vmem:[#allocation2 + $0x141] sm:$0xff]
        %v458 = vld [vmem:[#allocation2 + $0x151] sm:$0xff]
        %v459 = vld [vmem:[#allocation2 + $0x159] sm:$0xff]
        %v460 = vld [vmem:[#allocation2 + $0x169] sm:$0xff]
        %v461 = vld [vmem:[#allocation2 + $0x171] sm:$0xff]
        %v462 = vld [vmem:[%s1 + $0x4] sm:$0xf]
        %v464 = vsel %vm276, %v430, 0
        %v467 = vsel %vm276, %v431, 0
        %v470 = vsel %vm276, %v432, 0
        %v473 = vsel %vm276, %v433, 0
        %v476 = vsel %vm276, %v434, 0
        %v479 = vsel %vm276, %v435, 0
        %v482 = vsel %vm276, %v436, 0
        %v485 = vsel %vm276, %v437, 0
        %v488 = vsel %vm276, %v438, 0
        %v491 = vsel %vm276, %v439, 0
        %v494 = vsel %vm276, %v440, 0
        %v497 = vsel %vm276, %v441, 0
        %v500 = vsel %vm276, %v442, 0
        %v503 = vsel %vm276, %v443, 0
        %v506 = vsel %vm276, %v444, 0
        %v509 = vsel %vm276, %v445, 0
        %v512 = vsel %vm276, %v446, 0
        %v515 = vsel %vm276, %v447, 0
        %v518 = vsel %vm276, %v448, 0
        %v521 = vsel %vm276, %v449, 0
        %v524 = vsel %vm276, %v450, 0
        %v527 = vsel %vm276, %v451, 0
        %v530 = vsel %vm276, %v452, 0
        %v533 = vsel %vm276, %v453, 0
        %v536 = vsel %vm276, %v454, 0
        %v539 = vsel %vm276, %v455, 0
        %v542 = vsel %vm276, %v456, 0
        %v545 = vsel %vm276, %v457, 0
        %v548 = vsel %vm276, %v458, 0
        %v551 = vsel %vm276, %v459, 0
        %v554 = vsel %vm276, %v460, 0
        %v557 = vsel %vm276, %v461, 0
        %vm559 = vcmask 1043456
        %v561 = vsel %vm559, %v462, 0
        %563 = vmatprep.subr.mxu0 0.0
        %564 = vmatpush1.msra.mxu0 0.0
        %565 = vmatprep.subr.mxu0 0.0
        %566 = vmatpush1.msra.mxu0 0.0
        %567 = vmatprep.subr.mxu0 0.0
        %568 = vmatpush1.msra.mxu0 0.0
        %569 = vmatprep.subr.mxu0 0.0
        %570 = vmatpush1.msra.mxu0 0.0
        %571 = vmatprep.subr.mxu0 0.0
        %572 = vmatpush1.msra.mxu0 0.0
        %573 = vmatprep.subr.mxu0 0.0
        %574 = vmatpush1.msra.mxu0 0.0
        %575 = vmatprep.subr.mxu0 0.0
        %576 = vmatpush1.msra.mxu0 0.0
        %577 = vmatprep.subr.mxu0 0.0
        %578 = vmatpush1.msra.mxu0 0.0
        %579 = vmatprep.subr.mxu0 0.0
        %580 = vmatpush1.msra.mxu0 0.0
        %581 = vmatprep.subr.mxu0 0.0
        %582 = vmatpush1.msra.mxu0 0.0
        %583 = vmatprep.subr.mxu0 0.0
        %584 = vmatpush1.msra.mxu0 0.0
        %585 = vmatprep.subr.mxu0 0.0
        %586 = vmatpush1.msra.mxu0 0.0
        %587 = vmatprep.subr.mxu0 0.0
        %588 = vmatpush1.msra.mxu0 0.0
        %589 = vmatprep.subr.mxu0 0.0
        %590 = vmatpush1.msra.mxu0 0.0
        %591 = vmatprep.subr.mxu0 0.0
        %592 = vmatpush1.msra.mxu0 0.0
        %593 = vmatprep.subr.mxu0 0.0
        %594 = vmatpush1.msra.mxu0 %v561
        %595 = vmatprep.subr.mxu0 0.0
        %596 = vmatpush2.msra.mxu0 0.0
        %597 = vmatprep.subr.mxu0 0.0
        %598 = vmatpush2.msra.mxu0 0.0
        %599 = vmatprep.subr.mxu0 0.0
        %600 = vmatpush2.msra.mxu0 0.0
        %601 = vmatprep.subr.mxu0 0.0
        %602 = vmatpush2.msra.mxu0 0.0
        %603 = vmatprep.subr.mxu0 0.0
        %604 = vmatpush2.msra.mxu0 0.0
        %605 = vmatprep.subr.mxu0 0.0
        %606 = vmatpush2.msra.mxu0 0.0
        %607 = vmatprep.subr.mxu0 0.0
        %608 = vmatpush2.msra.mxu0 0.0
        %609 = vmatprep.subr.mxu0 0.0
        %610 = vmatpush2.msra.mxu0 0.0
        %611 = vmatprep.subr.mxu0 0.0
        %612 = vmatpush2.msra.mxu0 0.0
        %613 = vmatprep.subr.mxu0 0.0
        %614 = vmatpush2.msra.mxu0 0.0
        %615 = vmatprep.subr.mxu0 0.0
        %616 = vmatpush2.msra.mxu0 0.0
        %617 = vmatprep.subr.mxu0 0.0
        %618 = vmatpush2.msra.mxu0 0.0
        %619 = vmatprep.subr.mxu0 0.0
        %620 = vmatpush2.msra.mxu0 0.0
        %621 = vmatprep.subr.mxu0 0.0
        %622 = vmatpush2.msra.mxu0 0.0
        %623 = vmatprep.subr.mxu0 0.0
        %624 = vmatpush2.msra.mxu0 0.0
        %625 = vmatprep.subr.mxu0 0.0
        %626 = vmatpush2.msra.mxu0 0.0
        %627 = vmatprep.mubr.f32.mxu0 0.0
        %628 = vmatmul.mubr.f32.gmra.mxu0 %v464
        %v629 = vpop.f32.mrf.mxu0
        %v630 = vadd.f32 0.0, %v629
        %v631 = vpop.f32.mrf.mxu0
        %632 = vmatprep.mubr.f32.mxu0 0.0
        %633 = vmatmul.mubr.f32.gmra.mxu0 %v467
        %v634 = vpop.f32.mrf.mxu0
        %v635 = vadd.f32 0.0, %v634
        %v636 = vpop.f32.mrf.mxu0
        %637 = vmatprep.mubr.f32.mxu0 0.0
        %638 = vmatmul.mubr.f32.gmra.mxu0 %v470
        %v639 = vpop.f32.mrf.mxu0
        %v640 = vadd.f32 0.0, %v639
        %v641 = vpop.f32.mrf.mxu0
        %642 = vmatprep.mubr.f32.mxu0 0.0
        %643 = vmatmul.mubr.f32.gmra.mxu0 %v473
        %v644 = vpop.f32.mrf.mxu0
        %v645 = vadd.f32 0.0, %v644
        %v646 = vpop.f32.mrf.mxu0
        %647 = vmatprep.mubr.f32.mxu0 0.0
        %648 = vmatmul.mubr.f32.gmra.mxu0 %v476
        %v649 = vpop.f32.mrf.mxu0
        %v650 = vadd.f32 0.0, %v649
        %v651 = vpop.f32.mrf.mxu0
        %652 = vmatprep.mubr.f32.mxu0 0.0
        %653 = vmatmul.mubr.f32.gmra.mxu0 %v479
        %v654 = vpop.f32.mrf.mxu0
        %v655 = vadd.f32 0.0, %v654
        %v656 = vpop.f32.mrf.mxu0
        %657 = vmatprep.mubr.f32.mxu0 0.0
        %658 = vmatmul.mubr.f32.gmra.mxu0 %v482
        %v659 = vpop.f32.mrf.mxu0
        %v660 = vadd.f32 0.0, %v659
        %v661 = vpop.f32.mrf.mxu0
        %662 = vmatprep.mubr.f32.mxu0 0.0
        %663 = vmatmul.mubr.f32.gmra.mxu0 %v485
        %v664 = vpop.f32.mrf.mxu0
        %v665 = vadd.f32 0.0, %v664
        %v666 = vpop.f32.mrf.mxu0
        %667 = vmatprep.mubr.f32.mxu0 0.0
        %668 = vmatmul.mubr.f32.gmra.mxu0 %v488
        %v669 = vpop.f32.mrf.mxu0
        %v670 = vadd.f32 0.0, %v669
        %v671 = vpop.f32.mrf.mxu0
        %672 = vmatprep.mubr.f32.mxu0 0.0
        %673 = vmatmul.mubr.f32.gmra.mxu0 %v491
        %v674 = vpop.f32.mrf.mxu0
        %v675 = vadd.f32 0.0, %v674
        %v676 = vpop.f32.mrf.mxu0
        %677 = vmatprep.mubr.f32.mxu0 0.0
        %678 = vmatmul.mubr.f32.gmra.mxu0 %v494
        %v679 = vpop.f32.mrf.mxu0
        %v680 = vadd.f32 0.0, %v679
        %v681 = vpop.f32.mrf.mxu0
        %682 = vmatprep.mubr.f32.mxu0 0.0
        %683 = vmatmul.mubr.f32.gmra.mxu0 %v497
        %v684 = vpop.f32.mrf.mxu0
        %v685 = vadd.f32 0.0, %v684
        %v686 = vpop.f32.mrf.mxu0
        %687 = vmatprep.mubr.f32.mxu0 0.0
        %688 = vmatmul.mubr.f32.gmra.mxu0 %v500
        %v689 = vpop.f32.mrf.mxu0
        %v690 = vadd.f32 0.0, %v689
        %v691 = vpop.f32.mrf.mxu0
        %692 = vmatprep.mubr.f32.mxu0 0.0
        %693 = vmatmul.mubr.f32.gmra.mxu0 %v503
        %v694 = vpop.f32.mrf.mxu0
        %v695 = vadd.f32 0.0, %v694
        %v696 = vpop.f32.mrf.mxu0
        %697 = vmatprep.mubr.f32.mxu0 0.0
        %698 = vmatmul.mubr.f32.gmra.mxu0 %v506
        %v699 = vpop.f32.mrf.mxu0
        %v700 = vadd.f32 0.0, %v699
        %v701 = vpop.f32.mrf.mxu0
        %702 = vmatprep.mubr.f32.mxu0 0.0
        %703 = vmatmul.mubr.f32.gmra.mxu0 %v509
        %v704 = vpop.f32.mrf.mxu0
        %v705 = vadd.f32 0.0, %v704
        %v706 = vpop.f32.mrf.mxu0
        %707 = vmatprep.mubr.f32.mxu0 0.0
        %708 = vmatmul.mubr.f32.gmra.mxu0 %v512
        %v709 = vpop.f32.mrf.mxu0
        %v710 = vadd.f32 0.0, %v709
        %v711 = vpop.f32.mrf.mxu0
        %712 = vmatprep.mubr.f32.mxu0 0.0
        %713 = vmatmul.mubr.f32.gmra.mxu0 %v515
        %v714 = vpop.f32.mrf.mxu0
        %v715 = vadd.f32 0.0, %v714
        %v716 = vpop.f32.mrf.mxu0
        %717 = vmatprep.mubr.f32.mxu0 0.0
        %718 = vmatmul.mubr.f32.gmra.mxu0 %v518
        %v719 = vpop.f32.mrf.mxu0
        %v720 = vadd.f32 0.0, %v719
        %v721 = vpop.f32.mrf.mxu0
        %722 = vmatprep.mubr.f32.mxu0 0.0
        %723 = vmatmul.mubr.f32.gmra.mxu0 %v521
        %v724 = vpop.f32.mrf.mxu0
        %v725 = vadd.f32 0.0, %v724
        %v726 = vpop.f32.mrf.mxu0
        %727 = vmatprep.mubr.f32.mxu0 0.0
        %728 = vmatmul.mubr.f32.gmra.mxu0 %v524
        %v729 = vpop.f32.mrf.mxu0
        %v730 = vadd.f32 0.0, %v729
        %v731 = vpop.f32.mrf.mxu0
        %732 = vmatprep.mubr.f32.mxu0 0.0
        %733 = vmatmul.mubr.f32.gmra.mxu0 %v527
        %v734 = vpop.f32.mrf.mxu0
        %v735 = vadd.f32 0.0, %v734
        %v736 = vpop.f32.mrf.mxu0
        %737 = vmatprep.mubr.f32.mxu0 0.0
        %738 = vmatmul.mubr.f32.gmra.mxu0 %v530
        %v739 = vpop.f32.mrf.mxu0
        %v740 = vadd.f32 0.0, %v739
        %v741 = vpop.f32.mrf.mxu0
        %742 = vmatprep.mubr.f32.mxu0 0.0
        %743 = vmatmul.mubr.f32.gmra.mxu0 %v533
        %v744 = vpop.f32.mrf.mxu0
        %v745 = vadd.f32 0.0, %v744
        %v746 = vpop.f32.mrf.mxu0
        %747 = vmatprep.mubr.f32.mxu0 0.0
        %748 = vmatmul.mubr.f32.gmra.mxu0 %v536
        %v749 = vpop.f32.mrf.mxu0
        %v750 = vadd.f32 0.0, %v749
        %v751 = vpop.f32.mrf.mxu0
        %752 = vmatprep.mubr.f32.mxu0 0.0
        %753 = vmatmul.mubr.f32.gmra.mxu0 %v539
        %v754 = vpop.f32.mrf.mxu0
        %v755 = vadd.f32 0.0, %v754
        %v756 = vpop.f32.mrf.mxu0
        %757 = vmatprep.mubr.f32.mxu0 0.0
        %758 = vmatmul.mubr.f32.gmra.mxu0 %v542
        %v759 = vpop.f32.mrf.mxu0
        %v760 = vadd.f32 0.0, %v759
        %v761 = vpop.f32.mrf.mxu0
        %762 = vmatprep.mubr.f32.mxu0 0.0
        %763 = vmatmul.mubr.f32.gmra.mxu0 %v545
        %v764 = vpop.f32.mrf.mxu0
        %v765 = vadd.f32 0.0, %v764
        %v766 = vpop.f32.mrf.mxu0
        %767 = vmatprep.mubr.f32.mxu0 0.0
        %768 = vmatmul.mubr.f32.gmra.mxu0 %v548
        %v769 = vpop.f32.mrf.mxu0
        %v770 = vadd.f32 0.0, %v769
        %v771 = vpop.f32.mrf.mxu0
        %772 = vmatprep.mubr.f32.mxu0 0.0
        %773 = vmatmul.mubr.f32.gmra.mxu0 %v551
        %v774 = vpop.f32.mrf.mxu0
        %v775 = vadd.f32 0.0, %v774
        %v776 = vpop.f32.mrf.mxu0
        %777 = vmatprep.mubr.f32.mxu0 0.0
        %778 = vmatmul.mubr.f32.gmra.mxu0 %v554
        %v779 = vpop.f32.mrf.mxu0
        %v780 = vadd.f32 0.0, %v779
        %v781 = vpop.f32.mrf.mxu0
        %782 = vmatprep.mubr.f32.mxu0 0.0
        %783 = vmatmul.mubr.f32.gmra.mxu0 %v557
        %v784 = vpop.f32.mrf.mxu0
        %v785 = vadd.f32 0.0, %v784
        %v786 = vpop.f32.mrf.mxu0
        %787 = vdwg.mxu0
        %v789 = vsel %vm276, %v397, 0
        %v792 = vsel %vm276, %v398, 0
        %v795 = vsel %vm276, %v399, 0
        %v798 = vsel %vm276, %v400, 0
        %v801 = vsel %vm276, %v401, 0
        %v804 = vsel %vm276, %v402, 0
        %v807 = vsel %vm276, %v403, 0
        %v810 = vsel %vm276, %v404, 0
        %v813 = vsel %vm276, %v405, 0
        %v816 = vsel %vm276, %v406, 0
        %v819 = vsel %vm276, %v407, 0
        %v822 = vsel %vm276, %v408, 0
        %v825 = vsel %vm276, %v409, 0
        %v828 = vsel %vm276, %v410, 0
        %v831 = vsel %vm276, %v411, 0
        %v834 = vsel %vm276, %v412, 0
        %v837 = vsel %vm276, %v413, 0
        %v840 = vsel %vm276, %v414, 0
        %v843 = vsel %vm276, %v415, 0
        %v846 = vsel %vm276, %v416, 0
        %v849 = vsel %vm276, %v417, 0
        %v852 = vsel %vm276, %v418, 0
        %v855 = vsel %vm276, %v419, 0
        %v858 = vsel %vm276, %v420, 0
        %v861 = vsel %vm276, %v421, 0
        %v864 = vsel %vm276, %v422, 0
        %v867 = vsel %vm276, %v423, 0
        %v870 = vsel %vm276, %v424, 0
        %v873 = vsel %vm276, %v425, 0
        %v876 = vsel %vm276, %v426, 0
        %v879 = vsel %vm276, %v427, 0
        %v882 = vsel %vm276, %v428, 0
        %v885 = vsel %vm559, %v429, 0
        %887 = vmatprep.subr.mxu0 0.0
        %888 = vmatpush1.msra.mxu0 0.0
        %889 = vmatprep.subr.mxu0 0.0
        %890 = vmatpush1.msra.mxu0 0.0
        %891 = vmatprep.subr.mxu0 0.0
        %892 = vmatpush1.msra.mxu0 0.0
        %893 = vmatprep.subr.mxu0 0.0
        %894 = vmatpush1.msra.mxu0 0.0
        %895 = vmatprep.subr.mxu0 0.0
        %896 = vmatpush1.msra.mxu0 0.0
        %897 = vmatprep.subr.mxu0 0.0
        %898 = vmatpush1.msra.mxu0 0.0
        %899 = vmatprep.subr.mxu0 0.0
        %900 = vmatpush1.msra.mxu0 0.0
        %901 = vmatprep.subr.mxu0 0.0
        %902 = vmatpush1.msra.mxu0 0.0
        %903 = vmatprep.subr.mxu0 0.0
        %904 = vmatpush1.msra.mxu0 0.0
        %905 = vmatprep.subr.mxu0 0.0
        %906 = vmatpush1.msra.mxu0 0.0
        %907 = vmatprep.subr.mxu0 0.0
        %908 = vmatpush1.msra.mxu0 0.0
        %909 = vmatprep.subr.mxu0 0.0
        %910 = vmatpush1.msra.mxu0 0.0
        %911 = vmatprep.subr.mxu0 0.0
        %912 = vmatpush1.msra.mxu0 0.0
        %913 = vmatprep.subr.mxu0 0.0
        %914 = vmatpush1.msra.mxu0 0.0
        %915 = vmatprep.subr.mxu0 0.0
        %916 = vmatpush1.msra.mxu0 0.0
        %917 = vmatprep.subr.mxu0 0.0
        %918 = vmatpush1.msra.mxu0 %v885
        %919 = vmatprep.subr.mxu0 0.0
        %920 = vmatpush2.msra.mxu0 0.0
        %921 = vmatprep.subr.mxu0 0.0
        %922 = vmatpush2.msra.mxu0 0.0
        %923 = vmatprep.subr.mxu0 0.0
        %924 = vmatpush2.msra.mxu0 0.0
        %925 = vmatprep.subr.mxu0 0.0
        %926 = vmatpush2.msra.mxu0 0.0
        %927 = vmatprep.subr.mxu0 0.0
        %928 = vmatpush2.msra.mxu0 0.0
        %929 = vmatprep.subr.mxu0 0.0
        %930 = vmatpush2.msra.mxu0 0.0
        %931 = vmatprep.subr.mxu0 0.0
        %932 = vmatpush2.msra.mxu0 0.0
        %933 = vmatprep.subr.mxu0 0.0
        %934 = vmatpush2.msra.mxu0 0.0
        %935 = vmatprep.subr.mxu0 0.0
        %936 = vmatpush2.msra.mxu0 0.0
        %937 = vmatprep.subr.mxu0 0.0
        %938 = vmatpush2.msra.mxu0 0.0
        %939 = vmatprep.subr.mxu0 0.0
        %940 = vmatpush2.msra.mxu0 0.0
        %941 = vmatprep.subr.mxu0 0.0
        %942 = vmatpush2.msra.mxu0 0.0
        %943 = vmatprep.subr.mxu0 0.0
        %944 = vmatpush2.msra.mxu0 0.0
        %945 = vmatprep.subr.mxu0 0.0
        %946 = vmatpush2.msra.mxu0 0.0
        %947 = vmatprep.subr.mxu0 0.0
        %948 = vmatpush2.msra.mxu0 0.0
        %949 = vmatprep.subr.mxu0 0.0
        %950 = vmatpush2.msra.mxu0 0.0
        %951 = vmatprep.mubr.f32.mxu0 0.0
        %952 = vmatmul.mubr.f32.gmra.mxu0 %v789
        %v953 = vpop.f32.mrf.mxu0
        %v954 = vadd.f32 %v630, %v953
        %v955 = vpop.f32.mrf.mxu0
        %956 = vmatprep.mubr.f32.mxu0 0.0
        %957 = vmatmul.mubr.f32.gmra.mxu0 %v792
        %v958 = vpop.f32.mrf.mxu0
        %v959 = vadd.f32 %v635, %v958
        %v960 = vpop.f32.mrf.mxu0
        %961 = vmatprep.mubr.f32.mxu0 0.0
        %962 = vmatmul.mubr.f32.gmra.mxu0 %v795
        %v963 = vpop.f32.mrf.mxu0
        %v964 = vadd.f32 %v640, %v963
        %v965 = vpop.f32.mrf.mxu0
        %966 = vmatprep.mubr.f32.mxu0 0.0
        %967 = vmatmul.mubr.f32.gmra.mxu0 %v798
        %v968 = vpop.f32.mrf.mxu0
        %v969 = vadd.f32 %v645, %v968
        %v970 = vpop.f32.mrf.mxu0
        %971 = vmatprep.mubr.f32.mxu0 0.0
        %972 = vmatmul.mubr.f32.gmra.mxu0 %v801
        %v973 = vpop.f32.mrf.mxu0
        %v974 = vadd.f32 %v650, %v973
        %v975 = vpop.f32.mrf.mxu0
        %976 = vmatprep.mubr.f32.mxu0 0.0
        %977 = vmatmul.mubr.f32.gmra.mxu0 %v804
        %v978 = vpop.f32.mrf.mxu0
        %v979 = vadd.f32 %v655, %v978
        %v980 = vpop.f32.mrf.mxu0
        %981 = vmatprep.mubr.f32.mxu0 0.0
        %982 = vmatmul.mubr.f32.gmra.mxu0 %v807
        %v983 = vpop.f32.mrf.mxu0
        %v984 = vadd.f32 %v660, %v983
        %v985 = vpop.f32.mrf.mxu0
        %986 = vmatprep.mubr.f32.mxu0 0.0
        %987 = vmatmul.mubr.f32.gmra.mxu0 %v810
        %v988 = vpop.f32.mrf.mxu0
        %v989 = vadd.f32 %v665, %v988
        %v990 = vpop.f32.mrf.mxu0
        %991 = vmatprep.mubr.f32.mxu0 0.0
        %992 = vmatmul.mubr.f32.gmra.mxu0 %v813
        %v993 = vpop.f32.mrf.mxu0
        %v994 = vadd.f32 %v670, %v993
        %v995 = vpop.f32.mrf.mxu0
        %996 = vmatprep.mubr.f32.mxu0 0.0
        %997 = vmatmul.mubr.f32.gmra.mxu0 %v816
        %v998 = vpop.f32.mrf.mxu0
        %v999 = vadd.f32 %v675, %v998
        %v1000 = vpop.f32.mrf.mxu0
        %1001 = vmatprep.mubr.f32.mxu0 0.0
        %1002 = vmatmul.mubr.f32.gmra.mxu0 %v819
        %v1003 = vpop.f32.mrf.mxu0
        %v1004 = vadd.f32 %v680, %v1003
        %v1005 = vpop.f32.mrf.mxu0
        %1006 = vmatprep.mubr.f32.mxu0 0.0
        %1007 = vmatmul.mubr.f32.gmra.mxu0 %v822
        %v1008 = vpop.f32.mrf.mxu0
        %v1009 = vadd.f32 %v685, %v1008
        %v1010 = vpop.f32.mrf.mxu0
        %1011 = vmatprep.mubr.f32.mxu0 0.0
        %1012 = vmatmul.mubr.f32.gmra.mxu0 %v825
        %v1013 = vpop.f32.mrf.mxu0
        %v1014 = vadd.f32 %v690, %v1013
        %v1015 = vpop.f32.mrf.mxu0
        %1016 = vmatprep.mubr.f32.mxu0 0.0
        %1017 = vmatmul.mubr.f32.gmra.mxu0 %v828
        %v1018 = vpop.f32.mrf.mxu0
        %v1019 = vadd.f32 %v695, %v1018
        %v1020 = vpop.f32.mrf.mxu0
        %1021 = vmatprep.mubr.f32.mxu0 0.0
        %1022 = vmatmul.mubr.f32.gmra.mxu0 %v831
        %v1023 = vpop.f32.mrf.mxu0
        %v1024 = vadd.f32 %v700, %v1023
        %v1025 = vpop.f32.mrf.mxu0
        %1026 = vmatprep.mubr.f32.mxu0 0.0
        %1027 = vmatmul.mubr.f32.gmra.mxu0 %v834
        %v1028 = vpop.f32.mrf.mxu0
        %v1029 = vadd.f32 %v705, %v1028
        %v1030 = vpop.f32.mrf.mxu0
        %1031 = vmatprep.mubr.f32.mxu0 0.0
        %1032 = vmatmul.mubr.f32.gmra.mxu0 %v837
        %v1033 = vpop.f32.mrf.mxu0
        %v1034 = vadd.f32 %v710, %v1033
        %v1035 = vpop.f32.mrf.mxu0
        %1036 = vmatprep.mubr.f32.mxu0 0.0
        %1037 = vmatmul.mubr.f32.gmra.mxu0 %v840
        %v1038 = vpop.f32.mrf.mxu0
        %v1039 = vadd.f32 %v715, %v1038
        %v1040 = vpop.f32.mrf.mxu0
        %1041 = vmatprep.mubr.f32.mxu0 0.0
        %1042 = vmatmul.mubr.f32.gmra.mxu0 %v843
        %v1043 = vpop.f32.mrf.mxu0
        %v1044 = vadd.f32 %v720, %v1043
        %v1045 = vpop.f32.mrf.mxu0
        %1046 = vmatprep.mubr.f32.mxu0 0.0
        %1047 = vmatmul.mubr.f32.gmra.mxu0 %v846
        %v1048 = vpop.f32.mrf.mxu0
        %v1049 = vadd.f32 %v725, %v1048
        %v1050 = vpop.f32.mrf.mxu0
        %1051 = vmatprep.mubr.f32.mxu0 0.0
        %1052 = vmatmul.mubr.f32.gmra.mxu0 %v849
        %v1053 = vpop.f32.mrf.mxu0
        %v1054 = vadd.f32 %v730, %v1053
        %v1055 = vpop.f32.mrf.mxu0
        %1056 = vmatprep.mubr.f32.mxu0 0.0
        %1057 = vmatmul.mubr.f32.gmra.mxu0 %v852
        %v1058 = vpop.f32.mrf.mxu0
        %v1059 = vadd.f32 %v735, %v1058
        %v1060 = vpop.f32.mrf.mxu0
        %1061 = vmatprep.mubr.f32.mxu0 0.0
        %1062 = vmatmul.mubr.f32.gmra.mxu0 %v855
        %v1063 = vpop.f32.mrf.mxu0
        %v1064 = vadd.f32 %v740, %v1063
        %v1065 = vpop.f32.mrf.mxu0
        %1066 = vmatprep.mubr.f32.mxu0 0.0
        %1067 = vmatmul.mubr.f32.gmra.mxu0 %v858
        %v1068 = vpop.f32.mrf.mxu0
        %v1069 = vadd.f32 %v745, %v1068
        %v1070 = vpop.f32.mrf.mxu0
        %1071 = vmatprep.mubr.f32.mxu0 0.0
        %1072 = vmatmul.mubr.f32.gmra.mxu0 %v861
        %v1073 = vpop.f32.mrf.mxu0
        %v1074 = vadd.f32 %v750, %v1073
        %v1075 = vpop.f32.mrf.mxu0
        %1076 = vmatprep.mubr.f32.mxu0 0.0
        %1077 = vmatmul.mubr.f32.gmra.mxu0 %v864
        %v1078 = vpop.f32.mrf.mxu0
        %v1079 = vadd.f32 %v755, %v1078
        %v1080 = vpop.f32.mrf.mxu0
        %1081 = vmatprep.mubr.f32.mxu0 0.0
        %1082 = vmatmul.mubr.f32.gmra.mxu0 %v867
        %v1083 = vpop.f32.mrf.mxu0
        %v1084 = vadd.f32 %v760, %v1083
        %v1085 = vpop.f32.mrf.mxu0
        %1086 = vmatprep.mubr.f32.mxu0 0.0
        %1087 = vmatmul.mubr.f32.gmra.mxu0 %v870
        %v1088 = vpop.f32.mrf.mxu0
        %v1089 = vadd.f32 %v765, %v1088
        %v1090 = vpop.f32.mrf.mxu0
        %1091 = vmatprep.mubr.f32.mxu0 0.0
        %1092 = vmatmul.mubr.f32.gmra.mxu0 %v873
        %v1093 = vpop.f32.mrf.mxu0
        %v1094 = vadd.f32 %v770, %v1093
        %v1095 = vpop.f32.mrf.mxu0
        %1096 = vmatprep.mubr.f32.mxu0 0.0
        %1097 = vmatmul.mubr.f32.gmra.mxu0 %v876
        %v1098 = vpop.f32.mrf.mxu0
        %v1099 = vadd.f32 %v775, %v1098
        %v1100 = vpop.f32.mrf.mxu0
        %1101 = vmatprep.mubr.f32.mxu0 0.0
        %1102 = vmatmul.mubr.f32.gmra.mxu0 %v879
        %v1103 = vpop.f32.mrf.mxu0
        %v1104 = vadd.f32 %v780, %v1103
        %v1105 = vpop.f32.mrf.mxu0
        %1106 = vmatprep.mubr.f32.mxu0 0.0
        %1107 = vmatmul.mubr.f32.gmra.mxu0 %v882
        %v1108 = vpop.f32.mrf.mxu0
        %v1109 = vadd.f32 %v785, %v1108
        %v1110 = vpop.f32.mrf.mxu0
        %1111 = vdwg.mxu0
        %v1112 = vld [vmem:[#allocation2 + $0x2] sm:$0xff]
        %v1113 = vld [vmem:[#allocation2 + $0xa] sm:$0xff]
        %v1114 = vld [vmem:[#allocation2 + $0x1a] sm:$0xff]
        %v1115 = vld [vmem:[#allocation2 + $0x22] sm:$0xff]
        %v1116 = vld [vmem:[#allocation2 + $0x32] sm:$0xff]
        %v1117 = vld [vmem:[#allocation2 + $0x3a] sm:$0xff]
        %v1118 = vld [vmem:[#allocation2 + $0x4a] sm:$0xff]
        %v1119 = vld [vmem:[#allocation2 + $0x52] sm:$0xff]
        %v1120 = vld [vmem:[#allocation2 + $0x62] sm:$0xff]
        %v1121 = vld [vmem:[#allocation2 + $0x6a] sm:$0xff]
        %v1122 = vld [vmem:[#allocation2 + $0x7a] sm:$0xff]
        %v1123 = vld [vmem:[#allocation2 + $0x82] sm:$0xff]
        %v1124 = vld [vmem:[#allocation2 + $0x92] sm:$0xff]
        %v1125 = vld [vmem:[#allocation2 + $0x9a] sm:$0xff]
        %v1126 = vld [vmem:[#allocation2 + $0xaa] sm:$0xff]
        %v1127 = vld [vmem:[#allocation2 + $0xb2] sm:$0xff]
        %v1128 = vld [vmem:[#allocation2 + $0xc2] sm:$0xff]
        %v1129 = vld [vmem:[#allocation2 + $0xca] sm:$0xff]
        %v1130 = vld [vmem:[#allocation2 + $0xda] sm:$0xff]
        %v1131 = vld [vmem:[#allocation2 + $0xe2] sm:$0xff]
        %v1132 = vld [vmem:[#allocation2 + $0xf2] sm:$0xff]
        %v1133 = vld [vmem:[#allocation2 + $0xfa] sm:$0xff]
        %v1134 = vld [vmem:[#allocation2 + $0x10a] sm:$0xff]
        %v1135 = vld [vmem:[#allocation2 + $0x112] sm:$0xff]
        %v1136 = vld [vmem:[#allocation2 + $0x122] sm:$0xff]
        %v1137 = vld [vmem:[#allocation2 + $0x12a] sm:$0xff]
        %v1138 = vld [vmem:[#allocation2 + $0x13a] sm:$0xff]
        %v1139 = vld [vmem:[#allocation2 + $0x142] sm:$0xff]
        %v1140 = vld [vmem:[#allocation2 + $0x152] sm:$0xff]
        %v1141 = vld [vmem:[#allocation2 + $0x15a] sm:$0xff]
        %v1142 = vld [vmem:[#allocation2 + $0x16a] sm:$0xff]
        %v1143 = vld [vmem:[#allocation2 + $0x172] sm:$0xff]
        %v1144 = vld [vmem:[%s1 + $0x8] sm:$0xf]
        %v1146 = vsel %vm276, %v1112, 0
        %v1149 = vsel %vm276, %v1113, 0
        %v1152 = vsel %vm276, %v1114, 0
        %v1155 = vsel %vm276, %v1115, 0
        %v1158 = vsel %vm276, %v1116, 0
        %v1161 = vsel %vm276, %v1117, 0
        %v1164 = vsel %vm276, %v1118, 0
        %v1167 = vsel %vm276, %v1119, 0
        %v1170 = vsel %vm276, %v1120, 0
        %v1173 = vsel %vm276, %v1121, 0
        %v1176 = vsel %vm276, %v1122, 0
        %v1179 = vsel %vm276, %v1123, 0
        %v1182 = vsel %vm276, %v1124, 0
        %v1185 = vsel %vm276, %v1125, 0
        %v1188 = vsel %vm276, %v1126, 0
        %v1191 = vsel %vm276, %v1127, 0
        %v1194 = vsel %vm276, %v1128, 0
        %v1197 = vsel %vm276, %v1129, 0
        %v1200 = vsel %vm276, %v1130, 0
        %v1203 = vsel %vm276, %v1131, 0
        %v1206 = vsel %vm276, %v1132, 0
        %v1209 = vsel %vm276, %v1133, 0
        %v1212 = vsel %vm276, %v1134, 0
        %v1215 = vsel %vm276, %v1135, 0
        %v1218 = vsel %vm276, %v1136, 0
        %v1221 = vsel %vm276, %v1137, 0
        %v1224 = vsel %vm276, %v1138, 0
        %v1227 = vsel %vm276, %v1139, 0
        %v1230 = vsel %vm276, %v1140, 0
        %v1233 = vsel %vm276, %v1141, 0
        %v1236 = vsel %vm276, %v1142, 0
        %v1239 = vsel %vm276, %v1143, 0
        %v1242 = vsel %vm559, %v1144, 0
        %1244 = vmatprep.subr.mxu0 0.0
        %1245 = vmatpush1.msra.mxu0 0.0
        %1246 = vmatprep.subr.mxu0 0.0
        %1247 = vmatpush1.msra.mxu0 0.0
        %1248 = vmatprep.subr.mxu0 0.0
        %1249 = vmatpush1.msra.mxu0 0.0
        %1250 = vmatprep.subr.mxu0 0.0
        %1251 = vmatpush1.msra.mxu0 0.0
        %1252 = vmatprep.subr.mxu0 0.0
        %1253 = vmatpush1.msra.mxu0 0.0
        %1254 = vmatprep.subr.mxu0 0.0
        %1255 = vmatpush1.msra.mxu0 0.0
        %1256 = vmatprep.subr.mxu0 0.0
        %1257 = vmatpush1.msra.mxu0 0.0
        %1258 = vmatprep.subr.mxu0 0.0
        %1259 = vmatpush1.msra.mxu0 0.0
        %1260 = vmatprep.subr.mxu0 0.0
        %1261 = vmatpush1.msra.mxu0 0.0
        %1262 = vmatprep.subr.mxu0 0.0
        %1263 = vmatpush1.msra.mxu0 0.0
        %1264 = vmatprep.subr.mxu0 0.0
        %1265 = vmatpush1.msra.mxu0 0.0
        %1266 = vmatprep.subr.mxu0 0.0
        %1267 = vmatpush1.msra.mxu0 0.0
        %1268 = vmatprep.subr.mxu0 0.0
        %1269 = vmatpush1.msra.mxu0 0.0
        %1270 = vmatprep.subr.mxu0 0.0
        %1271 = vmatpush1.msra.mxu0 0.0
        %1272 = vmatprep.subr.mxu0 0.0
        %1273 = vmatpush1.msra.mxu0 0.0
        %1274 = vmatprep.subr.mxu0 0.0
        %1275 = vmatpush1.msra.mxu0 %v1242
        %1276 = vmatprep.subr.mxu0 0.0
        %1277 = vmatpush2.msra.mxu0 0.0
        %1278 = vmatprep.subr.mxu0 0.0
        %1279 = vmatpush2.msra.mxu0 0.0
        %1280 = vmatprep.subr.mxu0 0.0
        %1281 = vmatpush2.msra.mxu0 0.0
        %1282 = vmatprep.subr.mxu0 0.0
        %1283 = vmatpush2.msra.mxu0 0.0
        %1284 = vmatprep.subr.mxu0 0.0
        %1285 = vmatpush2.msra.mxu0 0.0
        %1286 = vmatprep.subr.mxu0 0.0
        %1287 = vmatpush2.msra.mxu0 0.0
        %1288 = vmatprep.subr.mxu0 0.0
        %1289 = vmatpush2.msra.mxu0 0.0
        %1290 = vmatprep.subr.mxu0 0.0
        %1291 = vmatpush2.msra.mxu0 0.0
        %1292 = vmatprep.subr.mxu0 0.0
        %1293 = vmatpush2.msra.mxu0 0.0
        %1294 = vmatprep.subr.mxu0 0.0
        %1295 = vmatpush2.msra.mxu0 0.0
        %1296 = vmatprep.subr.mxu0 0.0
        %1297 = vmatpush2.msra.mxu0 0.0
        %1298 = vmatprep.subr.mxu0 0.0
        %1299 = vmatpush2.msra.mxu0 0.0
        %1300 = vmatprep.subr.mxu0 0.0
        %1301 = vmatpush2.msra.mxu0 0.0
        %1302 = vmatprep.subr.mxu0 0.0
        %1303 = vmatpush2.msra.mxu0 0.0
        %1304 = vmatprep.subr.mxu0 0.0
        %1305 = vmatpush2.msra.mxu0 0.0
        %1306 = vmatprep.subr.mxu0 0.0
        %1307 = vmatpush2.msra.mxu0 0.0
        %1308 = vmatprep.mubr.f32.mxu0 0.0
        %1309 = vmatmul.mubr.f32.gmra.mxu0 %v1146
        %v1310 = vpop.f32.mrf.mxu0
        %v1311 = vadd.f32 0.0, %v1310
        %v1312 = vpop.f32.mrf.mxu0
        %1313 = vmatprep.mubr.f32.mxu0 0.0
        %1314 = vmatmul.mubr.f32.gmra.mxu0 %v1149
        %v1315 = vpop.f32.mrf.mxu0
        %v1316 = vadd.f32 0.0, %v1315
        %v1317 = vpop.f32.mrf.mxu0
        %1318 = vmatprep.mubr.f32.mxu0 0.0
        %1319 = vmatmul.mubr.f32.gmra.mxu0 %v1152
        %v1320 = vpop.f32.mrf.mxu0
        %v1321 = vadd.f32 0.0, %v1320
        %v1322 = vpop.f32.mrf.mxu0
        %1323 = vmatprep.mubr.f32.mxu0 0.0
        %1324 = vmatmul.mubr.f32.gmra.mxu0 %v1155
        %v1325 = vpop.f32.mrf.mxu0
        %v1326 = vadd.f32 0.0, %v1325
        %v1327 = vpop.f32.mrf.mxu0
        %1328 = vmatprep.mubr.f32.mxu0 0.0
        %1329 = vmatmul.mubr.f32.gmra.mxu0 %v1158
        %v1330 = vpop.f32.mrf.mxu0
        %v1331 = vadd.f32 0.0, %v1330
        %v1332 = vpop.f32.mrf.mxu0
        %1333 = vmatprep.mubr.f32.mxu0 0.0
        %1334 = vmatmul.mubr.f32.gmra.mxu0 %v1161
        %v1335 = vpop.f32.mrf.mxu0
        %v1336 = vadd.f32 0.0, %v1335
        %v1337 = vpop.f32.mrf.mxu0
        %1338 = vmatprep.mubr.f32.mxu0 0.0
        %1339 = vmatmul.mubr.f32.gmra.mxu0 %v1164
        %v1340 = vpop.f32.mrf.mxu0
        %v1341 = vadd.f32 0.0, %v1340
        %v1342 = vpop.f32.mrf.mxu0
        %1343 = vmatprep.mubr.f32.mxu0 0.0
        %1344 = vmatmul.mubr.f32.gmra.mxu0 %v1167
        %v1345 = vpop.f32.mrf.mxu0
        %v1346 = vadd.f32 0.0, %v1345
        %v1347 = vpop.f32.mrf.mxu0
        %1348 = vmatprep.mubr.f32.mxu0 0.0
        %1349 = vmatmul.mubr.f32.gmra.mxu0 %v1170
        %v1350 = vpop.f32.mrf.mxu0
        %v1351 = vadd.f32 0.0, %v1350
        %v1352 = vpop.f32.mrf.mxu0
        %1353 = vmatprep.mubr.f32.mxu0 0.0
        %1354 = vmatmul.mubr.f32.gmra.mxu0 %v1173
        %v1355 = vpop.f32.mrf.mxu0
        %v1356 = vadd.f32 0.0, %v1355
        %v1357 = vpop.f32.mrf.mxu0
        %1358 = vmatprep.mubr.f32.mxu0 0.0
        %1359 = vmatmul.mubr.f32.gmra.mxu0 %v1176
        %v1360 = vpop.f32.mrf.mxu0
        %v1361 = vadd.f32 0.0, %v1360
        %v1362 = vpop.f32.mrf.mxu0
        %1363 = vmatprep.mubr.f32.mxu0 0.0
        %1364 = vmatmul.mubr.f32.gmra.mxu0 %v1179
        %v1365 = vpop.f32.mrf.mxu0
        %v1366 = vadd.f32 0.0, %v1365
        %v1367 = vpop.f32.mrf.mxu0
        %1368 = vmatprep.mubr.f32.mxu0 0.0
        %1369 = vmatmul.mubr.f32.gmra.mxu0 %v1182
        %v1370 = vpop.f32.mrf.mxu0
        %v1371 = vadd.f32 0.0, %v1370
        %v1372 = vpop.f32.mrf.mxu0
        %1373 = vmatprep.mubr.f32.mxu0 0.0
        %1374 = vmatmul.mubr.f32.gmra.mxu0 %v1185
        %v1375 = vpop.f32.mrf.mxu0
        %v1376 = vadd.f32 0.0, %v1375
        %v1377 = vpop.f32.mrf.mxu0
        %1378 = vmatprep.mubr.f32.mxu0 0.0
        %1379 = vmatmul.mubr.f32.gmra.mxu0 %v1188
        %v1380 = vpop.f32.mrf.mxu0
        %v1381 = vadd.f32 0.0, %v1380
        %v1382 = vpop.f32.mrf.mxu0
        %1383 = vmatprep.mubr.f32.mxu0 0.0
        %1384 = vmatmul.mubr.f32.gmra.mxu0 %v1191
        %v1385 = vpop.f32.mrf.mxu0
        %v1386 = vadd.f32 0.0, %v1385
        %v1387 = vpop.f32.mrf.mxu0
        %1388 = vmatprep.mubr.f32.mxu0 0.0
        %1389 = vmatmul.mubr.f32.gmra.mxu0 %v1194
        %v1390 = vpop.f32.mrf.mxu0
        %v1391 = vadd.f32 0.0, %v1390
        %v1392 = vpop.f32.mrf.mxu0
        %1393 = vmatprep.mubr.f32.mxu0 0.0
        %1394 = vmatmul.mubr.f32.gmra.mxu0 %v1197
        %v1395 = vpop.f32.mrf.mxu0
        %v1396 = vadd.f32 0.0, %v1395
        %v1397 = vpop.f32.mrf.mxu0
        %1398 = vmatprep.mubr.f32.mxu0 0.0
        %1399 = vmatmul.mubr.f32.gmra.mxu0 %v1200
        %v1400 = vpop.f32.mrf.mxu0
        %v1401 = vadd.f32 0.0, %v1400
        %v1402 = vpop.f32.mrf.mxu0
        %1403 = vmatprep.mubr.f32.mxu0 0.0
        %1404 = vmatmul.mubr.f32.gmra.mxu0 %v1203
        %v1405 = vpop.f32.mrf.mxu0
        %v1406 = vadd.f32 0.0, %v1405
        %v1407 = vpop.f32.mrf.mxu0
        %1408 = vmatprep.mubr.f32.mxu0 0.0
        %1409 = vmatmul.mubr.f32.gmra.mxu0 %v1206
        %v1410 = vpop.f32.mrf.mxu0
        %v1411 = vadd.f32 0.0, %v1410
        %v1412 = vpop.f32.mrf.mxu0
        %1413 = vmatprep.mubr.f32.mxu0 0.0
        %1414 = vmatmul.mubr.f32.gmra.mxu0 %v1209
        %v1415 = vpop.f32.mrf.mxu0
        %v1416 = vadd.f32 0.0, %v1415
        %v1417 = vpop.f32.mrf.mxu0
        %1418 = vmatprep.mubr.f32.mxu0 0.0
        %1419 = vmatmul.mubr.f32.gmra.mxu0 %v1212
        %v1420 = vpop.f32.mrf.mxu0
        %v1421 = vadd.f32 0.0, %v1420
        %v1422 = vpop.f32.mrf.mxu0
        %1423 = vmatprep.mubr.f32.mxu0 0.0
        %1424 = vmatmul.mubr.f32.gmra.mxu0 %v1215
        %v1425 = vpop.f32.mrf.mxu0
        %v1426 = vadd.f32 0.0, %v1425
        %v1427 = vpop.f32.mrf.mxu0
        %1428 = vmatprep.mubr.f32.mxu0 0.0
        %1429 = vmatmul.mubr.f32.gmra.mxu0 %v1218
        %v1430 = vpop.f32.mrf.mxu0
        %v1431 = vadd.f32 0.0, %v1430
        %v1432 = vpop.f32.mrf.mxu0
        %1433 = vmatprep.mubr.f32.mxu0 0.0
        %1434 = vmatmul.mubr.f32.gmra.mxu0 %v1221
        %v1435 = vpop.f32.mrf.mxu0
        %v1436 = vadd.f32 0.0, %v1435
        %v1437 = vpop.f32.mrf.mxu0
        %1438 = vmatprep.mubr.f32.mxu0 0.0
        %1439 = vmatmul.mubr.f32.gmra.mxu0 %v1224
        %v1440 = vpop.f32.mrf.mxu0
        %v1441 = vadd.f32 0.0, %v1440
        %v1442 = vpop.f32.mrf.mxu0
        %1443 = vmatprep.mubr.f32.mxu0 0.0
        %1444 = vmatmul.mubr.f32.gmra.mxu0 %v1227
        %v1445 = vpop.f32.mrf.mxu0
        %v1446 = vadd.f32 0.0, %v1445
        %v1447 = vpop.f32.mrf.mxu0
        %1448 = vmatprep.mubr.f32.mxu0 0.0
        %1449 = vmatmul.mubr.f32.gmra.mxu0 %v1230
        %v1450 = vpop.f32.mrf.mxu0
        %v1451 = vadd.f32 0.0, %v1450
        %v1452 = vpop.f32.mrf.mxu0
        %1453 = vmatprep.mubr.f32.mxu0 0.0
        %1454 = vmatmul.mubr.f32.gmra.mxu0 %v1233
        %v1455 = vpop.f32.mrf.mxu0
        %v1456 = vadd.f32 0.0, %v1455
        %v1457 = vpop.f32.mrf.mxu0
        %1458 = vmatprep.mubr.f32.mxu0 0.0
        %1459 = vmatmul.mubr.f32.gmra.mxu0 %v1236
        %v1460 = vpop.f32.mrf.mxu0
        %v1461 = vadd.f32 0.0, %v1460
        %v1462 = vpop.f32.mrf.mxu0
        %1463 = vmatprep.mubr.f32.mxu0 0.0
        %1464 = vmatmul.mubr.f32.gmra.mxu0 %v1239
        %v1465 = vpop.f32.mrf.mxu0
        %v1466 = vadd.f32 0.0, %v1465
        %v1467 = vpop.f32.mrf.mxu0
        %1468 = vdwg.mxu0
        %v1469 = vadd.f32 %v954, %v1311
        %v1470 = vadd.f32 %v959, %v1316
        %v1471 = vadd.f32 %v964, %v1321
        %v1472 = vadd.f32 %v969, %v1326
        %v1473 = vadd.f32 %v974, %v1331
        %v1474 = vadd.f32 %v979, %v1336
        %v1475 = vadd.f32 %v984, %v1341
        %v1476 = vadd.f32 %v989, %v1346
        %v1477 = vadd.f32 %v994, %v1351
        %v1478 = vadd.f32 %v999, %v1356
        %v1479 = vadd.f32 %v1004, %v1361
        %v1480 = vadd.f32 %v1009, %v1366
        %v1481 = vadd.f32 %v1014, %v1371
        %v1482 = vadd.f32 %v1019, %v1376
        %v1483 = vadd.f32 %v1024, %v1381
        %v1484 = vadd.f32 %v1029, %v1386
        %v1485 = vadd.f32 %v1034, %v1391
        %v1486 = vadd.f32 %v1039, %v1396
        %v1487 = vadd.f32 %v1044, %v1401
        %v1488 = vadd.f32 %v1049, %v1406
        %v1489 = vadd.f32 %v1054, %v1411
        %v1490 = vadd.f32 %v1059, %v1416
        %v1491 = vadd.f32 %v1064, %v1421
        %v1492 = vadd.f32 %v1069, %v1426
        %v1493 = vadd.f32 %v1074, %v1431
        %v1494 = vadd.f32 %v1079, %v1436
        %v1495 = vadd.f32 %v1084, %v1441
        %v1496 = vadd.f32 %v1089, %v1446
        %v1497 = vadd.f32 %v1094, %v1451
        %v1498 = vadd.f32 %v1099, %v1456
        %v1499 = vadd.f32 %v1104, %v1461
        %v1500 = vadd.f32 %v1109, %v1466
        %v1501 = vld [vmem:[%s364] sm:$0xff]
        %v1502 = vld [vmem:[%s364 + $0x8] sm:$0xff]
        %v1503 = vld [vmem:[%s364 + $0x18] sm:$0xff]
        %v1504 = vld [vmem:[%s364 + $0x20] sm:$0xff]
        %v1505 = vld [vmem:[%s364 + $0x30] sm:$0xff]
        %v1506 = vld [vmem:[%s364 + $0x38] sm:$0xff]
        %v1507 = vld [vmem:[%s364 + $0x48] sm:$0xff]
        %v1508 = vld [vmem:[%s364 + $0x50] sm:$0xff]
        %v1509 = vld [vmem:[%s364 + $0x60] sm:$0xff]
        %v1510 = vld [vmem:[%s364 + $0x68] sm:$0xff]
        %v1511 = vld [vmem:[%s364 + $0x78] sm:$0xff]
        %v1512 = vld [vmem:[%s364 + $0x80] sm:$0xff]
        %v1513 = vld [vmem:[%s364 + $0x90] sm:$0xff]
        %v1514 = vld [vmem:[%s364 + $0x98] sm:$0xff]
        %v1515 = vld [vmem:[%s364 + $0xa8] sm:$0xff]
        %v1516 = vld [vmem:[%s364 + $0xb0] sm:$0xff]
        %v1517 = vld [vmem:[%s364 + $0xc0] sm:$0xff]
        %v1518 = vld [vmem:[%s364 + $0xc8] sm:$0xff]
        %v1519 = vld [vmem:[%s364 + $0xd8] sm:$0xff]
        %v1520 = vld [vmem:[%s364 + $0xe0] sm:$0xff]
        %v1521 = vld [vmem:[%s364 + $0xf0] sm:$0xff]
        %v1522 = vld [vmem:[%s364 + $0xf8] sm:$0xff]
        %v1523 = vld [vmem:[%s364 + $0x108] sm:$0xff]
        %v1524 = vld [vmem:[%s364 + $0x110] sm:$0xff]
        %v1525 = vld [vmem:[%s364 + $0x120] sm:$0xff]
        %v1526 = vld [vmem:[%s364 + $0x128] sm:$0xff]
        %v1527 = vld [vmem:[%s364 + $0x138] sm:$0xff]
        %v1528 = vld [vmem:[%s364 + $0x140] sm:$0xff]
        %v1529 = vld [vmem:[%s364 + $0x150] sm:$0xff]
        %v1530 = vld [vmem:[%s364 + $0x158] sm:$0xff]
        %v1531 = vld [vmem:[%s364 + $0x168] sm:$0xff]
        %v1532 = vld [vmem:[%s364 + $0x170] sm:$0xff]
        %v1533 = vld [vmem:[%s1 + $0xc] sm:$0xf]
        %v1535 = vsel %vm276, %v1501, 0
        %v1538 = vsel %vm276, %v1502, 0
        %v1541 = vsel %vm276, %v1503, 0
        %v1544 = vsel %vm276, %v1504, 0
        %v1547 = vsel %vm276, %v1505, 0
        %v1550 = vsel %vm276, %v1506, 0
        %v1553 = vsel %vm276, %v1507, 0
        %v1556 = vsel %vm276, %v1508, 0
        %v1559 = vsel %vm276, %v1509, 0
        %v1562 = vsel %vm276, %v1510, 0
        %v1565 = vsel %vm276, %v1511, 0
        %v1568 = vsel %vm276, %v1512, 0
        %v1571 = vsel %vm276, %v1513, 0
        %v1574 = vsel %vm276, %v1514, 0
        %v1577 = vsel %vm276, %v1515, 0
        %v1580 = vsel %vm276, %v1516, 0
        %v1583 = vsel %vm276, %v1517, 0
        %v1586 = vsel %vm276, %v1518, 0
        %v1589 = vsel %vm276, %v1519, 0
        %v1592 = vsel %vm276, %v1520, 0
        %v1595 = vsel %vm276, %v1521, 0
        %v1598 = vsel %vm276, %v1522, 0
        %v1601 = vsel %vm276, %v1523, 0
        %v1604 = vsel %vm276, %v1524, 0
        %v1607 = vsel %vm276, %v1525, 0
        %v1610 = vsel %vm276, %v1526, 0
        %v1613 = vsel %vm276, %v1527, 0
        %v1616 = vsel %vm276, %v1528, 0
        %v1619 = vsel %vm276, %v1529, 0
        %v1622 = vsel %vm276, %v1530, 0
        %v1625 = vsel %vm276, %v1531, 0
        %v1628 = vsel %vm276, %v1532, 0
        %v1631 = vsel %vm559, %v1533, 0
        %1633 = vmatprep.subr.mxu0 0.0
        %1634 = vmatpush1.msra.mxu0 0.0
        %1635 = vmatprep.subr.mxu0 0.0
        %1636 = vmatpush1.msra.mxu0 0.0
        %1637 = vmatprep.subr.mxu0 0.0
        %1638 = vmatpush1.msra.mxu0 0.0
        %1639 = vmatprep.subr.mxu0 0.0
        %1640 = vmatpush1.msra.mxu0 0.0
        %1641 = vmatprep.subr.mxu0 0.0
        %1642 = vmatpush1.msra.mxu0 0.0
        %1643 = vmatprep.subr.mxu0 0.0
        %1644 = vmatpush1.msra.mxu0 0.0
        %1645 = vmatprep.subr.mxu0 0.0
        %1646 = vmatpush1.msra.mxu0 0.0
        %1647 = vmatprep.subr.mxu0 0.0
        %1648 = vmatpush1.msra.mxu0 0.0
        %1649 = vmatprep.subr.mxu0 0.0
        %1650 = vmatpush1.msra.mxu0 0.0
        %1651 = vmatprep.subr.mxu0 0.0
        %1652 = vmatpush1.msra.mxu0 0.0
        %1653 = vmatprep.subr.mxu0 0.0
        %1654 = vmatpush1.msra.mxu0 0.0
        %1655 = vmatprep.subr.mxu0 0.0
        %1656 = vmatpush1.msra.mxu0 0.0
        %1657 = vmatprep.subr.mxu0 0.0
        %1658 = vmatpush1.msra.mxu0 0.0
        %1659 = vmatprep.subr.mxu0 0.0
        %1660 = vmatpush1.msra.mxu0 0.0
        %1661 = vmatprep.subr.mxu0 0.0
        %1662 = vmatpush1.msra.mxu0 0.0
        %1663 = vmatprep.subr.mxu0 0.0
        %1664 = vmatpush1.msra.mxu0 %v1631
        %1665 = vmatprep.subr.mxu0 0.0
        %1666 = vmatpush2.msra.mxu0 0.0
        %1667 = vmatprep.subr.mxu0 0.0
        %1668 = vmatpush2.msra.mxu0 0.0
        %1669 = vmatprep.subr.mxu0 0.0
        %1670 = vmatpush2.msra.mxu0 0.0
        %1671 = vmatprep.subr.mxu0 0.0
        %1672 = vmatpush2.msra.mxu0 0.0
        %1673 = vmatprep.subr.mxu0 0.0
        %1674 = vmatpush2.msra.mxu0 0.0
        %1675 = vmatprep.subr.mxu0 0.0
        %1676 = vmatpush2.msra.mxu0 0.0
        %1677 = vmatprep.subr.mxu0 0.0
        %1678 = vmatpush2.msra.mxu0 0.0
        %1679 = vmatprep.subr.mxu0 0.0
        %1680 = vmatpush2.msra.mxu0 0.0
        %1681 = vmatprep.subr.mxu0 0.0
        %1682 = vmatpush2.msra.mxu0 0.0
        %1683 = vmatprep.subr.mxu0 0.0
        %1684 = vmatpush2.msra.mxu0 0.0
        %1685 = vmatprep.subr.mxu0 0.0
        %1686 = vmatpush2.msra.mxu0 0.0
        %1687 = vmatprep.subr.mxu0 0.0
        %1688 = vmatpush2.msra.mxu0 0.0
        %1689 = vmatprep.subr.mxu0 0.0
        %1690 = vmatpush2.msra.mxu0 0.0
        %1691 = vmatprep.subr.mxu0 0.0
        %1692 = vmatpush2.msra.mxu0 0.0
        %1693 = vmatprep.subr.mxu0 0.0
        %1694 = vmatpush2.msra.mxu0 0.0
        %1695 = vmatprep.subr.mxu0 0.0
        %1696 = vmatpush2.msra.mxu0 0.0
        %1697 = vmatprep.mubr.f32.mxu0 0.0
        %1698 = vmatmul.mubr.f32.gmra.mxu0 %v1535
        %v1699 = vpop.f32.mrf.mxu0
        %v1700 = vadd.f32 0.0, %v1699
        %v1701 = vpop.f32.mrf.mxu0
        %1702 = vmatprep.mubr.f32.mxu0 0.0
        %1703 = vmatmul.mubr.f32.gmra.mxu0 %v1538
        %v1704 = vpop.f32.mrf.mxu0
        %v1705 = vadd.f32 0.0, %v1704
        %v1706 = vpop.f32.mrf.mxu0
        %1707 = vmatprep.mubr.f32.mxu0 0.0
        %1708 = vmatmul.mubr.f32.gmra.mxu0 %v1541
        %v1709 = vpop.f32.mrf.mxu0
        %v1710 = vadd.f32 0.0, %v1709
        %v1711 = vpop.f32.mrf.mxu0
        %1712 = vmatprep.mubr.f32.mxu0 0.0
        %1713 = vmatmul.mubr.f32.gmra.mxu0 %v1544
        %v1714 = vpop.f32.mrf.mxu0
        %v1715 = vadd.f32 0.0, %v1714
        %v1716 = vpop.f32.mrf.mxu0
        %1717 = vmatprep.mubr.f32.mxu0 0.0
        %1718 = vmatmul.mubr.f32.gmra.mxu0 %v1547
        %v1719 = vpop.f32.mrf.mxu0
        %v1720 = vadd.f32 0.0, %v1719
        %v1721 = vpop.f32.mrf.mxu0
        %1722 = vmatprep.mubr.f32.mxu0 0.0
        %1723 = vmatmul.mubr.f32.gmra.mxu0 %v1550
        %v1724 = vpop.f32.mrf.mxu0
        %v1725 = vadd.f32 0.0, %v1724
        %v1726 = vpop.f32.mrf.mxu0
        %1727 = vmatprep.mubr.f32.mxu0 0.0
        %1728 = vmatmul.mubr.f32.gmra.mxu0 %v1553
        %v1729 = vpop.f32.mrf.mxu0
        %v1730 = vadd.f32 0.0, %v1729
        %v1731 = vpop.f32.mrf.mxu0
        %1732 = vmatprep.mubr.f32.mxu0 0.0
        %1733 = vmatmul.mubr.f32.gmra.mxu0 %v1556
        %v1734 = vpop.f32.mrf.mxu0
        %v1735 = vadd.f32 0.0, %v1734
        %v1736 = vpop.f32.mrf.mxu0
        %1737 = vmatprep.mubr.f32.mxu0 0.0
        %1738 = vmatmul.mubr.f32.gmra.mxu0 %v1559
        %v1739 = vpop.f32.mrf.mxu0
        %v1740 = vadd.f32 0.0, %v1739
        %v1741 = vpop.f32.mrf.mxu0
        %1742 = vmatprep.mubr.f32.mxu0 0.0
        %1743 = vmatmul.mubr.f32.gmra.mxu0 %v1562
        %v1744 = vpop.f32.mrf.mxu0
        %v1745 = vadd.f32 0.0, %v1744
        %v1746 = vpop.f32.mrf.mxu0
        %1747 = vmatprep.mubr.f32.mxu0 0.0
        %1748 = vmatmul.mubr.f32.gmra.mxu0 %v1565
        %v1749 = vpop.f32.mrf.mxu0
        %v1750 = vadd.f32 0.0, %v1749
        %v1751 = vpop.f32.mrf.mxu0
        %1752 = vmatprep.mubr.f32.mxu0 0.0
        %1753 = vmatmul.mubr.f32.gmra.mxu0 %v1568
        %v1754 = vpop.f32.mrf.mxu0
        %v1755 = vadd.f32 0.0, %v1754
        %v1756 = vpop.f32.mrf.mxu0
        %1757 = vmatprep.mubr.f32.mxu0 0.0
        %1758 = vmatmul.mubr.f32.gmra.mxu0 %v1571
        %v1759 = vpop.f32.mrf.mxu0
        %v1760 = vadd.f32 0.0, %v1759
        %v1761 = vpop.f32.mrf.mxu0
        %1762 = vmatprep.mubr.f32.mxu0 0.0
        %1763 = vmatmul.mubr.f32.gmra.mxu0 %v1574
        %v1764 = vpop.f32.mrf.mxu0
        %v1765 = vadd.f32 0.0, %v1764
        %v1766 = vpop.f32.mrf.mxu0
        %1767 = vmatprep.mubr.f32.mxu0 0.0
        %1768 = vmatmul.mubr.f32.gmra.mxu0 %v1577
        %v1769 = vpop.f32.mrf.mxu0
        %v1770 = vadd.f32 0.0, %v1769
        %v1771 = vpop.f32.mrf.mxu0
        %1772 = vmatprep.mubr.f32.mxu0 0.0
        %1773 = vmatmul.mubr.f32.gmra.mxu0 %v1580
        %v1774 = vpop.f32.mrf.mxu0
        %v1775 = vadd.f32 0.0, %v1774
        %v1776 = vpop.f32.mrf.mxu0
        %1777 = vmatprep.mubr.f32.mxu0 0.0
        %1778 = vmatmul.mubr.f32.gmra.mxu0 %v1583
        %v1779 = vpop.f32.mrf.mxu0
        %v1780 = vadd.f32 0.0, %v1779
        %v1781 = vpop.f32.mrf.mxu0
        %1782 = vmatprep.mubr.f32.mxu0 0.0
        %1783 = vmatmul.mubr.f32.gmra.mxu0 %v1586
        %v1784 = vpop.f32.mrf.mxu0
        %v1785 = vadd.f32 0.0, %v1784
        %v1786 = vpop.f32.mrf.mxu0
        %1787 = vmatprep.mubr.f32.mxu0 0.0
        %1788 = vmatmul.mubr.f32.gmra.mxu0 %v1589
        %v1789 = vpop.f32.mrf.mxu0
        %v1790 = vadd.f32 0.0, %v1789
        %v1791 = vpop.f32.mrf.mxu0
        %1792 = vmatprep.mubr.f32.mxu0 0.0
        %1793 = vmatmul.mubr.f32.gmra.mxu0 %v1592
        %v1794 = vpop.f32.mrf.mxu0
        %v1795 = vadd.f32 0.0, %v1794
        %v1796 = vpop.f32.mrf.mxu0
        %1797 = vmatprep.mubr.f32.mxu0 0.0
        %1798 = vmatmul.mubr.f32.gmra.mxu0 %v1595
        %v1799 = vpop.f32.mrf.mxu0
        %v1800 = vadd.f32 0.0, %v1799
        %v1801 = vpop.f32.mrf.mxu0
        %1802 = vmatprep.mubr.f32.mxu0 0.0
        %1803 = vmatmul.mubr.f32.gmra.mxu0 %v1598
        %v1804 = vpop.f32.mrf.mxu0
        %v1805 = vadd.f32 0.0, %v1804
        %v1806 = vpop.f32.mrf.mxu0
        %1807 = vmatprep.mubr.f32.mxu0 0.0
        %1808 = vmatmul.mubr.f32.gmra.mxu0 %v1601
        %v1809 = vpop.f32.mrf.mxu0
        %v1810 = vadd.f32 0.0, %v1809
        %v1811 = vpop.f32.mrf.mxu0
        %1812 = vmatprep.mubr.f32.mxu0 0.0
        %1813 = vmatmul.mubr.f32.gmra.mxu0 %v1604
        %v1814 = vpop.f32.mrf.mxu0
        %v1815 = vadd.f32 0.0, %v1814
        %v1816 = vpop.f32.mrf.mxu0
        %1817 = vmatprep.mubr.f32.mxu0 0.0
        %1818 = vmatmul.mubr.f32.gmra.mxu0 %v1607
        %v1819 = vpop.f32.mrf.mxu0
        %v1820 = vadd.f32 0.0, %v1819
        %v1821 = vpop.f32.mrf.mxu0
        %1822 = vmatprep.mubr.f32.mxu0 0.0
        %1823 = vmatmul.mubr.f32.gmra.mxu0 %v1610
        %v1824 = vpop.f32.mrf.mxu0
        %v1825 = vadd.f32 0.0, %v1824
        %v1826 = vpop.f32.mrf.mxu0
        %1827 = vmatprep.mubr.f32.mxu0 0.0
        %1828 = vmatmul.mubr.f32.gmra.mxu0 %v1613
        %v1829 = vpop.f32.mrf.mxu0
        %v1830 = vadd.f32 0.0, %v1829
        %v1831 = vpop.f32.mrf.mxu0
        %1832 = vmatprep.mubr.f32.mxu0 0.0
        %1833 = vmatmul.mubr.f32.gmra.mxu0 %v1616
        %v1834 = vpop.f32.mrf.mxu0
        %v1835 = vadd.f32 0.0, %v1834
        %v1836 = vpop.f32.mrf.mxu0
        %1837 = vmatprep.mubr.f32.mxu0 0.0
        %1838 = vmatmul.mubr.f32.gmra.mxu0 %v1619
        %v1839 = vpop.f32.mrf.mxu0
        %v1840 = vadd.f32 0.0, %v1839
        %v1841 = vpop.f32.mrf.mxu0
        %1842 = vmatprep.mubr.f32.mxu0 0.0
        %1843 = vmatmul.mubr.f32.gmra.mxu0 %v1622
        %v1844 = vpop.f32.mrf.mxu0
        %v1845 = vadd.f32 0.0, %v1844
        %v1846 = vpop.f32.mrf.mxu0
        %1847 = vmatprep.mubr.f32.mxu0 0.0
        %1848 = vmatmul.mubr.f32.gmra.mxu0 %v1625
        %v1849 = vpop.f32.mrf.mxu0
        %v1850 = vadd.f32 0.0, %v1849
        %v1851 = vpop.f32.mrf.mxu0
        %1852 = vmatprep.mubr.f32.mxu0 0.0
        %1853 = vmatmul.mubr.f32.gmra.mxu0 %v1628
        %v1854 = vpop.f32.mrf.mxu0
        %v1855 = vadd.f32 0.0, %v1854
        %v1856 = vpop.f32.mrf.mxu0
        %1857 = vdwg.mxu0
        %v1858 = vadd.f32 %v1469, %v1700
        %v1859 = vadd.f32 %v1470, %v1705
        %v1860 = vadd.f32 %v1471, %v1710
        %v1861 = vadd.f32 %v1472, %v1715
        %v1862 = vadd.f32 %v1473, %v1720
        %v1863 = vadd.f32 %v1474, %v1725
        %v1864 = vadd.f32 %v1475, %v1730
        %v1865 = vadd.f32 %v1476, %v1735
        %v1866 = vadd.f32 %v1477, %v1740
        %v1867 = vadd.f32 %v1478, %v1745
        %v1868 = vadd.f32 %v1479, %v1750
        %v1869 = vadd.f32 %v1480, %v1755
        %v1870 = vadd.f32 %v1481, %v1760
        %v1871 = vadd.f32 %v1482, %v1765
        %v1872 = vadd.f32 %v1483, %v1770
        %v1873 = vadd.f32 %v1484, %v1775
        %v1874 = vadd.f32 %v1485, %v1780
        %v1875 = vadd.f32 %v1486, %v1785
        %v1876 = vadd.f32 %v1487, %v1790
        %v1877 = vadd.f32 %v1488, %v1795
        %v1878 = vadd.f32 %v1489, %v1800
        %v1879 = vadd.f32 %v1490, %v1805
        %v1880 = vadd.f32 %v1491, %v1810
        %v1881 = vadd.f32 %v1492, %v1815
        %v1882 = vadd.f32 %v1493, %v1820
        %v1883 = vadd.f32 %v1494, %v1825
        %v1884 = vadd.f32 %v1495, %v1830
        %v1885 = vadd.f32 %v1496, %v1835
        %v1886 = vadd.f32 %v1497, %v1840
        %v1887 = vadd.f32 %v1498, %v1845
        %v1888 = vadd.f32 %v1499, %v1850
        %v1889 = vadd.f32 %v1500, %v1855
        %v1890 = vld [vmem:[%s364 + $0x1] sm:$0xff]
        %v1891 = vld [vmem:[%s364 + $0x9] sm:$0xff]
        %v1892 = vld [vmem:[%s364 + $0x19] sm:$0xff]
        %v1893 = vld [vmem:[%s364 + $0x21] sm:$0xff]
        %v1894 = vld [vmem:[%s364 + $0x31] sm:$0xff]
        %v1895 = vld [vmem:[%s364 + $0x39] sm:$0xff]
        %v1896 = vld [vmem:[%s364 + $0x49] sm:$0xff]
        %v1897 = vld [vmem:[%s364 + $0x51] sm:$0xff]
        %v1898 = vld [vmem:[%s364 + $0x61] sm:$0xff]
        %v1899 = vld [vmem:[%s364 + $0x69] sm:$0xff]
        %v1900 = vld [vmem:[%s364 + $0x79] sm:$0xff]
        %v1901 = vld [vmem:[%s364 + $0x81] sm:$0xff]
        %v1902 = vld [vmem:[%s364 + $0x91] sm:$0xff]
        %v1903 = vld [vmem:[%s364 + $0x99] sm:$0xff]
        %v1904 = vld [vmem:[%s364 + $0xa9] sm:$0xff]
        %v1905 = vld [vmem:[%s364 + $0xb1] sm:$0xff]
        %v1906 = vld [vmem:[%s364 + $0xc1] sm:$0xff]
        %v1907 = vld [vmem:[%s364 + $0xc9] sm:$0xff]
        %v1908 = vld [vmem:[%s364 + $0xd9] sm:$0xff]
        %v1909 = vld [vmem:[%s364 + $0xe1] sm:$0xff]
        %v1910 = vld [vmem:[%s364 + $0xf1] sm:$0xff]
        %v1911 = vld [vmem:[%s364 + $0xf9] sm:$0xff]
        %v1912 = vld [vmem:[%s364 + $0x109] sm:$0xff]
        %v1913 = vld [vmem:[%s364 + $0x111] sm:$0xff]
        %v1914 = vld [vmem:[%s364 + $0x121] sm:$0xff]
        %v1915 = vld [vmem:[%s364 + $0x129] sm:$0xff]
        %v1916 = vld [vmem:[%s364 + $0x139] sm:$0xff]
        %v1917 = vld [vmem:[%s364 + $0x141] sm:$0xff]
        %v1918 = vld [vmem:[%s364 + $0x151] sm:$0xff]
        %v1919 = vld [vmem:[%s364 + $0x159] sm:$0xff]
        %v1920 = vld [vmem:[%s364 + $0x169] sm:$0xff]
        %v1921 = vld [vmem:[%s364 + $0x171] sm:$0xff]
        %v1922 = vld [vmem:[%s1 + $0x10] sm:$0xf]
        %v1924 = vsel %vm276, %v1890, 0
        %v1927 = vsel %vm276, %v1891, 0
        %v1930 = vsel %vm276, %v1892, 0
        %v1933 = vsel %vm276, %v1893, 0
        %v1936 = vsel %vm276, %v1894, 0
        %v1939 = vsel %vm276, %v1895, 0
        %v1942 = vsel %vm276, %v1896, 0
        %v1945 = vsel %vm276, %v1897, 0
        %v1948 = vsel %vm276, %v1898, 0
        %v1951 = vsel %vm276, %v1899, 0
        %v1954 = vsel %vm276, %v1900, 0
        %v1957 = vsel %vm276, %v1901, 0
        %v1960 = vsel %vm276, %v1902, 0
        %v1963 = vsel %vm276, %v1903, 0
        %v1966 = vsel %vm276, %v1904, 0
        %v1969 = vsel %vm276, %v1905, 0
        %v1972 = vsel %vm276, %v1906, 0
        %v1975 = vsel %vm276, %v1907, 0
        %v1978 = vsel %vm276, %v1908, 0
        %v1981 = vsel %vm276, %v1909, 0
        %v1984 = vsel %vm276, %v1910, 0
        %v1987 = vsel %vm276, %v1911, 0
        %v1990 = vsel %vm276, %v1912, 0
        %v1993 = vsel %vm276, %v1913, 0
        %v1996 = vsel %vm276, %v1914, 0
        %v1999 = vsel %vm276, %v1915, 0
        %v2002 = vsel %vm276, %v1916, 0
        %v2005 = vsel %vm276, %v1917, 0
        %v2008 = vsel %vm276, %v1918, 0
        %v2011 = vsel %vm276, %v1919, 0
        %v2014 = vsel %vm276, %v1920, 0
        %v2017 = vsel %vm276, %v1921, 0
        %v2020 = vsel %vm559, %v1922, 0
        %2022 = vmatprep.subr.mxu0 0.0
        %2023 = vmatpush1.msra.mxu0 0.0
        %2024 = vmatprep.subr.mxu0 0.0
        %2025 = vmatpush1.msra.mxu0 0.0
        %2026 = vmatprep.subr.mxu0 0.0
        %2027 = vmatpush1.msra.mxu0 0.0
        %2028 = vmatprep.subr.mxu0 0.0
        %2029 = vmatpush1.msra.mxu0 0.0
        %2030 = vmatprep.subr.mxu0 0.0
        %2031 = vmatpush1.msra.mxu0 0.0
        %2032 = vmatprep.subr.mxu0 0.0
        %2033 = vmatpush1.msra.mxu0 0.0
        %2034 = vmatprep.subr.mxu0 0.0
        %2035 = vmatpush1.msra.mxu0 0.0
        %2036 = vmatprep.subr.mxu0 0.0
        %2037 = vmatpush1.msra.mxu0 0.0
        %2038 = vmatprep.subr.mxu0 0.0
        %2039 = vmatpush1.msra.mxu0 0.0
        %2040 = vmatprep.subr.mxu0 0.0
        %2041 = vmatpush1.msra.mxu0 0.0
        %2042 = vmatprep.subr.mxu0 0.0
        %2043 = vmatpush1.msra.mxu0 0.0
        %2044 = vmatprep.subr.mxu0 0.0
        %2045 = vmatpush1.msra.mxu0 0.0
        %2046 = vmatprep.subr.mxu0 0.0
        %2047 = vmatpush1.msra.mxu0 0.0
        %2048 = vmatprep.subr.mxu0 0.0
        %2049 = vmatpush1.msra.mxu0 0.0
        %2050 = vmatprep.subr.mxu0 0.0
        %2051 = vmatpush1.msra.mxu0 0.0
        %2052 = vmatprep.subr.mxu0 0.0
        %2053 = vmatpush1.msra.mxu0 %v2020
        %2054 = vmatprep.subr.mxu0 0.0
        %2055 = vmatpush2.msra.mxu0 0.0
        %2056 = vmatprep.subr.mxu0 0.0
        %2057 = vmatpush2.msra.mxu0 0.0
        %2058 = vmatprep.subr.mxu0 0.0
        %2059 = vmatpush2.msra.mxu0 0.0
        %2060 = vmatprep.subr.mxu0 0.0
        %2061 = vmatpush2.msra.mxu0 0.0
        %2062 = vmatprep.subr.mxu0 0.0
        %2063 = vmatpush2.msra.mxu0 0.0
        %2064 = vmatprep.subr.mxu0 0.0
        %2065 = vmatpush2.msra.mxu0 0.0
        %2066 = vmatprep.subr.mxu0 0.0
        %2067 = vmatpush2.msra.mxu0 0.0
        %2068 = vmatprep.subr.mxu0 0.0
        %2069 = vmatpush2.msra.mxu0 0.0
        %2070 = vmatprep.subr.mxu0 0.0
        %2071 = vmatpush2.msra.mxu0 0.0
        %2072 = vmatprep.subr.mxu0 0.0
        %2073 = vmatpush2.msra.mxu0 0.0
        %2074 = vmatprep.subr.mxu0 0.0
        %2075 = vmatpush2.msra.mxu0 0.0
        %2076 = vmatprep.subr.mxu0 0.0
        %2077 = vmatpush2.msra.mxu0 0.0
        %2078 = vmatprep.subr.mxu0 0.0
        %2079 = vmatpush2.msra.mxu0 0.0
        %2080 = vmatprep.subr.mxu0 0.0
        %2081 = vmatpush2.msra.mxu0 0.0
        %2082 = vmatprep.subr.mxu0 0.0
        %2083 = vmatpush2.msra.mxu0 0.0
        %2084 = vmatprep.subr.mxu0 0.0
        %2085 = vmatpush2.msra.mxu0 0.0
        %2086 = vmatprep.mubr.f32.mxu0 0.0
        %2087 = vmatmul.mubr.f32.gmra.mxu0 %v1924
        %v2088 = vpop.f32.mrf.mxu0
        %v2089 = vadd.f32 0.0, %v2088
        %v2090 = vpop.f32.mrf.mxu0
        %2091 = vmatprep.mubr.f32.mxu0 0.0
        %2092 = vmatmul.mubr.f32.gmra.mxu0 %v1927
        %v2093 = vpop.f32.mrf.mxu0
        %v2094 = vadd.f32 0.0, %v2093
        %v2095 = vpop.f32.mrf.mxu0
        %2096 = vmatprep.mubr.f32.mxu0 0.0
        %2097 = vmatmul.mubr.f32.gmra.mxu0 %v1930
        %v2098 = vpop.f32.mrf.mxu0
        %v2099 = vadd.f32 0.0, %v2098
        %v2100 = vpop.f32.mrf.mxu0
        %2101 = vmatprep.mubr.f32.mxu0 0.0
        %2102 = vmatmul.mubr.f32.gmra.mxu0 %v1933
        %v2103 = vpop.f32.mrf.mxu0
        %v2104 = vadd.f32 0.0, %v2103
        %v2105 = vpop.f32.mrf.mxu0
        %2106 = vmatprep.mubr.f32.mxu0 0.0
        %2107 = vmatmul.mubr.f32.gmra.mxu0 %v1936
        %v2108 = vpop.f32.mrf.mxu0
        %v2109 = vadd.f32 0.0, %v2108
        %v2110 = vpop.f32.mrf.mxu0
        %2111 = vmatprep.mubr.f32.mxu0 0.0
        %2112 = vmatmul.mubr.f32.gmra.mxu0 %v1939
        %v2113 = vpop.f32.mrf.mxu0
        %v2114 = vadd.f32 0.0, %v2113
        %v2115 = vpop.f32.mrf.mxu0
        %2116 = vmatprep.mubr.f32.mxu0 0.0
        %2117 = vmatmul.mubr.f32.gmra.mxu0 %v1942
        %v2118 = vpop.f32.mrf.mxu0
        %v2119 = vadd.f32 0.0, %v2118
        %v2120 = vpop.f32.mrf.mxu0
        %2121 = vmatprep.mubr.f32.mxu0 0.0
        %2122 = vmatmul.mubr.f32.gmra.mxu0 %v1945
        %v2123 = vpop.f32.mrf.mxu0
        %v2124 = vadd.f32 0.0, %v2123
        %v2125 = vpop.f32.mrf.mxu0
        %2126 = vmatprep.mubr.f32.mxu0 0.0
        %2127 = vmatmul.mubr.f32.gmra.mxu0 %v1948
        %v2128 = vpop.f32.mrf.mxu0
        %v2129 = vadd.f32 0.0, %v2128
        %v2130 = vpop.f32.mrf.mxu0
        %2131 = vmatprep.mubr.f32.mxu0 0.0
        %2132 = vmatmul.mubr.f32.gmra.mxu0 %v1951
        %v2133 = vpop.f32.mrf.mxu0
        %v2134 = vadd.f32 0.0, %v2133
        %v2135 = vpop.f32.mrf.mxu0
        %2136 = vmatprep.mubr.f32.mxu0 0.0
        %2137 = vmatmul.mubr.f32.gmra.mxu0 %v1954
        %v2138 = vpop.f32.mrf.mxu0
        %v2139 = vadd.f32 0.0, %v2138
        %v2140 = vpop.f32.mrf.mxu0
        %2141 = vmatprep.mubr.f32.mxu0 0.0
        %2142 = vmatmul.mubr.f32.gmra.mxu0 %v1957
        %v2143 = vpop.f32.mrf.mxu0
        %v2144 = vadd.f32 0.0, %v2143
        %v2145 = vpop.f32.mrf.mxu0
        %2146 = vmatprep.mubr.f32.mxu0 0.0
        %2147 = vmatmul.mubr.f32.gmra.mxu0 %v1960
        %v2148 = vpop.f32.mrf.mxu0
        %v2149 = vadd.f32 0.0, %v2148
        %v2150 = vpop.f32.mrf.mxu0
        %2151 = vmatprep.mubr.f32.mxu0 0.0
        %2152 = vmatmul.mubr.f32.gmra.mxu0 %v1963
        %v2153 = vpop.f32.mrf.mxu0
        %v2154 = vadd.f32 0.0, %v2153
        %v2155 = vpop.f32.mrf.mxu0
        %2156 = vmatprep.mubr.f32.mxu0 0.0
        %2157 = vmatmul.mubr.f32.gmra.mxu0 %v1966
        %v2158 = vpop.f32.mrf.mxu0
        %v2159 = vadd.f32 0.0, %v2158
        %v2160 = vpop.f32.mrf.mxu0
        %2161 = vmatprep.mubr.f32.mxu0 0.0
        %2162 = vmatmul.mubr.f32.gmra.mxu0 %v1969
        %v2163 = vpop.f32.mrf.mxu0
        %v2164 = vadd.f32 0.0, %v2163
        %v2165 = vpop.f32.mrf.mxu0
        %2166 = vmatprep.mubr.f32.mxu0 0.0
        %2167 = vmatmul.mubr.f32.gmra.mxu0 %v1972
        %v2168 = vpop.f32.mrf.mxu0
        %v2169 = vadd.f32 0.0, %v2168
        %v2170 = vpop.f32.mrf.mxu0
        %2171 = vmatprep.mubr.f32.mxu0 0.0
        %2172 = vmatmul.mubr.f32.gmra.mxu0 %v1975
        %v2173 = vpop.f32.mrf.mxu0
        %v2174 = vadd.f32 0.0, %v2173
        %v2175 = vpop.f32.mrf.mxu0
        %2176 = vmatprep.mubr.f32.mxu0 0.0
        %2177 = vmatmul.mubr.f32.gmra.mxu0 %v1978
        %v2178 = vpop.f32.mrf.mxu0
        %v2179 = vadd.f32 0.0, %v2178
        %v2180 = vpop.f32.mrf.mxu0
        %2181 = vmatprep.mubr.f32.mxu0 0.0
        %2182 = vmatmul.mubr.f32.gmra.mxu0 %v1981
        %v2183 = vpop.f32.mrf.mxu0
        %v2184 = vadd.f32 0.0, %v2183
        %v2185 = vpop.f32.mrf.mxu0
        %2186 = vmatprep.mubr.f32.mxu0 0.0
        %2187 = vmatmul.mubr.f32.gmra.mxu0 %v1984
        %v2188 = vpop.f32.mrf.mxu0
        %v2189 = vadd.f32 0.0, %v2188
        %v2190 = vpop.f32.mrf.mxu0
        %2191 = vmatprep.mubr.f32.mxu0 0.0
        %2192 = vmatmul.mubr.f32.gmra.mxu0 %v1987
        %v2193 = vpop.f32.mrf.mxu0
        %v2194 = vadd.f32 0.0, %v2193
        %v2195 = vpop.f32.mrf.mxu0
        %2196 = vmatprep.mubr.f32.mxu0 0.0
        %2197 = vmatmul.mubr.f32.gmra.mxu0 %v1990
        %v2198 = vpop.f32.mrf.mxu0
        %v2199 = vadd.f32 0.0, %v2198
        %v2200 = vpop.f32.mrf.mxu0
        %2201 = vmatprep.mubr.f32.mxu0 0.0
        %2202 = vmatmul.mubr.f32.gmra.mxu0 %v1993
        %v2203 = vpop.f32.mrf.mxu0
        %v2204 = vadd.f32 0.0, %v2203
        %v2205 = vpop.f32.mrf.mxu0
        %2206 = vmatprep.mubr.f32.mxu0 0.0
        %2207 = vmatmul.mubr.f32.gmra.mxu0 %v1996
        %v2208 = vpop.f32.mrf.mxu0
        %v2209 = vadd.f32 0.0, %v2208
        %v2210 = vpop.f32.mrf.mxu0
        %2211 = vmatprep.mubr.f32.mxu0 0.0
        %2212 = vmatmul.mubr.f32.gmra.mxu0 %v1999
        %v2213 = vpop.f32.mrf.mxu0
        %v2214 = vadd.f32 0.0, %v2213
        %v2215 = vpop.f32.mrf.mxu0
        %2216 = vmatprep.mubr.f32.mxu0 0.0
        %2217 = vmatmul.mubr.f32.gmra.mxu0 %v2002
        %v2218 = vpop.f32.mrf.mxu0
        %v2219 = vadd.f32 0.0, %v2218
        %v2220 = vpop.f32.mrf.mxu0
        %2221 = vmatprep.mubr.f32.mxu0 0.0
        %2222 = vmatmul.mubr.f32.gmra.mxu0 %v2005
        %v2223 = vpop.f32.mrf.mxu0
        %v2224 = vadd.f32 0.0, %v2223
        %v2225 = vpop.f32.mrf.mxu0
        %2226 = vmatprep.mubr.f32.mxu0 0.0
        %2227 = vmatmul.mubr.f32.gmra.mxu0 %v2008
        %v2228 = vpop.f32.mrf.mxu0
        %v2229 = vadd.f32 0.0, %v2228
        %v2230 = vpop.f32.mrf.mxu0
        %2231 = vmatprep.mubr.f32.mxu0 0.0
        %2232 = vmatmul.mubr.f32.gmra.mxu0 %v2011
        %v2233 = vpop.f32.mrf.mxu0
        %v2234 = vadd.f32 0.0, %v2233
        %v2235 = vpop.f32.mrf.mxu0
        %2236 = vmatprep.mubr.f32.mxu0 0.0
        %2237 = vmatmul.mubr.f32.gmra.mxu0 %v2014
        %v2238 = vpop.f32.mrf.mxu0
        %v2239 = vadd.f32 0.0, %v2238
        %v2240 = vpop.f32.mrf.mxu0
        %2241 = vmatprep.mubr.f32.mxu0 0.0
        %2242 = vmatmul.mubr.f32.gmra.mxu0 %v2017
        %v2243 = vpop.f32.mrf.mxu0
        %v2244 = vadd.f32 0.0, %v2243
        %v2245 = vpop.f32.mrf.mxu0
        %2246 = vdwg.mxu0
        %v2247 = vadd.f32 %v1858, %v2089
        %v2248 = vadd.f32 %v1859, %v2094
        %v2249 = vadd.f32 %v1860, %v2099
        %v2250 = vadd.f32 %v1861, %v2104
        %v2251 = vadd.f32 %v1862, %v2109
        %v2252 = vadd.f32 %v1863, %v2114
        %v2253 = vadd.f32 %v1864, %v2119
        %v2254 = vadd.f32 %v1865, %v2124
        %v2255 = vadd.f32 %v1866, %v2129
        %v2256 = vadd.f32 %v1867, %v2134
        %v2257 = vadd.f32 %v1868, %v2139
        %v2258 = vadd.f32 %v1869, %v2144
        %v2259 = vadd.f32 %v1870, %v2149
        %v2260 = vadd.f32 %v1871, %v2154
        %v2261 = vadd.f32 %v1872, %v2159
        %v2262 = vadd.f32 %v1873, %v2164
        %v2263 = vadd.f32 %v1874, %v2169
        %v2264 = vadd.f32 %v1875, %v2174
        %v2265 = vadd.f32 %v1876, %v2179
        %v2266 = vadd.f32 %v1877, %v2184
        %v2267 = vadd.f32 %v1878, %v2189
        %v2268 = vadd.f32 %v1879, %v2194
        %v2269 = vadd.f32 %v1880, %v2199
        %v2270 = vadd.f32 %v1881, %v2204
        %v2271 = vadd.f32 %v1882, %v2209
        %v2272 = vadd.f32 %v1883, %v2214
        %v2273 = vadd.f32 %v1884, %v2219
        %v2274 = vadd.f32 %v1885, %v2224
        %v2275 = vadd.f32 %v1886, %v2229
        %v2276 = vadd.f32 %v1887, %v2234
        %v2277 = vadd.f32 %v1888, %v2239
        %v2278 = vadd.f32 %v1889, %v2244
        %v2279 = vld [vmem:[%s364 + $0x2] sm:$0xff]
        %v2280 = vld [vmem:[%s364 + $0xa] sm:$0xff]
        %v2281 = vld [vmem:[%s364 + $0x1a] sm:$0xff]
        %v2282 = vld [vmem:[%s364 + $0x22] sm:$0xff]
        %v2283 = vld [vmem:[%s364 + $0x32] sm:$0xff]
        %v2284 = vld [vmem:[%s364 + $0x3a] sm:$0xff]
        %v2285 = vld [vmem:[%s364 + $0x4a] sm:$0xff]
        %v2286 = vld [vmem:[%s364 + $0x52] sm:$0xff]
        %v2287 = vld [vmem:[%s364 + $0x62] sm:$0xff]
        %v2288 = vld [vmem:[%s364 + $0x6a] sm:$0xff]
        %v2289 = vld [vmem:[%s364 + $0x7a] sm:$0xff]
        %v2290 = vld [vmem:[%s364 + $0x82] sm:$0xff]
        %v2291 = vld [vmem:[%s364 + $0x92] sm:$0xff]
        %v2292 = vld [vmem:[%s364 + $0x9a] sm:$0xff]
        %v2293 = vld [vmem:[%s364 + $0xaa] sm:$0xff]
        %v2294 = vld [vmem:[%s364 + $0xb2] sm:$0xff]
        %v2295 = vld [vmem:[%s364 + $0xc2] sm:$0xff]
        %v2296 = vld [vmem:[%s364 + $0xca] sm:$0xff]
        %v2297 = vld [vmem:[%s364 + $0xda] sm:$0xff]
        %v2298 = vld [vmem:[%s364 + $0xe2] sm:$0xff]
        %v2299 = vld [vmem:[%s364 + $0xf2] sm:$0xff]
        %v2300 = vld [vmem:[%s364 + $0xfa] sm:$0xff]
        %v2301 = vld [vmem:[%s364 + $0x10a] sm:$0xff]
        %v2302 = vld [vmem:[%s364 + $0x112] sm:$0xff]
        %v2303 = vld [vmem:[%s364 + $0x122] sm:$0xff]
        %v2304 = vld [vmem:[%s364 + $0x12a] sm:$0xff]
        %v2305 = vld [vmem:[%s364 + $0x13a] sm:$0xff]
        %v2306 = vld [vmem:[%s364 + $0x142] sm:$0xff]
        %v2307 = vld [vmem:[%s364 + $0x152] sm:$0xff]
        %v2308 = vld [vmem:[%s364 + $0x15a] sm:$0xff]
        %v2309 = vld [vmem:[%s364 + $0x16a] sm:$0xff]
        %v2310 = vld [vmem:[%s364 + $0x172] sm:$0xff]
        %v2311 = vld [vmem:[%s1 + $0x14] sm:$0xf]
        %v2313 = vsel %vm276, %v2279, 0
        %v2316 = vsel %vm276, %v2280, 0
        %v2319 = vsel %vm276, %v2281, 0
        %v2322 = vsel %vm276, %v2282, 0
        %v2325 = vsel %vm276, %v2283, 0
        %v2328 = vsel %vm276, %v2284, 0
        %v2331 = vsel %vm276, %v2285, 0
        %v2334 = vsel %vm276, %v2286, 0
        %v2337 = vsel %vm276, %v2287, 0
        %v2340 = vsel %vm276, %v2288, 0
        %v2343 = vsel %vm276, %v2289, 0
        %v2346 = vsel %vm276, %v2290, 0
        %v2349 = vsel %vm276, %v2291, 0
        %v2352 = vsel %vm276, %v2292, 0
        %v2355 = vsel %vm276, %v2293, 0
        %v2358 = vsel %vm276, %v2294, 0
        %v2361 = vsel %vm276, %v2295, 0
        %v2364 = vsel %vm276, %v2296, 0
        %v2367 = vsel %vm276, %v2297, 0
        %v2370 = vsel %vm276, %v2298, 0
        %v2373 = vsel %vm276, %v2299, 0
        %v2376 = vsel %vm276, %v2300, 0
        %v2379 = vsel %vm276, %v2301, 0
        %v2382 = vsel %vm276, %v2302, 0
        %v2385 = vsel %vm276, %v2303, 0
        %v2388 = vsel %vm276, %v2304, 0
        %v2391 = vsel %vm276, %v2305, 0
        %v2394 = vsel %vm276, %v2306, 0
        %v2397 = vsel %vm276, %v2307, 0
        %v2400 = vsel %vm276, %v2308, 0
        %v2403 = vsel %vm276, %v2309, 0
        %v2406 = vsel %vm276, %v2310, 0
        %v2409 = vsel %vm559, %v2311, 0
        %2411 = vmatprep.subr.mxu0 0.0
        %2412 = vmatpush1.msra.mxu0 0.0
        %2413 = vmatprep.subr.mxu0 0.0
        %2414 = vmatpush1.msra.mxu0 0.0
        %2415 = vmatprep.subr.mxu0 0.0
        %2416 = vmatpush1.msra.mxu0 0.0
        %2417 = vmatprep.subr.mxu0 0.0
        %2418 = vmatpush1.msra.mxu0 0.0
        %2419 = vmatprep.subr.mxu0 0.0
        %2420 = vmatpush1.msra.mxu0 0.0
        %2421 = vmatprep.subr.mxu0 0.0
        %2422 = vmatpush1.msra.mxu0 0.0
        %2423 = vmatprep.subr.mxu0 0.0
        %2424 = vmatpush1.msra.mxu0 0.0
        %2425 = vmatprep.subr.mxu0 0.0
        %2426 = vmatpush1.msra.mxu0 0.0
        %2427 = vmatprep.subr.mxu0 0.0
        %2428 = vmatpush1.msra.mxu0 0.0
        %2429 = vmatprep.subr.mxu0 0.0
        %2430 = vmatpush1.msra.mxu0 0.0
        %2431 = vmatprep.subr.mxu0 0.0
        %2432 = vmatpush1.msra.mxu0 0.0
        %2433 = vmatprep.subr.mxu0 0.0
        %2434 = vmatpush1.msra.mxu0 0.0
        %2435 = vmatprep.subr.mxu0 0.0
        %2436 = vmatpush1.msra.mxu0 0.0
        %2437 = vmatprep.subr.mxu0 0.0
        %2438 = vmatpush1.msra.mxu0 0.0
        %2439 = vmatprep.subr.mxu0 0.0
        %2440 = vmatpush1.msra.mxu0 0.0
        %2441 = vmatprep.subr.mxu0 0.0
        %2442 = vmatpush1.msra.mxu0 %v2409
        %2443 = vmatprep.subr.mxu0 0.0
        %2444 = vmatpush2.msra.mxu0 0.0
        %2445 = vmatprep.subr.mxu0 0.0
        %2446 = vmatpush2.msra.mxu0 0.0
        %2447 = vmatprep.subr.mxu0 0.0
        %2448 = vmatpush2.msra.mxu0 0.0
        %2449 = vmatprep.subr.mxu0 0.0
        %2450 = vmatpush2.msra.mxu0 0.0
        %2451 = vmatprep.subr.mxu0 0.0
        %2452 = vmatpush2.msra.mxu0 0.0
        %2453 = vmatprep.subr.mxu0 0.0
        %2454 = vmatpush2.msra.mxu0 0.0
        %2455 = vmatprep.subr.mxu0 0.0
        %2456 = vmatpush2.msra.mxu0 0.0
        %2457 = vmatprep.subr.mxu0 0.0
        %2458 = vmatpush2.msra.mxu0 0.0
        %2459 = vmatprep.subr.mxu0 0.0
        %2460 = vmatpush2.msra.mxu0 0.0
        %2461 = vmatprep.subr.mxu0 0.0
        %2462 = vmatpush2.msra.mxu0 0.0
        %2463 = vmatprep.subr.mxu0 0.0
        %2464 = vmatpush2.msra.mxu0 0.0
        %2465 = vmatprep.subr.mxu0 0.0
        %2466 = vmatpush2.msra.mxu0 0.0
        %2467 = vmatprep.subr.mxu0 0.0
        %2468 = vmatpush2.msra.mxu0 0.0
        %2469 = vmatprep.subr.mxu0 0.0
        %2470 = vmatpush2.msra.mxu0 0.0
        %2471 = vmatprep.subr.mxu0 0.0
        %2472 = vmatpush2.msra.mxu0 0.0
        %2473 = vmatprep.subr.mxu0 0.0
        %2474 = vmatpush2.msra.mxu0 0.0
        %2475 = vmatprep.mubr.f32.mxu0 0.0
        %2476 = vmatmul.mubr.f32.gmra.mxu0 %v2313
        %v2477 = vpop.f32.mrf.mxu0
        %v2478 = vadd.f32 0.0, %v2477
        %v2479 = vpop.f32.mrf.mxu0
        %2480 = vmatprep.mubr.f32.mxu0 0.0
        %2481 = vmatmul.mubr.f32.gmra.mxu0 %v2316
        %v2482 = vpop.f32.mrf.mxu0
        %v2483 = vadd.f32 0.0, %v2482
        %v2484 = vpop.f32.mrf.mxu0
        %2485 = vmatprep.mubr.f32.mxu0 0.0
        %2486 = vmatmul.mubr.f32.gmra.mxu0 %v2319
        %v2487 = vpop.f32.mrf.mxu0
        %v2488 = vadd.f32 0.0, %v2487
        %v2489 = vpop.f32.mrf.mxu0
        %2490 = vmatprep.mubr.f32.mxu0 0.0
        %2491 = vmatmul.mubr.f32.gmra.mxu0 %v2322
        %v2492 = vpop.f32.mrf.mxu0
        %v2493 = vadd.f32 0.0, %v2492
        %v2494 = vpop.f32.mrf.mxu0
        %2495 = vmatprep.mubr.f32.mxu0 0.0
        %2496 = vmatmul.mubr.f32.gmra.mxu0 %v2325
        %v2497 = vpop.f32.mrf.mxu0
        %v2498 = vadd.f32 0.0, %v2497
        %v2499 = vpop.f32.mrf.mxu0
        %2500 = vmatprep.mubr.f32.mxu0 0.0
        %2501 = vmatmul.mubr.f32.gmra.mxu0 %v2328
        %v2502 = vpop.f32.mrf.mxu0
        %v2503 = vadd.f32 0.0, %v2502
        %v2504 = vpop.f32.mrf.mxu0
        %2505 = vmatprep.mubr.f32.mxu0 0.0
        %2506 = vmatmul.mubr.f32.gmra.mxu0 %v2331
        %v2507 = vpop.f32.mrf.mxu0
        %v2508 = vadd.f32 0.0, %v2507
        %v2509 = vpop.f32.mrf.mxu0
        %2510 = vmatprep.mubr.f32.mxu0 0.0
        %2511 = vmatmul.mubr.f32.gmra.mxu0 %v2334
        %v2512 = vpop.f32.mrf.mxu0
        %v2513 = vadd.f32 0.0, %v2512
        %v2514 = vpop.f32.mrf.mxu0
        %2515 = vmatprep.mubr.f32.mxu0 0.0
        %2516 = vmatmul.mubr.f32.gmra.mxu0 %v2337
        %v2517 = vpop.f32.mrf.mxu0
        %v2518 = vadd.f32 0.0, %v2517
        %v2519 = vpop.f32.mrf.mxu0
        %2520 = vmatprep.mubr.f32.mxu0 0.0
        %2521 = vmatmul.mubr.f32.gmra.mxu0 %v2340
        %v2522 = vpop.f32.mrf.mxu0
        %v2523 = vadd.f32 0.0, %v2522
        %v2524 = vpop.f32.mrf.mxu0
        %2525 = vmatprep.mubr.f32.mxu0 0.0
        %2526 = vmatmul.mubr.f32.gmra.mxu0 %v2343
        %v2527 = vpop.f32.mrf.mxu0
        %v2528 = vadd.f32 0.0, %v2527
        %v2529 = vpop.f32.mrf.mxu0
        %2530 = vmatprep.mubr.f32.mxu0 0.0
        %2531 = vmatmul.mubr.f32.gmra.mxu0 %v2346
        %v2532 = vpop.f32.mrf.mxu0
        %v2533 = vadd.f32 0.0, %v2532
        %v2534 = vpop.f32.mrf.mxu0
        %2535 = vmatprep.mubr.f32.mxu0 0.0
        %2536 = vmatmul.mubr.f32.gmra.mxu0 %v2349
        %v2537 = vpop.f32.mrf.mxu0
        %v2538 = vadd.f32 0.0, %v2537
        %v2539 = vpop.f32.mrf.mxu0
        %2540 = vmatprep.mubr.f32.mxu0 0.0
        %2541 = vmatmul.mubr.f32.gmra.mxu0 %v2352
        %v2542 = vpop.f32.mrf.mxu0
        %v2543 = vadd.f32 0.0, %v2542
        %v2544 = vpop.f32.mrf.mxu0
        %2545 = vmatprep.mubr.f32.mxu0 0.0
        %2546 = vmatmul.mubr.f32.gmra.mxu0 %v2355
        %v2547 = vpop.f32.mrf.mxu0
        %v2548 = vadd.f32 0.0, %v2547
        %v2549 = vpop.f32.mrf.mxu0
        %2550 = vmatprep.mubr.f32.mxu0 0.0
        %2551 = vmatmul.mubr.f32.gmra.mxu0 %v2358
        %v2552 = vpop.f32.mrf.mxu0
        %v2553 = vadd.f32 0.0, %v2552
        %v2554 = vpop.f32.mrf.mxu0
        %2555 = vmatprep.mubr.f32.mxu0 0.0
        %2556 = vmatmul.mubr.f32.gmra.mxu0 %v2361
        %v2557 = vpop.f32.mrf.mxu0
        %v2558 = vadd.f32 0.0, %v2557
        %v2559 = vpop.f32.mrf.mxu0
        %2560 = vmatprep.mubr.f32.mxu0 0.0
        %2561 = vmatmul.mubr.f32.gmra.mxu0 %v2364
        %v2562 = vpop.f32.mrf.mxu0
        %v2563 = vadd.f32 0.0, %v2562
        %v2564 = vpop.f32.mrf.mxu0
        %2565 = vmatprep.mubr.f32.mxu0 0.0
        %2566 = vmatmul.mubr.f32.gmra.mxu0 %v2367
        %v2567 = vpop.f32.mrf.mxu0
        %v2568 = vadd.f32 0.0, %v2567
        %v2569 = vpop.f32.mrf.mxu0
        %2570 = vmatprep.mubr.f32.mxu0 0.0
        %2571 = vmatmul.mubr.f32.gmra.mxu0 %v2370
        %v2572 = vpop.f32.mrf.mxu0
        %v2573 = vadd.f32 0.0, %v2572
        %v2574 = vpop.f32.mrf.mxu0
        %2575 = vmatprep.mubr.f32.mxu0 0.0
        %2576 = vmatmul.mubr.f32.gmra.mxu0 %v2373
        %v2577 = vpop.f32.mrf.mxu0
        %v2578 = vadd.f32 0.0, %v2577
        %v2579 = vpop.f32.mrf.mxu0
        %2580 = vmatprep.mubr.f32.mxu0 0.0
        %2581 = vmatmul.mubr.f32.gmra.mxu0 %v2376
        %v2582 = vpop.f32.mrf.mxu0
        %v2583 = vadd.f32 0.0, %v2582
        %v2584 = vpop.f32.mrf.mxu0
        %2585 = vmatprep.mubr.f32.mxu0 0.0
        %2586 = vmatmul.mubr.f32.gmra.mxu0 %v2379
        %v2587 = vpop.f32.mrf.mxu0
        %v2588 = vadd.f32 0.0, %v2587
        %v2589 = vpop.f32.mrf.mxu0
        %2590 = vmatprep.mubr.f32.mxu0 0.0
        %2591 = vmatmul.mubr.f32.gmra.mxu0 %v2382
        %v2592 = vpop.f32.mrf.mxu0
        %v2593 = vadd.f32 0.0, %v2592
        %v2594 = vpop.f32.mrf.mxu0
        %2595 = vmatprep.mubr.f32.mxu0 0.0
        %2596 = vmatmul.mubr.f32.gmra.mxu0 %v2385
        %v2597 = vpop.f32.mrf.mxu0
        %v2598 = vadd.f32 0.0, %v2597
        %v2599 = vpop.f32.mrf.mxu0
        %2600 = vmatprep.mubr.f32.mxu0 0.0
        %2601 = vmatmul.mubr.f32.gmra.mxu0 %v2388
        %v2602 = vpop.f32.mrf.mxu0
        %v2603 = vadd.f32 0.0, %v2602
        %v2604 = vpop.f32.mrf.mxu0
        %2605 = vmatprep.mubr.f32.mxu0 0.0
        %2606 = vmatmul.mubr.f32.gmra.mxu0 %v2391
        %v2607 = vpop.f32.mrf.mxu0
        %v2608 = vadd.f32 0.0, %v2607
        %v2609 = vpop.f32.mrf.mxu0
        %2610 = vmatprep.mubr.f32.mxu0 0.0
        %2611 = vmatmul.mubr.f32.gmra.mxu0 %v2394
        %v2612 = vpop.f32.mrf.mxu0
        %v2613 = vadd.f32 0.0, %v2612
        %v2614 = vpop.f32.mrf.mxu0
        %2615 = vmatprep.mubr.f32.mxu0 0.0
        %2616 = vmatmul.mubr.f32.gmra.mxu0 %v2397
        %v2617 = vpop.f32.mrf.mxu0
        %v2618 = vadd.f32 0.0, %v2617
        %v2619 = vpop.f32.mrf.mxu0
        %2620 = vmatprep.mubr.f32.mxu0 0.0
        %2621 = vmatmul.mubr.f32.gmra.mxu0 %v2400
        %v2622 = vpop.f32.mrf.mxu0
        %v2623 = vadd.f32 0.0, %v2622
        %v2624 = vpop.f32.mrf.mxu0
        %2625 = vmatprep.mubr.f32.mxu0 0.0
        %2626 = vmatmul.mubr.f32.gmra.mxu0 %v2403
        %v2627 = vpop.f32.mrf.mxu0
        %v2628 = vadd.f32 0.0, %v2627
        %v2629 = vpop.f32.mrf.mxu0
        %2630 = vmatprep.mubr.f32.mxu0 0.0
        %2631 = vmatmul.mubr.f32.gmra.mxu0 %v2406
        %v2632 = vpop.f32.mrf.mxu0
        %v2633 = vadd.f32 0.0, %v2632
        %v2634 = vpop.f32.mrf.mxu0
        %2635 = vdwg.mxu0
        %v2636 = vadd.f32 %v2247, %v2478
        %v2637 = vadd.f32 %v2248, %v2483
        %v2638 = vadd.f32 %v2249, %v2488
        %v2639 = vadd.f32 %v2250, %v2493
        %v2640 = vadd.f32 %v2251, %v2498
        %v2641 = vadd.f32 %v2252, %v2503
        %v2642 = vadd.f32 %v2253, %v2508
        %v2643 = vadd.f32 %v2254, %v2513
        %v2644 = vadd.f32 %v2255, %v2518
        %v2645 = vadd.f32 %v2256, %v2523
        %v2646 = vadd.f32 %v2257, %v2528
        %v2647 = vadd.f32 %v2258, %v2533
        %v2648 = vadd.f32 %v2259, %v2538
        %v2649 = vadd.f32 %v2260, %v2543
        %v2650 = vadd.f32 %v2261, %v2548
        %v2651 = vadd.f32 %v2262, %v2553
        %v2652 = vadd.f32 %v2263, %v2558
        %v2653 = vadd.f32 %v2264, %v2563
        %v2654 = vadd.f32 %v2265, %v2568
        %v2655 = vadd.f32 %v2266, %v2573
        %v2656 = vadd.f32 %v2267, %v2578
        %v2657 = vadd.f32 %v2268, %v2583
        %v2658 = vadd.f32 %v2269, %v2588
        %v2659 = vadd.f32 %v2270, %v2593
        %v2660 = vadd.f32 %v2271, %v2598
        %v2661 = vadd.f32 %v2272, %v2603
        %v2662 = vadd.f32 %v2273, %v2608
        %v2663 = vadd.f32 %v2274, %v2613
        %v2664 = vadd.f32 %v2275, %v2618
        %v2665 = vadd.f32 %v2276, %v2623
        %v2666 = vadd.f32 %v2277, %v2628
        %v2667 = vadd.f32 %v2278, %v2633
        %s2668 = scalar_lea.vmem [#allocation2], 48
        %v2669 = vld [vmem:[%s2668] sm:$0xff]
        %v2670 = vld [vmem:[%s2668 + $0x8] sm:$0xff]
        %v2671 = vld [vmem:[%s2668 + $0x18] sm:$0xff]
        %v2672 = vld [vmem:[%s2668 + $0x20] sm:$0xff]
        %v2673 = vld [vmem:[%s2668 + $0x30] sm:$0xff]
        %v2674 = vld [vmem:[%s2668 + $0x38] sm:$0xff]
        %v2675 = vld [vmem:[%s2668 + $0x48] sm:$0xff]
        %v2676 = vld [vmem:[%s2668 + $0x50] sm:$0xff]
        %v2677 = vld [vmem:[%s2668 + $0x60] sm:$0xff]
        %v2678 = vld [vmem:[%s2668 + $0x68] sm:$0xff]
        %v2679 = vld [vmem:[%s2668 + $0x78] sm:$0xff]
        %v2680 = vld [vmem:[%s2668 + $0x80] sm:$0xff]
        %v2681 = vld [vmem:[%s2668 + $0x90] sm:$0xff]
        %v2682 = vld [vmem:[%s2668 + $0x98] sm:$0xff]
        %v2683 = vld [vmem:[%s2668 + $0xa8] sm:$0xff]
        %v2684 = vld [vmem:[%s2668 + $0xb0] sm:$0xff]
        %v2685 = vld [vmem:[%s2668 + $0xc0] sm:$0xff]
        %v2686 = vld [vmem:[%s2668 + $0xc8] sm:$0xff]
        %v2687 = vld [vmem:[%s2668 + $0xd8] sm:$0xff]
        %v2688 = vld [vmem:[%s2668 + $0xe0] sm:$0xff]
        %v2689 = vld [vmem:[%s2668 + $0xf0] sm:$0xff]
        %v2690 = vld [vmem:[%s2668 + $0xf8] sm:$0xff]
        %v2691 = vld [vmem:[%s2668 + $0x108] sm:$0xff]
        %v2692 = vld [vmem:[%s2668 + $0x110] sm:$0xff]
        %v2693 = vld [vmem:[%s2668 + $0x120] sm:$0xff]
        %v2694 = vld [vmem:[%s2668 + $0x128] sm:$0xff]
        %v2695 = vld [vmem:[%s2668 + $0x138] sm:$0xff]
        %v2696 = vld [vmem:[%s2668 + $0x140] sm:$0xff]
        %v2697 = vld [vmem:[%s2668 + $0x150] sm:$0xff]
        %v2698 = vld [vmem:[%s2668 + $0x158] sm:$0xff]
        %v2699 = vld [vmem:[%s2668 + $0x168] sm:$0xff]
        %v2700 = vld [vmem:[%s2668 + $0x170] sm:$0xff]
        %v2701 = vld [vmem:[%s1 + $0x18] sm:$0xf]
        %v2703 = vsel %vm276, %v2669, 0
        %v2706 = vsel %vm276, %v2670, 0
        %v2709 = vsel %vm276, %v2671, 0
        %v2712 = vsel %vm276, %v2672, 0
        %v2715 = vsel %vm276, %v2673, 0
        %v2718 = vsel %vm276, %v2674, 0
        %v2721 = vsel %vm276, %v2675, 0
        %v2724 = vsel %vm276, %v2676, 0
        %v2727 = vsel %vm276, %v2677, 0
        %v2730 = vsel %vm276, %v2678, 0
        %v2733 = vsel %vm276, %v2679, 0
        %v2736 = vsel %vm276, %v2680, 0
        %v2739 = vsel %vm276, %v2681, 0
        %v2742 = vsel %vm276, %v2682, 0
        %v2745 = vsel %vm276, %v2683, 0
        %v2748 = vsel %vm276, %v2684, 0
        %v2751 = vsel %vm276, %v2685, 0
        %v2754 = vsel %vm276, %v2686, 0
        %v2757 = vsel %vm276, %v2687, 0
        %v2760 = vsel %vm276, %v2688, 0
        %v2763 = vsel %vm276, %v2689, 0
        %v2766 = vsel %vm276, %v2690, 0
        %v2769 = vsel %vm276, %v2691, 0
        %v2772 = vsel %vm276, %v2692, 0
        %v2775 = vsel %vm276, %v2693, 0
        %v2778 = vsel %vm276, %v2694, 0
        %v2781 = vsel %vm276, %v2695, 0
        %v2784 = vsel %vm276, %v2696, 0
        %v2787 = vsel %vm276, %v2697, 0
        %v2790 = vsel %vm276, %v2698, 0
        %v2793 = vsel %vm276, %v2699, 0
        %v2796 = vsel %vm276, %v2700, 0
        %v2799 = vsel %vm559, %v2701, 0
        %2801 = vmatprep.subr.mxu0 0.0
        %2802 = vmatpush1.msra.mxu0 0.0
        %2803 = vmatprep.subr.mxu0 0.0
        %2804 = vmatpush1.msra.mxu0 0.0
        %2805 = vmatprep.subr.mxu0 0.0
        %2806 = vmatpush1.msra.mxu0 0.0
        %2807 = vmatprep.subr.mxu0 0.0
        %2808 = vmatpush1.msra.mxu0 0.0
        %2809 = vmatprep.subr.mxu0 0.0
        %2810 = vmatpush1.msra.mxu0 0.0
        %2811 = vmatprep.subr.mxu0 0.0
        %2812 = vmatpush1.msra.mxu0 0.0
        %2813 = vmatprep.subr.mxu0 0.0
        %2814 = vmatpush1.msra.mxu0 0.0
        %2815 = vmatprep.subr.mxu0 0.0
        %2816 = vmatpush1.msra.mxu0 0.0
        %2817 = vmatprep.subr.mxu0 0.0
        %2818 = vmatpush1.msra.mxu0 0.0
        %2819 = vmatprep.subr.mxu0 0.0
        %2820 = vmatpush1.msra.mxu0 0.0
        %2821 = vmatprep.subr.mxu0 0.0
        %2822 = vmatpush1.msra.mxu0 0.0
        %2823 = vmatprep.subr.mxu0 0.0
        %2824 = vmatpush1.msra.mxu0 0.0
        %2825 = vmatprep.subr.mxu0 0.0
        %2826 = vmatpush1.msra.mxu0 0.0
        %2827 = vmatprep.subr.mxu0 0.0
        %2828 = vmatpush1.msra.mxu0 0.0
        %2829 = vmatprep.subr.mxu0 0.0
        %2830 = vmatpush1.msra.mxu0 0.0
        %2831 = vmatprep.subr.mxu0 0.0
        %2832 = vmatpush1.msra.mxu0 %v2799
        %2833 = vmatprep.subr.mxu0 0.0
        %2834 = vmatpush2.msra.mxu0 0.0
        %2835 = vmatprep.subr.mxu0 0.0
        %2836 = vmatpush2.msra.mxu0 0.0
        %2837 = vmatprep.subr.mxu0 0.0
        %2838 = vmatpush2.msra.mxu0 0.0
        %2839 = vmatprep.subr.mxu0 0.0
        %2840 = vmatpush2.msra.mxu0 0.0
        %2841 = vmatprep.subr.mxu0 0.0
        %2842 = vmatpush2.msra.mxu0 0.0
        %2843 = vmatprep.subr.mxu0 0.0
        %2844 = vmatpush2.msra.mxu0 0.0
        %2845 = vmatprep.subr.mxu0 0.0
        %2846 = vmatpush2.msra.mxu0 0.0
        %2847 = vmatprep.subr.mxu0 0.0
        %2848 = vmatpush2.msra.mxu0 0.0
        %2849 = vmatprep.subr.mxu0 0.0
        %2850 = vmatpush2.msra.mxu0 0.0
        %2851 = vmatprep.subr.mxu0 0.0
        %2852 = vmatpush2.msra.mxu0 0.0
        %2853 = vmatprep.subr.mxu0 0.0
        %2854 = vmatpush2.msra.mxu0 0.0
        %2855 = vmatprep.subr.mxu0 0.0
        %2856 = vmatpush2.msra.mxu0 0.0
        %2857 = vmatprep.subr.mxu0 0.0
        %2858 = vmatpush2.msra.mxu0 0.0
        %2859 = vmatprep.subr.mxu0 0.0
        %2860 = vmatpush2.msra.mxu0 0.0
        %2861 = vmatprep.subr.mxu0 0.0
        %2862 = vmatpush2.msra.mxu0 0.0
        %2863 = vmatprep.subr.mxu0 0.0
        %2864 = vmatpush2.msra.mxu0 0.0
        %2865 = vmatprep.mubr.f32.mxu0 0.0
        %2866 = vmatmul.mubr.f32.gmra.mxu0 %v2703
        %v2867 = vpop.f32.mrf.mxu0
        %v2868 = vadd.f32 0.0, %v2867
        %v2869 = vpop.f32.mrf.mxu0
        %2870 = vmatprep.mubr.f32.mxu0 0.0
        %2871 = vmatmul.mubr.f32.gmra.mxu0 %v2706
        %v2872 = vpop.f32.mrf.mxu0
        %v2873 = vadd.f32 0.0, %v2872
        %v2874 = vpop.f32.mrf.mxu0
        %2875 = vmatprep.mubr.f32.mxu0 0.0
        %2876 = vmatmul.mubr.f32.gmra.mxu0 %v2709
        %v2877 = vpop.f32.mrf.mxu0
        %v2878 = vadd.f32 0.0, %v2877
        %v2879 = vpop.f32.mrf.mxu0
        %2880 = vmatprep.mubr.f32.mxu0 0.0
        %2881 = vmatmul.mubr.f32.gmra.mxu0 %v2712
        %v2882 = vpop.f32.mrf.mxu0
        %v2883 = vadd.f32 0.0, %v2882
        %v2884 = vpop.f32.mrf.mxu0
        %2885 = vmatprep.mubr.f32.mxu0 0.0
        %2886 = vmatmul.mubr.f32.gmra.mxu0 %v2715
        %v2887 = vpop.f32.mrf.mxu0
        %v2888 = vadd.f32 0.0, %v2887
        %v2889 = vpop.f32.mrf.mxu0
        %2890 = vmatprep.mubr.f32.mxu0 0.0
        %2891 = vmatmul.mubr.f32.gmra.mxu0 %v2718
        %v2892 = vpop.f32.mrf.mxu0
        %v2893 = vadd.f32 0.0, %v2892
        %v2894 = vpop.f32.mrf.mxu0
        %2895 = vmatprep.mubr.f32.mxu0 0.0
        %2896 = vmatmul.mubr.f32.gmra.mxu0 %v2721
        %v2897 = vpop.f32.mrf.mxu0
        %v2898 = vadd.f32 0.0, %v2897
        %v2899 = vpop.f32.mrf.mxu0
        %2900 = vmatprep.mubr.f32.mxu0 0.0
        %2901 = vmatmul.mubr.f32.gmra.mxu0 %v2724
        %v2902 = vpop.f32.mrf.mxu0
        %v2903 = vadd.f32 0.0, %v2902
        %v2904 = vpop.f32.mrf.mxu0
        %2905 = vmatprep.mubr.f32.mxu0 0.0
        %2906 = vmatmul.mubr.f32.gmra.mxu0 %v2727
        %v2907 = vpop.f32.mrf.mxu0
        %v2908 = vadd.f32 0.0, %v2907
        %v2909 = vpop.f32.mrf.mxu0
        %2910 = vmatprep.mubr.f32.mxu0 0.0
        %2911 = vmatmul.mubr.f32.gmra.mxu0 %v2730
        %v2912 = vpop.f32.mrf.mxu0
        %v2913 = vadd.f32 0.0, %v2912
        %v2914 = vpop.f32.mrf.mxu0
        %2915 = vmatprep.mubr.f32.mxu0 0.0
        %2916 = vmatmul.mubr.f32.gmra.mxu0 %v2733
        %v2917 = vpop.f32.mrf.mxu0
        %v2918 = vadd.f32 0.0, %v2917
        %v2919 = vpop.f32.mrf.mxu0
        %2920 = vmatprep.mubr.f32.mxu0 0.0
        %2921 = vmatmul.mubr.f32.gmra.mxu0 %v2736
        %v2922 = vpop.f32.mrf.mxu0
        %v2923 = vadd.f32 0.0, %v2922
        %v2924 = vpop.f32.mrf.mxu0
        %2925 = vmatprep.mubr.f32.mxu0 0.0
        %2926 = vmatmul.mubr.f32.gmra.mxu0 %v2739
        %v2927 = vpop.f32.mrf.mxu0
        %v2928 = vadd.f32 0.0, %v2927
        %v2929 = vpop.f32.mrf.mxu0
        %2930 = vmatprep.mubr.f32.mxu0 0.0
        %2931 = vmatmul.mubr.f32.gmra.mxu0 %v2742
        %v2932 = vpop.f32.mrf.mxu0
        %v2933 = vadd.f32 0.0, %v2932
        %v2934 = vpop.f32.mrf.mxu0
        %2935 = vmatprep.mubr.f32.mxu0 0.0
        %2936 = vmatmul.mubr.f32.gmra.mxu0 %v2745
        %v2937 = vpop.f32.mrf.mxu0
        %v2938 = vadd.f32 0.0, %v2937
        %v2939 = vpop.f32.mrf.mxu0
        %2940 = vmatprep.mubr.f32.mxu0 0.0
        %2941 = vmatmul.mubr.f32.gmra.mxu0 %v2748
        %v2942 = vpop.f32.mrf.mxu0
        %v2943 = vadd.f32 0.0, %v2942
        %v2944 = vpop.f32.mrf.mxu0
        %2945 = vmatprep.mubr.f32.mxu0 0.0
        %2946 = vmatmul.mubr.f32.gmra.mxu0 %v2751
        %v2947 = vpop.f32.mrf.mxu0
        %v2948 = vadd.f32 0.0, %v2947
        %v2949 = vpop.f32.mrf.mxu0
        %2950 = vmatprep.mubr.f32.mxu0 0.0
        %2951 = vmatmul.mubr.f32.gmra.mxu0 %v2754
        %v2952 = vpop.f32.mrf.mxu0
        %v2953 = vadd.f32 0.0, %v2952
        %v2954 = vpop.f32.mrf.mxu0
        %2955 = vmatprep.mubr.f32.mxu0 0.0
        %2956 = vmatmul.mubr.f32.gmra.mxu0 %v2757
        %v2957 = vpop.f32.mrf.mxu0
        %v2958 = vadd.f32 0.0, %v2957
        %v2959 = vpop.f32.mrf.mxu0
        %2960 = vmatprep.mubr.f32.mxu0 0.0
        %2961 = vmatmul.mubr.f32.gmra.mxu0 %v2760
        %v2962 = vpop.f32.mrf.mxu0
        %v2963 = vadd.f32 0.0, %v2962
        %v2964 = vpop.f32.mrf.mxu0
        %2965 = vmatprep.mubr.f32.mxu0 0.0
        %2966 = vmatmul.mubr.f32.gmra.mxu0 %v2763
        %v2967 = vpop.f32.mrf.mxu0
        %v2968 = vadd.f32 0.0, %v2967
        %v2969 = vpop.f32.mrf.mxu0
        %2970 = vmatprep.mubr.f32.mxu0 0.0
        %2971 = vmatmul.mubr.f32.gmra.mxu0 %v2766
        %v2972 = vpop.f32.mrf.mxu0
        %v2973 = vadd.f32 0.0, %v2972
        %v2974 = vpop.f32.mrf.mxu0
        %2975 = vmatprep.mubr.f32.mxu0 0.0
        %2976 = vmatmul.mubr.f32.gmra.mxu0 %v2769
        %v2977 = vpop.f32.mrf.mxu0
        %v2978 = vadd.f32 0.0, %v2977
        %v2979 = vpop.f32.mrf.mxu0
        %2980 = vmatprep.mubr.f32.mxu0 0.0
        %2981 = vmatmul.mubr.f32.gmra.mxu0 %v2772
        %v2982 = vpop.f32.mrf.mxu0
        %v2983 = vadd.f32 0.0, %v2982
        %v2984 = vpop.f32.mrf.mxu0
        %2985 = vmatprep.mubr.f32.mxu0 0.0
        %2986 = vmatmul.mubr.f32.gmra.mxu0 %v2775
        %v2987 = vpop.f32.mrf.mxu0
        %v2988 = vadd.f32 0.0, %v2987
        %v2989 = vpop.f32.mrf.mxu0
        %2990 = vmatprep.mubr.f32.mxu0 0.0
        %2991 = vmatmul.mubr.f32.gmra.mxu0 %v2778
        %v2992 = vpop.f32.mrf.mxu0
        %v2993 = vadd.f32 0.0, %v2992
        %v2994 = vpop.f32.mrf.mxu0
        %2995 = vmatprep.mubr.f32.mxu0 0.0
        %2996 = vmatmul.mubr.f32.gmra.mxu0 %v2781
        %v2997 = vpop.f32.mrf.mxu0
        %v2998 = vadd.f32 0.0, %v2997
        %v2999 = vpop.f32.mrf.mxu0
        %3000 = vmatprep.mubr.f32.mxu0 0.0
        %3001 = vmatmul.mubr.f32.gmra.mxu0 %v2784
        %v3002 = vpop.f32.mrf.mxu0
        %v3003 = vadd.f32 0.0, %v3002
        %v3004 = vpop.f32.mrf.mxu0
        %3005 = vmatprep.mubr.f32.mxu0 0.0
        %3006 = vmatmul.mubr.f32.gmra.mxu0 %v2787
        %v3007 = vpop.f32.mrf.mxu0
        %v3008 = vadd.f32 0.0, %v3007
        %v3009 = vpop.f32.mrf.mxu0
        %3010 = vmatprep.mubr.f32.mxu0 0.0
        %3011 = vmatmul.mubr.f32.gmra.mxu0 %v2790
        %v3012 = vpop.f32.mrf.mxu0
        %v3013 = vadd.f32 0.0, %v3012
        %v3014 = vpop.f32.mrf.mxu0
        %3015 = vmatprep.mubr.f32.mxu0 0.0
        %3016 = vmatmul.mubr.f32.gmra.mxu0 %v2793
        %v3017 = vpop.f32.mrf.mxu0
        %v3018 = vadd.f32 0.0, %v3017
        %v3019 = vpop.f32.mrf.mxu0
        %3020 = vmatprep.mubr.f32.mxu0 0.0
        %3021 = vmatmul.mubr.f32.gmra.mxu0 %v2796
        %v3022 = vpop.f32.mrf.mxu0
        %v3023 = vadd.f32 0.0, %v3022
        %v3024 = vpop.f32.mrf.mxu0
        %3025 = vdwg.mxu0
        %v3026 = vadd.f32 %v2636, %v2868
        %v3027 = vadd.f32 %v2637, %v2873
        %v3028 = vadd.f32 %v2638, %v2878
        %v3029 = vadd.f32 %v2639, %v2883
        %v3030 = vadd.f32 %v2640, %v2888
        %v3031 = vadd.f32 %v2641, %v2893
        %v3032 = vadd.f32 %v2642, %v2898
        %v3033 = vadd.f32 %v2643, %v2903
        %v3034 = vadd.f32 %v2644, %v2908
        %v3035 = vadd.f32 %v2645, %v2913
        %v3036 = vadd.f32 %v2646, %v2918
        %v3037 = vadd.f32 %v2647, %v2923
        %v3038 = vadd.f32 %v2648, %v2928
        %v3039 = vadd.f32 %v2649, %v2933
        %v3040 = vadd.f32 %v2650, %v2938
        %v3041 = vadd.f32 %v2651, %v2943
        %v3042 = vadd.f32 %v2652, %v2948
        %v3043 = vadd.f32 %v2653, %v2953
        %v3044 = vadd.f32 %v2654, %v2958
        %v3045 = vadd.f32 %v2655, %v2963
        %v3046 = vadd.f32 %v2656, %v2968
        %v3047 = vadd.f32 %v2657, %v2973
        %v3048 = vadd.f32 %v2658, %v2978
        %v3049 = vadd.f32 %v2659, %v2983
        %v3050 = vadd.f32 %v2660, %v2988
        %v3051 = vadd.f32 %v2661, %v2993
        %v3052 = vadd.f32 %v2662, %v2998
        %v3053 = vadd.f32 %v2663, %v3003
        %v3054 = vadd.f32 %v2664, %v3008
        %v3055 = vadd.f32 %v2665, %v3013
        %v3056 = vadd.f32 %v2666, %v3018
        %v3057 = vadd.f32 %v2667, %v3023
        %v3058 = vld [vmem:[%s2668 + $0x1] sm:$0xff]
        %v3059 = vld [vmem:[%s2668 + $0x9] sm:$0xff]
        %v3060 = vld [vmem:[%s2668 + $0x19] sm:$0xff]
        %v3061 = vld [vmem:[%s2668 + $0x21] sm:$0xff]
        %v3062 = vld [vmem:[%s2668 + $0x31] sm:$0xff]
        %v3063 = vld [vmem:[%s2668 + $0x39] sm:$0xff]
        %v3064 = vld [vmem:[%s2668 + $0x49] sm:$0xff]
        %v3065 = vld [vmem:[%s2668 + $0x51] sm:$0xff]
        %v3066 = vld [vmem:[%s2668 + $0x61] sm:$0xff]
        %v3067 = vld [vmem:[%s2668 + $0x69] sm:$0xff]
        %v3068 = vld [vmem:[%s2668 + $0x79] sm:$0xff]
        %v3069 = vld [vmem:[%s2668 + $0x81] sm:$0xff]
        %v3070 = vld [vmem:[%s2668 + $0x91] sm:$0xff]
        %v3071 = vld [vmem:[%s2668 + $0x99] sm:$0xff]
        %v3072 = vld [vmem:[%s2668 + $0xa9] sm:$0xff]
        %v3073 = vld [vmem:[%s2668 + $0xb1] sm:$0xff]
        %v3074 = vld [vmem:[%s2668 + $0xc1] sm:$0xff]
        %v3075 = vld [vmem:[%s2668 + $0xc9] sm:$0xff]
        %v3076 = vld [vmem:[%s2668 + $0xd9] sm:$0xff]
        %v3077 = vld [vmem:[%s2668 + $0xe1] sm:$0xff]
        %v3078 = vld [vmem:[%s2668 + $0xf1] sm:$0xff]
        %v3079 = vld [vmem:[%s2668 + $0xf9] sm:$0xff]
        %v3080 = vld [vmem:[%s2668 + $0x109] sm:$0xff]
        %v3081 = vld [vmem:[%s2668 + $0x111] sm:$0xff]
        %v3082 = vld [vmem:[%s2668 + $0x121] sm:$0xff]
        %v3083 = vld [vmem:[%s2668 + $0x129] sm:$0xff]
        %v3084 = vld [vmem:[%s2668 + $0x139] sm:$0xff]
        %v3085 = vld [vmem:[%s2668 + $0x141] sm:$0xff]
        %v3086 = vld [vmem:[%s2668 + $0x151] sm:$0xff]
        %v3087 = vld [vmem:[%s2668 + $0x159] sm:$0xff]
        %v3088 = vld [vmem:[%s2668 + $0x169] sm:$0xff]
        %v3089 = vld [vmem:[%s2668 + $0x171] sm:$0xff]
        %v3090 = vld [vmem:[%s1 + $0x1c] sm:$0xf]
        %v3092 = vsel %vm276, %v3058, 0
        %v3095 = vsel %vm276, %v3059, 0
        %v3098 = vsel %vm276, %v3060, 0
        %v3101 = vsel %vm276, %v3061, 0
        %v3104 = vsel %vm276, %v3062, 0
        %v3107 = vsel %vm276, %v3063, 0
        %v3110 = vsel %vm276, %v3064, 0
        %v3113 = vsel %vm276, %v3065, 0
        %v3116 = vsel %vm276, %v3066, 0
        %v3119 = vsel %vm276, %v3067, 0
        %v3122 = vsel %vm276, %v3068, 0
        %v3125 = vsel %vm276, %v3069, 0
        %v3128 = vsel %vm276, %v3070, 0
        %v3131 = vsel %vm276, %v3071, 0
        %v3134 = vsel %vm276, %v3072, 0
        %v3137 = vsel %vm276, %v3073, 0
        %v3140 = vsel %vm276, %v3074, 0
        %v3143 = vsel %vm276, %v3075, 0
        %v3146 = vsel %vm276, %v3076, 0
        %v3149 = vsel %vm276, %v3077, 0
        %v3152 = vsel %vm276, %v3078, 0
        %v3155 = vsel %vm276, %v3079, 0
        %v3158 = vsel %vm276, %v3080, 0
        %v3161 = vsel %vm276, %v3081, 0
        %v3164 = vsel %vm276, %v3082, 0
        %v3167 = vsel %vm276, %v3083, 0
        %v3170 = vsel %vm276, %v3084, 0
        %v3173 = vsel %vm276, %v3085, 0
        %v3176 = vsel %vm276, %v3086, 0
        %v3179 = vsel %vm276, %v3087, 0
        %v3182 = vsel %vm276, %v3088, 0
        %v3185 = vsel %vm276, %v3089, 0
        %v3188 = vsel %vm559, %v3090, 0
        %3190 = vmatprep.subr.mxu0 0.0
        %3191 = vmatpush1.msra.mxu0 0.0
        %3192 = vmatprep.subr.mxu0 0.0
        %3193 = vmatpush1.msra.mxu0 0.0
        %3194 = vmatprep.subr.mxu0 0.0
        %3195 = vmatpush1.msra.mxu0 0.0
        %3196 = vmatprep.subr.mxu0 0.0
        %3197 = vmatpush1.msra.mxu0 0.0
        %3198 = vmatprep.subr.mxu0 0.0
        %3199 = vmatpush1.msra.mxu0 0.0
        %3200 = vmatprep.subr.mxu0 0.0
        %3201 = vmatpush1.msra.mxu0 0.0
        %3202 = vmatprep.subr.mxu0 0.0
        %3203 = vmatpush1.msra.mxu0 0.0
        %3204 = vmatprep.subr.mxu0 0.0
        %3205 = vmatpush1.msra.mxu0 0.0
        %3206 = vmatprep.subr.mxu0 0.0
        %3207 = vmatpush1.msra.mxu0 0.0
        %3208 = vmatprep.subr.mxu0 0.0
        %3209 = vmatpush1.msra.mxu0 0.0
        %3210 = vmatprep.subr.mxu0 0.0
        %3211 = vmatpush1.msra.mxu0 0.0
        %3212 = vmatprep.subr.mxu0 0.0
        %3213 = vmatpush1.msra.mxu0 0.0
        %3214 = vmatprep.subr.mxu0 0.0
        %3215 = vmatpush1.msra.mxu0 0.0
        %3216 = vmatprep.subr.mxu0 0.0
        %3217 = vmatpush1.msra.mxu0 0.0
        %3218 = vmatprep.subr.mxu0 0.0
        %3219 = vmatpush1.msra.mxu0 0.0
        %3220 = vmatprep.subr.mxu0 0.0
        %3221 = vmatpush1.msra.mxu0 %v3188
        %3222 = vmatprep.subr.mxu0 0.0
        %3223 = vmatpush2.msra.mxu0 0.0
        %3224 = vmatprep.subr.mxu0 0.0
        %3225 = vmatpush2.msra.mxu0 0.0
        %3226 = vmatprep.subr.mxu0 0.0
        %3227 = vmatpush2.msra.mxu0 0.0
        %3228 = vmatprep.subr.mxu0 0.0
        %3229 = vmatpush2.msra.mxu0 0.0
        %3230 = vmatprep.subr.mxu0 0.0
        %3231 = vmatpush2.msra.mxu0 0.0
        %3232 = vmatprep.subr.mxu0 0.0
        %3233 = vmatpush2.msra.mxu0 0.0
        %3234 = vmatprep.subr.mxu0 0.0
        %3235 = vmatpush2.msra.mxu0 0.0
        %3236 = vmatprep.subr.mxu0 0.0
        %3237 = vmatpush2.msra.mxu0 0.0
        %3238 = vmatprep.subr.mxu0 0.0
        %3239 = vmatpush2.msra.mxu0 0.0
        %3240 = vmatprep.subr.mxu0 0.0
        %3241 = vmatpush2.msra.mxu0 0.0
        %3242 = vmatprep.subr.mxu0 0.0
        %3243 = vmatpush2.msra.mxu0 0.0
        %3244 = vmatprep.subr.mxu0 0.0
        %3245 = vmatpush2.msra.mxu0 0.0
        %3246 = vmatprep.subr.mxu0 0.0
        %3247 = vmatpush2.msra.mxu0 0.0
        %3248 = vmatprep.subr.mxu0 0.0
        %3249 = vmatpush2.msra.mxu0 0.0
        %3250 = vmatprep.subr.mxu0 0.0
        %3251 = vmatpush2.msra.mxu0 0.0
        %3252 = vmatprep.subr.mxu0 0.0
        %3253 = vmatpush2.msra.mxu0 0.0
        %3254 = vmatprep.mubr.f32.mxu0 0.0
        %3255 = vmatmul.mubr.f32.gmra.mxu0 %v3092
        %v3256 = vpop.f32.mrf.mxu0
        %v3257 = vadd.f32 0.0, %v3256
        %v3258 = vpop.f32.mrf.mxu0
        %3259 = vmatprep.mubr.f32.mxu0 0.0
        %3260 = vmatmul.mubr.f32.gmra.mxu0 %v3095
        %v3261 = vpop.f32.mrf.mxu0
        %v3262 = vadd.f32 0.0, %v3261
        %v3263 = vpop.f32.mrf.mxu0
        %3264 = vmatprep.mubr.f32.mxu0 0.0
        %3265 = vmatmul.mubr.f32.gmra.mxu0 %v3098
        %v3266 = vpop.f32.mrf.mxu0
        %v3267 = vadd.f32 0.0, %v3266
        %v3268 = vpop.f32.mrf.mxu0
        %3269 = vmatprep.mubr.f32.mxu0 0.0
        %3270 = vmatmul.mubr.f32.gmra.mxu0 %v3101
        %v3271 = vpop.f32.mrf.mxu0
        %v3272 = vadd.f32 0.0, %v3271
        %v3273 = vpop.f32.mrf.mxu0
        %3274 = vmatprep.mubr.f32.mxu0 0.0
        %3275 = vmatmul.mubr.f32.gmra.mxu0 %v3104
        %v3276 = vpop.f32.mrf.mxu0
        %v3277 = vadd.f32 0.0, %v3276
        %v3278 = vpop.f32.mrf.mxu0
        %3279 = vmatprep.mubr.f32.mxu0 0.0
        %3280 = vmatmul.mubr.f32.gmra.mxu0 %v3107
        %v3281 = vpop.f32.mrf.mxu0
        %v3282 = vadd.f32 0.0, %v3281
        %v3283 = vpop.f32.mrf.mxu0
        %3284 = vmatprep.mubr.f32.mxu0 0.0
        %3285 = vmatmul.mubr.f32.gmra.mxu0 %v3110
        %v3286 = vpop.f32.mrf.mxu0
        %v3287 = vadd.f32 0.0, %v3286
        %v3288 = vpop.f32.mrf.mxu0
        %3289 = vmatprep.mubr.f32.mxu0 0.0
        %3290 = vmatmul.mubr.f32.gmra.mxu0 %v3113
        %v3291 = vpop.f32.mrf.mxu0
        %v3292 = vadd.f32 0.0, %v3291
        %v3293 = vpop.f32.mrf.mxu0
        %3294 = vmatprep.mubr.f32.mxu0 0.0
        %3295 = vmatmul.mubr.f32.gmra.mxu0 %v3116
        %v3296 = vpop.f32.mrf.mxu0
        %v3297 = vadd.f32 0.0, %v3296
        %v3298 = vpop.f32.mrf.mxu0
        %3299 = vmatprep.mubr.f32.mxu0 0.0
        %3300 = vmatmul.mubr.f32.gmra.mxu0 %v3119
        %v3301 = vpop.f32.mrf.mxu0
        %v3302 = vadd.f32 0.0, %v3301
        %v3303 = vpop.f32.mrf.mxu0
        %3304 = vmatprep.mubr.f32.mxu0 0.0
        %3305 = vmatmul.mubr.f32.gmra.mxu0 %v3122
        %v3306 = vpop.f32.mrf.mxu0
        %v3307 = vadd.f32 0.0, %v3306
        %v3308 = vpop.f32.mrf.mxu0
        %3309 = vmatprep.mubr.f32.mxu0 0.0
        %3310 = vmatmul.mubr.f32.gmra.mxu0 %v3125
        %v3311 = vpop.f32.mrf.mxu0
        %v3312 = vadd.f32 0.0, %v3311
        %v3313 = vpop.f32.mrf.mxu0
        %3314 = vmatprep.mubr.f32.mxu0 0.0
        %3315 = vmatmul.mubr.f32.gmra.mxu0 %v3128
        %v3316 = vpop.f32.mrf.mxu0
        %v3317 = vadd.f32 0.0, %v3316
        %v3318 = vpop.f32.mrf.mxu0
        %3319 = vmatprep.mubr.f32.mxu0 0.0
        %3320 = vmatmul.mubr.f32.gmra.mxu0 %v3131
        %v3321 = vpop.f32.mrf.mxu0
        %v3322 = vadd.f32 0.0, %v3321
        %v3323 = vpop.f32.mrf.mxu0
        %3324 = vmatprep.mubr.f32.mxu0 0.0
        %3325 = vmatmul.mubr.f32.gmra.mxu0 %v3134
        %v3326 = vpop.f32.mrf.mxu0
        %v3327 = vadd.f32 0.0, %v3326
        %v3328 = vpop.f32.mrf.mxu0
        %3329 = vmatprep.mubr.f32.mxu0 0.0
        %3330 = vmatmul.mubr.f32.gmra.mxu0 %v3137
        %v3331 = vpop.f32.mrf.mxu0
        %v3332 = vadd.f32 0.0, %v3331
        %v3333 = vpop.f32.mrf.mxu0
        %3334 = vmatprep.mubr.f32.mxu0 0.0
        %3335 = vmatmul.mubr.f32.gmra.mxu0 %v3140
        %v3336 = vpop.f32.mrf.mxu0
        %v3337 = vadd.f32 0.0, %v3336
        %v3338 = vpop.f32.mrf.mxu0
        %3339 = vmatprep.mubr.f32.mxu0 0.0
        %3340 = vmatmul.mubr.f32.gmra.mxu0 %v3143
        %v3341 = vpop.f32.mrf.mxu0
        %v3342 = vadd.f32 0.0, %v3341
        %v3343 = vpop.f32.mrf.mxu0
        %3344 = vmatprep.mubr.f32.mxu0 0.0
        %3345 = vmatmul.mubr.f32.gmra.mxu0 %v3146
        %v3346 = vpop.f32.mrf.mxu0
        %v3347 = vadd.f32 0.0, %v3346
        %v3348 = vpop.f32.mrf.mxu0
        %3349 = vmatprep.mubr.f32.mxu0 0.0
        %3350 = vmatmul.mubr.f32.gmra.mxu0 %v3149
        %v3351 = vpop.f32.mrf.mxu0
        %v3352 = vadd.f32 0.0, %v3351
        %v3353 = vpop.f32.mrf.mxu0
        %3354 = vmatprep.mubr.f32.mxu0 0.0
        %3355 = vmatmul.mubr.f32.gmra.mxu0 %v3152
        %v3356 = vpop.f32.mrf.mxu0
        %v3357 = vadd.f32 0.0, %v3356
        %v3358 = vpop.f32.mrf.mxu0
        %3359 = vmatprep.mubr.f32.mxu0 0.0
        %3360 = vmatmul.mubr.f32.gmra.mxu0 %v3155
        %v3361 = vpop.f32.mrf.mxu0
        %v3362 = vadd.f32 0.0, %v3361
        %v3363 = vpop.f32.mrf.mxu0
        %3364 = vmatprep.mubr.f32.mxu0 0.0
        %3365 = vmatmul.mubr.f32.gmra.mxu0 %v3158
        %v3366 = vpop.f32.mrf.mxu0
        %v3367 = vadd.f32 0.0, %v3366
        %v3368 = vpop.f32.mrf.mxu0
        %3369 = vmatprep.mubr.f32.mxu0 0.0
        %3370 = vmatmul.mubr.f32.gmra.mxu0 %v3161
        %v3371 = vpop.f32.mrf.mxu0
        %v3372 = vadd.f32 0.0, %v3371
        %v3373 = vpop.f32.mrf.mxu0
        %3374 = vmatprep.mubr.f32.mxu0 0.0
        %3375 = vmatmul.mubr.f32.gmra.mxu0 %v3164
        %v3376 = vpop.f32.mrf.mxu0
        %v3377 = vadd.f32 0.0, %v3376
        %v3378 = vpop.f32.mrf.mxu0
        %3379 = vmatprep.mubr.f32.mxu0 0.0
        %3380 = vmatmul.mubr.f32.gmra.mxu0 %v3167
        %v3381 = vpop.f32.mrf.mxu0
        %v3382 = vadd.f32 0.0, %v3381
        %v3383 = vpop.f32.mrf.mxu0
        %3384 = vmatprep.mubr.f32.mxu0 0.0
        %3385 = vmatmul.mubr.f32.gmra.mxu0 %v3170
        %v3386 = vpop.f32.mrf.mxu0
        %v3387 = vadd.f32 0.0, %v3386
        %v3388 = vpop.f32.mrf.mxu0
        %3389 = vmatprep.mubr.f32.mxu0 0.0
        %3390 = vmatmul.mubr.f32.gmra.mxu0 %v3173
        %v3391 = vpop.f32.mrf.mxu0
        %v3392 = vadd.f32 0.0, %v3391
        %v3393 = vpop.f32.mrf.mxu0
        %3394 = vmatprep.mubr.f32.mxu0 0.0
        %3395 = vmatmul.mubr.f32.gmra.mxu0 %v3176
        %v3396 = vpop.f32.mrf.mxu0
        %v3397 = vadd.f32 0.0, %v3396
        %v3398 = vpop.f32.mrf.mxu0
        %3399 = vmatprep.mubr.f32.mxu0 0.0
        %3400 = vmatmul.mubr.f32.gmra.mxu0 %v3179
        %v3401 = vpop.f32.mrf.mxu0
        %v3402 = vadd.f32 0.0, %v3401
        %v3403 = vpop.f32.mrf.mxu0
        %3404 = vmatprep.mubr.f32.mxu0 0.0
        %3405 = vmatmul.mubr.f32.gmra.mxu0 %v3182
        %v3406 = vpop.f32.mrf.mxu0
        %v3407 = vadd.f32 0.0, %v3406
        %v3408 = vpop.f32.mrf.mxu0
        %3409 = vmatprep.mubr.f32.mxu0 0.0
        %3410 = vmatmul.mubr.f32.gmra.mxu0 %v3185
        %v3411 = vpop.f32.mrf.mxu0
        %v3412 = vadd.f32 0.0, %v3411
        %v3413 = vpop.f32.mrf.mxu0
        %3414 = vdwg.mxu0
        %v3415 = vadd.f32 %v3026, %v3257
        %v3416 = vadd.f32 %v3027, %v3262
        %v3417 = vadd.f32 %v3028, %v3267
        %v3418 = vadd.f32 %v3029, %v3272
        %v3419 = vadd.f32 %v3030, %v3277
        %v3420 = vadd.f32 %v3031, %v3282
        %v3421 = vadd.f32 %v3032, %v3287
        %v3422 = vadd.f32 %v3033, %v3292
        %v3423 = vadd.f32 %v3034, %v3297
        %v3424 = vadd.f32 %v3035, %v3302
        %v3425 = vadd.f32 %v3036, %v3307
        %v3426 = vadd.f32 %v3037, %v3312
        %v3427 = vadd.f32 %v3038, %v3317
        %v3428 = vadd.f32 %v3039, %v3322
        %v3429 = vadd.f32 %v3040, %v3327
        %v3430 = vadd.f32 %v3041, %v3332
        %v3431 = vadd.f32 %v3042, %v3337
        %v3432 = vadd.f32 %v3043, %v3342
        %v3433 = vadd.f32 %v3044, %v3347
        %v3434 = vadd.f32 %v3045, %v3352
        %v3435 = vadd.f32 %v3046, %v3357
        %v3436 = vadd.f32 %v3047, %v3362
        %v3437 = vadd.f32 %v3048, %v3367
        %v3438 = vadd.f32 %v3049, %v3372
        %v3439 = vadd.f32 %v3050, %v3377
        %v3440 = vadd.f32 %v3051, %v3382
        %v3441 = vadd.f32 %v3052, %v3387
        %v3442 = vadd.f32 %v3053, %v3392
        %v3443 = vadd.f32 %v3054, %v3397
        %v3444 = vadd.f32 %v3055, %v3402
        %v3445 = vadd.f32 %v3056, %v3407
        %v3446 = vadd.f32 %v3057, %v3412
        %v3447 = vld [vmem:[%s2668 + $0x2] sm:$0xff]
        %v3448 = vld [vmem:[%s2668 + $0xa] sm:$0xff]
        %v3449 = vld [vmem:[%s2668 + $0x1a] sm:$0xff]
        %v3450 = vld [vmem:[%s2668 + $0x22] sm:$0xff]
        %v3451 = vld [vmem:[%s2668 + $0x32] sm:$0xff]
        %v3452 = vld [vmem:[%s2668 + $0x3a] sm:$0xff]
        %v3453 = vld [vmem:[%s2668 + $0x4a] sm:$0xff]
        %v3454 = vld [vmem:[%s2668 + $0x52] sm:$0xff]
        %v3455 = vld [vmem:[%s2668 + $0x62] sm:$0xff]
        %v3456 = vld [vmem:[%s2668 + $0x6a] sm:$0xff]
        %v3457 = vld [vmem:[%s2668 + $0x7a] sm:$0xff]
        %v3458 = vld [vmem:[%s2668 + $0x82] sm:$0xff]
        %v3459 = vld [vmem:[%s2668 + $0x92] sm:$0xff]
        %v3460 = vld [vmem:[%s2668 + $0x9a] sm:$0xff]
        %v3461 = vld [vmem:[%s2668 + $0xaa] sm:$0xff]
        %v3462 = vld [vmem:[%s2668 + $0xb2] sm:$0xff]
        %v3463 = vld [vmem:[%s2668 + $0xc2] sm:$0xff]
        %v3464 = vld [vmem:[%s2668 + $0xca] sm:$0xff]
        %v3465 = vld [vmem:[%s2668 + $0xda] sm:$0xff]
        %v3466 = vld [vmem:[%s2668 + $0xe2] sm:$0xff]
        %v3467 = vld [vmem:[%s2668 + $0xf2] sm:$0xff]
        %v3468 = vld [vmem:[%s2668 + $0xfa] sm:$0xff]
        %v3469 = vld [vmem:[%s2668 + $0x10a] sm:$0xff]
        %v3470 = vld [vmem:[%s2668 + $0x112] sm:$0xff]
        %v3471 = vld [vmem:[%s2668 + $0x122] sm:$0xff]
        %v3472 = vld [vmem:[%s2668 + $0x12a] sm:$0xff]
        %v3473 = vld [vmem:[%s2668 + $0x13a] sm:$0xff]
        %v3474 = vld [vmem:[%s2668 + $0x142] sm:$0xff]
        %v3475 = vld [vmem:[%s2668 + $0x152] sm:$0xff]
        %v3476 = vld [vmem:[%s2668 + $0x15a] sm:$0xff]
        %v3477 = vld [vmem:[%s2668 + $0x16a] sm:$0xff]
        %v3478 = vld [vmem:[%s2668 + $0x172] sm:$0xff]
        %v3479 = vld [vmem:[%s1 + $0x20] sm:$0xf]
        %v3481 = vsel %vm276, %v3447, 0
        %v3484 = vsel %vm276, %v3448, 0
        %v3487 = vsel %vm276, %v3449, 0
        %v3490 = vsel %vm276, %v3450, 0
        %v3493 = vsel %vm276, %v3451, 0
        %v3496 = vsel %vm276, %v3452, 0
        %v3499 = vsel %vm276, %v3453, 0
        %v3502 = vsel %vm276, %v3454, 0
        %v3505 = vsel %vm276, %v3455, 0
        %v3508 = vsel %vm276, %v3456, 0
        %v3511 = vsel %vm276, %v3457, 0
        %v3514 = vsel %vm276, %v3458, 0
        %v3517 = vsel %vm276, %v3459, 0
        %v3520 = vsel %vm276, %v3460, 0
        %v3523 = vsel %vm276, %v3461, 0
        %v3526 = vsel %vm276, %v3462, 0
        %v3529 = vsel %vm276, %v3463, 0
        %v3532 = vsel %vm276, %v3464, 0
        %v3535 = vsel %vm276, %v3465, 0
        %v3538 = vsel %vm276, %v3466, 0
        %v3541 = vsel %vm276, %v3467, 0
        %v3544 = vsel %vm276, %v3468, 0
        %v3547 = vsel %vm276, %v3469, 0
        %v3550 = vsel %vm276, %v3470, 0
        %v3553 = vsel %vm276, %v3471, 0
        %v3556 = vsel %vm276, %v3472, 0
        %v3559 = vsel %vm276, %v3473, 0
        %v3562 = vsel %vm276, %v3474, 0
        %v3565 = vsel %vm276, %v3475, 0
        %v3568 = vsel %vm276, %v3476, 0
        %v3571 = vsel %vm276, %v3477, 0
        %v3574 = vsel %vm276, %v3478, 0
        %v3577 = vsel %vm559, %v3479, 0
        %3579 = vmatprep.subr.mxu0 0.0
        %3580 = vmatpush1.msra.mxu0 0.0
        %3581 = vmatprep.subr.mxu0 0.0
        %3582 = vmatpush1.msra.mxu0 0.0
        %3583 = vmatprep.subr.mxu0 0.0
        %3584 = vmatpush1.msra.mxu0 0.0
        %3585 = vmatprep.subr.mxu0 0.0
        %3586 = vmatpush1.msra.mxu0 0.0
        %3587 = vmatprep.subr.mxu0 0.0
        %3588 = vmatpush1.msra.mxu0 0.0
        %3589 = vmatprep.subr.mxu0 0.0
        %3590 = vmatpush1.msra.mxu0 0.0
        %3591 = vmatprep.subr.mxu0 0.0
        %3592 = vmatpush1.msra.mxu0 0.0
        %3593 = vmatprep.subr.mxu0 0.0
        %3594 = vmatpush1.msra.mxu0 0.0
        %3595 = vmatprep.subr.mxu0 0.0
        %3596 = vmatpush1.msra.mxu0 0.0
        %3597 = vmatprep.subr.mxu0 0.0
        %3598 = vmatpush1.msra.mxu0 0.0
        %3599 = vmatprep.subr.mxu0 0.0
        %3600 = vmatpush1.msra.mxu0 0.0
        %3601 = vmatprep.subr.mxu0 0.0
        %3602 = vmatpush1.msra.mxu0 0.0
        %3603 = vmatprep.subr.mxu0 0.0
        %3604 = vmatpush1.msra.mxu0 0.0
        %3605 = vmatprep.subr.mxu0 0.0
        %3606 = vmatpush1.msra.mxu0 0.0
        %3607 = vmatprep.subr.mxu0 0.0
        %3608 = vmatpush1.msra.mxu0 0.0
        %3609 = vmatprep.subr.mxu0 0.0
        %3610 = vmatpush1.msra.mxu0 %v3577
        %3611 = vmatprep.subr.mxu0 0.0
        %3612 = vmatpush2.msra.mxu0 0.0
        %3613 = vmatprep.subr.mxu0 0.0
        %3614 = vmatpush2.msra.mxu0 0.0
        %3615 = vmatprep.subr.mxu0 0.0
        %3616 = vmatpush2.msra.mxu0 0.0
        %3617 = vmatprep.subr.mxu0 0.0
        %3618 = vmatpush2.msra.mxu0 0.0
        %3619 = vmatprep.subr.mxu0 0.0
        %3620 = vmatpush2.msra.mxu0 0.0
        %3621 = vmatprep.subr.mxu0 0.0
        %3622 = vmatpush2.msra.mxu0 0.0
        %3623 = vmatprep.subr.mxu0 0.0
        %3624 = vmatpush2.msra.mxu0 0.0
        %3625 = vmatprep.subr.mxu0 0.0
        %3626 = vmatpush2.msra.mxu0 0.0
        %3627 = vmatprep.subr.mxu0 0.0
        %3628 = vmatpush2.msra.mxu0 0.0
        %3629 = vmatprep.subr.mxu0 0.0
        %3630 = vmatpush2.msra.mxu0 0.0
        %3631 = vmatprep.subr.mxu0 0.0
        %3632 = vmatpush2.msra.mxu0 0.0
        %3633 = vmatprep.subr.mxu0 0.0
        %3634 = vmatpush2.msra.mxu0 0.0
        %3635 = vmatprep.subr.mxu0 0.0
        %3636 = vmatpush2.msra.mxu0 0.0
        %3637 = vmatprep.subr.mxu0 0.0
        %3638 = vmatpush2.msra.mxu0 0.0
        %3639 = vmatprep.subr.mxu0 0.0
        %3640 = vmatpush2.msra.mxu0 0.0
        %3641 = vmatprep.subr.mxu0 0.0
        %3642 = vmatpush2.msra.mxu0 0.0
        %3643 = vmatprep.mubr.f32.mxu0 0.0
        %3644 = vmatmul.mubr.f32.gmra.mxu0 %v3481
        %v3645 = vpop.f32.mrf.mxu0
        %v3646 = vadd.f32 0.0, %v3645
        %v3647 = vpop.f32.mrf.mxu0
        %3648 = vmatprep.mubr.f32.mxu0 0.0
        %3649 = vmatmul.mubr.f32.gmra.mxu0 %v3484
        %v3650 = vpop.f32.mrf.mxu0
        %v3651 = vadd.f32 0.0, %v3650
        %v3652 = vpop.f32.mrf.mxu0
        %3653 = vmatprep.mubr.f32.mxu0 0.0
        %3654 = vmatmul.mubr.f32.gmra.mxu0 %v3487
        %v3655 = vpop.f32.mrf.mxu0
        %v3656 = vadd.f32 0.0, %v3655
        %v3657 = vpop.f32.mrf.mxu0
        %3658 = vmatprep.mubr.f32.mxu0 0.0
        %3659 = vmatmul.mubr.f32.gmra.mxu0 %v3490
        %v3660 = vpop.f32.mrf.mxu0
        %v3661 = vadd.f32 0.0, %v3660
        %v3662 = vpop.f32.mrf.mxu0
        %3663 = vmatprep.mubr.f32.mxu0 0.0
        %3664 = vmatmul.mubr.f32.gmra.mxu0 %v3493
        %v3665 = vpop.f32.mrf.mxu0
        %v3666 = vadd.f32 0.0, %v3665
        %v3667 = vpop.f32.mrf.mxu0
        %3668 = vmatprep.mubr.f32.mxu0 0.0
        %3669 = vmatmul.mubr.f32.gmra.mxu0 %v3496
        %v3670 = vpop.f32.mrf.mxu0
        %v3671 = vadd.f32 0.0, %v3670
        %v3672 = vpop.f32.mrf.mxu0
        %3673 = vmatprep.mubr.f32.mxu0 0.0
        %3674 = vmatmul.mubr.f32.gmra.mxu0 %v3499
        %v3675 = vpop.f32.mrf.mxu0
        %v3676 = vadd.f32 0.0, %v3675
        %v3677 = vpop.f32.mrf.mxu0
        %3678 = vmatprep.mubr.f32.mxu0 0.0
        %3679 = vmatmul.mubr.f32.gmra.mxu0 %v3502
        %v3680 = vpop.f32.mrf.mxu0
        %v3681 = vadd.f32 0.0, %v3680
        %v3682 = vpop.f32.mrf.mxu0
        %3683 = vmatprep.mubr.f32.mxu0 0.0
        %3684 = vmatmul.mubr.f32.gmra.mxu0 %v3505
        %v3685 = vpop.f32.mrf.mxu0
        %v3686 = vadd.f32 0.0, %v3685
        %v3687 = vpop.f32.mrf.mxu0
        %3688 = vmatprep.mubr.f32.mxu0 0.0
        %3689 = vmatmul.mubr.f32.gmra.mxu0 %v3508
        %v3690 = vpop.f32.mrf.mxu0
        %v3691 = vadd.f32 0.0, %v3690
        %v3692 = vpop.f32.mrf.mxu0
        %3693 = vmatprep.mubr.f32.mxu0 0.0
        %3694 = vmatmul.mubr.f32.gmra.mxu0 %v3511
        %v3695 = vpop.f32.mrf.mxu0
        %v3696 = vadd.f32 0.0, %v3695
        %v3697 = vpop.f32.mrf.mxu0
        %3698 = vmatprep.mubr.f32.mxu0 0.0
        %3699 = vmatmul.mubr.f32.gmra.mxu0 %v3514
        %v3700 = vpop.f32.mrf.mxu0
        %v3701 = vadd.f32 0.0, %v3700
        %v3702 = vpop.f32.mrf.mxu0
        %3703 = vmatprep.mubr.f32.mxu0 0.0
        %3704 = vmatmul.mubr.f32.gmra.mxu0 %v3517
        %v3705 = vpop.f32.mrf.mxu0
        %v3706 = vadd.f32 0.0, %v3705
        %v3707 = vpop.f32.mrf.mxu0
        %3708 = vmatprep.mubr.f32.mxu0 0.0
        %3709 = vmatmul.mubr.f32.gmra.mxu0 %v3520
        %v3710 = vpop.f32.mrf.mxu0
        %v3711 = vadd.f32 0.0, %v3710
        %v3712 = vpop.f32.mrf.mxu0
        %3713 = vmatprep.mubr.f32.mxu0 0.0
        %3714 = vmatmul.mubr.f32.gmra.mxu0 %v3523
        %v3715 = vpop.f32.mrf.mxu0
        %v3716 = vadd.f32 0.0, %v3715
        %v3717 = vpop.f32.mrf.mxu0
        %3718 = vmatprep.mubr.f32.mxu0 0.0
        %3719 = vmatmul.mubr.f32.gmra.mxu0 %v3526
        %v3720 = vpop.f32.mrf.mxu0
        %v3721 = vadd.f32 0.0, %v3720
        %v3722 = vpop.f32.mrf.mxu0
        %3723 = vmatprep.mubr.f32.mxu0 0.0
        %3724 = vmatmul.mubr.f32.gmra.mxu0 %v3529
        %v3725 = vpop.f32.mrf.mxu0
        %v3726 = vadd.f32 0.0, %v3725
        %v3727 = vpop.f32.mrf.mxu0
        %3728 = vmatprep.mubr.f32.mxu0 0.0
        %3729 = vmatmul.mubr.f32.gmra.mxu0 %v3532
        %v3730 = vpop.f32.mrf.mxu0
        %v3731 = vadd.f32 0.0, %v3730
        %v3732 = vpop.f32.mrf.mxu0
        %3733 = vmatprep.mubr.f32.mxu0 0.0
        %3734 = vmatmul.mubr.f32.gmra.mxu0 %v3535
        %v3735 = vpop.f32.mrf.mxu0
        %v3736 = vadd.f32 0.0, %v3735
        %v3737 = vpop.f32.mrf.mxu0
        %3738 = vmatprep.mubr.f32.mxu0 0.0
        %3739 = vmatmul.mubr.f32.gmra.mxu0 %v3538
        %v3740 = vpop.f32.mrf.mxu0
        %v3741 = vadd.f32 0.0, %v3740
        %v3742 = vpop.f32.mrf.mxu0
        %3743 = vmatprep.mubr.f32.mxu0 0.0
        %3744 = vmatmul.mubr.f32.gmra.mxu0 %v3541
        %v3745 = vpop.f32.mrf.mxu0
        %v3746 = vadd.f32 0.0, %v3745
        %v3747 = vpop.f32.mrf.mxu0
        %3748 = vmatprep.mubr.f32.mxu0 0.0
        %3749 = vmatmul.mubr.f32.gmra.mxu0 %v3544
        %v3750 = vpop.f32.mrf.mxu0
        %v3751 = vadd.f32 0.0, %v3750
        %v3752 = vpop.f32.mrf.mxu0
        %3753 = vmatprep.mubr.f32.mxu0 0.0
        %3754 = vmatmul.mubr.f32.gmra.mxu0 %v3547
        %v3755 = vpop.f32.mrf.mxu0
        %v3756 = vadd.f32 0.0, %v3755
        %v3757 = vpop.f32.mrf.mxu0
        %3758 = vmatprep.mubr.f32.mxu0 0.0
        %3759 = vmatmul.mubr.f32.gmra.mxu0 %v3550
        %v3760 = vpop.f32.mrf.mxu0
        %v3761 = vadd.f32 0.0, %v3760
        %v3762 = vpop.f32.mrf.mxu0
        %3763 = vmatprep.mubr.f32.mxu0 0.0
        %3764 = vmatmul.mubr.f32.gmra.mxu0 %v3553
        %v3765 = vpop.f32.mrf.mxu0
        %v3766 = vadd.f32 0.0, %v3765
        %v3767 = vpop.f32.mrf.mxu0
        %3768 = vmatprep.mubr.f32.mxu0 0.0
        %3769 = vmatmul.mubr.f32.gmra.mxu0 %v3556
        %v3770 = vpop.f32.mrf.mxu0
        %v3771 = vadd.f32 0.0, %v3770
        %v3772 = vpop.f32.mrf.mxu0
        %3773 = vmatprep.mubr.f32.mxu0 0.0
        %3774 = vmatmul.mubr.f32.gmra.mxu0 %v3559
        %v3775 = vpop.f32.mrf.mxu0
        %v3776 = vadd.f32 0.0, %v3775
        %v3777 = vpop.f32.mrf.mxu0
        %3778 = vmatprep.mubr.f32.mxu0 0.0
        %3779 = vmatmul.mubr.f32.gmra.mxu0 %v3562
        %v3780 = vpop.f32.mrf.mxu0
        %v3781 = vadd.f32 0.0, %v3780
        %v3782 = vpop.f32.mrf.mxu0
        %3783 = vmatprep.mubr.f32.mxu0 0.0
        %3784 = vmatmul.mubr.f32.gmra.mxu0 %v3565
        %v3785 = vpop.f32.mrf.mxu0
        %v3786 = vadd.f32 0.0, %v3785
        %v3787 = vpop.f32.mrf.mxu0
        %3788 = vmatprep.mubr.f32.mxu0 0.0
        %3789 = vmatmul.mubr.f32.gmra.mxu0 %v3568
        %v3790 = vpop.f32.mrf.mxu0
        %v3791 = vadd.f32 0.0, %v3790
        %v3792 = vpop.f32.mrf.mxu0
        %3793 = vmatprep.mubr.f32.mxu0 0.0
        %3794 = vmatmul.mubr.f32.gmra.mxu0 %v3571
        %v3795 = vpop.f32.mrf.mxu0
        %v3796 = vadd.f32 0.0, %v3795
        %v3797 = vpop.f32.mrf.mxu0
        %3798 = vmatprep.mubr.f32.mxu0 0.0
        %3799 = vmatmul.mubr.f32.gmra.mxu0 %v3574
        %v3800 = vpop.f32.mrf.mxu0
        %v3801 = vadd.f32 0.0, %v3800
        %v3802 = vpop.f32.mrf.mxu0
        %3803 = vdwg.mxu0
        %v3804 = vadd.f32 %v3415, %v3646
        %v3805 = vadd.f32 %v3416, %v3651
        %v3806 = vadd.f32 %v3417, %v3656
        %v3807 = vadd.f32 %v3418, %v3661
        %v3808 = vadd.f32 %v3419, %v3666
        %v3809 = vadd.f32 %v3420, %v3671
        %v3810 = vadd.f32 %v3421, %v3676
        %v3811 = vadd.f32 %v3422, %v3681
        %v3812 = vadd.f32 %v3423, %v3686
        %v3813 = vadd.f32 %v3424, %v3691
        %v3814 = vadd.f32 %v3425, %v3696
        %v3815 = vadd.f32 %v3426, %v3701
        %v3816 = vadd.f32 %v3427, %v3706
        %v3817 = vadd.f32 %v3428, %v3711
        %v3818 = vadd.f32 %v3429, %v3716
        %v3819 = vadd.f32 %v3430, %v3721
        %v3820 = vadd.f32 %v3431, %v3726
        %v3821 = vadd.f32 %v3432, %v3731
        %v3822 = vadd.f32 %v3433, %v3736
        %v3823 = vadd.f32 %v3434, %v3741
        %v3824 = vadd.f32 %v3435, %v3746
        %v3825 = vadd.f32 %v3436, %v3751
        %v3826 = vadd.f32 %v3437, %v3756
        %v3827 = vadd.f32 %v3438, %v3761
        %v3828 = vadd.f32 %v3439, %v3766
        %v3829 = vadd.f32 %v3440, %v3771
        %v3830 = vadd.f32 %v3441, %v3776
        %v3831 = vadd.f32 %v3442, %v3781
        %v3832 = vadd.f32 %v3443, %v3786
        %v3833 = vadd.f32 %v3444, %v3791
        %v3834 = vadd.f32 %v3445, %v3796
        %v3835 = vadd.f32 %v3446, %v3801
        %v3836 = vld [vmem:[%s2] sm:$0x1]
        %v3838 = vlaneseq
        %v3839 = vshrl.u32 %v3838, 7
        %v3840 = vsub.s32 0, %v3839
        %v3841 = vrot.slane %v3836, %v3840
        %v3843 = vadd.f32 %v3804, %v3841
        %v3844 = vadd.f32 %v3805, %v3841
        %v3845 = vadd.f32 %v3806, %v3841
        %v3846 = vadd.f32 %v3807, %v3841
        %v3847 = vadd.f32 %v3808, %v3841
        %v3848 = vadd.f32 %v3809, %v3841
        %v3849 = vadd.f32 %v3810, %v3841
        %v3850 = vadd.f32 %v3811, %v3841
        %v3851 = vadd.f32 %v3812, %v3841
        %v3852 = vadd.f32 %v3813, %v3841
        %v3853 = vadd.f32 %v3814, %v3841
        %v3854 = vadd.f32 %v3815, %v3841
        %v3855 = vadd.f32 %v3816, %v3841
        %v3856 = vadd.f32 %v3817, %v3841
        %v3857 = vadd.f32 %v3818, %v3841
        %v3858 = vadd.f32 %v3819, %v3841
        %v3859 = vadd.f32 %v3820, %v3841
        %v3860 = vadd.f32 %v3821, %v3841
        %v3861 = vadd.f32 %v3822, %v3841
        %v3862 = vadd.f32 %v3823, %v3841
        %v3863 = vadd.f32 %v3824, %v3841
        %v3864 = vadd.f32 %v3825, %v3841
        %v3865 = vadd.f32 %v3826, %v3841
        %v3866 = vadd.f32 %v3827, %v3841
        %v3867 = vadd.f32 %v3828, %v3841
        %v3868 = vadd.f32 %v3829, %v3841
        %v3869 = vadd.f32 %v3830, %v3841
        %v3870 = vadd.f32 %v3831, %v3841
        %v3871 = vadd.f32 %v3832, %v3841
        %v3872 = vadd.f32 %v3833, %v3841
        %v3873 = vadd.f32 %v3834, %v3841
        %v3874 = vadd.f32 %v3835, %v3841
        %v3875 = vmax.f32 %v3843, 0.0
        %v3876 = vmax.f32 %v3844, 0.0
        %v3877 = vmax.f32 %v3845, 0.0
        %v3878 = vmax.f32 %v3846, 0.0
        %v3879 = vmax.f32 %v3847, 0.0
        %v3880 = vmax.f32 %v3848, 0.0
        %v3881 = vmax.f32 %v3849, 0.0
        %v3882 = vmax.f32 %v3850, 0.0
        %v3883 = vmax.f32 %v3851, 0.0
        %v3884 = vmax.f32 %v3852, 0.0
        %v3885 = vmax.f32 %v3853, 0.0
        %v3886 = vmax.f32 %v3854, 0.0
        %v3887 = vmax.f32 %v3855, 0.0
        %v3888 = vmax.f32 %v3856, 0.0
        %v3889 = vmax.f32 %v3857, 0.0
        %v3890 = vmax.f32 %v3858, 0.0
        %v3891 = vmax.f32 %v3859, 0.0
        %v3892 = vmax.f32 %v3860, 0.0
        %v3893 = vmax.f32 %v3861, 0.0
        %v3894 = vmax.f32 %v3862, 0.0
        %v3895 = vmax.f32 %v3863, 0.0
        %v3896 = vmax.f32 %v3864, 0.0
        %v3897 = vmax.f32 %v3865, 0.0
        %v3898 = vmax.f32 %v3866, 0.0
        %v3899 = vmax.f32 %v3867, 0.0
        %v3900 = vmax.f32 %v3868, 0.0
        %v3901 = vmax.f32 %v3869, 0.0
        %v3902 = vmax.f32 %v3870, 0.0
        %v3903 = vmax.f32 %v3871, 0.0
        %v3904 = vmax.f32 %v3872, 0.0
        %v3905 = vmax.f32 %v3873, 0.0
        %v3906 = vmax.f32 %v3874, 0.0
        %vm3907 = vcmask 130048
        %3908 = vst.msk [vmem:[#allocation3] sm:$0xff] %vm3907, 0.0
        %3909 = vst.msk [vmem:[#allocation3 + $0x8] sm:$0xff] %vm3907, 0.0
        %vm3910 = vcmask 123904
        %3911 = vst.msk [vmem:[#allocation3 + $0x10] sm:$0x3] %vm3910, 0.0
        %3912 = vst.msk [vmem:[#allocation3 + $0x18] sm:$0xff] %vm3907, 0.0
        %3913 = vst.msk [vmem:[#allocation3 + $0x20] sm:$0xff] %vm3907, 0.0
        %3914 = vst.msk [vmem:[#allocation3 + $0x28] sm:$0x3] %vm3910, 0.0
        %3915 = vst.msk [vmem:[#allocation3 + $0x30] sm:$0xff] %vm3907, 0.0
        %3916 = vst.msk [vmem:[#allocation3 + $0x38] sm:$0xff] %vm3907, 0.0
        %3917 = vst.msk [vmem:[#allocation3 + $0x40] sm:$0x3] %vm3910, 0.0
        %3918 = vst.msk [vmem:[#allocation3 + $0x48] sm:$0xff] %vm3907, 0.0
        %3919 = vst.msk [vmem:[#allocation3 + $0x50] sm:$0xff] %vm3907, 0.0
        %3920 = vst.msk [vmem:[#allocation3 + $0x58] sm:$0x3] %vm3910, 0.0
        %3921 = vst.msk [vmem:[#allocation3 + $0x60] sm:$0xff] %vm3907, 0.0
        %3922 = vst.msk [vmem:[#allocation3 + $0x68] sm:$0xff] %vm3907, 0.0
        %3923 = vst.msk [vmem:[#allocation3 + $0x70] sm:$0x3] %vm3910, 0.0
        %3924 = vst.msk [vmem:[#allocation3 + $0x78] sm:$0xff] %vm3907, 0.0
        %3925 = vst.msk [vmem:[#allocation3 + $0x80] sm:$0xff] %vm3907, 0.0
        %3926 = vst.msk [vmem:[#allocation3 + $0x88] sm:$0x3] %vm3910, 0.0
        %3927 = vst.msk [vmem:[#allocation3 + $0x90] sm:$0xff] %vm3907, 0.0
        %3928 = vst.msk [vmem:[#allocation3 + $0x98] sm:$0xff] %vm3907, 0.0
        %3929 = vst.msk [vmem:[#allocation3 + $0xa0] sm:$0x3] %vm3910, 0.0
        %3930 = vst.msk [vmem:[#allocation3 + $0xa8] sm:$0xff] %vm3907, 0.0
        %3931 = vst.msk [vmem:[#allocation3 + $0xb0] sm:$0xff] %vm3907, 0.0
        %3932 = vst.msk [vmem:[#allocation3 + $0xb8] sm:$0x3] %vm3910, 0.0
        %3933 = vst.msk [vmem:[#allocation3 + $0xc0] sm:$0xff] %vm3907, 0.0
        %3934 = vst.msk [vmem:[#allocation3 + $0xc8] sm:$0xff] %vm3907, 0.0
        %3935 = vst.msk [vmem:[#allocation3 + $0xd0] sm:$0x3] %vm3910, 0.0
        %3936 = vst.msk [vmem:[#allocation3 + $0xd8] sm:$0xff] %vm3907, 0.0
        %3937 = vst.msk [vmem:[#allocation3 + $0xe0] sm:$0xff] %vm3907, 0.0
        %3938 = vst.msk [vmem:[#allocation3 + $0xe8] sm:$0x3] %vm3910, 0.0
        %3939 = vst.msk [vmem:[#allocation3 + $0xf0] sm:$0xff] %vm3907, 0.0
        %3940 = vst.msk [vmem:[#allocation3 + $0xf8] sm:$0xff] %vm3907, 0.0
        %3941 = vst.msk [vmem:[#allocation3 + $0x100] sm:$0x3] %vm3910, 0.0
        %3942 = vst.msk [vmem:[#allocation3 + $0x108] sm:$0xff] %vm3907, 0.0
        %3943 = vst.msk [vmem:[#allocation3 + $0x110] sm:$0xff] %vm3907, 0.0
        %3944 = vst.msk [vmem:[#allocation3 + $0x118] sm:$0x3] %vm3910, 0.0
        %3945 = vst.msk [vmem:[#allocation3 + $0x120] sm:$0xff] %vm3907, 0.0
        %3946 = vst.msk [vmem:[#allocation3 + $0x128] sm:$0xff] %vm3907, 0.0
        %3947 = vst.msk [vmem:[#allocation3 + $0x130] sm:$0x3] %vm3910, 0.0
        %3948 = vst.msk [vmem:[#allocation3 + $0x138] sm:$0xff] %vm3907, 0.0
        %3949 = vst.msk [vmem:[#allocation3 + $0x140] sm:$0xff] %vm3907, 0.0
        %3950 = vst.msk [vmem:[#allocation3 + $0x148] sm:$0x3] %vm3910, 0.0
        %3951 = vst.msk [vmem:[#allocation3 + $0x150] sm:$0xff] %vm3907, 0.0
        %3952 = vst.msk [vmem:[#allocation3 + $0x158] sm:$0xff] %vm3907, 0.0
        %3953 = vst.msk [vmem:[#allocation3 + $0x160] sm:$0x3] %vm3910, 0.0
        %3954 = vst.msk [vmem:[#allocation3 + $0x168] sm:$0xff] %vm3907, 0.0
        %3955 = vst.msk [vmem:[#allocation3 + $0x170] sm:$0xff] %vm3907, 0.0
        %3956 = vst.msk [vmem:[#allocation3 + $0x178] sm:$0x3] %vm3910, 0.0
        %3957 = vst.msk [vmem:[#allocation3 + $0x180] sm:$0xff] %vm3907, 0.0
        %3958 = vst.msk [vmem:[#allocation3 + $0x188] sm:$0xff] %vm3907, 0.0
        %3959 = vst.msk [vmem:[#allocation3 + $0x190] sm:$0x3] %vm3910, 0.0
        %3960 = vst.msk [vmem:[#allocation3 + $0x198] sm:$0xff] %vm3907, 0.0
        %3961 = vst.msk [vmem:[#allocation3 + $0x1a0] sm:$0xff] %vm3907, 0.0
        %3962 = vst.msk [vmem:[#allocation3 + $0x1a8] sm:$0x3] %vm3910, 0.0
        %s3963 = scalar_lea.vmem [#allocation3], 24
        %3964 = vst.msk [vmem:[%s3963 + $0x1] sm:$0xff] %vm3907, %v3875
        %3965 = vst.msk [vmem:[%s3963 + $0x9] sm:$0xff] %vm3907, %v3876
        %3966 = vst.msk [vmem:[%s3963 + $0x19] sm:$0xff] %vm3907, %v3877
        %3967 = vst.msk [vmem:[%s3963 + $0x21] sm:$0xff] %vm3907, %v3878
        %3968 = vst.msk [vmem:[%s3963 + $0x31] sm:$0xff] %vm3907, %v3879
        %3969 = vst.msk [vmem:[%s3963 + $0x39] sm:$0xff] %vm3907, %v3880
        %3970 = vst.msk [vmem:[%s3963 + $0x49] sm:$0xff] %vm3907, %v3881
        %3971 = vst.msk [vmem:[%s3963 + $0x51] sm:$0xff] %vm3907, %v3882
        %3972 = vst.msk [vmem:[%s3963 + $0x61] sm:$0xff] %vm3907, %v3883
        %3973 = vst.msk [vmem:[%s3963 + $0x69] sm:$0xff] %vm3907, %v3884
        %3974 = vst.msk [vmem:[%s3963 + $0x79] sm:$0xff] %vm3907, %v3885
        %3975 = vst.msk [vmem:[%s3963 + $0x81] sm:$0xff] %vm3907, %v3886
        %3976 = vst.msk [vmem:[%s3963 + $0x91] sm:$0xff] %vm3907, %v3887
        %3977 = vst.msk [vmem:[%s3963 + $0x99] sm:$0xff] %vm3907, %v3888
        %3978 = vst.msk [vmem:[%s3963 + $0xa9] sm:$0xff] %vm3907, %v3889
        %3979 = vst.msk [vmem:[%s3963 + $0xb1] sm:$0xff] %vm3907, %v3890
        %3980 = vst.msk [vmem:[%s3963 + $0xc1] sm:$0xff] %vm3907, %v3891
        %3981 = vst.msk [vmem:[%s3963 + $0xc9] sm:$0xff] %vm3907, %v3892
        %3982 = vst.msk [vmem:[%s3963 + $0xd9] sm:$0xff] %vm3907, %v3893
        %3983 = vst.msk [vmem:[%s3963 + $0xe1] sm:$0xff] %vm3907, %v3894
        %3984 = vst.msk [vmem:[%s3963 + $0xf1] sm:$0xff] %vm3907, %v3895
        %3985 = vst.msk [vmem:[%s3963 + $0xf9] sm:$0xff] %vm3907, %v3896
        %3986 = vst.msk [vmem:[%s3963 + $0x109] sm:$0xff] %vm3907, %v3897
        %3987 = vst.msk [vmem:[%s3963 + $0x111] sm:$0xff] %vm3907, %v3898
        %3988 = vst.msk [vmem:[%s3963 + $0x121] sm:$0xff] %vm3907, %v3899
        %3989 = vst.msk [vmem:[%s3963 + $0x129] sm:$0xff] %vm3907, %v3900
        %3990 = vst.msk [vmem:[%s3963 + $0x139] sm:$0xff] %vm3907, %v3901
        %3991 = vst.msk [vmem:[%s3963 + $0x141] sm:$0xff] %vm3907, %v3902
        %3992 = vst.msk [vmem:[%s3963 + $0x151] sm:$0xff] %vm3907, %v3903
        %3993 = vst.msk [vmem:[%s3963 + $0x159] sm:$0xff] %vm3907, %v3904
        %3994 = vst.msk [vmem:[%s3963 + $0x169] sm:$0xff] %vm3907, %v3905
        %3995 = vst.msk [vmem:[%s3963 + $0x171] sm:$0xff] %vm3907, %v3906
        %v3996 = vld [vmem:[#allocation3] sm:$0xff]
        %v3997 = vld [vmem:[#allocation3 + $0x8] sm:$0xff]
        %v3998 = vld [vmem:[#allocation3 + $0x18] sm:$0xff]
        %v3999 = vld [vmem:[#allocation3 + $0x20] sm:$0xff]
        %v4000 = vld [vmem:[#allocation3 + $0x30] sm:$0xff]
        %v4001 = vld [vmem:[#allocation3 + $0x38] sm:$0xff]
        %v4002 = vld [vmem:[#allocation3 + $0x48] sm:$0xff]
        %v4003 = vld [vmem:[#allocation3 + $0x50] sm:$0xff]
        %v4004 = vld [vmem:[#allocation3 + $0x60] sm:$0xff]
        %v4005 = vld [vmem:[#allocation3 + $0x68] sm:$0xff]
        %v4006 = vld [vmem:[#allocation3 + $0x78] sm:$0xff]
        %v4007 = vld [vmem:[#allocation3 + $0x80] sm:$0xff]
        %v4008 = vld [vmem:[#allocation3 + $0x90] sm:$0xff]
        %v4009 = vld [vmem:[#allocation3 + $0x98] sm:$0xff]
        %v4010 = vld [vmem:[#allocation3 + $0xa8] sm:$0xff]
        %v4011 = vld [vmem:[#allocation3 + $0xb0] sm:$0xff]
        %v4012 = vld [vmem:[#allocation3 + $0xc0] sm:$0xff]
        %v4013 = vld [vmem:[#allocation3 + $0xc8] sm:$0xff]
        %v4014 = vld [vmem:[#allocation3 + $0xd8] sm:$0xff]
        %v4015 = vld [vmem:[#allocation3 + $0xe0] sm:$0xff]
        %v4016 = vld [vmem:[#allocation3 + $0xf0] sm:$0xff]
        %v4017 = vld [vmem:[#allocation3 + $0xf8] sm:$0xff]
        %v4018 = vld [vmem:[#allocation3 + $0x108] sm:$0xff]
        %v4019 = vld [vmem:[#allocation3 + $0x110] sm:$0xff]
        %v4020 = vld [vmem:[#allocation3 + $0x120] sm:$0xff]
        %v4021 = vld [vmem:[#allocation3 + $0x128] sm:$0xff]
        %v4022 = vld [vmem:[#allocation3 + $0x138] sm:$0xff]
        %v4023 = vld [vmem:[#allocation3 + $0x140] sm:$0xff]
        %v4024 = vld [vmem:[#allocation3 + $0x150] sm:$0xff]
        %v4025 = vld [vmem:[#allocation3 + $0x158] sm:$0xff]
        %v4026 = vld [vmem:[#allocation3 + $0x168] sm:$0xff]
        %v4027 = vld [vmem:[#allocation3 + $0x170] sm:$0xff]
        %v4028 = vld [vmem:[%s3] sm:$0xff]
        %v4029 = vld [vmem:[%s3 + $0x8] sm:$0xff]
        %v4030 = vld [vmem:[#allocation3 + $0x1] sm:$0xff]
        %v4031 = vld [vmem:[#allocation3 + $0x9] sm:$0xff]
        %v4032 = vld [vmem:[#allocation3 + $0x19] sm:$0xff]
        %v4033 = vld [vmem:[#allocation3 + $0x21] sm:$0xff]
        %v4034 = vld [vmem:[#allocation3 + $0x31] sm:$0xff]
        %v4035 = vld [vmem:[#allocation3 + $0x39] sm:$0xff]
        %v4036 = vld [vmem:[#allocation3 + $0x49] sm:$0xff]
        %v4037 = vld [vmem:[#allocation3 + $0x51] sm:$0xff]
        %v4038 = vld [vmem:[#allocation3 + $0x61] sm:$0xff]
        %v4039 = vld [vmem:[#allocation3 + $0x69] sm:$0xff]
        %v4040 = vld [vmem:[#allocation3 + $0x79] sm:$0xff]
        %v4041 = vld [vmem:[#allocation3 + $0x81] sm:$0xff]
        %v4042 = vld [vmem:[#allocation3 + $0x91] sm:$0xff]
        %v4043 = vld [vmem:[#allocation3 + $0x99] sm:$0xff]
        %v4044 = vld [vmem:[#allocation3 + $0xa9] sm:$0xff]
        %v4045 = vld [vmem:[#allocation3 + $0xb1] sm:$0xff]
        %v4046 = vld [vmem:[#allocation3 + $0xc1] sm:$0xff]
        %v4047 = vld [vmem:[#allocation3 + $0xc9] sm:$0xff]
        %v4048 = vld [vmem:[#allocation3 + $0xd9] sm:$0xff]
        %v4049 = vld [vmem:[#allocation3 + $0xe1] sm:$0xff]
        %v4050 = vld [vmem:[#allocation3 + $0xf1] sm:$0xff]
        %v4051 = vld [vmem:[#allocation3 + $0xf9] sm:$0xff]
        %v4052 = vld [vmem:[#allocation3 + $0x109] sm:$0xff]
        %v4053 = vld [vmem:[#allocation3 + $0x111] sm:$0xff]
        %v4054 = vld [vmem:[#allocation3 + $0x121] sm:$0xff]
        %v4055 = vld [vmem:[#allocation3 + $0x129] sm:$0xff]
        %v4056 = vld [vmem:[#allocation3 + $0x139] sm:$0xff]
        %v4057 = vld [vmem:[#allocation3 + $0x141] sm:$0xff]
        %v4058 = vld [vmem:[#allocation3 + $0x151] sm:$0xff]
        %v4059 = vld [vmem:[#allocation3 + $0x159] sm:$0xff]
        %v4060 = vld [vmem:[#allocation3 + $0x169] sm:$0xff]
        %v4061 = vld [vmem:[#allocation3 + $0x171] sm:$0xff]
        %v4062 = vld [vmem:[%s3 + $0x10] sm:$0xff]
        %v4063 = vld [vmem:[%s3 + $0x18] sm:$0xff]
        %v4065 = vsel %vm3907, %v4030, 0
        %v4068 = vsel %vm3907, %v4031, 0
        %v4071 = vsel %vm3907, %v4032, 0
        %v4074 = vsel %vm3907, %v4033, 0
        %v4077 = vsel %vm3907, %v4034, 0
        %v4080 = vsel %vm3907, %v4035, 0
        %v4083 = vsel %vm3907, %v4036, 0
        %v4086 = vsel %vm3907, %v4037, 0
        %v4089 = vsel %vm3907, %v4038, 0
        %v4092 = vsel %vm3907, %v4039, 0
        %v4095 = vsel %vm3907, %v4040, 0
        %v4098 = vsel %vm3907, %v4041, 0
        %v4101 = vsel %vm3907, %v4042, 0
        %v4104 = vsel %vm3907, %v4043, 0
        %v4107 = vsel %vm3907, %v4044, 0
        %v4110 = vsel %vm3907, %v4045, 0
        %v4113 = vsel %vm3907, %v4046, 0
        %v4116 = vsel %vm3907, %v4047, 0
        %v4119 = vsel %vm3907, %v4048, 0
        %v4122 = vsel %vm3907, %v4049, 0
        %v4125 = vsel %vm3907, %v4050, 0
        %v4128 = vsel %vm3907, %v4051, 0
        %v4131 = vsel %vm3907, %v4052, 0
        %v4134 = vsel %vm3907, %v4053, 0
        %v4137 = vsel %vm3907, %v4054, 0
        %v4140 = vsel %vm3907, %v4055, 0
        %v4143 = vsel %vm3907, %v4056, 0
        %v4146 = vsel %vm3907, %v4057, 0
        %v4149 = vsel %vm3907, %v4058, 0
        %v4152 = vsel %vm3907, %v4059, 0
        %v4155 = vsel %vm3907, %v4060, 0
        %v4158 = vsel %vm3907, %v4061, 0
        %4160 = vmatprep.subr.mxu0 0.0
        %4161 = vmatpush1.msra.mxu0 0.0
        %4162 = vmatprep.subr.mxu0 0.0
        %4163 = vmatpush1.msra.mxu0 0.0
        %4164 = vmatprep.subr.mxu0 0.0
        %4165 = vmatpush1.msra.mxu0 0.0
        %4166 = vmatprep.subr.mxu0 0.0
        %4167 = vmatpush1.msra.mxu0 0.0
        %4168 = vmatprep.subr.mxu0 0.0
        %4169 = vmatpush1.msra.mxu0 0.0
        %4170 = vmatprep.subr.mxu0 0.0
        %4171 = vmatpush1.msra.mxu0 0.0
        %4172 = vmatprep.subr.mxu0 0.0
        %4173 = vmatpush1.msra.mxu0 0.0
        %4174 = vmatprep.subr.mxu0 0.0
        %4175 = vmatpush1.msra.mxu0 0.0
        %4176 = vmatprep.subr.mxu0 0.0
        %4177 = vmatpush1.msra.mxu0 0.0
        %4178 = vmatprep.subr.mxu0 0.0
        %4179 = vmatpush1.msra.mxu0 0.0
        %4180 = vmatprep.subr.mxu0 0.0
        %4181 = vmatpush1.msra.mxu0 0.0
        %4182 = vmatprep.subr.mxu0 0.0
        %4183 = vmatpush1.msra.mxu0 0.0
        %4184 = vmatprep.subr.mxu0 0.0
        %4185 = vmatpush1.msra.mxu0 0.0
        %4186 = vmatprep.subr.mxu0 0.0
        %4187 = vmatpush1.msra.mxu0 0.0
        %4188 = vmatprep.subr.mxu0 0.0
        %4189 = vmatpush1.msra.mxu0 %v4063
        %4190 = vmatprep.subr.mxu0 0.0
        %4191 = vmatpush1.msra.mxu0 %v4062
        %4192 = vmatprep.subr.mxu0 0.0
        %4193 = vmatpush2.msra.mxu0 0.0
        %4194 = vmatprep.subr.mxu0 0.0
        %4195 = vmatpush2.msra.mxu0 0.0
        %4196 = vmatprep.subr.mxu0 0.0
        %4197 = vmatpush2.msra.mxu0 0.0
        %4198 = vmatprep.subr.mxu0 0.0
        %4199 = vmatpush2.msra.mxu0 0.0
        %4200 = vmatprep.subr.mxu0 0.0
        %4201 = vmatpush2.msra.mxu0 0.0
        %4202 = vmatprep.subr.mxu0 0.0
        %4203 = vmatpush2.msra.mxu0 0.0
        %4204 = vmatprep.subr.mxu0 0.0
        %4205 = vmatpush2.msra.mxu0 0.0
        %4206 = vmatprep.subr.mxu0 0.0
        %4207 = vmatpush2.msra.mxu0 0.0
        %4208 = vmatprep.subr.mxu0 0.0
        %4209 = vmatpush2.msra.mxu0 0.0
        %4210 = vmatprep.subr.mxu0 0.0
        %4211 = vmatpush2.msra.mxu0 0.0
        %4212 = vmatprep.subr.mxu0 0.0
        %4213 = vmatpush2.msra.mxu0 0.0
        %4214 = vmatprep.subr.mxu0 0.0
        %4215 = vmatpush2.msra.mxu0 0.0
        %4216 = vmatprep.subr.mxu0 0.0
        %4217 = vmatpush2.msra.mxu0 0.0
        %4218 = vmatprep.subr.mxu0 0.0
        %4219 = vmatpush2.msra.mxu0 0.0
        %4220 = vmatprep.subr.mxu0 0.0
        %4221 = vmatpush2.msra.mxu0 0.0
        %4222 = vmatprep.subr.mxu0 0.0
        %4223 = vmatpush2.msra.mxu0 0.0
        %4224 = vmatprep.mubr.f32.mxu0 0.0
        %4225 = vmatmul.mubr.f32.gmra.mxu0 %v4065
        %v4226 = vpop.f32.mrf.mxu0
        %v4227 = vadd.f32 0.0, %v4226
        %v4228 = vpop.f32.mrf.mxu0
        %4229 = vmatprep.mubr.f32.mxu0 0.0
        %4230 = vmatmul.mubr.f32.gmra.mxu0 %v4068
        %v4231 = vpop.f32.mrf.mxu0
        %v4232 = vadd.f32 0.0, %v4231
        %v4233 = vpop.f32.mrf.mxu0
        %4234 = vmatprep.mubr.f32.mxu0 0.0
        %4235 = vmatmul.mubr.f32.gmra.mxu0 %v4071
        %v4236 = vpop.f32.mrf.mxu0
        %v4237 = vadd.f32 0.0, %v4236
        %v4238 = vpop.f32.mrf.mxu0
        %4239 = vmatprep.mubr.f32.mxu0 0.0
        %4240 = vmatmul.mubr.f32.gmra.mxu0 %v4074
        %v4241 = vpop.f32.mrf.mxu0
        %v4242 = vadd.f32 0.0, %v4241
        %v4243 = vpop.f32.mrf.mxu0
        %4244 = vmatprep.mubr.f32.mxu0 0.0
        %4245 = vmatmul.mubr.f32.gmra.mxu0 %v4077
        %v4246 = vpop.f32.mrf.mxu0
        %v4247 = vadd.f32 0.0, %v4246
        %v4248 = vpop.f32.mrf.mxu0
        %4249 = vmatprep.mubr.f32.mxu0 0.0
        %4250 = vmatmul.mubr.f32.gmra.mxu0 %v4080
        %v4251 = vpop.f32.mrf.mxu0
        %v4252 = vadd.f32 0.0, %v4251
        %v4253 = vpop.f32.mrf.mxu0
        %4254 = vmatprep.mubr.f32.mxu0 0.0
        %4255 = vmatmul.mubr.f32.gmra.mxu0 %v4083
        %v4256 = vpop.f32.mrf.mxu0
        %v4257 = vadd.f32 0.0, %v4256
        %v4258 = vpop.f32.mrf.mxu0
        %4259 = vmatprep.mubr.f32.mxu0 0.0
        %4260 = vmatmul.mubr.f32.gmra.mxu0 %v4086
        %v4261 = vpop.f32.mrf.mxu0
        %v4262 = vadd.f32 0.0, %v4261
        %v4263 = vpop.f32.mrf.mxu0
        %4264 = vmatprep.mubr.f32.mxu0 0.0
        %4265 = vmatmul.mubr.f32.gmra.mxu0 %v4089
        %v4266 = vpop.f32.mrf.mxu0
        %v4267 = vadd.f32 0.0, %v4266
        %v4268 = vpop.f32.mrf.mxu0
        %4269 = vmatprep.mubr.f32.mxu0 0.0
        %4270 = vmatmul.mubr.f32.gmra.mxu0 %v4092
        %v4271 = vpop.f32.mrf.mxu0
        %v4272 = vadd.f32 0.0, %v4271
        %v4273 = vpop.f32.mrf.mxu0
        %4274 = vmatprep.mubr.f32.mxu0 0.0
        %4275 = vmatmul.mubr.f32.gmra.mxu0 %v4095
        %v4276 = vpop.f32.mrf.mxu0
        %v4277 = vadd.f32 0.0, %v4276
        %v4278 = vpop.f32.mrf.mxu0
        %4279 = vmatprep.mubr.f32.mxu0 0.0
        %4280 = vmatmul.mubr.f32.gmra.mxu0 %v4098
        %v4281 = vpop.f32.mrf.mxu0
        %v4282 = vadd.f32 0.0, %v4281
        %v4283 = vpop.f32.mrf.mxu0
        %4284 = vmatprep.mubr.f32.mxu0 0.0
        %4285 = vmatmul.mubr.f32.gmra.mxu0 %v4101
        %v4286 = vpop.f32.mrf.mxu0
        %v4287 = vadd.f32 0.0, %v4286
        %v4288 = vpop.f32.mrf.mxu0
        %4289 = vmatprep.mubr.f32.mxu0 0.0
        %4290 = vmatmul.mubr.f32.gmra.mxu0 %v4104
        %v4291 = vpop.f32.mrf.mxu0
        %v4292 = vadd.f32 0.0, %v4291
        %v4293 = vpop.f32.mrf.mxu0
        %4294 = vmatprep.mubr.f32.mxu0 0.0
        %4295 = vmatmul.mubr.f32.gmra.mxu0 %v4107
        %v4296 = vpop.f32.mrf.mxu0
        %v4297 = vadd.f32 0.0, %v4296
        %v4298 = vpop.f32.mrf.mxu0
        %4299 = vmatprep.mubr.f32.mxu0 0.0
        %4300 = vmatmul.mubr.f32.gmra.mxu0 %v4110
        %v4301 = vpop.f32.mrf.mxu0
        %v4302 = vadd.f32 0.0, %v4301
        %v4303 = vpop.f32.mrf.mxu0
        %4304 = vmatprep.mubr.f32.mxu0 0.0
        %4305 = vmatmul.mubr.f32.gmra.mxu0 %v4113
        %v4306 = vpop.f32.mrf.mxu0
        %v4307 = vadd.f32 0.0, %v4306
        %v4308 = vpop.f32.mrf.mxu0
        %4309 = vmatprep.mubr.f32.mxu0 0.0
        %4310 = vmatmul.mubr.f32.gmra.mxu0 %v4116
        %v4311 = vpop.f32.mrf.mxu0
        %v4312 = vadd.f32 0.0, %v4311
        %v4313 = vpop.f32.mrf.mxu0
        %4314 = vmatprep.mubr.f32.mxu0 0.0
        %4315 = vmatmul.mubr.f32.gmra.mxu0 %v4119
        %v4316 = vpop.f32.mrf.mxu0
        %v4317 = vadd.f32 0.0, %v4316
        %v4318 = vpop.f32.mrf.mxu0
        %4319 = vmatprep.mubr.f32.mxu0 0.0
        %4320 = vmatmul.mubr.f32.gmra.mxu0 %v4122
        %v4321 = vpop.f32.mrf.mxu0
        %v4322 = vadd.f32 0.0, %v4321
        %v4323 = vpop.f32.mrf.mxu0
        %4324 = vmatprep.mubr.f32.mxu0 0.0
        %4325 = vmatmul.mubr.f32.gmra.mxu0 %v4125
        %v4326 = vpop.f32.mrf.mxu0
        %v4327 = vadd.f32 0.0, %v4326
        %v4328 = vpop.f32.mrf.mxu0
        %4329 = vmatprep.mubr.f32.mxu0 0.0
        %4330 = vmatmul.mubr.f32.gmra.mxu0 %v4128
        %v4331 = vpop.f32.mrf.mxu0
        %v4332 = vadd.f32 0.0, %v4331
        %v4333 = vpop.f32.mrf.mxu0
        %4334 = vmatprep.mubr.f32.mxu0 0.0
        %4335 = vmatmul.mubr.f32.gmra.mxu0 %v4131
        %v4336 = vpop.f32.mrf.mxu0
        %v4337 = vadd.f32 0.0, %v4336
        %v4338 = vpop.f32.mrf.mxu0
        %4339 = vmatprep.mubr.f32.mxu0 0.0
        %4340 = vmatmul.mubr.f32.gmra.mxu0 %v4134
        %v4341 = vpop.f32.mrf.mxu0
        %v4342 = vadd.f32 0.0, %v4341
        %v4343 = vpop.f32.mrf.mxu0
        %4344 = vmatprep.mubr.f32.mxu0 0.0
        %4345 = vmatmul.mubr.f32.gmra.mxu0 %v4137
        %v4346 = vpop.f32.mrf.mxu0
        %v4347 = vadd.f32 0.0, %v4346
        %v4348 = vpop.f32.mrf.mxu0
        %4349 = vmatprep.mubr.f32.mxu0 0.0
        %4350 = vmatmul.mubr.f32.gmra.mxu0 %v4140
        %v4351 = vpop.f32.mrf.mxu0
        %v4352 = vadd.f32 0.0, %v4351
        %v4353 = vpop.f32.mrf.mxu0
        %4354 = vmatprep.mubr.f32.mxu0 0.0
        %4355 = vmatmul.mubr.f32.gmra.mxu0 %v4143
        %v4356 = vpop.f32.mrf.mxu0
        %v4357 = vadd.f32 0.0, %v4356
        %v4358 = vpop.f32.mrf.mxu0
        %4359 = vmatprep.mubr.f32.mxu0 0.0
        %4360 = vmatmul.mubr.f32.gmra.mxu0 %v4146
        %v4361 = vpop.f32.mrf.mxu0
        %v4362 = vadd.f32 0.0, %v4361
        %v4363 = vpop.f32.mrf.mxu0
        %4364 = vmatprep.mubr.f32.mxu0 0.0
        %4365 = vmatmul.mubr.f32.gmra.mxu0 %v4149
        %v4366 = vpop.f32.mrf.mxu0
        %v4367 = vadd.f32 0.0, %v4366
        %v4368 = vpop.f32.mrf.mxu0
        %4369 = vmatprep.mubr.f32.mxu0 0.0
        %4370 = vmatmul.mubr.f32.gmra.mxu0 %v4152
        %v4371 = vpop.f32.mrf.mxu0
        %v4372 = vadd.f32 0.0, %v4371
        %v4373 = vpop.f32.mrf.mxu0
        %4374 = vmatprep.mubr.f32.mxu0 0.0
        %4375 = vmatmul.mubr.f32.gmra.mxu0 %v4155
        %v4376 = vpop.f32.mrf.mxu0
        %v4377 = vadd.f32 0.0, %v4376
        %v4378 = vpop.f32.mrf.mxu0
        %4379 = vmatprep.mubr.f32.mxu0 0.0
        %4380 = vmatmul.mubr.f32.gmra.mxu0 %v4158
        %v4381 = vpop.f32.mrf.mxu0
        %v4382 = vadd.f32 0.0, %v4381
        %v4383 = vpop.f32.mrf.mxu0
        %4384 = vdwg.mxu0
        %v4386 = vsel %vm3907, %v3996, 0
        %v4389 = vsel %vm3907, %v3997, 0
        %v4392 = vsel %vm3907, %v3998, 0
        %v4395 = vsel %vm3907, %v3999, 0
        %v4398 = vsel %vm3907, %v4000, 0
        %v4401 = vsel %vm3907, %v4001, 0
        %v4404 = vsel %vm3907, %v4002, 0
        %v4407 = vsel %vm3907, %v4003, 0
        %v4410 = vsel %vm3907, %v4004, 0
        %v4413 = vsel %vm3907, %v4005, 0
        %v4416 = vsel %vm3907, %v4006, 0
        %v4419 = vsel %vm3907, %v4007, 0
        %v4422 = vsel %vm3907, %v4008, 0
        %v4425 = vsel %vm3907, %v4009, 0
        %v4428 = vsel %vm3907, %v4010, 0
        %v4431 = vsel %vm3907, %v4011, 0
        %v4434 = vsel %vm3907, %v4012, 0
        %v4437 = vsel %vm3907, %v4013, 0
        %v4440 = vsel %vm3907, %v4014, 0
        %v4443 = vsel %vm3907, %v4015, 0
        %v4446 = vsel %vm3907, %v4016, 0
        %v4449 = vsel %vm3907, %v4017, 0
        %v4452 = vsel %vm3907, %v4018, 0
        %v4455 = vsel %vm3907, %v4019, 0
        %v4458 = vsel %vm3907, %v4020, 0
        %v4461 = vsel %vm3907, %v4021, 0
        %v4464 = vsel %vm3907, %v4022, 0
        %v4467 = vsel %vm3907, %v4023, 0
        %v4470 = vsel %vm3907, %v4024, 0
        %v4473 = vsel %vm3907, %v4025, 0
        %v4476 = vsel %vm3907, %v4026, 0
        %v4479 = vsel %vm3907, %v4027, 0
        %4481 = vmatprep.subr.mxu0 0.0
        %4482 = vmatpush1.msra.mxu0 0.0
        %4483 = vmatprep.subr.mxu0 0.0
        %4484 = vmatpush1.msra.mxu0 0.0
        %4485 = vmatprep.subr.mxu0 0.0
        %4486 = vmatpush1.msra.mxu0 0.0
        %4487 = vmatprep.subr.mxu0 0.0
        %4488 = vmatpush1.msra.mxu0 0.0
        %4489 = vmatprep.subr.mxu0 0.0
        %4490 = vmatpush1.msra.mxu0 0.0
        %4491 = vmatprep.subr.mxu0 0.0
        %4492 = vmatpush1.msra.mxu0 0.0
        %4493 = vmatprep.subr.mxu0 0.0
        %4494 = vmatpush1.msra.mxu0 0.0
        %4495 = vmatprep.subr.mxu0 0.0
        %4496 = vmatpush1.msra.mxu0 0.0
        %4497 = vmatprep.subr.mxu0 0.0
        %4498 = vmatpush1.msra.mxu0 0.0
        %4499 = vmatprep.subr.mxu0 0.0
        %4500 = vmatpush1.msra.mxu0 0.0
        %4501 = vmatprep.subr.mxu0 0.0
        %4502 = vmatpush1.msra.mxu0 0.0
        %4503 = vmatprep.subr.mxu0 0.0
        %4504 = vmatpush1.msra.mxu0 0.0
        %4505 = vmatprep.subr.mxu0 0.0
        %4506 = vmatpush1.msra.mxu0 0.0
        %4507 = vmatprep.subr.mxu0 0.0
        %4508 = vmatpush1.msra.mxu0 0.0
        %4509 = vmatprep.subr.mxu0 0.0
        %4510 = vmatpush1.msra.mxu0 %v4029
        %4511 = vmatprep.subr.mxu0 0.0
        %4512 = vmatpush1.msra.mxu0 %v4028
        %4513 = vmatprep.subr.mxu0 0.0
        %4514 = vmatpush2.msra.mxu0 0.0
        %4515 = vmatprep.subr.mxu0 0.0
        %4516 = vmatpush2.msra.mxu0 0.0
        %4517 = vmatprep.subr.mxu0 0.0
        %4518 = vmatpush2.msra.mxu0 0.0
        %4519 = vmatprep.subr.mxu0 0.0
        %4520 = vmatpush2.msra.mxu0 0.0
        %4521 = vmatprep.subr.mxu0 0.0
        %4522 = vmatpush2.msra.mxu0 0.0
        %4523 = vmatprep.subr.mxu0 0.0
        %4524 = vmatpush2.msra.mxu0 0.0
        %4525 = vmatprep.subr.mxu0 0.0
        %4526 = vmatpush2.msra.mxu0 0.0
        %4527 = vmatprep.subr.mxu0 0.0
        %4528 = vmatpush2.msra.mxu0 0.0
        %4529 = vmatprep.subr.mxu0 0.0
        %4530 = vmatpush2.msra.mxu0 0.0
        %4531 = vmatprep.subr.mxu0 0.0
        %4532 = vmatpush2.msra.mxu0 0.0
        %4533 = vmatprep.subr.mxu0 0.0
        %4534 = vmatpush2.msra.mxu0 0.0
        %4535 = vmatprep.subr.mxu0 0.0
        %4536 = vmatpush2.msra.mxu0 0.0
        %4537 = vmatprep.subr.mxu0 0.0
        %4538 = vmatpush2.msra.mxu0 0.0
        %4539 = vmatprep.subr.mxu0 0.0
        %4540 = vmatpush2.msra.mxu0 0.0
        %4541 = vmatprep.subr.mxu0 0.0
        %4542 = vmatpush2.msra.mxu0 0.0
        %4543 = vmatprep.subr.mxu0 0.0
        %4544 = vmatpush2.msra.mxu0 0.0
        %4545 = vmatprep.mubr.f32.mxu0 0.0
        %4546 = vmatmul.mubr.f32.gmra.mxu0 %v4386
        %v4547 = vpop.f32.mrf.mxu0
        %v4548 = vadd.f32 %v4227, %v4547
        %v4549 = vpop.f32.mrf.mxu0
        %4550 = vmatprep.mubr.f32.mxu0 0.0
        %4551 = vmatmul.mubr.f32.gmra.mxu0 %v4389
        %v4552 = vpop.f32.mrf.mxu0
        %v4553 = vadd.f32 %v4232, %v4552
        %v4554 = vpop.f32.mrf.mxu0
        %4555 = vmatprep.mubr.f32.mxu0 0.0
        %4556 = vmatmul.mubr.f32.gmra.mxu0 %v4392
        %v4557 = vpop.f32.mrf.mxu0
        %v4558 = vadd.f32 %v4237, %v4557
        %v4559 = vpop.f32.mrf.mxu0
        %4560 = vmatprep.mubr.f32.mxu0 0.0
        %4561 = vmatmul.mubr.f32.gmra.mxu0 %v4395
        %v4562 = vpop.f32.mrf.mxu0
        %v4563 = vadd.f32 %v4242, %v4562
        %v4564 = vpop.f32.mrf.mxu0
        %4565 = vmatprep.mubr.f32.mxu0 0.0
        %4566 = vmatmul.mubr.f32.gmra.mxu0 %v4398
        %v4567 = vpop.f32.mrf.mxu0
        %v4568 = vadd.f32 %v4247, %v4567
        %v4569 = vpop.f32.mrf.mxu0
        %4570 = vmatprep.mubr.f32.mxu0 0.0
        %4571 = vmatmul.mubr.f32.gmra.mxu0 %v4401
        %v4572 = vpop.f32.mrf.mxu0
        %v4573 = vadd.f32 %v4252, %v4572
        %v4574 = vpop.f32.mrf.mxu0
        %4575 = vmatprep.mubr.f32.mxu0 0.0
        %4576 = vmatmul.mubr.f32.gmra.mxu0 %v4404
        %v4577 = vpop.f32.mrf.mxu0
        %v4578 = vadd.f32 %v4257, %v4577
        %v4579 = vpop.f32.mrf.mxu0
        %4580 = vmatprep.mubr.f32.mxu0 0.0
        %4581 = vmatmul.mubr.f32.gmra.mxu0 %v4407
        %v4582 = vpop.f32.mrf.mxu0
        %v4583 = vadd.f32 %v4262, %v4582
        %v4584 = vpop.f32.mrf.mxu0
        %4585 = vmatprep.mubr.f32.mxu0 0.0
        %4586 = vmatmul.mubr.f32.gmra.mxu0 %v4410
        %v4587 = vpop.f32.mrf.mxu0
        %v4588 = vadd.f32 %v4267, %v4587
        %v4589 = vpop.f32.mrf.mxu0
        %4590 = vmatprep.mubr.f32.mxu0 0.0
        %4591 = vmatmul.mubr.f32.gmra.mxu0 %v4413
        %v4592 = vpop.f32.mrf.mxu0
        %v4593 = vadd.f32 %v4272, %v4592
        %v4594 = vpop.f32.mrf.mxu0
        %4595 = vmatprep.mubr.f32.mxu0 0.0
        %4596 = vmatmul.mubr.f32.gmra.mxu0 %v4416
        %v4597 = vpop.f32.mrf.mxu0
        %v4598 = vadd.f32 %v4277, %v4597
        %v4599 = vpop.f32.mrf.mxu0
        %4600 = vmatprep.mubr.f32.mxu0 0.0
        %4601 = vmatmul.mubr.f32.gmra.mxu0 %v4419
        %v4602 = vpop.f32.mrf.mxu0
        %v4603 = vadd.f32 %v4282, %v4602
        %v4604 = vpop.f32.mrf.mxu0
        %4605 = vmatprep.mubr.f32.mxu0 0.0
        %4606 = vmatmul.mubr.f32.gmra.mxu0 %v4422
        %v4607 = vpop.f32.mrf.mxu0
        %v4608 = vadd.f32 %v4287, %v4607
        %v4609 = vpop.f32.mrf.mxu0
        %4610 = vmatprep.mubr.f32.mxu0 0.0
        %4611 = vmatmul.mubr.f32.gmra.mxu0 %v4425
        %v4612 = vpop.f32.mrf.mxu0
        %v4613 = vadd.f32 %v4292, %v4612
        %v4614 = vpop.f32.mrf.mxu0
        %4615 = vmatprep.mubr.f32.mxu0 0.0
        %4616 = vmatmul.mubr.f32.gmra.mxu0 %v4428
        %v4617 = vpop.f32.mrf.mxu0
        %v4618 = vadd.f32 %v4297, %v4617
        %v4619 = vpop.f32.mrf.mxu0
        %4620 = vmatprep.mubr.f32.mxu0 0.0
        %4621 = vmatmul.mubr.f32.gmra.mxu0 %v4431
        %v4622 = vpop.f32.mrf.mxu0
        %v4623 = vadd.f32 %v4302, %v4622
        %v4624 = vpop.f32.mrf.mxu0
        %4625 = vmatprep.mubr.f32.mxu0 0.0
        %4626 = vmatmul.mubr.f32.gmra.mxu0 %v4434
        %v4627 = vpop.f32.mrf.mxu0
        %v4628 = vadd.f32 %v4307, %v4627
        %v4629 = vpop.f32.mrf.mxu0
        %4630 = vmatprep.mubr.f32.mxu0 0.0
        %4631 = vmatmul.mubr.f32.gmra.mxu0 %v4437
        %v4632 = vpop.f32.mrf.mxu0
        %v4633 = vadd.f32 %v4312, %v4632
        %v4634 = vpop.f32.mrf.mxu0
        %4635 = vmatprep.mubr.f32.mxu0 0.0
        %4636 = vmatmul.mubr.f32.gmra.mxu0 %v4440
        %v4637 = vpop.f32.mrf.mxu0
        %v4638 = vadd.f32 %v4317, %v4637
        %v4639 = vpop.f32.mrf.mxu0
        %4640 = vmatprep.mubr.f32.mxu0 0.0
        %4641 = vmatmul.mubr.f32.gmra.mxu0 %v4443
        %v4642 = vpop.f32.mrf.mxu0
        %v4643 = vadd.f32 %v4322, %v4642
        %v4644 = vpop.f32.mrf.mxu0
        %4645 = vmatprep.mubr.f32.mxu0 0.0
        %4646 = vmatmul.mubr.f32.gmra.mxu0 %v4446
        %v4647 = vpop.f32.mrf.mxu0
        %v4648 = vadd.f32 %v4327, %v4647
        %v4649 = vpop.f32.mrf.mxu0
        %4650 = vmatprep.mubr.f32.mxu0 0.0
        %4651 = vmatmul.mubr.f32.gmra.mxu0 %v4449
        %v4652 = vpop.f32.mrf.mxu0
        %v4653 = vadd.f32 %v4332, %v4652
        %v4654 = vpop.f32.mrf.mxu0
        %4655 = vmatprep.mubr.f32.mxu0 0.0
        %4656 = vmatmul.mubr.f32.gmra.mxu0 %v4452
        %v4657 = vpop.f32.mrf.mxu0
        %v4658 = vadd.f32 %v4337, %v4657
        %v4659 = vpop.f32.mrf.mxu0
        %4660 = vmatprep.mubr.f32.mxu0 0.0
        %4661 = vmatmul.mubr.f32.gmra.mxu0 %v4455
        %v4662 = vpop.f32.mrf.mxu0
        %v4663 = vadd.f32 %v4342, %v4662
        %v4664 = vpop.f32.mrf.mxu0
        %4665 = vmatprep.mubr.f32.mxu0 0.0
        %4666 = vmatmul.mubr.f32.gmra.mxu0 %v4458
        %v4667 = vpop.f32.mrf.mxu0
        %v4668 = vadd.f32 %v4347, %v4667
        %v4669 = vpop.f32.mrf.mxu0
        %4670 = vmatprep.mubr.f32.mxu0 0.0
        %4671 = vmatmul.mubr.f32.gmra.mxu0 %v4461
        %v4672 = vpop.f32.mrf.mxu0
        %v4673 = vadd.f32 %v4352, %v4672
        %v4674 = vpop.f32.mrf.mxu0
        %4675 = vmatprep.mubr.f32.mxu0 0.0
        %4676 = vmatmul.mubr.f32.gmra.mxu0 %v4464
        %v4677 = vpop.f32.mrf.mxu0
        %v4678 = vadd.f32 %v4357, %v4677
        %v4679 = vpop.f32.mrf.mxu0
        %4680 = vmatprep.mubr.f32.mxu0 0.0
        %4681 = vmatmul.mubr.f32.gmra.mxu0 %v4467
        %v4682 = vpop.f32.mrf.mxu0
        %v4683 = vadd.f32 %v4362, %v4682
        %v4684 = vpop.f32.mrf.mxu0
        %4685 = vmatprep.mubr.f32.mxu0 0.0
        %4686 = vmatmul.mubr.f32.gmra.mxu0 %v4470
        %v4687 = vpop.f32.mrf.mxu0
        %v4688 = vadd.f32 %v4367, %v4687
        %v4689 = vpop.f32.mrf.mxu0
        %4690 = vmatprep.mubr.f32.mxu0 0.0
        %4691 = vmatmul.mubr.f32.gmra.mxu0 %v4473
        %v4692 = vpop.f32.mrf.mxu0
        %v4693 = vadd.f32 %v4372, %v4692
        %v4694 = vpop.f32.mrf.mxu0
        %4695 = vmatprep.mubr.f32.mxu0 0.0
        %4696 = vmatmul.mubr.f32.gmra.mxu0 %v4476
        %v4697 = vpop.f32.mrf.mxu0
        %v4698 = vadd.f32 %v4377, %v4697
        %v4699 = vpop.f32.mrf.mxu0
        %4700 = vmatprep.mubr.f32.mxu0 0.0
        %4701 = vmatmul.mubr.f32.gmra.mxu0 %v4479
        %v4702 = vpop.f32.mrf.mxu0
        %v4703 = vadd.f32 %v4382, %v4702
        %v4704 = vpop.f32.mrf.mxu0
        %4705 = vdwg.mxu0
        %v4706 = vld [vmem:[#allocation3 + $0x2] sm:$0xff]
        %v4707 = vld [vmem:[#allocation3 + $0xa] sm:$0xff]
        %v4708 = vld [vmem:[#allocation3 + $0x1a] sm:$0xff]
        %v4709 = vld [vmem:[#allocation3 + $0x22] sm:$0xff]
        %v4710 = vld [vmem:[#allocation3 + $0x32] sm:$0xff]
        %v4711 = vld [vmem:[#allocation3 + $0x3a] sm:$0xff]
        %v4712 = vld [vmem:[#allocation3 + $0x4a] sm:$0xff]
        %v4713 = vld [vmem:[#allocation3 + $0x52] sm:$0xff]
        %v4714 = vld [vmem:[#allocation3 + $0x62] sm:$0xff]
        %v4715 = vld [vmem:[#allocation3 + $0x6a] sm:$0xff]
        %v4716 = vld [vmem:[#allocation3 + $0x7a] sm:$0xff]
        %v4717 = vld [vmem:[#allocation3 + $0x82] sm:$0xff]
        %v4718 = vld [vmem:[#allocation3 + $0x92] sm:$0xff]
        %v4719 = vld [vmem:[#allocation3 + $0x9a] sm:$0xff]
        %v4720 = vld [vmem:[#allocation3 + $0xaa] sm:$0xff]
        %v4721 = vld [vmem:[#allocation3 + $0xb2] sm:$0xff]
        %v4722 = vld [vmem:[#allocation3 + $0xc2] sm:$0xff]
        %v4723 = vld [vmem:[#allocation3 + $0xca] sm:$0xff]
        %v4724 = vld [vmem:[#allocation3 + $0xda] sm:$0xff]
        %v4725 = vld [vmem:[#allocation3 + $0xe2] sm:$0xff]
        %v4726 = vld [vmem:[#allocation3 + $0xf2] sm:$0xff]
        %v4727 = vld [vmem:[#allocation3 + $0xfa] sm:$0xff]
        %v4728 = vld [vmem:[#allocation3 + $0x10a] sm:$0xff]
        %v4729 = vld [vmem:[#allocation3 + $0x112] sm:$0xff]
        %v4730 = vld [vmem:[#allocation3 + $0x122] sm:$0xff]
        %v4731 = vld [vmem:[#allocation3 + $0x12a] sm:$0xff]
        %v4732 = vld [vmem:[#allocation3 + $0x13a] sm:$0xff]
        %v4733 = vld [vmem:[#allocation3 + $0x142] sm:$0xff]
        %v4734 = vld [vmem:[#allocation3 + $0x152] sm:$0xff]
        %v4735 = vld [vmem:[#allocation3 + $0x15a] sm:$0xff]
        %v4736 = vld [vmem:[#allocation3 + $0x16a] sm:$0xff]
        %v4737 = vld [vmem:[#allocation3 + $0x172] sm:$0xff]
        %v4738 = vld [vmem:[%s3 + $0x20] sm:$0xff]
        %v4739 = vld [vmem:[%s3 + $0x28] sm:$0xff]
        %v4741 = vsel %vm3907, %v4706, 0
        %v4744 = vsel %vm3907, %v4707, 0
        %v4747 = vsel %vm3907, %v4708, 0
        %v4750 = vsel %vm3907, %v4709, 0
        %v4753 = vsel %vm3907, %v4710, 0
        %v4756 = vsel %vm3907, %v4711, 0
        %v4759 = vsel %vm3907, %v4712, 0
        %v4762 = vsel %vm3907, %v4713, 0
        %v4765 = vsel %vm3907, %v4714, 0
        %v4768 = vsel %vm3907, %v4715, 0
        %v4771 = vsel %vm3907, %v4716, 0
        %v4774 = vsel %vm3907, %v4717, 0
        %v4777 = vsel %vm3907, %v4718, 0
        %v4780 = vsel %vm3907, %v4719, 0
        %v4783 = vsel %vm3907, %v4720, 0
        %v4786 = vsel %vm3907, %v4721, 0
        %v4789 = vsel %vm3907, %v4722, 0
        %v4792 = vsel %vm3907, %v4723, 0
        %v4795 = vsel %vm3907, %v4724, 0
        %v4798 = vsel %vm3907, %v4725, 0
        %v4801 = vsel %vm3907, %v4726, 0
        %v4804 = vsel %vm3907, %v4727, 0
        %v4807 = vsel %vm3907, %v4728, 0
        %v4810 = vsel %vm3907, %v4729, 0
        %v4813 = vsel %vm3907, %v4730, 0
        %v4816 = vsel %vm3907, %v4731, 0
        %v4819 = vsel %vm3907, %v4732, 0
        %v4822 = vsel %vm3907, %v4733, 0
        %v4825 = vsel %vm3907, %v4734, 0
        %v4828 = vsel %vm3907, %v4735, 0
        %v4831 = vsel %vm3907, %v4736, 0
        %v4834 = vsel %vm3907, %v4737, 0
        %4836 = vmatprep.subr.mxu0 0.0
        %4837 = vmatpush1.msra.mxu0 0.0
        %4838 = vmatprep.subr.mxu0 0.0
        %4839 = vmatpush1.msra.mxu0 0.0
        %4840 = vmatprep.subr.mxu0 0.0
        %4841 = vmatpush1.msra.mxu0 0.0
        %4842 = vmatprep.subr.mxu0 0.0
        %4843 = vmatpush1.msra.mxu0 0.0
        %4844 = vmatprep.subr.mxu0 0.0
        %4845 = vmatpush1.msra.mxu0 0.0
        %4846 = vmatprep.subr.mxu0 0.0
        %4847 = vmatpush1.msra.mxu0 0.0
        %4848 = vmatprep.subr.mxu0 0.0
        %4849 = vmatpush1.msra.mxu0 0.0
        %4850 = vmatprep.subr.mxu0 0.0
        %4851 = vmatpush1.msra.mxu0 0.0
        %4852 = vmatprep.subr.mxu0 0.0
        %4853 = vmatpush1.msra.mxu0 0.0
        %4854 = vmatprep.subr.mxu0 0.0
        %4855 = vmatpush1.msra.mxu0 0.0
        %4856 = vmatprep.subr.mxu0 0.0
        %4857 = vmatpush1.msra.mxu0 0.0
        %4858 = vmatprep.subr.mxu0 0.0
        %4859 = vmatpush1.msra.mxu0 0.0
        %4860 = vmatprep.subr.mxu0 0.0
        %4861 = vmatpush1.msra.mxu0 0.0
        %4862 = vmatprep.subr.mxu0 0.0
        %4863 = vmatpush1.msra.mxu0 0.0
        %4864 = vmatprep.subr.mxu0 0.0
        %4865 = vmatpush1.msra.mxu0 %v4739
        %4866 = vmatprep.subr.mxu0 0.0
        %4867 = vmatpush1.msra.mxu0 %v4738
        %4868 = vmatprep.subr.mxu0 0.0
        %4869 = vmatpush2.msra.mxu0 0.0
        %4870 = vmatprep.subr.mxu0 0.0
        %4871 = vmatpush2.msra.mxu0 0.0
        %4872 = vmatprep.subr.mxu0 0.0
        %4873 = vmatpush2.msra.mxu0 0.0
        %4874 = vmatprep.subr.mxu0 0.0
        %4875 = vmatpush2.msra.mxu0 0.0
        %4876 = vmatprep.subr.mxu0 0.0
        %4877 = vmatpush2.msra.mxu0 0.0
        %4878 = vmatprep.subr.mxu0 0.0
        %4879 = vmatpush2.msra.mxu0 0.0
        %4880 = vmatprep.subr.mxu0 0.0
        %4881 = vmatpush2.msra.mxu0 0.0
        %4882 = vmatprep.subr.mxu0 0.0
        %4883 = vmatpush2.msra.mxu0 0.0
        %4884 = vmatprep.subr.mxu0 0.0
        %4885 = vmatpush2.msra.mxu0 0.0
        %4886 = vmatprep.subr.mxu0 0.0
        %4887 = vmatpush2.msra.mxu0 0.0
        %4888 = vmatprep.subr.mxu0 0.0
        %4889 = vmatpush2.msra.mxu0 0.0
        %4890 = vmatprep.subr.mxu0 0.0
        %4891 = vmatpush2.msra.mxu0 0.0
        %4892 = vmatprep.subr.mxu0 0.0
        %4893 = vmatpush2.msra.mxu0 0.0
        %4894 = vmatprep.subr.mxu0 0.0
        %4895 = vmatpush2.msra.mxu0 0.0
        %4896 = vmatprep.subr.mxu0 0.0
        %4897 = vmatpush2.msra.mxu0 0.0
        %4898 = vmatprep.subr.mxu0 0.0
        %4899 = vmatpush2.msra.mxu0 0.0
        %4900 = vmatprep.mubr.f32.mxu0 0.0
        %4901 = vmatmul.mubr.f32.gmra.mxu0 %v4741
        %v4902 = vpop.f32.mrf.mxu0
        %v4903 = vadd.f32 0.0, %v4902
        %v4904 = vpop.f32.mrf.mxu0
        %4905 = vmatprep.mubr.f32.mxu0 0.0
        %4906 = vmatmul.mubr.f32.gmra.mxu0 %v4744
        %v4907 = vpop.f32.mrf.mxu0
        %v4908 = vadd.f32 0.0, %v4907
        %v4909 = vpop.f32.mrf.mxu0
        %4910 = vmatprep.mubr.f32.mxu0 0.0
        %4911 = vmatmul.mubr.f32.gmra.mxu0 %v4747
        %v4912 = vpop.f32.mrf.mxu0
        %v4913 = vadd.f32 0.0, %v4912
        %v4914 = vpop.f32.mrf.mxu0
        %4915 = vmatprep.mubr.f32.mxu0 0.0
        %4916 = vmatmul.mubr.f32.gmra.mxu0 %v4750
        %v4917 = vpop.f32.mrf.mxu0
        %v4918 = vadd.f32 0.0, %v4917
        %v4919 = vpop.f32.mrf.mxu0
        %4920 = vmatprep.mubr.f32.mxu0 0.0
        %4921 = vmatmul.mubr.f32.gmra.mxu0 %v4753
        %v4922 = vpop.f32.mrf.mxu0
        %v4923 = vadd.f32 0.0, %v4922
        %v4924 = vpop.f32.mrf.mxu0
        %4925 = vmatprep.mubr.f32.mxu0 0.0
        %4926 = vmatmul.mubr.f32.gmra.mxu0 %v4756
        %v4927 = vpop.f32.mrf.mxu0
        %v4928 = vadd.f32 0.0, %v4927
        %v4929 = vpop.f32.mrf.mxu0
        %4930 = vmatprep.mubr.f32.mxu0 0.0
        %4931 = vmatmul.mubr.f32.gmra.mxu0 %v4759
        %v4932 = vpop.f32.mrf.mxu0
        %v4933 = vadd.f32 0.0, %v4932
        %v4934 = vpop.f32.mrf.mxu0
        %4935 = vmatprep.mubr.f32.mxu0 0.0
        %4936 = vmatmul.mubr.f32.gmra.mxu0 %v4762
        %v4937 = vpop.f32.mrf.mxu0
        %v4938 = vadd.f32 0.0, %v4937
        %v4939 = vpop.f32.mrf.mxu0
        %4940 = vmatprep.mubr.f32.mxu0 0.0
        %4941 = vmatmul.mubr.f32.gmra.mxu0 %v4765
        %v4942 = vpop.f32.mrf.mxu0
        %v4943 = vadd.f32 0.0, %v4942
        %v4944 = vpop.f32.mrf.mxu0
        %4945 = vmatprep.mubr.f32.mxu0 0.0
        %4946 = vmatmul.mubr.f32.gmra.mxu0 %v4768
        %v4947 = vpop.f32.mrf.mxu0
        %v4948 = vadd.f32 0.0, %v4947
        %v4949 = vpop.f32.mrf.mxu0
        %4950 = vmatprep.mubr.f32.mxu0 0.0
        %4951 = vmatmul.mubr.f32.gmra.mxu0 %v4771
        %v4952 = vpop.f32.mrf.mxu0
        %v4953 = vadd.f32 0.0, %v4952
        %v4954 = vpop.f32.mrf.mxu0
        %4955 = vmatprep.mubr.f32.mxu0 0.0
        %4956 = vmatmul.mubr.f32.gmra.mxu0 %v4774
        %v4957 = vpop.f32.mrf.mxu0
        %v4958 = vadd.f32 0.0, %v4957
        %v4959 = vpop.f32.mrf.mxu0
        %4960 = vmatprep.mubr.f32.mxu0 0.0
        %4961 = vmatmul.mubr.f32.gmra.mxu0 %v4777
        %v4962 = vpop.f32.mrf.mxu0
        %v4963 = vadd.f32 0.0, %v4962
        %v4964 = vpop.f32.mrf.mxu0
        %4965 = vmatprep.mubr.f32.mxu0 0.0
        %4966 = vmatmul.mubr.f32.gmra.mxu0 %v4780
        %v4967 = vpop.f32.mrf.mxu0
        %v4968 = vadd.f32 0.0, %v4967
        %v4969 = vpop.f32.mrf.mxu0
        %4970 = vmatprep.mubr.f32.mxu0 0.0
        %4971 = vmatmul.mubr.f32.gmra.mxu0 %v4783
        %v4972 = vpop.f32.mrf.mxu0
        %v4973 = vadd.f32 0.0, %v4972
        %v4974 = vpop.f32.mrf.mxu0
        %4975 = vmatprep.mubr.f32.mxu0 0.0
        %4976 = vmatmul.mubr.f32.gmra.mxu0 %v4786
        %v4977 = vpop.f32.mrf.mxu0
        %v4978 = vadd.f32 0.0, %v4977
        %v4979 = vpop.f32.mrf.mxu0
        %4980 = vmatprep.mubr.f32.mxu0 0.0
        %4981 = vmatmul.mubr.f32.gmra.mxu0 %v4789
        %v4982 = vpop.f32.mrf.mxu0
        %v4983 = vadd.f32 0.0, %v4982
        %v4984 = vpop.f32.mrf.mxu0
        %4985 = vmatprep.mubr.f32.mxu0 0.0
        %4986 = vmatmul.mubr.f32.gmra.mxu0 %v4792
        %v4987 = vpop.f32.mrf.mxu0
        %v4988 = vadd.f32 0.0, %v4987
        %v4989 = vpop.f32.mrf.mxu0
        %4990 = vmatprep.mubr.f32.mxu0 0.0
        %4991 = vmatmul.mubr.f32.gmra.mxu0 %v4795
        %v4992 = vpop.f32.mrf.mxu0
        %v4993 = vadd.f32 0.0, %v4992
        %v4994 = vpop.f32.mrf.mxu0
        %4995 = vmatprep.mubr.f32.mxu0 0.0
        %4996 = vmatmul.mubr.f32.gmra.mxu0 %v4798
        %v4997 = vpop.f32.mrf.mxu0
        %v4998 = vadd.f32 0.0, %v4997
        %v4999 = vpop.f32.mrf.mxu0
        %5000 = vmatprep.mubr.f32.mxu0 0.0
        %5001 = vmatmul.mubr.f32.gmra.mxu0 %v4801
        %v5002 = vpop.f32.mrf.mxu0
        %v5003 = vadd.f32 0.0, %v5002
        %v5004 = vpop.f32.mrf.mxu0
        %5005 = vmatprep.mubr.f32.mxu0 0.0
        %5006 = vmatmul.mubr.f32.gmra.mxu0 %v4804
        %v5007 = vpop.f32.mrf.mxu0
        %v5008 = vadd.f32 0.0, %v5007
        %v5009 = vpop.f32.mrf.mxu0
        %5010 = vmatprep.mubr.f32.mxu0 0.0
        %5011 = vmatmul.mubr.f32.gmra.mxu0 %v4807
        %v5012 = vpop.f32.mrf.mxu0
        %v5013 = vadd.f32 0.0, %v5012
        %v5014 = vpop.f32.mrf.mxu0
        %5015 = vmatprep.mubr.f32.mxu0 0.0
        %5016 = vmatmul.mubr.f32.gmra.mxu0 %v4810
        %v5017 = vpop.f32.mrf.mxu0
        %v5018 = vadd.f32 0.0, %v5017
        %v5019 = vpop.f32.mrf.mxu0
        %5020 = vmatprep.mubr.f32.mxu0 0.0
        %5021 = vmatmul.mubr.f32.gmra.mxu0 %v4813
        %v5022 = vpop.f32.mrf.mxu0
        %v5023 = vadd.f32 0.0, %v5022
        %v5024 = vpop.f32.mrf.mxu0
        %5025 = vmatprep.mubr.f32.mxu0 0.0
        %5026 = vmatmul.mubr.f32.gmra.mxu0 %v4816
        %v5027 = vpop.f32.mrf.mxu0
        %v5028 = vadd.f32 0.0, %v5027
        %v5029 = vpop.f32.mrf.mxu0
        %5030 = vmatprep.mubr.f32.mxu0 0.0
        %5031 = vmatmul.mubr.f32.gmra.mxu0 %v4819
        %v5032 = vpop.f32.mrf.mxu0
        %v5033 = vadd.f32 0.0, %v5032
        %v5034 = vpop.f32.mrf.mxu0
        %5035 = vmatprep.mubr.f32.mxu0 0.0
        %5036 = vmatmul.mubr.f32.gmra.mxu0 %v4822
        %v5037 = vpop.f32.mrf.mxu0
        %v5038 = vadd.f32 0.0, %v5037
        %v5039 = vpop.f32.mrf.mxu0
        %5040 = vmatprep.mubr.f32.mxu0 0.0
        %5041 = vmatmul.mubr.f32.gmra.mxu0 %v4825
        %v5042 = vpop.f32.mrf.mxu0
        %v5043 = vadd.f32 0.0, %v5042
        %v5044 = vpop.f32.mrf.mxu0
        %5045 = vmatprep.mubr.f32.mxu0 0.0
        %5046 = vmatmul.mubr.f32.gmra.mxu0 %v4828
        %v5047 = vpop.f32.mrf.mxu0
        %v5048 = vadd.f32 0.0, %v5047
        %v5049 = vpop.f32.mrf.mxu0
        %5050 = vmatprep.mubr.f32.mxu0 0.0
        %5051 = vmatmul.mubr.f32.gmra.mxu0 %v4831
        %v5052 = vpop.f32.mrf.mxu0
        %v5053 = vadd.f32 0.0, %v5052
        %v5054 = vpop.f32.mrf.mxu0
        %5055 = vmatprep.mubr.f32.mxu0 0.0
        %5056 = vmatmul.mubr.f32.gmra.mxu0 %v4834
        %v5057 = vpop.f32.mrf.mxu0
        %v5058 = vadd.f32 0.0, %v5057
        %v5059 = vpop.f32.mrf.mxu0
        %5060 = vdwg.mxu0
        %v5061 = vadd.f32 %v4548, %v4903
        %v5062 = vadd.f32 %v4553, %v4908
        %v5063 = vadd.f32 %v4558, %v4913
        %v5064 = vadd.f32 %v4563, %v4918
        %v5065 = vadd.f32 %v4568, %v4923
        %v5066 = vadd.f32 %v4573, %v4928
        %v5067 = vadd.f32 %v4578, %v4933
        %v5068 = vadd.f32 %v4583, %v4938
        %v5069 = vadd.f32 %v4588, %v4943
        %v5070 = vadd.f32 %v4593, %v4948
        %v5071 = vadd.f32 %v4598, %v4953
        %v5072 = vadd.f32 %v4603, %v4958
        %v5073 = vadd.f32 %v4608, %v4963
        %v5074 = vadd.f32 %v4613, %v4968
        %v5075 = vadd.f32 %v4618, %v4973
        %v5076 = vadd.f32 %v4623, %v4978
        %v5077 = vadd.f32 %v4628, %v4983
        %v5078 = vadd.f32 %v4633, %v4988
        %v5079 = vadd.f32 %v4638, %v4993
        %v5080 = vadd.f32 %v4643, %v4998
        %v5081 = vadd.f32 %v4648, %v5003
        %v5082 = vadd.f32 %v4653, %v5008
        %v5083 = vadd.f32 %v4658, %v5013
        %v5084 = vadd.f32 %v4663, %v5018
        %v5085 = vadd.f32 %v4668, %v5023
        %v5086 = vadd.f32 %v4673, %v5028
        %v5087 = vadd.f32 %v4678, %v5033
        %v5088 = vadd.f32 %v4683, %v5038
        %v5089 = vadd.f32 %v4688, %v5043
        %v5090 = vadd.f32 %v4693, %v5048
        %v5091 = vadd.f32 %v4698, %v5053
        %v5092 = vadd.f32 %v4703, %v5058
        %v5093 = vld [vmem:[%s3963] sm:$0xff]
        %v5094 = vld [vmem:[%s3963 + $0x8] sm:$0xff]
        %v5095 = vld [vmem:[%s3963 + $0x18] sm:$0xff]
        %v5096 = vld [vmem:[%s3963 + $0x20] sm:$0xff]
        %v5097 = vld [vmem:[%s3963 + $0x30] sm:$0xff]
        %v5098 = vld [vmem:[%s3963 + $0x38] sm:$0xff]
        %v5099 = vld [vmem:[%s3963 + $0x48] sm:$0xff]
        %v5100 = vld [vmem:[%s3963 + $0x50] sm:$0xff]
        %v5101 = vld [vmem:[%s3963 + $0x60] sm:$0xff]
        %v5102 = vld [vmem:[%s3963 + $0x68] sm:$0xff]
        %v5103 = vld [vmem:[%s3963 + $0x78] sm:$0xff]
        %v5104 = vld [vmem:[%s3963 + $0x80] sm:$0xff]
        %v5105 = vld [vmem:[%s3963 + $0x90] sm:$0xff]
        %v5106 = vld [vmem:[%s3963 + $0x98] sm:$0xff]
        %v5107 = vld [vmem:[%s3963 + $0xa8] sm:$0xff]
        %v5108 = vld [vmem:[%s3963 + $0xb0] sm:$0xff]
        %v5109 = vld [vmem:[%s3963 + $0xc0] sm:$0xff]
        %v5110 = vld [vmem:[%s3963 + $0xc8] sm:$0xff]
        %v5111 = vld [vmem:[%s3963 + $0xd8] sm:$0xff]
        %v5112 = vld [vmem:[%s3963 + $0xe0] sm:$0xff]
        %v5113 = vld [vmem:[%s3963 + $0xf0] sm:$0xff]
        %v5114 = vld [vmem:[%s3963 + $0xf8] sm:$0xff]
        %v5115 = vld [vmem:[%s3963 + $0x108] sm:$0xff]
        %v5116 = vld [vmem:[%s3963 + $0x110] sm:$0xff]
        %v5117 = vld [vmem:[%s3963 + $0x120] sm:$0xff]
        %v5118 = vld [vmem:[%s3963 + $0x128] sm:$0xff]
        %v5119 = vld [vmem:[%s3963 + $0x138] sm:$0xff]
        %v5120 = vld [vmem:[%s3963 + $0x140] sm:$0xff]
        %v5121 = vld [vmem:[%s3963 + $0x150] sm:$0xff]
        %v5122 = vld [vmem:[%s3963 + $0x158] sm:$0xff]
        %v5123 = vld [vmem:[%s3963 + $0x168] sm:$0xff]
        %v5124 = vld [vmem:[%s3963 + $0x170] sm:$0xff]
        %v5125 = vld [vmem:[%s3 + $0x30] sm:$0xff]
        %v5126 = vld [vmem:[%s3 + $0x38] sm:$0xff]
        %v5128 = vsel %vm3907, %v5093, 0
        %v5131 = vsel %vm3907, %v5094, 0
        %v5134 = vsel %vm3907, %v5095, 0
        %v5137 = vsel %vm3907, %v5096, 0
        %v5140 = vsel %vm3907, %v5097, 0
        %v5143 = vsel %vm3907, %v5098, 0
        %v5146 = vsel %vm3907, %v5099, 0
        %v5149 = vsel %vm3907, %v5100, 0
        %v5152 = vsel %vm3907, %v5101, 0
        %v5155 = vsel %vm3907, %v5102, 0
        %v5158 = vsel %vm3907, %v5103, 0
        %v5161 = vsel %vm3907, %v5104, 0
        %v5164 = vsel %vm3907, %v5105, 0
        %v5167 = vsel %vm3907, %v5106, 0
        %v5170 = vsel %vm3907, %v5107, 0
        %v5173 = vsel %vm3907, %v5108, 0
        %v5176 = vsel %vm3907, %v5109, 0
        %v5179 = vsel %vm3907, %v5110, 0
        %v5182 = vsel %vm3907, %v5111, 0
        %v5185 = vsel %vm3907, %v5112, 0
        %v5188 = vsel %vm3907, %v5113, 0
        %v5191 = vsel %vm3907, %v5114, 0
        %v5194 = vsel %vm3907, %v5115, 0
        %v5197 = vsel %vm3907, %v5116, 0
        %v5200 = vsel %vm3907, %v5117, 0
        %v5203 = vsel %vm3907, %v5118, 0
        %v5206 = vsel %vm3907, %v5119, 0
        %v5209 = vsel %vm3907, %v5120, 0
        %v5212 = vsel %vm3907, %v5121, 0
        %v5215 = vsel %vm3907, %v5122, 0
        %v5218 = vsel %vm3907, %v5123, 0
        %v5221 = vsel %vm3907, %v5124, 0
        %5223 = vmatprep.subr.mxu0 0.0
        %5224 = vmatpush1.msra.mxu0 0.0
        %5225 = vmatprep.subr.mxu0 0.0
        %5226 = vmatpush1.msra.mxu0 0.0
        %5227 = vmatprep.subr.mxu0 0.0
        %5228 = vmatpush1.msra.mxu0 0.0
        %5229 = vmatprep.subr.mxu0 0.0
        %5230 = vmatpush1.msra.mxu0 0.0
        %5231 = vmatprep.subr.mxu0 0.0
        %5232 = vmatpush1.msra.mxu0 0.0
        %5233 = vmatprep.subr.mxu0 0.0
        %5234 = vmatpush1.msra.mxu0 0.0
        %5235 = vmatprep.subr.mxu0 0.0
        %5236 = vmatpush1.msra.mxu0 0.0
        %5237 = vmatprep.subr.mxu0 0.0
        %5238 = vmatpush1.msra.mxu0 0.0
        %5239 = vmatprep.subr.mxu0 0.0
        %5240 = vmatpush1.msra.mxu0 0.0
        %5241 = vmatprep.subr.mxu0 0.0
        %5242 = vmatpush1.msra.mxu0 0.0
        %5243 = vmatprep.subr.mxu0 0.0
        %5244 = vmatpush1.msra.mxu0 0.0
        %5245 = vmatprep.subr.mxu0 0.0
        %5246 = vmatpush1.msra.mxu0 0.0
        %5247 = vmatprep.subr.mxu0 0.0
        %5248 = vmatpush1.msra.mxu0 0.0
        %5249 = vmatprep.subr.mxu0 0.0
        %5250 = vmatpush1.msra.mxu0 0.0
        %5251 = vmatprep.subr.mxu0 0.0
        %5252 = vmatpush1.msra.mxu0 %v5126
        %5253 = vmatprep.subr.mxu0 0.0
        %5254 = vmatpush1.msra.mxu0 %v5125
        %5255 = vmatprep.subr.mxu0 0.0
        %5256 = vmatpush2.msra.mxu0 0.0
        %5257 = vmatprep.subr.mxu0 0.0
        %5258 = vmatpush2.msra.mxu0 0.0
        %5259 = vmatprep.subr.mxu0 0.0
        %5260 = vmatpush2.msra.mxu0 0.0
        %5261 = vmatprep.subr.mxu0 0.0
        %5262 = vmatpush2.msra.mxu0 0.0
        %5263 = vmatprep.subr.mxu0 0.0
        %5264 = vmatpush2.msra.mxu0 0.0
        %5265 = vmatprep.subr.mxu0 0.0
        %5266 = vmatpush2.msra.mxu0 0.0
        %5267 = vmatprep.subr.mxu0 0.0
        %5268 = vmatpush2.msra.mxu0 0.0
        %5269 = vmatprep.subr.mxu0 0.0
        %5270 = vmatpush2.msra.mxu0 0.0
        %5271 = vmatprep.subr.mxu0 0.0
        %5272 = vmatpush2.msra.mxu0 0.0
        %5273 = vmatprep.subr.mxu0 0.0
        %5274 = vmatpush2.msra.mxu0 0.0
        %5275 = vmatprep.subr.mxu0 0.0
        %5276 = vmatpush2.msra.mxu0 0.0
        %5277 = vmatprep.subr.mxu0 0.0
        %5278 = vmatpush2.msra.mxu0 0.0
        %5279 = vmatprep.subr.mxu0 0.0
        %5280 = vmatpush2.msra.mxu0 0.0
        %5281 = vmatprep.subr.mxu0 0.0
        %5282 = vmatpush2.msra.mxu0 0.0
        %5283 = vmatprep.subr.mxu0 0.0
        %5284 = vmatpush2.msra.mxu0 0.0
        %5285 = vmatprep.subr.mxu0 0.0
        %5286 = vmatpush2.msra.mxu0 0.0
        %5287 = vmatprep.mubr.f32.mxu0 0.0
        %5288 = vmatmul.mubr.f32.gmra.mxu0 %v5128
        %v5289 = vpop.f32.mrf.mxu0
        %v5290 = vadd.f32 0.0, %v5289
        %v5291 = vpop.f32.mrf.mxu0
        %5292 = vmatprep.mubr.f32.mxu0 0.0
        %5293 = vmatmul.mubr.f32.gmra.mxu0 %v5131
        %v5294 = vpop.f32.mrf.mxu0
        %v5295 = vadd.f32 0.0, %v5294
        %v5296 = vpop.f32.mrf.mxu0
        %5297 = vmatprep.mubr.f32.mxu0 0.0
        %5298 = vmatmul.mubr.f32.gmra.mxu0 %v5134
        %v5299 = vpop.f32.mrf.mxu0
        %v5300 = vadd.f32 0.0, %v5299
        %v5301 = vpop.f32.mrf.mxu0
        %5302 = vmatprep.mubr.f32.mxu0 0.0
        %5303 = vmatmul.mubr.f32.gmra.mxu0 %v5137
        %v5304 = vpop.f32.mrf.mxu0
        %v5305 = vadd.f32 0.0, %v5304
        %v5306 = vpop.f32.mrf.mxu0
        %5307 = vmatprep.mubr.f32.mxu0 0.0
        %5308 = vmatmul.mubr.f32.gmra.mxu0 %v5140
        %v5309 = vpop.f32.mrf.mxu0
        %v5310 = vadd.f32 0.0, %v5309
        %v5311 = vpop.f32.mrf.mxu0
        %5312 = vmatprep.mubr.f32.mxu0 0.0
        %5313 = vmatmul.mubr.f32.gmra.mxu0 %v5143
        %v5314 = vpop.f32.mrf.mxu0
        %v5315 = vadd.f32 0.0, %v5314
        %v5316 = vpop.f32.mrf.mxu0
        %5317 = vmatprep.mubr.f32.mxu0 0.0
        %5318 = vmatmul.mubr.f32.gmra.mxu0 %v5146
        %v5319 = vpop.f32.mrf.mxu0
        %v5320 = vadd.f32 0.0, %v5319
        %v5321 = vpop.f32.mrf.mxu0
        %5322 = vmatprep.mubr.f32.mxu0 0.0
        %5323 = vmatmul.mubr.f32.gmra.mxu0 %v5149
        %v5324 = vpop.f32.mrf.mxu0
        %v5325 = vadd.f32 0.0, %v5324
        %v5326 = vpop.f32.mrf.mxu0
        %5327 = vmatprep.mubr.f32.mxu0 0.0
        %5328 = vmatmul.mubr.f32.gmra.mxu0 %v5152
        %v5329 = vpop.f32.mrf.mxu0
        %v5330 = vadd.f32 0.0, %v5329
        %v5331 = vpop.f32.mrf.mxu0
        %5332 = vmatprep.mubr.f32.mxu0 0.0
        %5333 = vmatmul.mubr.f32.gmra.mxu0 %v5155
        %v5334 = vpop.f32.mrf.mxu0
        %v5335 = vadd.f32 0.0, %v5334
        %v5336 = vpop.f32.mrf.mxu0
        %5337 = vmatprep.mubr.f32.mxu0 0.0
        %5338 = vmatmul.mubr.f32.gmra.mxu0 %v5158
        %v5339 = vpop.f32.mrf.mxu0
        %v5340 = vadd.f32 0.0, %v5339
        %v5341 = vpop.f32.mrf.mxu0
        %5342 = vmatprep.mubr.f32.mxu0 0.0
        %5343 = vmatmul.mubr.f32.gmra.mxu0 %v5161
        %v5344 = vpop.f32.mrf.mxu0
        %v5345 = vadd.f32 0.0, %v5344
        %v5346 = vpop.f32.mrf.mxu0
        %5347 = vmatprep.mubr.f32.mxu0 0.0
        %5348 = vmatmul.mubr.f32.gmra.mxu0 %v5164
        %v5349 = vpop.f32.mrf.mxu0
        %v5350 = vadd.f32 0.0, %v5349
        %v5351 = vpop.f32.mrf.mxu0
        %5352 = vmatprep.mubr.f32.mxu0 0.0
        %5353 = vmatmul.mubr.f32.gmra.mxu0 %v5167
        %v5354 = vpop.f32.mrf.mxu0
        %v5355 = vadd.f32 0.0, %v5354
        %v5356 = vpop.f32.mrf.mxu0
        %5357 = vmatprep.mubr.f32.mxu0 0.0
        %5358 = vmatmul.mubr.f32.gmra.mxu0 %v5170
        %v5359 = vpop.f32.mrf.mxu0
        %v5360 = vadd.f32 0.0, %v5359
        %v5361 = vpop.f32.mrf.mxu0
        %5362 = vmatprep.mubr.f32.mxu0 0.0
        %5363 = vmatmul.mubr.f32.gmra.mxu0 %v5173
        %v5364 = vpop.f32.mrf.mxu0
        %v5365 = vadd.f32 0.0, %v5364
        %v5366 = vpop.f32.mrf.mxu0
        %5367 = vmatprep.mubr.f32.mxu0 0.0
        %5368 = vmatmul.mubr.f32.gmra.mxu0 %v5176
        %v5369 = vpop.f32.mrf.mxu0
        %v5370 = vadd.f32 0.0, %v5369
        %v5371 = vpop.f32.mrf.mxu0
        %5372 = vmatprep.mubr.f32.mxu0 0.0
        %5373 = vmatmul.mubr.f32.gmra.mxu0 %v5179
        %v5374 = vpop.f32.mrf.mxu0
        %v5375 = vadd.f32 0.0, %v5374
        %v5376 = vpop.f32.mrf.mxu0
        %5377 = vmatprep.mubr.f32.mxu0 0.0
        %5378 = vmatmul.mubr.f32.gmra.mxu0 %v5182
        %v5379 = vpop.f32.mrf.mxu0
        %v5380 = vadd.f32 0.0, %v5379
        %v5381 = vpop.f32.mrf.mxu0
        %5382 = vmatprep.mubr.f32.mxu0 0.0
        %5383 = vmatmul.mubr.f32.gmra.mxu0 %v5185
        %v5384 = vpop.f32.mrf.mxu0
        %v5385 = vadd.f32 0.0, %v5384
        %v5386 = vpop.f32.mrf.mxu0
        %5387 = vmatprep.mubr.f32.mxu0 0.0
        %5388 = vmatmul.mubr.f32.gmra.mxu0 %v5188
        %v5389 = vpop.f32.mrf.mxu0
        %v5390 = vadd.f32 0.0, %v5389
        %v5391 = vpop.f32.mrf.mxu0
        %5392 = vmatprep.mubr.f32.mxu0 0.0
        %5393 = vmatmul.mubr.f32.gmra.mxu0 %v5191
        %v5394 = vpop.f32.mrf.mxu0
        %v5395 = vadd.f32 0.0, %v5394
        %v5396 = vpop.f32.mrf.mxu0
        %5397 = vmatprep.mubr.f32.mxu0 0.0
        %5398 = vmatmul.mubr.f32.gmra.mxu0 %v5194
        %v5399 = vpop.f32.mrf.mxu0
        %v5400 = vadd.f32 0.0, %v5399
        %v5401 = vpop.f32.mrf.mxu0
        %5402 = vmatprep.mubr.f32.mxu0 0.0
        %5403 = vmatmul.mubr.f32.gmra.mxu0 %v5197
        %v5404 = vpop.f32.mrf.mxu0
        %v5405 = vadd.f32 0.0, %v5404
        %v5406 = vpop.f32.mrf.mxu0
        %5407 = vmatprep.mubr.f32.mxu0 0.0
        %5408 = vmatmul.mubr.f32.gmra.mxu0 %v5200
        %v5409 = vpop.f32.mrf.mxu0
        %v5410 = vadd.f32 0.0, %v5409
        %v5411 = vpop.f32.mrf.mxu0
        %5412 = vmatprep.mubr.f32.mxu0 0.0
        %5413 = vmatmul.mubr.f32.gmra.mxu0 %v5203
        %v5414 = vpop.f32.mrf.mxu0
        %v5415 = vadd.f32 0.0, %v5414
        %v5416 = vpop.f32.mrf.mxu0
        %5417 = vmatprep.mubr.f32.mxu0 0.0
        %5418 = vmatmul.mubr.f32.gmra.mxu0 %v5206
        %v5419 = vpop.f32.mrf.mxu0
        %v5420 = vadd.f32 0.0, %v5419
        %v5421 = vpop.f32.mrf.mxu0
        %5422 = vmatprep.mubr.f32.mxu0 0.0
        %5423 = vmatmul.mubr.f32.gmra.mxu0 %v5209
        %v5424 = vpop.f32.mrf.mxu0
        %v5425 = vadd.f32 0.0, %v5424
        %v5426 = vpop.f32.mrf.mxu0
        %5427 = vmatprep.mubr.f32.mxu0 0.0
        %5428 = vmatmul.mubr.f32.gmra.mxu0 %v5212
        %v5429 = vpop.f32.mrf.mxu0
        %v5430 = vadd.f32 0.0, %v5429
        %v5431 = vpop.f32.mrf.mxu0
        %5432 = vmatprep.mubr.f32.mxu0 0.0
        %5433 = vmatmul.mubr.f32.gmra.mxu0 %v5215
        %v5434 = vpop.f32.mrf.mxu0
        %v5435 = vadd.f32 0.0, %v5434
        %v5436 = vpop.f32.mrf.mxu0
        %5437 = vmatprep.mubr.f32.mxu0 0.0
        %5438 = vmatmul.mubr.f32.gmra.mxu0 %v5218
        %v5439 = vpop.f32.mrf.mxu0
        %v5440 = vadd.f32 0.0, %v5439
        %v5441 = vpop.f32.mrf.mxu0
        %5442 = vmatprep.mubr.f32.mxu0 0.0
        %5443 = vmatmul.mubr.f32.gmra.mxu0 %v5221
        %v5444 = vpop.f32.mrf.mxu0
        %v5445 = vadd.f32 0.0, %v5444
        %v5446 = vpop.f32.mrf.mxu0
        %5447 = vdwg.mxu0
        %v5448 = vadd.f32 %v5061, %v5290
        %v5449 = vadd.f32 %v5062, %v5295
        %v5450 = vadd.f32 %v5063, %v5300
        %v5451 = vadd.f32 %v5064, %v5305
        %v5452 = vadd.f32 %v5065, %v5310
        %v5453 = vadd.f32 %v5066, %v5315
        %v5454 = vadd.f32 %v5067, %v5320
        %v5455 = vadd.f32 %v5068, %v5325
        %v5456 = vadd.f32 %v5069, %v5330
        %v5457 = vadd.f32 %v5070, %v5335
        %v5458 = vadd.f32 %v5071, %v5340
        %v5459 = vadd.f32 %v5072, %v5345
        %v5460 = vadd.f32 %v5073, %v5350
        %v5461 = vadd.f32 %v5074, %v5355
        %v5462 = vadd.f32 %v5075, %v5360
        %v5463 = vadd.f32 %v5076, %v5365
        %v5464 = vadd.f32 %v5077, %v5370
        %v5465 = vadd.f32 %v5078, %v5375
        %v5466 = vadd.f32 %v5079, %v5380
        %v5467 = vadd.f32 %v5080, %v5385
        %v5468 = vadd.f32 %v5081, %v5390
        %v5469 = vadd.f32 %v5082, %v5395
        %v5470 = vadd.f32 %v5083, %v5400
        %v5471 = vadd.f32 %v5084, %v5405
        %v5472 = vadd.f32 %v5085, %v5410
        %v5473 = vadd.f32 %v5086, %v5415
        %v5474 = vadd.f32 %v5087, %v5420
        %v5475 = vadd.f32 %v5088, %v5425
        %v5476 = vadd.f32 %v5089, %v5430
        %v5477 = vadd.f32 %v5090, %v5435
        %v5478 = vadd.f32 %v5091, %v5440
        %v5479 = vadd.f32 %v5092, %v5445
        %v5480 = vld [vmem:[%s3963 + $0x1] sm:$0xff]
        %v5481 = vld [vmem:[%s3963 + $0x9] sm:$0xff]
        %v5482 = vld [vmem:[%s3963 + $0x19] sm:$0xff]
        %v5483 = vld [vmem:[%s3963 + $0x21] sm:$0xff]
        %v5484 = vld [vmem:[%s3963 + $0x31] sm:$0xff]
        %v5485 = vld [vmem:[%s3963 + $0x39] sm:$0xff]
        %v5486 = vld [vmem:[%s3963 + $0x49] sm:$0xff]
        %v5487 = vld [vmem:[%s3963 + $0x51] sm:$0xff]
        %v5488 = vld [vmem:[%s3963 + $0x61] sm:$0xff]
        %v5489 = vld [vmem:[%s3963 + $0x69] sm:$0xff]
        %v5490 = vld [vmem:[%s3963 + $0x79] sm:$0xff]
        %v5491 = vld [vmem:[%s3963 + $0x81] sm:$0xff]
        %v5492 = vld [vmem:[%s3963 + $0x91] sm:$0xff]
        %v5493 = vld [vmem:[%s3963 + $0x99] sm:$0xff]
        %v5494 = vld [vmem:[%s3963 + $0xa9] sm:$0xff]
        %v5495 = vld [vmem:[%s3963 + $0xb1] sm:$0xff]
        %v5496 = vld [vmem:[%s3963 + $0xc1] sm:$0xff]
        %v5497 = vld [vmem:[%s3963 + $0xc9] sm:$0xff]
        %v5498 = vld [vmem:[%s3963 + $0xd9] sm:$0xff]
        %v5499 = vld [vmem:[%s3963 + $0xe1] sm:$0xff]
        %v5500 = vld [vmem:[%s3963 + $0xf1] sm:$0xff]
        %v5501 = vld [vmem:[%s3963 + $0xf9] sm:$0xff]
        %v5502 = vld [vmem:[%s3963 + $0x109] sm:$0xff]
        %v5503 = vld [vmem:[%s3963 + $0x111] sm:$0xff]
        %v5504 = vld [vmem:[%s3963 + $0x121] sm:$0xff]
        %v5505 = vld [vmem:[%s3963 + $0x129] sm:$0xff]
        %v5506 = vld [vmem:[%s3963 + $0x139] sm:$0xff]
        %v5507 = vld [vmem:[%s3963 + $0x141] sm:$0xff]
        %v5508 = vld [vmem:[%s3963 + $0x151] sm:$0xff]
        %v5509 = vld [vmem:[%s3963 + $0x159] sm:$0xff]
        %v5510 = vld [vmem:[%s3963 + $0x169] sm:$0xff]
        %v5511 = vld [vmem:[%s3963 + $0x171] sm:$0xff]
        %v5512 = vld [vmem:[%s3 + $0x40] sm:$0xff]
        %v5513 = vld [vmem:[%s3 + $0x48] sm:$0xff]
        %v5515 = vsel %vm3907, %v5480, 0
        %v5518 = vsel %vm3907, %v5481, 0
        %v5521 = vsel %vm3907, %v5482, 0
        %v5524 = vsel %vm3907, %v5483, 0
        %v5527 = vsel %vm3907, %v5484, 0
        %v5530 = vsel %vm3907, %v5485, 0
        %v5533 = vsel %vm3907, %v5486, 0
        %v5536 = vsel %vm3907, %v5487, 0
        %v5539 = vsel %vm3907, %v5488, 0
        %v5542 = vsel %vm3907, %v5489, 0
        %v5545 = vsel %vm3907, %v5490, 0
        %v5548 = vsel %vm3907, %v5491, 0
        %v5551 = vsel %vm3907, %v5492, 0
        %v5554 = vsel %vm3907, %v5493, 0
        %v5557 = vsel %vm3907, %v5494, 0
        %v5560 = vsel %vm3907, %v5495, 0
        %v5563 = vsel %vm3907, %v5496, 0
        %v5566 = vsel %vm3907, %v5497, 0
        %v5569 = vsel %vm3907, %v5498, 0
        %v5572 = vsel %vm3907, %v5499, 0
        %v5575 = vsel %vm3907, %v5500, 0
        %v5578 = vsel %vm3907, %v5501, 0
        %v5581 = vsel %vm3907, %v5502, 0
        %v5584 = vsel %vm3907, %v5503, 0
        %v5587 = vsel %vm3907, %v5504, 0
        %v5590 = vsel %vm3907, %v5505, 0
        %v5593 = vsel %vm3907, %v5506, 0
        %v5596 = vsel %vm3907, %v5507, 0
        %v5599 = vsel %vm3907, %v5508, 0
        %v5602 = vsel %vm3907, %v5509, 0
        %v5605 = vsel %vm3907, %v5510, 0
        %v5608 = vsel %vm3907, %v5511, 0
        %5610 = vmatprep.subr.mxu0 0.0
        %5611 = vmatpush1.msra.mxu0 0.0
        %5612 = vmatprep.subr.mxu0 0.0
        %5613 = vmatpush1.msra.mxu0 0.0
        %5614 = vmatprep.subr.mxu0 0.0
        %5615 = vmatpush1.msra.mxu0 0.0
        %5616 = vmatprep.subr.mxu0 0.0
        %5617 = vmatpush1.msra.mxu0 0.0
        %5618 = vmatprep.subr.mxu0 0.0
        %5619 = vmatpush1.msra.mxu0 0.0
        %5620 = vmatprep.subr.mxu0 0.0
        %5621 = vmatpush1.msra.mxu0 0.0
        %5622 = vmatprep.subr.mxu0 0.0
        %5623 = vmatpush1.msra.mxu0 0.0
        %5624 = vmatprep.subr.mxu0 0.0
        %5625 = vmatpush1.msra.mxu0 0.0
        %5626 = vmatprep.subr.mxu0 0.0
        %5627 = vmatpush1.msra.mxu0 0.0
        %5628 = vmatprep.subr.mxu0 0.0
        %5629 = vmatpush1.msra.mxu0 0.0
        %5630 = vmatprep.subr.mxu0 0.0
        %5631 = vmatpush1.msra.mxu0 0.0
        %5632 = vmatprep.subr.mxu0 0.0
        %5633 = vmatpush1.msra.mxu0 0.0
        %5634 = vmatprep.subr.mxu0 0.0
        %5635 = vmatpush1.msra.mxu0 0.0
        %5636 = vmatprep.subr.mxu0 0.0
        %5637 = vmatpush1.msra.mxu0 0.0
        %5638 = vmatprep.subr.mxu0 0.0
        %5639 = vmatpush1.msra.mxu0 %v5513
        %5640 = vmatprep.subr.mxu0 0.0
        %5641 = vmatpush1.msra.mxu0 %v5512
        %5642 = vmatprep.subr.mxu0 0.0
        %5643 = vmatpush2.msra.mxu0 0.0
        %5644 = vmatprep.subr.mxu0 0.0
        %5645 = vmatpush2.msra.mxu0 0.0
        %5646 = vmatprep.subr.mxu0 0.0
        %5647 = vmatpush2.msra.mxu0 0.0
        %5648 = vmatprep.subr.mxu0 0.0
        %5649 = vmatpush2.msra.mxu0 0.0
        %5650 = vmatprep.subr.mxu0 0.0
        %5651 = vmatpush2.msra.mxu0 0.0
        %5652 = vmatprep.subr.mxu0 0.0
        %5653 = vmatpush2.msra.mxu0 0.0
        %5654 = vmatprep.subr.mxu0 0.0
        %5655 = vmatpush2.msra.mxu0 0.0
        %5656 = vmatprep.subr.mxu0 0.0
        %5657 = vmatpush2.msra.mxu0 0.0
        %5658 = vmatprep.subr.mxu0 0.0
        %5659 = vmatpush2.msra.mxu0 0.0
        %5660 = vmatprep.subr.mxu0 0.0
        %5661 = vmatpush2.msra.mxu0 0.0
        %5662 = vmatprep.subr.mxu0 0.0
        %5663 = vmatpush2.msra.mxu0 0.0
        %5664 = vmatprep.subr.mxu0 0.0
        %5665 = vmatpush2.msra.mxu0 0.0
        %5666 = vmatprep.subr.mxu0 0.0
        %5667 = vmatpush2.msra.mxu0 0.0
        %5668 = vmatprep.subr.mxu0 0.0
        %5669 = vmatpush2.msra.mxu0 0.0
        %5670 = vmatprep.subr.mxu0 0.0
        %5671 = vmatpush2.msra.mxu0 0.0
        %5672 = vmatprep.subr.mxu0 0.0
        %5673 = vmatpush2.msra.mxu0 0.0
        %5674 = vmatprep.mubr.f32.mxu0 0.0
        %5675 = vmatmul.mubr.f32.gmra.mxu0 %v5515
        %v5676 = vpop.f32.mrf.mxu0
        %v5677 = vadd.f32 0.0, %v5676
        %v5678 = vpop.f32.mrf.mxu0
        %5679 = vmatprep.mubr.f32.mxu0 0.0
        %5680 = vmatmul.mubr.f32.gmra.mxu0 %v5518
        %v5681 = vpop.f32.mrf.mxu0
        %v5682 = vadd.f32 0.0, %v5681
        %v5683 = vpop.f32.mrf.mxu0
        %5684 = vmatprep.mubr.f32.mxu0 0.0
        %5685 = vmatmul.mubr.f32.gmra.mxu0 %v5521
        %v5686 = vpop.f32.mrf.mxu0
        %v5687 = vadd.f32 0.0, %v5686
        %v5688 = vpop.f32.mrf.mxu0
        %5689 = vmatprep.mubr.f32.mxu0 0.0
        %5690 = vmatmul.mubr.f32.gmra.mxu0 %v5524
        %v5691 = vpop.f32.mrf.mxu0
        %v5692 = vadd.f32 0.0, %v5691
        %v5693 = vpop.f32.mrf.mxu0
        %5694 = vmatprep.mubr.f32.mxu0 0.0
        %5695 = vmatmul.mubr.f32.gmra.mxu0 %v5527
        %v5696 = vpop.f32.mrf.mxu0
        %v5697 = vadd.f32 0.0, %v5696
        %v5698 = vpop.f32.mrf.mxu0
        %5699 = vmatprep.mubr.f32.mxu0 0.0
        %5700 = vmatmul.mubr.f32.gmra.mxu0 %v5530
        %v5701 = vpop.f32.mrf.mxu0
        %v5702 = vadd.f32 0.0, %v5701
        %v5703 = vpop.f32.mrf.mxu0
        %5704 = vmatprep.mubr.f32.mxu0 0.0
        %5705 = vmatmul.mubr.f32.gmra.mxu0 %v5533
        %v5706 = vpop.f32.mrf.mxu0
        %v5707 = vadd.f32 0.0, %v5706
        %v5708 = vpop.f32.mrf.mxu0
        %5709 = vmatprep.mubr.f32.mxu0 0.0
        %5710 = vmatmul.mubr.f32.gmra.mxu0 %v5536
        %v5711 = vpop.f32.mrf.mxu0
        %v5712 = vadd.f32 0.0, %v5711
        %v5713 = vpop.f32.mrf.mxu0
        %5714 = vmatprep.mubr.f32.mxu0 0.0
        %5715 = vmatmul.mubr.f32.gmra.mxu0 %v5539
        %v5716 = vpop.f32.mrf.mxu0
        %v5717 = vadd.f32 0.0, %v5716
        %v5718 = vpop.f32.mrf.mxu0
        %5719 = vmatprep.mubr.f32.mxu0 0.0
        %5720 = vmatmul.mubr.f32.gmra.mxu0 %v5542
        %v5721 = vpop.f32.mrf.mxu0
        %v5722 = vadd.f32 0.0, %v5721
        %v5723 = vpop.f32.mrf.mxu0
        %5724 = vmatprep.mubr.f32.mxu0 0.0
        %5725 = vmatmul.mubr.f32.gmra.mxu0 %v5545
        %v5726 = vpop.f32.mrf.mxu0
        %v5727 = vadd.f32 0.0, %v5726
        %v5728 = vpop.f32.mrf.mxu0
        %5729 = vmatprep.mubr.f32.mxu0 0.0
        %5730 = vmatmul.mubr.f32.gmra.mxu0 %v5548
        %v5731 = vpop.f32.mrf.mxu0
        %v5732 = vadd.f32 0.0, %v5731
        %v5733 = vpop.f32.mrf.mxu0
        %5734 = vmatprep.mubr.f32.mxu0 0.0
        %5735 = vmatmul.mubr.f32.gmra.mxu0 %v5551
        %v5736 = vpop.f32.mrf.mxu0
        %v5737 = vadd.f32 0.0, %v5736
        %v5738 = vpop.f32.mrf.mxu0
        %5739 = vmatprep.mubr.f32.mxu0 0.0
        %5740 = vmatmul.mubr.f32.gmra.mxu0 %v5554
        %v5741 = vpop.f32.mrf.mxu0
        %v5742 = vadd.f32 0.0, %v5741
        %v5743 = vpop.f32.mrf.mxu0
        %5744 = vmatprep.mubr.f32.mxu0 0.0
        %5745 = vmatmul.mubr.f32.gmra.mxu0 %v5557
        %v5746 = vpop.f32.mrf.mxu0
        %v5747 = vadd.f32 0.0, %v5746
        %v5748 = vpop.f32.mrf.mxu0
        %5749 = vmatprep.mubr.f32.mxu0 0.0
        %5750 = vmatmul.mubr.f32.gmra.mxu0 %v5560
        %v5751 = vpop.f32.mrf.mxu0
        %v5752 = vadd.f32 0.0, %v5751
        %v5753 = vpop.f32.mrf.mxu0
        %5754 = vmatprep.mubr.f32.mxu0 0.0
        %5755 = vmatmul.mubr.f32.gmra.mxu0 %v5563
        %v5756 = vpop.f32.mrf.mxu0
        %v5757 = vadd.f32 0.0, %v5756
        %v5758 = vpop.f32.mrf.mxu0
        %5759 = vmatprep.mubr.f32.mxu0 0.0
        %5760 = vmatmul.mubr.f32.gmra.mxu0 %v5566
        %v5761 = vpop.f32.mrf.mxu0
        %v5762 = vadd.f32 0.0, %v5761
        %v5763 = vpop.f32.mrf.mxu0
        %5764 = vmatprep.mubr.f32.mxu0 0.0
        %5765 = vmatmul.mubr.f32.gmra.mxu0 %v5569
        %v5766 = vpop.f32.mrf.mxu0
        %v5767 = vadd.f32 0.0, %v5766
        %v5768 = vpop.f32.mrf.mxu0
        %5769 = vmatprep.mubr.f32.mxu0 0.0
        %5770 = vmatmul.mubr.f32.gmra.mxu0 %v5572
        %v5771 = vpop.f32.mrf.mxu0
        %v5772 = vadd.f32 0.0, %v5771
        %v5773 = vpop.f32.mrf.mxu0
        %5774 = vmatprep.mubr.f32.mxu0 0.0
        %5775 = vmatmul.mubr.f32.gmra.mxu0 %v5575
        %v5776 = vpop.f32.mrf.mxu0
        %v5777 = vadd.f32 0.0, %v5776
        %v5778 = vpop.f32.mrf.mxu0
        %5779 = vmatprep.mubr.f32.mxu0 0.0
        %5780 = vmatmul.mubr.f32.gmra.mxu0 %v5578
        %v5781 = vpop.f32.mrf.mxu0
        %v5782 = vadd.f32 0.0, %v5781
        %v5783 = vpop.f32.mrf.mxu0
        %5784 = vmatprep.mubr.f32.mxu0 0.0
        %5785 = vmatmul.mubr.f32.gmra.mxu0 %v5581
        %v5786 = vpop.f32.mrf.mxu0
        %v5787 = vadd.f32 0.0, %v5786
        %v5788 = vpop.f32.mrf.mxu0
        %5789 = vmatprep.mubr.f32.mxu0 0.0
        %5790 = vmatmul.mubr.f32.gmra.mxu0 %v5584
        %v5791 = vpop.f32.mrf.mxu0
        %v5792 = vadd.f32 0.0, %v5791
        %v5793 = vpop.f32.mrf.mxu0
        %5794 = vmatprep.mubr.f32.mxu0 0.0
        %5795 = vmatmul.mubr.f32.gmra.mxu0 %v5587
        %v5796 = vpop.f32.mrf.mxu0
        %v5797 = vadd.f32 0.0, %v5796
        %v5798 = vpop.f32.mrf.mxu0
        %5799 = vmatprep.mubr.f32.mxu0 0.0
        %5800 = vmatmul.mubr.f32.gmra.mxu0 %v5590
        %v5801 = vpop.f32.mrf.mxu0
        %v5802 = vadd.f32 0.0, %v5801
        %v5803 = vpop.f32.mrf.mxu0
        %5804 = vmatprep.mubr.f32.mxu0 0.0
        %5805 = vmatmul.mubr.f32.gmra.mxu0 %v5593
        %v5806 = vpop.f32.mrf.mxu0
        %v5807 = vadd.f32 0.0, %v5806
        %v5808 = vpop.f32.mrf.mxu0
        %5809 = vmatprep.mubr.f32.mxu0 0.0
        %5810 = vmatmul.mubr.f32.gmra.mxu0 %v5596
        %v5811 = vpop.f32.mrf.mxu0
        %v5812 = vadd.f32 0.0, %v5811
        %v5813 = vpop.f32.mrf.mxu0
        %5814 = vmatprep.mubr.f32.mxu0 0.0
        %5815 = vmatmul.mubr.f32.gmra.mxu0 %v5599
        %v5816 = vpop.f32.mrf.mxu0
        %v5817 = vadd.f32 0.0, %v5816
        %v5818 = vpop.f32.mrf.mxu0
        %5819 = vmatprep.mubr.f32.mxu0 0.0
        %5820 = vmatmul.mubr.f32.gmra.mxu0 %v5602
        %v5821 = vpop.f32.mrf.mxu0
        %v5822 = vadd.f32 0.0, %v5821
        %v5823 = vpop.f32.mrf.mxu0
        %5824 = vmatprep.mubr.f32.mxu0 0.0
        %5825 = vmatmul.mubr.f32.gmra.mxu0 %v5605
        %v5826 = vpop.f32.mrf.mxu0
        %v5827 = vadd.f32 0.0, %v5826
        %v5828 = vpop.f32.mrf.mxu0
        %5829 = vmatprep.mubr.f32.mxu0 0.0
        %5830 = vmatmul.mubr.f32.gmra.mxu0 %v5608
        %v5831 = vpop.f32.mrf.mxu0
        %v5832 = vadd.f32 0.0, %v5831
        %v5833 = vpop.f32.mrf.mxu0
        %5834 = vdwg.mxu0
        %v5835 = vadd.f32 %v5448, %v5677
        %v5836 = vadd.f32 %v5449, %v5682
        %v5837 = vadd.f32 %v5450, %v5687
        %v5838 = vadd.f32 %v5451, %v5692
        %v5839 = vadd.f32 %v5452, %v5697
        %v5840 = vadd.f32 %v5453, %v5702
        %v5841 = vadd.f32 %v5454, %v5707
        %v5842 = vadd.f32 %v5455, %v5712
        %v5843 = vadd.f32 %v5456, %v5717
        %v5844 = vadd.f32 %v5457, %v5722
        %v5845 = vadd.f32 %v5458, %v5727
        %v5846 = vadd.f32 %v5459, %v5732
        %v5847 = vadd.f32 %v5460, %v5737
        %v5848 = vadd.f32 %v5461, %v5742
        %v5849 = vadd.f32 %v5462, %v5747
        %v5850 = vadd.f32 %v5463, %v5752
        %v5851 = vadd.f32 %v5464, %v5757
        %v5852 = vadd.f32 %v5465, %v5762
        %v5853 = vadd.f32 %v5466, %v5767
        %v5854 = vadd.f32 %v5467, %v5772
        %v5855 = vadd.f32 %v5468, %v5777
        %v5856 = vadd.f32 %v5469, %v5782
        %v5857 = vadd.f32 %v5470, %v5787
        %v5858 = vadd.f32 %v5471, %v5792
        %v5859 = vadd.f32 %v5472, %v5797
        %v5860 = vadd.f32 %v5473, %v5802
        %v5861 = vadd.f32 %v5474, %v5807
        %v5862 = vadd.f32 %v5475, %v5812
        %v5863 = vadd.f32 %v5476, %v5817
        %v5864 = vadd.f32 %v5477, %v5822
        %v5865 = vadd.f32 %v5478, %v5827
        %v5866 = vadd.f32 %v5479, %v5832
        %v5867 = vld [vmem:[%s3963 + $0x2] sm:$0xff]
        %v5868 = vld [vmem:[%s3963 + $0xa] sm:$0xff]
        %v5869 = vld [vmem:[%s3963 + $0x1a] sm:$0xff]
        %v5870 = vld [vmem:[%s3963 + $0x22] sm:$0xff]
        %v5871 = vld [vmem:[%s3963 + $0x32] sm:$0xff]
        %v5872 = vld [vmem:[%s3963 + $0x3a] sm:$0xff]
        %v5873 = vld [vmem:[%s3963 + $0x4a] sm:$0xff]
        %v5874 = vld [vmem:[%s3963 + $0x52] sm:$0xff]
        %v5875 = vld [vmem:[%s3963 + $0x62] sm:$0xff]
        %v5876 = vld [vmem:[%s3963 + $0x6a] sm:$0xff]
        %v5877 = vld [vmem:[%s3963 + $0x7a] sm:$0xff]
        %v5878 = vld [vmem:[%s3963 + $0x82] sm:$0xff]
        %v5879 = vld [vmem:[%s3963 + $0x92] sm:$0xff]
        %v5880 = vld [vmem:[%s3963 + $0x9a] sm:$0xff]
        %v5881 = vld [vmem:[%s3963 + $0xaa] sm:$0xff]
        %v5882 = vld [vmem:[%s3963 + $0xb2] sm:$0xff]
        %v5883 = vld [vmem:[%s3963 + $0xc2] sm:$0xff]
        %v5884 = vld [vmem:[%s3963 + $0xca] sm:$0xff]
        %v5885 = vld [vmem:[%s3963 + $0xda] sm:$0xff]
        %v5886 = vld [vmem:[%s3963 + $0xe2] sm:$0xff]
        %v5887 = vld [vmem:[%s3963 + $0xf2] sm:$0xff]
        %v5888 = vld [vmem:[%s3963 + $0xfa] sm:$0xff]
        %v5889 = vld [vmem:[%s3963 + $0x10a] sm:$0xff]
        %v5890 = vld [vmem:[%s3963 + $0x112] sm:$0xff]
        %v5891 = vld [vmem:[%s3963 + $0x122] sm:$0xff]
        %v5892 = vld [vmem:[%s3963 + $0x12a] sm:$0xff]
        %v5893 = vld [vmem:[%s3963 + $0x13a] sm:$0xff]
        %v5894 = vld [vmem:[%s3963 + $0x142] sm:$0xff]
        %v5895 = vld [vmem:[%s3963 + $0x152] sm:$0xff]
        %v5896 = vld [vmem:[%s3963 + $0x15a] sm:$0xff]
        %v5897 = vld [vmem:[%s3963 + $0x16a] sm:$0xff]
        %v5898 = vld [vmem:[%s3963 + $0x172] sm:$0xff]
        %v5899 = vld [vmem:[%s3 + $0x50] sm:$0xff]
        %v5900 = vld [vmem:[%s3 + $0x58] sm:$0xff]
        %v5902 = vsel %vm3907, %v5867, 0
        %v5905 = vsel %vm3907, %v5868, 0
        %v5908 = vsel %vm3907, %v5869, 0
        %v5911 = vsel %vm3907, %v5870, 0
        %v5914 = vsel %vm3907, %v5871, 0
        %v5917 = vsel %vm3907, %v5872, 0
        %v5920 = vsel %vm3907, %v5873, 0
        %v5923 = vsel %vm3907, %v5874, 0
        %v5926 = vsel %vm3907, %v5875, 0
        %v5929 = vsel %vm3907, %v5876, 0
        %v5932 = vsel %vm3907, %v5877, 0
        %v5935 = vsel %vm3907, %v5878, 0
        %v5938 = vsel %vm3907, %v5879, 0
        %v5941 = vsel %vm3907, %v5880, 0
        %v5944 = vsel %vm3907, %v5881, 0
        %v5947 = vsel %vm3907, %v5882, 0
        %v5950 = vsel %vm3907, %v5883, 0
        %v5953 = vsel %vm3907, %v5884, 0
        %v5956 = vsel %vm3907, %v5885, 0
        %v5959 = vsel %vm3907, %v5886, 0
        %v5962 = vsel %vm3907, %v5887, 0
        %v5965 = vsel %vm3907, %v5888, 0
        %v5968 = vsel %vm3907, %v5889, 0
        %v5971 = vsel %vm3907, %v5890, 0
        %v5974 = vsel %vm3907, %v5891, 0
        %v5977 = vsel %vm3907, %v5892, 0
        %v5980 = vsel %vm3907, %v5893, 0
        %v5983 = vsel %vm3907, %v5894, 0
        %v5986 = vsel %vm3907, %v5895, 0
        %v5989 = vsel %vm3907, %v5896, 0
        %v5992 = vsel %vm3907, %v5897, 0
        %v5995 = vsel %vm3907, %v5898, 0
        %5997 = vmatprep.subr.mxu0 0.0
        %5998 = vmatpush1.msra.mxu0 0.0
        %5999 = vmatprep.subr.mxu0 0.0
        %6000 = vmatpush1.msra.mxu0 0.0
        %6001 = vmatprep.subr.mxu0 0.0
        %6002 = vmatpush1.msra.mxu0 0.0
        %6003 = vmatprep.subr.mxu0 0.0
        %6004 = vmatpush1.msra.mxu0 0.0
        %6005 = vmatprep.subr.mxu0 0.0
        %6006 = vmatpush1.msra.mxu0 0.0
        %6007 = vmatprep.subr.mxu0 0.0
        %6008 = vmatpush1.msra.mxu0 0.0
        %6009 = vmatprep.subr.mxu0 0.0
        %6010 = vmatpush1.msra.mxu0 0.0
        %6011 = vmatprep.subr.mxu0 0.0
        %6012 = vmatpush1.msra.mxu0 0.0
        %6013 = vmatprep.subr.mxu0 0.0
        %6014 = vmatpush1.msra.mxu0 0.0
        %6015 = vmatprep.subr.mxu0 0.0
        %6016 = vmatpush1.msra.mxu0 0.0
        %6017 = vmatprep.subr.mxu0 0.0
        %6018 = vmatpush1.msra.mxu0 0.0
        %6019 = vmatprep.subr.mxu0 0.0
        %6020 = vmatpush1.msra.mxu0 0.0
        %6021 = vmatprep.subr.mxu0 0.0
        %6022 = vmatpush1.msra.mxu0 0.0
        %6023 = vmatprep.subr.mxu0 0.0
        %6024 = vmatpush1.msra.mxu0 0.0
        %6025 = vmatprep.subr.mxu0 0.0
        %6026 = vmatpush1.msra.mxu0 %v5900
        %6027 = vmatprep.subr.mxu0 0.0
        %6028 = vmatpush1.msra.mxu0 %v5899
        %6029 = vmatprep.subr.mxu0 0.0
        %6030 = vmatpush2.msra.mxu0 0.0
        %6031 = vmatprep.subr.mxu0 0.0
        %6032 = vmatpush2.msra.mxu0 0.0
        %6033 = vmatprep.subr.mxu0 0.0
        %6034 = vmatpush2.msra.mxu0 0.0
        %6035 = vmatprep.subr.mxu0 0.0
        %6036 = vmatpush2.msra.mxu0 0.0
        %6037 = vmatprep.subr.mxu0 0.0
        %6038 = vmatpush2.msra.mxu0 0.0
        %6039 = vmatprep.subr.mxu0 0.0
        %6040 = vmatpush2.msra.mxu0 0.0
        %6041 = vmatprep.subr.mxu0 0.0
        %6042 = vmatpush2.msra.mxu0 0.0
        %6043 = vmatprep.subr.mxu0 0.0
        %6044 = vmatpush2.msra.mxu0 0.0
        %6045 = vmatprep.subr.mxu0 0.0
        %6046 = vmatpush2.msra.mxu0 0.0
        %6047 = vmatprep.subr.mxu0 0.0
        %6048 = vmatpush2.msra.mxu0 0.0
        %6049 = vmatprep.subr.mxu0 0.0
        %6050 = vmatpush2.msra.mxu0 0.0
        %6051 = vmatprep.subr.mxu0 0.0
        %6052 = vmatpush2.msra.mxu0 0.0
        %6053 = vmatprep.subr.mxu0 0.0
        %6054 = vmatpush2.msra.mxu0 0.0
        %6055 = vmatprep.subr.mxu0 0.0
        %6056 = vmatpush2.msra.mxu0 0.0
        %6057 = vmatprep.subr.mxu0 0.0
        %6058 = vmatpush2.msra.mxu0 0.0
        %6059 = vmatprep.subr.mxu0 0.0
        %6060 = vmatpush2.msra.mxu0 0.0
        %6061 = vmatprep.mubr.f32.mxu0 0.0
        %6062 = vmatmul.mubr.f32.gmra.mxu0 %v5902
        %v6063 = vpop.f32.mrf.mxu0
        %v6064 = vadd.f32 0.0, %v6063
        %v6065 = vpop.f32.mrf.mxu0
        %6066 = vmatprep.mubr.f32.mxu0 0.0
        %6067 = vmatmul.mubr.f32.gmra.mxu0 %v5905
        %v6068 = vpop.f32.mrf.mxu0
        %v6069 = vadd.f32 0.0, %v6068
        %v6070 = vpop.f32.mrf.mxu0
        %6071 = vmatprep.mubr.f32.mxu0 0.0
        %6072 = vmatmul.mubr.f32.gmra.mxu0 %v5908
        %v6073 = vpop.f32.mrf.mxu0
        %v6074 = vadd.f32 0.0, %v6073
        %v6075 = vpop.f32.mrf.mxu0
        %6076 = vmatprep.mubr.f32.mxu0 0.0
        %6077 = vmatmul.mubr.f32.gmra.mxu0 %v5911
        %v6078 = vpop.f32.mrf.mxu0
        %v6079 = vadd.f32 0.0, %v6078
        %v6080 = vpop.f32.mrf.mxu0
        %6081 = vmatprep.mubr.f32.mxu0 0.0
        %6082 = vmatmul.mubr.f32.gmra.mxu0 %v5914
        %v6083 = vpop.f32.mrf.mxu0
        %v6084 = vadd.f32 0.0, %v6083
        %v6085 = vpop.f32.mrf.mxu0
        %6086 = vmatprep.mubr.f32.mxu0 0.0
        %6087 = vmatmul.mubr.f32.gmra.mxu0 %v5917
        %v6088 = vpop.f32.mrf.mxu0
        %v6089 = vadd.f32 0.0, %v6088
        %v6090 = vpop.f32.mrf.mxu0
        %6091 = vmatprep.mubr.f32.mxu0 0.0
        %6092 = vmatmul.mubr.f32.gmra.mxu0 %v5920
        %v6093 = vpop.f32.mrf.mxu0
        %v6094 = vadd.f32 0.0, %v6093
        %v6095 = vpop.f32.mrf.mxu0
        %6096 = vmatprep.mubr.f32.mxu0 0.0
        %6097 = vmatmul.mubr.f32.gmra.mxu0 %v5923
        %v6098 = vpop.f32.mrf.mxu0
        %v6099 = vadd.f32 0.0, %v6098
        %v6100 = vpop.f32.mrf.mxu0
        %6101 = vmatprep.mubr.f32.mxu0 0.0
        %6102 = vmatmul.mubr.f32.gmra.mxu0 %v5926
        %v6103 = vpop.f32.mrf.mxu0
        %v6104 = vadd.f32 0.0, %v6103
        %v6105 = vpop.f32.mrf.mxu0
        %6106 = vmatprep.mubr.f32.mxu0 0.0
        %6107 = vmatmul.mubr.f32.gmra.mxu0 %v5929
        %v6108 = vpop.f32.mrf.mxu0
        %v6109 = vadd.f32 0.0, %v6108
        %v6110 = vpop.f32.mrf.mxu0
        %6111 = vmatprep.mubr.f32.mxu0 0.0
        %6112 = vmatmul.mubr.f32.gmra.mxu0 %v5932
        %v6113 = vpop.f32.mrf.mxu0
        %v6114 = vadd.f32 0.0, %v6113
        %v6115 = vpop.f32.mrf.mxu0
        %6116 = vmatprep.mubr.f32.mxu0 0.0
        %6117 = vmatmul.mubr.f32.gmra.mxu0 %v5935
        %v6118 = vpop.f32.mrf.mxu0
        %v6119 = vadd.f32 0.0, %v6118
        %v6120 = vpop.f32.mrf.mxu0
        %6121 = vmatprep.mubr.f32.mxu0 0.0
        %6122 = vmatmul.mubr.f32.gmra.mxu0 %v5938
        %v6123 = vpop.f32.mrf.mxu0
        %v6124 = vadd.f32 0.0, %v6123
        %v6125 = vpop.f32.mrf.mxu0
        %6126 = vmatprep.mubr.f32.mxu0 0.0
        %6127 = vmatmul.mubr.f32.gmra.mxu0 %v5941
        %v6128 = vpop.f32.mrf.mxu0
        %v6129 = vadd.f32 0.0, %v6128
        %v6130 = vpop.f32.mrf.mxu0
        %6131 = vmatprep.mubr.f32.mxu0 0.0
        %6132 = vmatmul.mubr.f32.gmra.mxu0 %v5944
        %v6133 = vpop.f32.mrf.mxu0
        %v6134 = vadd.f32 0.0, %v6133
        %v6135 = vpop.f32.mrf.mxu0
        %6136 = vmatprep.mubr.f32.mxu0 0.0
        %6137 = vmatmul.mubr.f32.gmra.mxu0 %v5947
        %v6138 = vpop.f32.mrf.mxu0
        %v6139 = vadd.f32 0.0, %v6138
        %v6140 = vpop.f32.mrf.mxu0
        %6141 = vmatprep.mubr.f32.mxu0 0.0
        %6142 = vmatmul.mubr.f32.gmra.mxu0 %v5950
        %v6143 = vpop.f32.mrf.mxu0
        %v6144 = vadd.f32 0.0, %v6143
        %v6145 = vpop.f32.mrf.mxu0
        %6146 = vmatprep.mubr.f32.mxu0 0.0
        %6147 = vmatmul.mubr.f32.gmra.mxu0 %v5953
        %v6148 = vpop.f32.mrf.mxu0
        %v6149 = vadd.f32 0.0, %v6148
        %v6150 = vpop.f32.mrf.mxu0
        %6151 = vmatprep.mubr.f32.mxu0 0.0
        %6152 = vmatmul.mubr.f32.gmra.mxu0 %v5956
        %v6153 = vpop.f32.mrf.mxu0
        %v6154 = vadd.f32 0.0, %v6153
        %v6155 = vpop.f32.mrf.mxu0
        %6156 = vmatprep.mubr.f32.mxu0 0.0
        %6157 = vmatmul.mubr.f32.gmra.mxu0 %v5959
        %v6158 = vpop.f32.mrf.mxu0
        %v6159 = vadd.f32 0.0, %v6158
        %v6160 = vpop.f32.mrf.mxu0
        %6161 = vmatprep.mubr.f32.mxu0 0.0
        %6162 = vmatmul.mubr.f32.gmra.mxu0 %v5962
        %v6163 = vpop.f32.mrf.mxu0
        %v6164 = vadd.f32 0.0, %v6163
        %v6165 = vpop.f32.mrf.mxu0
        %6166 = vmatprep.mubr.f32.mxu0 0.0
        %6167 = vmatmul.mubr.f32.gmra.mxu0 %v5965
        %v6168 = vpop.f32.mrf.mxu0
        %v6169 = vadd.f32 0.0, %v6168
        %v6170 = vpop.f32.mrf.mxu0
        %6171 = vmatprep.mubr.f32.mxu0 0.0
        %6172 = vmatmul.mubr.f32.gmra.mxu0 %v5968
        %v6173 = vpop.f32.mrf.mxu0
        %v6174 = vadd.f32 0.0, %v6173
        %v6175 = vpop.f32.mrf.mxu0
        %6176 = vmatprep.mubr.f32.mxu0 0.0
        %6177 = vmatmul.mubr.f32.gmra.mxu0 %v5971
        %v6178 = vpop.f32.mrf.mxu0
        %v6179 = vadd.f32 0.0, %v6178
        %v6180 = vpop.f32.mrf.mxu0
        %6181 = vmatprep.mubr.f32.mxu0 0.0
        %6182 = vmatmul.mubr.f32.gmra.mxu0 %v5974
        %v6183 = vpop.f32.mrf.mxu0
        %v6184 = vadd.f32 0.0, %v6183
        %v6185 = vpop.f32.mrf.mxu0
        %6186 = vmatprep.mubr.f32.mxu0 0.0
        %6187 = vmatmul.mubr.f32.gmra.mxu0 %v5977
        %v6188 = vpop.f32.mrf.mxu0
        %v6189 = vadd.f32 0.0, %v6188
        %v6190 = vpop.f32.mrf.mxu0
        %6191 = vmatprep.mubr.f32.mxu0 0.0
        %6192 = vmatmul.mubr.f32.gmra.mxu0 %v5980
        %v6193 = vpop.f32.mrf.mxu0
        %v6194 = vadd.f32 0.0, %v6193
        %v6195 = vpop.f32.mrf.mxu0
        %6196 = vmatprep.mubr.f32.mxu0 0.0
        %6197 = vmatmul.mubr.f32.gmra.mxu0 %v5983
        %v6198 = vpop.f32.mrf.mxu0
        %v6199 = vadd.f32 0.0, %v6198
        %v6200 = vpop.f32.mrf.mxu0
        %6201 = vmatprep.mubr.f32.mxu0 0.0
        %6202 = vmatmul.mubr.f32.gmra.mxu0 %v5986
        %v6203 = vpop.f32.mrf.mxu0
        %v6204 = vadd.f32 0.0, %v6203
        %v6205 = vpop.f32.mrf.mxu0
        %6206 = vmatprep.mubr.f32.mxu0 0.0
        %6207 = vmatmul.mubr.f32.gmra.mxu0 %v5989
        %v6208 = vpop.f32.mrf.mxu0
        %v6209 = vadd.f32 0.0, %v6208
        %v6210 = vpop.f32.mrf.mxu0
        %6211 = vmatprep.mubr.f32.mxu0 0.0
        %6212 = vmatmul.mubr.f32.gmra.mxu0 %v5992
        %v6213 = vpop.f32.mrf.mxu0
        %v6214 = vadd.f32 0.0, %v6213
        %v6215 = vpop.f32.mrf.mxu0
        %6216 = vmatprep.mubr.f32.mxu0 0.0
        %6217 = vmatmul.mubr.f32.gmra.mxu0 %v5995
        %v6218 = vpop.f32.mrf.mxu0
        %v6219 = vadd.f32 0.0, %v6218
        %v6220 = vpop.f32.mrf.mxu0
        %6221 = vdwg.mxu0
        %v6222 = vadd.f32 %v5835, %v6064
        %v6223 = vadd.f32 %v5836, %v6069
        %v6224 = vadd.f32 %v5837, %v6074
        %v6225 = vadd.f32 %v5838, %v6079
        %v6226 = vadd.f32 %v5839, %v6084
        %v6227 = vadd.f32 %v5840, %v6089
        %v6228 = vadd.f32 %v5841, %v6094
        %v6229 = vadd.f32 %v5842, %v6099
        %v6230 = vadd.f32 %v5843, %v6104
        %v6231 = vadd.f32 %v5844, %v6109
        %v6232 = vadd.f32 %v5845, %v6114
        %v6233 = vadd.f32 %v5846, %v6119
        %v6234 = vadd.f32 %v5847, %v6124
        %v6235 = vadd.f32 %v5848, %v6129
        %v6236 = vadd.f32 %v5849, %v6134
        %v6237 = vadd.f32 %v5850, %v6139
        %v6238 = vadd.f32 %v5851, %v6144
        %v6239 = vadd.f32 %v5852, %v6149
        %v6240 = vadd.f32 %v5853, %v6154
        %v6241 = vadd.f32 %v5854, %v6159
        %v6242 = vadd.f32 %v5855, %v6164
        %v6243 = vadd.f32 %v5856, %v6169
        %v6244 = vadd.f32 %v5857, %v6174
        %v6245 = vadd.f32 %v5858, %v6179
        %v6246 = vadd.f32 %v5859, %v6184
        %v6247 = vadd.f32 %v5860, %v6189
        %v6248 = vadd.f32 %v5861, %v6194
        %v6249 = vadd.f32 %v5862, %v6199
        %v6250 = vadd.f32 %v5863, %v6204
        %v6251 = vadd.f32 %v5864, %v6209
        %v6252 = vadd.f32 %v5865, %v6214
        %v6253 = vadd.f32 %v5866, %v6219
        %s6254 = scalar_lea.vmem [#allocation3], 48
        %v6255 = vld [vmem:[%s6254] sm:$0xff]
        %v6256 = vld [vmem:[%s6254 + $0x8] sm:$0xff]
        %v6257 = vld [vmem:[%s6254 + $0x18] sm:$0xff]
        %v6258 = vld [vmem:[%s6254 + $0x20] sm:$0xff]
        %v6259 = vld [vmem:[%s6254 + $0x30] sm:$0xff]
        %v6260 = vld [vmem:[%s6254 + $0x38] sm:$0xff]
        %v6261 = vld [vmem:[%s6254 + $0x48] sm:$0xff]
        %v6262 = vld [vmem:[%s6254 + $0x50] sm:$0xff]
        %v6263 = vld [vmem:[%s6254 + $0x60] sm:$0xff]
        %v6264 = vld [vmem:[%s6254 + $0x68] sm:$0xff]
        %v6265 = vld [vmem:[%s6254 + $0x78] sm:$0xff]
        %v6266 = vld [vmem:[%s6254 + $0x80] sm:$0xff]
        %v6267 = vld [vmem:[%s6254 + $0x90] sm:$0xff]
        %v6268 = vld [vmem:[%s6254 + $0x98] sm:$0xff]
        %v6269 = vld [vmem:[%s6254 + $0xa8] sm:$0xff]
        %v6270 = vld [vmem:[%s6254 + $0xb0] sm:$0xff]
        %v6271 = vld [vmem:[%s6254 + $0xc0] sm:$0xff]
        %v6272 = vld [vmem:[%s6254 + $0xc8] sm:$0xff]
        %v6273 = vld [vmem:[%s6254 + $0xd8] sm:$0xff]
        %v6274 = vld [vmem:[%s6254 + $0xe0] sm:$0xff]
        %v6275 = vld [vmem:[%s6254 + $0xf0] sm:$0xff]
        %v6276 = vld [vmem:[%s6254 + $0xf8] sm:$0xff]
        %v6277 = vld [vmem:[%s6254 + $0x108] sm:$0xff]
        %v6278 = vld [vmem:[%s6254 + $0x110] sm:$0xff]
        %v6279 = vld [vmem:[%s6254 + $0x120] sm:$0xff]
        %v6280 = vld [vmem:[%s6254 + $0x128] sm:$0xff]
        %v6281 = vld [vmem:[%s6254 + $0x138] sm:$0xff]
        %v6282 = vld [vmem:[%s6254 + $0x140] sm:$0xff]
        %v6283 = vld [vmem:[%s6254 + $0x150] sm:$0xff]
        %v6284 = vld [vmem:[%s6254 + $0x158] sm:$0xff]
        %v6285 = vld [vmem:[%s6254 + $0x168] sm:$0xff]
        %v6286 = vld [vmem:[%s6254 + $0x170] sm:$0xff]
        %v6287 = vld [vmem:[%s3 + $0x60] sm:$0xff]
        %v6288 = vld [vmem:[%s3 + $0x68] sm:$0xff]
        %v6290 = vsel %vm3907, %v6255, 0
        %v6293 = vsel %vm3907, %v6256, 0
        %v6296 = vsel %vm3907, %v6257, 0
        %v6299 = vsel %vm3907, %v6258, 0
        %v6302 = vsel %vm3907, %v6259, 0
        %v6305 = vsel %vm3907, %v6260, 0
        %v6308 = vsel %vm3907, %v6261, 0
        %v6311 = vsel %vm3907, %v6262, 0
        %v6314 = vsel %vm3907, %v6263, 0
        %v6317 = vsel %vm3907, %v6264, 0
        %v6320 = vsel %vm3907, %v6265, 0
        %v6323 = vsel %vm3907, %v6266, 0
        %v6326 = vsel %vm3907, %v6267, 0
        %v6329 = vsel %vm3907, %v6268, 0
        %v6332 = vsel %vm3907, %v6269, 0
        %v6335 = vsel %vm3907, %v6270, 0
        %v6338 = vsel %vm3907, %v6271, 0
        %v6341 = vsel %vm3907, %v6272, 0
        %v6344 = vsel %vm3907, %v6273, 0
        %v6347 = vsel %vm3907, %v6274, 0
        %v6350 = vsel %vm3907, %v6275, 0
        %v6353 = vsel %vm3907, %v6276, 0
        %v6356 = vsel %vm3907, %v6277, 0
        %v6359 = vsel %vm3907, %v6278, 0
        %v6362 = vsel %vm3907, %v6279, 0
        %v6365 = vsel %vm3907, %v6280, 0
        %v6368 = vsel %vm3907, %v6281, 0
        %v6371 = vsel %vm3907, %v6282, 0
        %v6374 = vsel %vm3907, %v6283, 0
        %v6377 = vsel %vm3907, %v6284, 0
        %v6380 = vsel %vm3907, %v6285, 0
        %v6383 = vsel %vm3907, %v6286, 0
        %6385 = vmatprep.subr.mxu0 0.0
        %6386 = vmatpush1.msra.mxu0 0.0
        %6387 = vmatprep.subr.mxu0 0.0
        %6388 = vmatpush1.msra.mxu0 0.0
        %6389 = vmatprep.subr.mxu0 0.0
        %6390 = vmatpush1.msra.mxu0 0.0
        %6391 = vmatprep.subr.mxu0 0.0
        %6392 = vmatpush1.msra.mxu0 0.0
        %6393 = vmatprep.subr.mxu0 0.0
        %6394 = vmatpush1.msra.mxu0 0.0
        %6395 = vmatprep.subr.mxu0 0.0
        %6396 = vmatpush1.msra.mxu0 0.0
        %6397 = vmatprep.subr.mxu0 0.0
        %6398 = vmatpush1.msra.mxu0 0.0
        %6399 = vmatprep.subr.mxu0 0.0
        %6400 = vmatpush1.msra.mxu0 0.0
        %6401 = vmatprep.subr.mxu0 0.0
        %6402 = vmatpush1.msra.mxu0 0.0
        %6403 = vmatprep.subr.mxu0 0.0
        %6404 = vmatpush1.msra.mxu0 0.0
        %6405 = vmatprep.subr.mxu0 0.0
        %6406 = vmatpush1.msra.mxu0 0.0
        %6407 = vmatprep.subr.mxu0 0.0
        %6408 = vmatpush1.msra.mxu0 0.0
        %6409 = vmatprep.subr.mxu0 0.0
        %6410 = vmatpush1.msra.mxu0 0.0
        %6411 = vmatprep.subr.mxu0 0.0
        %6412 = vmatpush1.msra.mxu0 0.0
        %6413 = vmatprep.subr.mxu0 0.0
        %6414 = vmatpush1.msra.mxu0 %v6288
        %6415 = vmatprep.subr.mxu0 0.0
        %6416 = vmatpush1.msra.mxu0 %v6287
        %6417 = vmatprep.subr.mxu0 0.0
        %6418 = vmatpush2.msra.mxu0 0.0
        %6419 = vmatprep.subr.mxu0 0.0
        %6420 = vmatpush2.msra.mxu0 0.0
        %6421 = vmatprep.subr.mxu0 0.0
        %6422 = vmatpush2.msra.mxu0 0.0
        %6423 = vmatprep.subr.mxu0 0.0
        %6424 = vmatpush2.msra.mxu0 0.0
        %6425 = vmatprep.subr.mxu0 0.0
        %6426 = vmatpush2.msra.mxu0 0.0
        %6427 = vmatprep.subr.mxu0 0.0
        %6428 = vmatpush2.msra.mxu0 0.0
        %6429 = vmatprep.subr.mxu0 0.0
        %6430 = vmatpush2.msra.mxu0 0.0
        %6431 = vmatprep.subr.mxu0 0.0
        %6432 = vmatpush2.msra.mxu0 0.0
        %6433 = vmatprep.subr.mxu0 0.0
        %6434 = vmatpush2.msra.mxu0 0.0
        %6435 = vmatprep.subr.mxu0 0.0
        %6436 = vmatpush2.msra.mxu0 0.0
        %6437 = vmatprep.subr.mxu0 0.0
        %6438 = vmatpush2.msra.mxu0 0.0
        %6439 = vmatprep.subr.mxu0 0.0
        %6440 = vmatpush2.msra.mxu0 0.0
        %6441 = vmatprep.subr.mxu0 0.0
        %6442 = vmatpush2.msra.mxu0 0.0
        %6443 = vmatprep.subr.mxu0 0.0
        %6444 = vmatpush2.msra.mxu0 0.0
        %6445 = vmatprep.subr.mxu0 0.0
        %6446 = vmatpush2.msra.mxu0 0.0
        %6447 = vmatprep.subr.mxu0 0.0
        %6448 = vmatpush2.msra.mxu0 0.0
        %6449 = vmatprep.mubr.f32.mxu0 0.0
        %6450 = vmatmul.mubr.f32.gmra.mxu0 %v6290
        %v6451 = vpop.f32.mrf.mxu0
        %v6452 = vadd.f32 0.0, %v6451
        %v6453 = vpop.f32.mrf.mxu0
        %6454 = vmatprep.mubr.f32.mxu0 0.0
        %6455 = vmatmul.mubr.f32.gmra.mxu0 %v6293
        %v6456 = vpop.f32.mrf.mxu0
        %v6457 = vadd.f32 0.0, %v6456
        %v6458 = vpop.f32.mrf.mxu0
        %6459 = vmatprep.mubr.f32.mxu0 0.0
        %6460 = vmatmul.mubr.f32.gmra.mxu0 %v6296
        %v6461 = vpop.f32.mrf.mxu0
        %v6462 = vadd.f32 0.0, %v6461
        %v6463 = vpop.f32.mrf.mxu0
        %6464 = vmatprep.mubr.f32.mxu0 0.0
        %6465 = vmatmul.mubr.f32.gmra.mxu0 %v6299
        %v6466 = vpop.f32.mrf.mxu0
        %v6467 = vadd.f32 0.0, %v6466
        %v6468 = vpop.f32.mrf.mxu0
        %6469 = vmatprep.mubr.f32.mxu0 0.0
        %6470 = vmatmul.mubr.f32.gmra.mxu0 %v6302
        %v6471 = vpop.f32.mrf.mxu0
        %v6472 = vadd.f32 0.0, %v6471
        %v6473 = vpop.f32.mrf.mxu0
        %6474 = vmatprep.mubr.f32.mxu0 0.0
        %6475 = vmatmul.mubr.f32.gmra.mxu0 %v6305
        %v6476 = vpop.f32.mrf.mxu0
        %v6477 = vadd.f32 0.0, %v6476
        %v6478 = vpop.f32.mrf.mxu0
        %6479 = vmatprep.mubr.f32.mxu0 0.0
        %6480 = vmatmul.mubr.f32.gmra.mxu0 %v6308
        %v6481 = vpop.f32.mrf.mxu0
        %v6482 = vadd.f32 0.0, %v6481
        %v6483 = vpop.f32.mrf.mxu0
        %6484 = vmatprep.mubr.f32.mxu0 0.0
        %6485 = vmatmul.mubr.f32.gmra.mxu0 %v6311
        %v6486 = vpop.f32.mrf.mxu0
        %v6487 = vadd.f32 0.0, %v6486
        %v6488 = vpop.f32.mrf.mxu0
        %6489 = vmatprep.mubr.f32.mxu0 0.0
        %6490 = vmatmul.mubr.f32.gmra.mxu0 %v6314
        %v6491 = vpop.f32.mrf.mxu0
        %v6492 = vadd.f32 0.0, %v6491
        %v6493 = vpop.f32.mrf.mxu0
        %6494 = vmatprep.mubr.f32.mxu0 0.0
        %6495 = vmatmul.mubr.f32.gmra.mxu0 %v6317
        %v6496 = vpop.f32.mrf.mxu0
        %v6497 = vadd.f32 0.0, %v6496
        %v6498 = vpop.f32.mrf.mxu0
        %6499 = vmatprep.mubr.f32.mxu0 0.0
        %6500 = vmatmul.mubr.f32.gmra.mxu0 %v6320
        %v6501 = vpop.f32.mrf.mxu0
        %v6502 = vadd.f32 0.0, %v6501
        %v6503 = vpop.f32.mrf.mxu0
        %6504 = vmatprep.mubr.f32.mxu0 0.0
        %6505 = vmatmul.mubr.f32.gmra.mxu0 %v6323
        %v6506 = vpop.f32.mrf.mxu0
        %v6507 = vadd.f32 0.0, %v6506
        %v6508 = vpop.f32.mrf.mxu0
        %6509 = vmatprep.mubr.f32.mxu0 0.0
        %6510 = vmatmul.mubr.f32.gmra.mxu0 %v6326
        %v6511 = vpop.f32.mrf.mxu0
        %v6512 = vadd.f32 0.0, %v6511
        %v6513 = vpop.f32.mrf.mxu0
        %6514 = vmatprep.mubr.f32.mxu0 0.0
        %6515 = vmatmul.mubr.f32.gmra.mxu0 %v6329
        %v6516 = vpop.f32.mrf.mxu0
        %v6517 = vadd.f32 0.0, %v6516
        %v6518 = vpop.f32.mrf.mxu0
        %6519 = vmatprep.mubr.f32.mxu0 0.0
        %6520 = vmatmul.mubr.f32.gmra.mxu0 %v6332
        %v6521 = vpop.f32.mrf.mxu0
        %v6522 = vadd.f32 0.0, %v6521
        %v6523 = vpop.f32.mrf.mxu0
        %6524 = vmatprep.mubr.f32.mxu0 0.0
        %6525 = vmatmul.mubr.f32.gmra.mxu0 %v6335
        %v6526 = vpop.f32.mrf.mxu0
        %v6527 = vadd.f32 0.0, %v6526
        %v6528 = vpop.f32.mrf.mxu0
        %6529 = vmatprep.mubr.f32.mxu0 0.0
        %6530 = vmatmul.mubr.f32.gmra.mxu0 %v6338
        %v6531 = vpop.f32.mrf.mxu0
        %v6532 = vadd.f32 0.0, %v6531
        %v6533 = vpop.f32.mrf.mxu0
        %6534 = vmatprep.mubr.f32.mxu0 0.0
        %6535 = vmatmul.mubr.f32.gmra.mxu0 %v6341
        %v6536 = vpop.f32.mrf.mxu0
        %v6537 = vadd.f32 0.0, %v6536
        %v6538 = vpop.f32.mrf.mxu0
        %6539 = vmatprep.mubr.f32.mxu0 0.0
        %6540 = vmatmul.mubr.f32.gmra.mxu0 %v6344
        %v6541 = vpop.f32.mrf.mxu0
        %v6542 = vadd.f32 0.0, %v6541
        %v6543 = vpop.f32.mrf.mxu0
        %6544 = vmatprep.mubr.f32.mxu0 0.0
        %6545 = vmatmul.mubr.f32.gmra.mxu0 %v6347
        %v6546 = vpop.f32.mrf.mxu0
        %v6547 = vadd.f32 0.0, %v6546
        %v6548 = vpop.f32.mrf.mxu0
        %6549 = vmatprep.mubr.f32.mxu0 0.0
        %6550 = vmatmul.mubr.f32.gmra.mxu0 %v6350
        %v6551 = vpop.f32.mrf.mxu0
        %v6552 = vadd.f32 0.0, %v6551
        %v6553 = vpop.f32.mrf.mxu0
        %6554 = vmatprep.mubr.f32.mxu0 0.0
        %6555 = vmatmul.mubr.f32.gmra.mxu0 %v6353
        %v6556 = vpop.f32.mrf.mxu0
        %v6557 = vadd.f32 0.0, %v6556
        %v6558 = vpop.f32.mrf.mxu0
        %6559 = vmatprep.mubr.f32.mxu0 0.0
        %6560 = vmatmul.mubr.f32.gmra.mxu0 %v6356
        %v6561 = vpop.f32.mrf.mxu0
        %v6562 = vadd.f32 0.0, %v6561
        %v6563 = vpop.f32.mrf.mxu0
        %6564 = vmatprep.mubr.f32.mxu0 0.0
        %6565 = vmatmul.mubr.f32.gmra.mxu0 %v6359
        %v6566 = vpop.f32.mrf.mxu0
        %v6567 = vadd.f32 0.0, %v6566
        %v6568 = vpop.f32.mrf.mxu0
        %6569 = vmatprep.mubr.f32.mxu0 0.0
        %6570 = vmatmul.mubr.f32.gmra.mxu0 %v6362
        %v6571 = vpop.f32.mrf.mxu0
        %v6572 = vadd.f32 0.0, %v6571
        %v6573 = vpop.f32.mrf.mxu0
        %6574 = vmatprep.mubr.f32.mxu0 0.0
        %6575 = vmatmul.mubr.f32.gmra.mxu0 %v6365
        %v6576 = vpop.f32.mrf.mxu0
        %v6577 = vadd.f32 0.0, %v6576
        %v6578 = vpop.f32.mrf.mxu0
        %6579 = vmatprep.mubr.f32.mxu0 0.0
        %6580 = vmatmul.mubr.f32.gmra.mxu0 %v6368
        %v6581 = vpop.f32.mrf.mxu0
        %v6582 = vadd.f32 0.0, %v6581
        %v6583 = vpop.f32.mrf.mxu0
        %6584 = vmatprep.mubr.f32.mxu0 0.0
        %6585 = vmatmul.mubr.f32.gmra.mxu0 %v6371
        %v6586 = vpop.f32.mrf.mxu0
        %v6587 = vadd.f32 0.0, %v6586
        %v6588 = vpop.f32.mrf.mxu0
        %6589 = vmatprep.mubr.f32.mxu0 0.0
        %6590 = vmatmul.mubr.f32.gmra.mxu0 %v6374
        %v6591 = vpop.f32.mrf.mxu0
        %v6592 = vadd.f32 0.0, %v6591
        %v6593 = vpop.f32.mrf.mxu0
        %6594 = vmatprep.mubr.f32.mxu0 0.0
        %6595 = vmatmul.mubr.f32.gmra.mxu0 %v6377
        %v6596 = vpop.f32.mrf.mxu0
        %v6597 = vadd.f32 0.0, %v6596
        %v6598 = vpop.f32.mrf.mxu0
        %6599 = vmatprep.mubr.f32.mxu0 0.0
        %6600 = vmatmul.mubr.f32.gmra.mxu0 %v6380
        %v6601 = vpop.f32.mrf.mxu0
        %v6602 = vadd.f32 0.0, %v6601
        %v6603 = vpop.f32.mrf.mxu0
        %6604 = vmatprep.mubr.f32.mxu0 0.0
        %6605 = vmatmul.mubr.f32.gmra.mxu0 %v6383
        %v6606 = vpop.f32.mrf.mxu0
        %v6607 = vadd.f32 0.0, %v6606
        %v6608 = vpop.f32.mrf.mxu0
        %6609 = vdwg.mxu0
        %v6610 = vadd.f32 %v6222, %v6452
        %v6611 = vadd.f32 %v6223, %v6457
        %v6612 = vadd.f32 %v6224, %v6462
        %v6613 = vadd.f32 %v6225, %v6467
        %v6614 = vadd.f32 %v6226, %v6472
        %v6615 = vadd.f32 %v6227, %v6477
        %v6616 = vadd.f32 %v6228, %v6482
        %v6617 = vadd.f32 %v6229, %v6487
        %v6618 = vadd.f32 %v6230, %v6492
        %v6619 = vadd.f32 %v6231, %v6497
        %v6620 = vadd.f32 %v6232, %v6502
        %v6621 = vadd.f32 %v6233, %v6507
        %v6622 = vadd.f32 %v6234, %v6512
        %v6623 = vadd.f32 %v6235, %v6517
        %v6624 = vadd.f32 %v6236, %v6522
        %v6625 = vadd.f32 %v6237, %v6527
        %v6626 = vadd.f32 %v6238, %v6532
        %v6627 = vadd.f32 %v6239, %v6537
        %v6628 = vadd.f32 %v6240, %v6542
        %v6629 = vadd.f32 %v6241, %v6547
        %v6630 = vadd.f32 %v6242, %v6552
        %v6631 = vadd.f32 %v6243, %v6557
        %v6632 = vadd.f32 %v6244, %v6562
        %v6633 = vadd.f32 %v6245, %v6567
        %v6634 = vadd.f32 %v6246, %v6572
        %v6635 = vadd.f32 %v6247, %v6577
        %v6636 = vadd.f32 %v6248, %v6582
        %v6637 = vadd.f32 %v6249, %v6587
        %v6638 = vadd.f32 %v6250, %v6592
        %v6639 = vadd.f32 %v6251, %v6597
        %v6640 = vadd.f32 %v6252, %v6602
        %v6641 = vadd.f32 %v6253, %v6607
        %v6642 = vld [vmem:[%s6254 + $0x1] sm:$0xff]
        %v6643 = vld [vmem:[%s6254 + $0x9] sm:$0xff]
        %v6644 = vld [vmem:[%s6254 + $0x19] sm:$0xff]
        %v6645 = vld [vmem:[%s6254 + $0x21] sm:$0xff]
        %v6646 = vld [vmem:[%s6254 + $0x31] sm:$0xff]
        %v6647 = vld [vmem:[%s6254 + $0x39] sm:$0xff]
        %v6648 = vld [vmem:[%s6254 + $0x49] sm:$0xff]
        %v6649 = vld [vmem:[%s6254 + $0x51] sm:$0xff]
        %v6650 = vld [vmem:[%s6254 + $0x61] sm:$0xff]
        %v6651 = vld [vmem:[%s6254 + $0x69] sm:$0xff]
        %v6652 = vld [vmem:[%s6254 + $0x79] sm:$0xff]
        %v6653 = vld [vmem:[%s6254 + $0x81] sm:$0xff]
        %v6654 = vld [vmem:[%s6254 + $0x91] sm:$0xff]
        %v6655 = vld [vmem:[%s6254 + $0x99] sm:$0xff]
        %v6656 = vld [vmem:[%s6254 + $0xa9] sm:$0xff]
        %v6657 = vld [vmem:[%s6254 + $0xb1] sm:$0xff]
        %v6658 = vld [vmem:[%s6254 + $0xc1] sm:$0xff]
        %v6659 = vld [vmem:[%s6254 + $0xc9] sm:$0xff]
        %v6660 = vld [vmem:[%s6254 + $0xd9] sm:$0xff]
        %v6661 = vld [vmem:[%s6254 + $0xe1] sm:$0xff]
        %v6662 = vld [vmem:[%s6254 + $0xf1] sm:$0xff]
        %v6663 = vld [vmem:[%s6254 + $0xf9] sm:$0xff]
        %v6664 = vld [vmem:[%s6254 + $0x109] sm:$0xff]
        %v6665 = vld [vmem:[%s6254 + $0x111] sm:$0xff]
        %v6666 = vld [vmem:[%s6254 + $0x121] sm:$0xff]
        %v6667 = vld [vmem:[%s6254 + $0x129] sm:$0xff]
        %v6668 = vld [vmem:[%s6254 + $0x139] sm:$0xff]
        %v6669 = vld [vmem:[%s6254 + $0x141] sm:$0xff]
        %v6670 = vld [vmem:[%s6254 + $0x151] sm:$0xff]
        %v6671 = vld [vmem:[%s6254 + $0x159] sm:$0xff]
        %v6672 = vld [vmem:[%s6254 + $0x169] sm:$0xff]
        %v6673 = vld [vmem:[%s6254 + $0x171] sm:$0xff]
        %v6674 = vld [vmem:[%s3 + $0x70] sm:$0xff]
        %v6675 = vld [vmem:[%s3 + $0x78] sm:$0xff]
        %v6677 = vsel %vm3907, %v6642, 0
        %v6680 = vsel %vm3907, %v6643, 0
        %v6683 = vsel %vm3907, %v6644, 0
        %v6686 = vsel %vm3907, %v6645, 0
        %v6689 = vsel %vm3907, %v6646, 0
        %v6692 = vsel %vm3907, %v6647, 0
        %v6695 = vsel %vm3907, %v6648, 0
        %v6698 = vsel %vm3907, %v6649, 0
        %v6701 = vsel %vm3907, %v6650, 0
        %v6704 = vsel %vm3907, %v6651, 0
        %v6707 = vsel %vm3907, %v6652, 0
        %v6710 = vsel %vm3907, %v6653, 0
        %v6713 = vsel %vm3907, %v6654, 0
        %v6716 = vsel %vm3907, %v6655, 0
        %v6719 = vsel %vm3907, %v6656, 0
        %v6722 = vsel %vm3907, %v6657, 0
        %v6725 = vsel %vm3907, %v6658, 0
        %v6728 = vsel %vm3907, %v6659, 0
        %v6731 = vsel %vm3907, %v6660, 0
        %v6734 = vsel %vm3907, %v6661, 0
        %v6737 = vsel %vm3907, %v6662, 0
        %v6740 = vsel %vm3907, %v6663, 0
        %v6743 = vsel %vm3907, %v6664, 0
        %v6746 = vsel %vm3907, %v6665, 0
        %v6749 = vsel %vm3907, %v6666, 0
        %v6752 = vsel %vm3907, %v6667, 0
        %v6755 = vsel %vm3907, %v6668, 0
        %v6758 = vsel %vm3907, %v6669, 0
        %v6761 = vsel %vm3907, %v6670, 0
        %v6764 = vsel %vm3907, %v6671, 0
        %v6767 = vsel %vm3907, %v6672, 0
        %v6770 = vsel %vm3907, %v6673, 0
        %6772 = vmatprep.subr.mxu0 0.0
        %6773 = vmatpush1.msra.mxu0 0.0
        %6774 = vmatprep.subr.mxu0 0.0
        %6775 = vmatpush1.msra.mxu0 0.0
        %6776 = vmatprep.subr.mxu0 0.0
        %6777 = vmatpush1.msra.mxu0 0.0
        %6778 = vmatprep.subr.mxu0 0.0
        %6779 = vmatpush1.msra.mxu0 0.0
        %6780 = vmatprep.subr.mxu0 0.0
        %6781 = vmatpush1.msra.mxu0 0.0
        %6782 = vmatprep.subr.mxu0 0.0
        %6783 = vmatpush1.msra.mxu0 0.0
        %6784 = vmatprep.subr.mxu0 0.0
        %6785 = vmatpush1.msra.mxu0 0.0
        %6786 = vmatprep.subr.mxu0 0.0
        %6787 = vmatpush1.msra.mxu0 0.0
        %6788 = vmatprep.subr.mxu0 0.0
        %6789 = vmatpush1.msra.mxu0 0.0
        %6790 = vmatprep.subr.mxu0 0.0
        %6791 = vmatpush1.msra.mxu0 0.0
        %6792 = vmatprep.subr.mxu0 0.0
        %6793 = vmatpush1.msra.mxu0 0.0
        %6794 = vmatprep.subr.mxu0 0.0
        %6795 = vmatpush1.msra.mxu0 0.0
        %6796 = vmatprep.subr.mxu0 0.0
        %6797 = vmatpush1.msra.mxu0 0.0
        %6798 = vmatprep.subr.mxu0 0.0
        %6799 = vmatpush1.msra.mxu0 0.0
        %6800 = vmatprep.subr.mxu0 0.0
        %6801 = vmatpush1.msra.mxu0 %v6675
        %6802 = vmatprep.subr.mxu0 0.0
        %6803 = vmatpush1.msra.mxu0 %v6674
        %6804 = vmatprep.subr.mxu0 0.0
        %6805 = vmatpush2.msra.mxu0 0.0
        %6806 = vmatprep.subr.mxu0 0.0
        %6807 = vmatpush2.msra.mxu0 0.0
        %6808 = vmatprep.subr.mxu0 0.0
        %6809 = vmatpush2.msra.mxu0 0.0
        %6810 = vmatprep.subr.mxu0 0.0
        %6811 = vmatpush2.msra.mxu0 0.0
        %6812 = vmatprep.subr.mxu0 0.0
        %6813 = vmatpush2.msra.mxu0 0.0
        %6814 = vmatprep.subr.mxu0 0.0
        %6815 = vmatpush2.msra.mxu0 0.0
        %6816 = vmatprep.subr.mxu0 0.0
        %6817 = vmatpush2.msra.mxu0 0.0
        %6818 = vmatprep.subr.mxu0 0.0
        %6819 = vmatpush2.msra.mxu0 0.0
        %6820 = vmatprep.subr.mxu0 0.0
        %6821 = vmatpush2.msra.mxu0 0.0
        %6822 = vmatprep.subr.mxu0 0.0
        %6823 = vmatpush2.msra.mxu0 0.0
        %6824 = vmatprep.subr.mxu0 0.0
        %6825 = vmatpush2.msra.mxu0 0.0
        %6826 = vmatprep.subr.mxu0 0.0
        %6827 = vmatpush2.msra.mxu0 0.0
        %6828 = vmatprep.subr.mxu0 0.0
        %6829 = vmatpush2.msra.mxu0 0.0
        %6830 = vmatprep.subr.mxu0 0.0
        %6831 = vmatpush2.msra.mxu0 0.0
        %6832 = vmatprep.subr.mxu0 0.0
        %6833 = vmatpush2.msra.mxu0 0.0
        %6834 = vmatprep.subr.mxu0 0.0
        %6835 = vmatpush2.msra.mxu0 0.0
        %6836 = vmatprep.mubr.f32.mxu0 0.0
        %6837 = vmatmul.mubr.f32.gmra.mxu0 %v6677
        %v6838 = vpop.f32.mrf.mxu0
        %v6839 = vadd.f32 0.0, %v6838
        %v6840 = vpop.f32.mrf.mxu0
        %6841 = vmatprep.mubr.f32.mxu0 0.0
        %6842 = vmatmul.mubr.f32.gmra.mxu0 %v6680
        %v6843 = vpop.f32.mrf.mxu0
        %v6844 = vadd.f32 0.0, %v6843
        %v6845 = vpop.f32.mrf.mxu0
        %6846 = vmatprep.mubr.f32.mxu0 0.0
        %6847 = vmatmul.mubr.f32.gmra.mxu0 %v6683
        %v6848 = vpop.f32.mrf.mxu0
        %v6849 = vadd.f32 0.0, %v6848
        %v6850 = vpop.f32.mrf.mxu0
        %6851 = vmatprep.mubr.f32.mxu0 0.0
        %6852 = vmatmul.mubr.f32.gmra.mxu0 %v6686
        %v6853 = vpop.f32.mrf.mxu0
        %v6854 = vadd.f32 0.0, %v6853
        %v6855 = vpop.f32.mrf.mxu0
        %6856 = vmatprep.mubr.f32.mxu0 0.0
        %6857 = vmatmul.mubr.f32.gmra.mxu0 %v6689
        %v6858 = vpop.f32.mrf.mxu0
        %v6859 = vadd.f32 0.0, %v6858
        %v6860 = vpop.f32.mrf.mxu0
        %6861 = vmatprep.mubr.f32.mxu0 0.0
        %6862 = vmatmul.mubr.f32.gmra.mxu0 %v6692
        %v6863 = vpop.f32.mrf.mxu0
        %v6864 = vadd.f32 0.0, %v6863
        %v6865 = vpop.f32.mrf.mxu0
        %6866 = vmatprep.mubr.f32.mxu0 0.0
        %6867 = vmatmul.mubr.f32.gmra.mxu0 %v6695
        %v6868 = vpop.f32.mrf.mxu0
        %v6869 = vadd.f32 0.0, %v6868
        %v6870 = vpop.f32.mrf.mxu0
        %6871 = vmatprep.mubr.f32.mxu0 0.0
        %6872 = vmatmul.mubr.f32.gmra.mxu0 %v6698
        %v6873 = vpop.f32.mrf.mxu0
        %v6874 = vadd.f32 0.0, %v6873
        %v6875 = vpop.f32.mrf.mxu0
        %6876 = vmatprep.mubr.f32.mxu0 0.0
        %6877 = vmatmul.mubr.f32.gmra.mxu0 %v6701
        %v6878 = vpop.f32.mrf.mxu0
        %v6879 = vadd.f32 0.0, %v6878
        %v6880 = vpop.f32.mrf.mxu0
        %6881 = vmatprep.mubr.f32.mxu0 0.0
        %6882 = vmatmul.mubr.f32.gmra.mxu0 %v6704
        %v6883 = vpop.f32.mrf.mxu0
        %v6884 = vadd.f32 0.0, %v6883
        %v6885 = vpop.f32.mrf.mxu0
        %6886 = vmatprep.mubr.f32.mxu0 0.0
        %6887 = vmatmul.mubr.f32.gmra.mxu0 %v6707
        %v6888 = vpop.f32.mrf.mxu0
        %v6889 = vadd.f32 0.0, %v6888
        %v6890 = vpop.f32.mrf.mxu0
        %6891 = vmatprep.mubr.f32.mxu0 0.0
        %6892 = vmatmul.mubr.f32.gmra.mxu0 %v6710
        %v6893 = vpop.f32.mrf.mxu0
        %v6894 = vadd.f32 0.0, %v6893
        %v6895 = vpop.f32.mrf.mxu0
        %6896 = vmatprep.mubr.f32.mxu0 0.0
        %6897 = vmatmul.mubr.f32.gmra.mxu0 %v6713
        %v6898 = vpop.f32.mrf.mxu0
        %v6899 = vadd.f32 0.0, %v6898
        %v6900 = vpop.f32.mrf.mxu0
        %6901 = vmatprep.mubr.f32.mxu0 0.0
        %6902 = vmatmul.mubr.f32.gmra.mxu0 %v6716
        %v6903 = vpop.f32.mrf.mxu0
        %v6904 = vadd.f32 0.0, %v6903
        %v6905 = vpop.f32.mrf.mxu0
        %6906 = vmatprep.mubr.f32.mxu0 0.0
        %6907 = vmatmul.mubr.f32.gmra.mxu0 %v6719
        %v6908 = vpop.f32.mrf.mxu0
        %v6909 = vadd.f32 0.0, %v6908
        %v6910 = vpop.f32.mrf.mxu0
        %6911 = vmatprep.mubr.f32.mxu0 0.0
        %6912 = vmatmul.mubr.f32.gmra.mxu0 %v6722
        %v6913 = vpop.f32.mrf.mxu0
        %v6914 = vadd.f32 0.0, %v6913
        %v6915 = vpop.f32.mrf.mxu0
        %6916 = vmatprep.mubr.f32.mxu0 0.0
        %6917 = vmatmul.mubr.f32.gmra.mxu0 %v6725
        %v6918 = vpop.f32.mrf.mxu0
        %v6919 = vadd.f32 0.0, %v6918
        %v6920 = vpop.f32.mrf.mxu0
        %6921 = vmatprep.mubr.f32.mxu0 0.0
        %6922 = vmatmul.mubr.f32.gmra.mxu0 %v6728
        %v6923 = vpop.f32.mrf.mxu0
        %v6924 = vadd.f32 0.0, %v6923
        %v6925 = vpop.f32.mrf.mxu0
        %6926 = vmatprep.mubr.f32.mxu0 0.0
        %6927 = vmatmul.mubr.f32.gmra.mxu0 %v6731
        %v6928 = vpop.f32.mrf.mxu0
        %v6929 = vadd.f32 0.0, %v6928
        %v6930 = vpop.f32.mrf.mxu0
        %6931 = vmatprep.mubr.f32.mxu0 0.0
        %6932 = vmatmul.mubr.f32.gmra.mxu0 %v6734
        %v6933 = vpop.f32.mrf.mxu0
        %v6934 = vadd.f32 0.0, %v6933
        %v6935 = vpop.f32.mrf.mxu0
        %6936 = vmatprep.mubr.f32.mxu0 0.0
        %6937 = vmatmul.mubr.f32.gmra.mxu0 %v6737
        %v6938 = vpop.f32.mrf.mxu0
        %v6939 = vadd.f32 0.0, %v6938
        %v6940 = vpop.f32.mrf.mxu0
        %6941 = vmatprep.mubr.f32.mxu0 0.0
        %6942 = vmatmul.mubr.f32.gmra.mxu0 %v6740
        %v6943 = vpop.f32.mrf.mxu0
        %v6944 = vadd.f32 0.0, %v6943
        %v6945 = vpop.f32.mrf.mxu0
        %6946 = vmatprep.mubr.f32.mxu0 0.0
        %6947 = vmatmul.mubr.f32.gmra.mxu0 %v6743
        %v6948 = vpop.f32.mrf.mxu0
        %v6949 = vadd.f32 0.0, %v6948
        %v6950 = vpop.f32.mrf.mxu0
        %6951 = vmatprep.mubr.f32.mxu0 0.0
        %6952 = vmatmul.mubr.f32.gmra.mxu0 %v6746
        %v6953 = vpop.f32.mrf.mxu0
        %v6954 = vadd.f32 0.0, %v6953
        %v6955 = vpop.f32.mrf.mxu0
        %6956 = vmatprep.mubr.f32.mxu0 0.0
        %6957 = vmatmul.mubr.f32.gmra.mxu0 %v6749
        %v6958 = vpop.f32.mrf.mxu0
        %v6959 = vadd.f32 0.0, %v6958
        %v6960 = vpop.f32.mrf.mxu0
        %6961 = vmatprep.mubr.f32.mxu0 0.0
        %6962 = vmatmul.mubr.f32.gmra.mxu0 %v6752
        %v6963 = vpop.f32.mrf.mxu0
        %v6964 = vadd.f32 0.0, %v6963
        %v6965 = vpop.f32.mrf.mxu0
        %6966 = vmatprep.mubr.f32.mxu0 0.0
        %6967 = vmatmul.mubr.f32.gmra.mxu0 %v6755
        %v6968 = vpop.f32.mrf.mxu0
        %v6969 = vadd.f32 0.0, %v6968
        %v6970 = vpop.f32.mrf.mxu0
        %6971 = vmatprep.mubr.f32.mxu0 0.0
        %6972 = vmatmul.mubr.f32.gmra.mxu0 %v6758
        %v6973 = vpop.f32.mrf.mxu0
        %v6974 = vadd.f32 0.0, %v6973
        %v6975 = vpop.f32.mrf.mxu0
        %6976 = vmatprep.mubr.f32.mxu0 0.0
        %6977 = vmatmul.mubr.f32.gmra.mxu0 %v6761
        %v6978 = vpop.f32.mrf.mxu0
        %v6979 = vadd.f32 0.0, %v6978
        %v6980 = vpop.f32.mrf.mxu0
        %6981 = vmatprep.mubr.f32.mxu0 0.0
        %6982 = vmatmul.mubr.f32.gmra.mxu0 %v6764
        %v6983 = vpop.f32.mrf.mxu0
        %v6984 = vadd.f32 0.0, %v6983
        %v6985 = vpop.f32.mrf.mxu0
        %6986 = vmatprep.mubr.f32.mxu0 0.0
        %6987 = vmatmul.mubr.f32.gmra.mxu0 %v6767
        %v6988 = vpop.f32.mrf.mxu0
        %v6989 = vadd.f32 0.0, %v6988
        %v6990 = vpop.f32.mrf.mxu0
        %6991 = vmatprep.mubr.f32.mxu0 0.0
        %6992 = vmatmul.mubr.f32.gmra.mxu0 %v6770
        %v6993 = vpop.f32.mrf.mxu0
        %v6994 = vadd.f32 0.0, %v6993
        %v6995 = vpop.f32.mrf.mxu0
        %6996 = vdwg.mxu0
        %v6997 = vadd.f32 %v6610, %v6839
        %v6998 = vadd.f32 %v6611, %v6844
        %v6999 = vadd.f32 %v6612, %v6849
        %v7000 = vadd.f32 %v6613, %v6854
        %v7001 = vadd.f32 %v6614, %v6859
        %v7002 = vadd.f32 %v6615, %v6864
        %v7003 = vadd.f32 %v6616, %v6869
        %v7004 = vadd.f32 %v6617, %v6874
        %v7005 = vadd.f32 %v6618, %v6879
        %v7006 = vadd.f32 %v6619, %v6884
        %v7007 = vadd.f32 %v6620, %v6889
        %v7008 = vadd.f32 %v6621, %v6894
        %v7009 = vadd.f32 %v6622, %v6899
        %v7010 = vadd.f32 %v6623, %v6904
        %v7011 = vadd.f32 %v6624, %v6909
        %v7012 = vadd.f32 %v6625, %v6914
        %v7013 = vadd.f32 %v6626, %v6919
        %v7014 = vadd.f32 %v6627, %v6924
        %v7015 = vadd.f32 %v6628, %v6929
        %v7016 = vadd.f32 %v6629, %v6934
        %v7017 = vadd.f32 %v6630, %v6939
        %v7018 = vadd.f32 %v6631, %v6944
        %v7019 = vadd.f32 %v6632, %v6949
        %v7020 = vadd.f32 %v6633, %v6954
        %v7021 = vadd.f32 %v6634, %v6959
        %v7022 = vadd.f32 %v6635, %v6964
        %v7023 = vadd.f32 %v6636, %v6969
        %v7024 = vadd.f32 %v6637, %v6974
        %v7025 = vadd.f32 %v6638, %v6979
        %v7026 = vadd.f32 %v6639, %v6984
        %v7027 = vadd.f32 %v6640, %v6989
        %v7028 = vadd.f32 %v6641, %v6994
        %v7029 = vld [vmem:[%s6254 + $0x2] sm:$0xff]
        %v7030 = vld [vmem:[%s6254 + $0xa] sm:$0xff]
        %v7031 = vld [vmem:[%s6254 + $0x1a] sm:$0xff]
        %v7032 = vld [vmem:[%s6254 + $0x22] sm:$0xff]
        %v7033 = vld [vmem:[%s6254 + $0x32] sm:$0xff]
        %v7034 = vld [vmem:[%s6254 + $0x3a] sm:$0xff]
        %v7035 = vld [vmem:[%s6254 + $0x4a] sm:$0xff]
        %v7036 = vld [vmem:[%s6254 + $0x52] sm:$0xff]
        %v7037 = vld [vmem:[%s6254 + $0x62] sm:$0xff]
        %v7038 = vld [vmem:[%s6254 + $0x6a] sm:$0xff]
        %v7039 = vld [vmem:[%s6254 + $0x7a] sm:$0xff]
        %v7040 = vld [vmem:[%s6254 + $0x82] sm:$0xff]
        %v7041 = vld [vmem:[%s6254 + $0x92] sm:$0xff]
        %v7042 = vld [vmem:[%s6254 + $0x9a] sm:$0xff]
        %v7043 = vld [vmem:[%s6254 + $0xaa] sm:$0xff]
        %v7044 = vld [vmem:[%s6254 + $0xb2] sm:$0xff]
        %v7045 = vld [vmem:[%s6254 + $0xc2] sm:$0xff]
        %v7046 = vld [vmem:[%s6254 + $0xca] sm:$0xff]
        %v7047 = vld [vmem:[%s6254 + $0xda] sm:$0xff]
        %v7048 = vld [vmem:[%s6254 + $0xe2] sm:$0xff]
        %v7049 = vld [vmem:[%s6254 + $0xf2] sm:$0xff]
        %v7050 = vld [vmem:[%s6254 + $0xfa] sm:$0xff]
        %v7051 = vld [vmem:[%s6254 + $0x10a] sm:$0xff]
        %v7052 = vld [vmem:[%s6254 + $0x112] sm:$0xff]
        %v7053 = vld [vmem:[%s6254 + $0x122] sm:$0xff]
        %v7054 = vld [vmem:[%s6254 + $0x12a] sm:$0xff]
        %v7055 = vld [vmem:[%s6254 + $0x13a] sm:$0xff]
        %v7056 = vld [vmem:[%s6254 + $0x142] sm:$0xff]
        %v7057 = vld [vmem:[%s6254 + $0x152] sm:$0xff]
        %v7058 = vld [vmem:[%s6254 + $0x15a] sm:$0xff]
        %v7059 = vld [vmem:[%s6254 + $0x16a] sm:$0xff]
        %v7060 = vld [vmem:[%s6254 + $0x172] sm:$0xff]
        %v7061 = vld [vmem:[%s3 + $0x80] sm:$0xff]
        %v7062 = vld [vmem:[%s3 + $0x88] sm:$0xff]
        %v7064 = vsel %vm3907, %v7029, 0
        %v7067 = vsel %vm3907, %v7030, 0
        %v7070 = vsel %vm3907, %v7031, 0
        %v7073 = vsel %vm3907, %v7032, 0
        %v7076 = vsel %vm3907, %v7033, 0
        %v7079 = vsel %vm3907, %v7034, 0
        %v7082 = vsel %vm3907, %v7035, 0
        %v7085 = vsel %vm3907, %v7036, 0
        %v7088 = vsel %vm3907, %v7037, 0
        %v7091 = vsel %vm3907, %v7038, 0
        %v7094 = vsel %vm3907, %v7039, 0
        %v7097 = vsel %vm3907, %v7040, 0
        %v7100 = vsel %vm3907, %v7041, 0
        %v7103 = vsel %vm3907, %v7042, 0
        %v7106 = vsel %vm3907, %v7043, 0
        %v7109 = vsel %vm3907, %v7044, 0
        %v7112 = vsel %vm3907, %v7045, 0
        %v7115 = vsel %vm3907, %v7046, 0
        %v7118 = vsel %vm3907, %v7047, 0
        %v7121 = vsel %vm3907, %v7048, 0
        %v7124 = vsel %vm3907, %v7049, 0
        %v7127 = vsel %vm3907, %v7050, 0
        %v7130 = vsel %vm3907, %v7051, 0
        %v7133 = vsel %vm3907, %v7052, 0
        %v7136 = vsel %vm3907, %v7053, 0
        %v7139 = vsel %vm3907, %v7054, 0
        %v7142 = vsel %vm3907, %v7055, 0
        %v7145 = vsel %vm3907, %v7056, 0
        %v7148 = vsel %vm3907, %v7057, 0
        %v7151 = vsel %vm3907, %v7058, 0
        %v7154 = vsel %vm3907, %v7059, 0
        %v7157 = vsel %vm3907, %v7060, 0
        %7159 = vmatprep.subr.mxu0 0.0
        %7160 = vmatpush1.msra.mxu0 0.0
        %7161 = vmatprep.subr.mxu0 0.0
        %7162 = vmatpush1.msra.mxu0 0.0
        %7163 = vmatprep.subr.mxu0 0.0
        %7164 = vmatpush1.msra.mxu0 0.0
        %7165 = vmatprep.subr.mxu0 0.0
        %7166 = vmatpush1.msra.mxu0 0.0
        %7167 = vmatprep.subr.mxu0 0.0
        %7168 = vmatpush1.msra.mxu0 0.0
        %7169 = vmatprep.subr.mxu0 0.0
        %7170 = vmatpush1.msra.mxu0 0.0
        %7171 = vmatprep.subr.mxu0 0.0
        %7172 = vmatpush1.msra.mxu0 0.0
        %7173 = vmatprep.subr.mxu0 0.0
        %7174 = vmatpush1.msra.mxu0 0.0
        %7175 = vmatprep.subr.mxu0 0.0
        %7176 = vmatpush1.msra.mxu0 0.0
        %7177 = vmatprep.subr.mxu0 0.0
        %7178 = vmatpush1.msra.mxu0 0.0
        %7179 = vmatprep.subr.mxu0 0.0
        %7180 = vmatpush1.msra.mxu0 0.0
        %7181 = vmatprep.subr.mxu0 0.0
        %7182 = vmatpush1.msra.mxu0 0.0
        %7183 = vmatprep.subr.mxu0 0.0
        %7184 = vmatpush1.msra.mxu0 0.0
        %7185 = vmatprep.subr.mxu0 0.0
        %7186 = vmatpush1.msra.mxu0 0.0
        %7187 = vmatprep.subr.mxu0 0.0
        %7188 = vmatpush1.msra.mxu0 %v7062
        %7189 = vmatprep.subr.mxu0 0.0
        %7190 = vmatpush1.msra.mxu0 %v7061
        %7191 = vmatprep.subr.mxu0 0.0
        %7192 = vmatpush2.msra.mxu0 0.0
        %7193 = vmatprep.subr.mxu0 0.0
        %7194 = vmatpush2.msra.mxu0 0.0
        %7195 = vmatprep.subr.mxu0 0.0
        %7196 = vmatpush2.msra.mxu0 0.0
        %7197 = vmatprep.subr.mxu0 0.0
        %7198 = vmatpush2.msra.mxu0 0.0
        %7199 = vmatprep.subr.mxu0 0.0
        %7200 = vmatpush2.msra.mxu0 0.0
        %7201 = vmatprep.subr.mxu0 0.0
        %7202 = vmatpush2.msra.mxu0 0.0
        %7203 = vmatprep.subr.mxu0 0.0
        %7204 = vmatpush2.msra.mxu0 0.0
        %7205 = vmatprep.subr.mxu0 0.0
        %7206 = vmatpush2.msra.mxu0 0.0
        %7207 = vmatprep.subr.mxu0 0.0
        %7208 = vmatpush2.msra.mxu0 0.0
        %7209 = vmatprep.subr.mxu0 0.0
        %7210 = vmatpush2.msra.mxu0 0.0
        %7211 = vmatprep.subr.mxu0 0.0
        %7212 = vmatpush2.msra.mxu0 0.0
        %7213 = vmatprep.subr.mxu0 0.0
        %7214 = vmatpush2.msra.mxu0 0.0
        %7215 = vmatprep.subr.mxu0 0.0
        %7216 = vmatpush2.msra.mxu0 0.0
        %7217 = vmatprep.subr.mxu0 0.0
        %7218 = vmatpush2.msra.mxu0 0.0
        %7219 = vmatprep.subr.mxu0 0.0
        %7220 = vmatpush2.msra.mxu0 0.0
        %7221 = vmatprep.subr.mxu0 0.0
        %7222 = vmatpush2.msra.mxu0 0.0
        %7223 = vmatprep.mubr.f32.mxu0 0.0
        %7224 = vmatmul.mubr.f32.gmra.mxu0 %v7064
        %v7225 = vpop.f32.mrf.mxu0
        %v7226 = vadd.f32 0.0, %v7225
        %v7227 = vpop.f32.mrf.mxu0
        %7228 = vmatprep.mubr.f32.mxu0 0.0
        %7229 = vmatmul.mubr.f32.gmra.mxu0 %v7067
        %v7230 = vpop.f32.mrf.mxu0
        %v7231 = vadd.f32 0.0, %v7230
        %v7232 = vpop.f32.mrf.mxu0
        %7233 = vmatprep.mubr.f32.mxu0 0.0
        %7234 = vmatmul.mubr.f32.gmra.mxu0 %v7070
        %v7235 = vpop.f32.mrf.mxu0
        %v7236 = vadd.f32 0.0, %v7235
        %v7237 = vpop.f32.mrf.mxu0
        %7238 = vmatprep.mubr.f32.mxu0 0.0
        %7239 = vmatmul.mubr.f32.gmra.mxu0 %v7073
        %v7240 = vpop.f32.mrf.mxu0
        %v7241 = vadd.f32 0.0, %v7240
        %v7242 = vpop.f32.mrf.mxu0
        %7243 = vmatprep.mubr.f32.mxu0 0.0
        %7244 = vmatmul.mubr.f32.gmra.mxu0 %v7076
        %v7245 = vpop.f32.mrf.mxu0
        %v7246 = vadd.f32 0.0, %v7245
        %v7247 = vpop.f32.mrf.mxu0
        %7248 = vmatprep.mubr.f32.mxu0 0.0
        %7249 = vmatmul.mubr.f32.gmra.mxu0 %v7079
        %v7250 = vpop.f32.mrf.mxu0
        %v7251 = vadd.f32 0.0, %v7250
        %v7252 = vpop.f32.mrf.mxu0
        %7253 = vmatprep.mubr.f32.mxu0 0.0
        %7254 = vmatmul.mubr.f32.gmra.mxu0 %v7082
        %v7255 = vpop.f32.mrf.mxu0
        %v7256 = vadd.f32 0.0, %v7255
        %v7257 = vpop.f32.mrf.mxu0
        %7258 = vmatprep.mubr.f32.mxu0 0.0
        %7259 = vmatmul.mubr.f32.gmra.mxu0 %v7085
        %v7260 = vpop.f32.mrf.mxu0
        %v7261 = vadd.f32 0.0, %v7260
        %v7262 = vpop.f32.mrf.mxu0
        %7263 = vmatprep.mubr.f32.mxu0 0.0
        %7264 = vmatmul.mubr.f32.gmra.mxu0 %v7088
        %v7265 = vpop.f32.mrf.mxu0
        %v7266 = vadd.f32 0.0, %v7265
        %v7267 = vpop.f32.mrf.mxu0
        %7268 = vmatprep.mubr.f32.mxu0 0.0
        %7269 = vmatmul.mubr.f32.gmra.mxu0 %v7091
        %v7270 = vpop.f32.mrf.mxu0
        %v7271 = vadd.f32 0.0, %v7270
        %v7272 = vpop.f32.mrf.mxu0
        %7273 = vmatprep.mubr.f32.mxu0 0.0
        %7274 = vmatmul.mubr.f32.gmra.mxu0 %v7094
        %v7275 = vpop.f32.mrf.mxu0
        %v7276 = vadd.f32 0.0, %v7275
        %v7277 = vpop.f32.mrf.mxu0
        %7278 = vmatprep.mubr.f32.mxu0 0.0
        %7279 = vmatmul.mubr.f32.gmra.mxu0 %v7097
        %v7280 = vpop.f32.mrf.mxu0
        %v7281 = vadd.f32 0.0, %v7280
        %v7282 = vpop.f32.mrf.mxu0
        %7283 = vmatprep.mubr.f32.mxu0 0.0
        %7284 = vmatmul.mubr.f32.gmra.mxu0 %v7100
        %v7285 = vpop.f32.mrf.mxu0
        %v7286 = vadd.f32 0.0, %v7285
        %v7287 = vpop.f32.mrf.mxu0
        %7288 = vmatprep.mubr.f32.mxu0 0.0
        %7289 = vmatmul.mubr.f32.gmra.mxu0 %v7103
        %v7290 = vpop.f32.mrf.mxu0
        %v7291 = vadd.f32 0.0, %v7290
        %v7292 = vpop.f32.mrf.mxu0
        %7293 = vmatprep.mubr.f32.mxu0 0.0
        %7294 = vmatmul.mubr.f32.gmra.mxu0 %v7106
        %v7295 = vpop.f32.mrf.mxu0
        %v7296 = vadd.f32 0.0, %v7295
        %v7297 = vpop.f32.mrf.mxu0
        %7298 = vmatprep.mubr.f32.mxu0 0.0
        %7299 = vmatmul.mubr.f32.gmra.mxu0 %v7109
        %v7300 = vpop.f32.mrf.mxu0
        %v7301 = vadd.f32 0.0, %v7300
        %v7302 = vpop.f32.mrf.mxu0
        %7303 = vmatprep.mubr.f32.mxu0 0.0
        %7304 = vmatmul.mubr.f32.gmra.mxu0 %v7112
        %v7305 = vpop.f32.mrf.mxu0
        %v7306 = vadd.f32 0.0, %v7305
        %v7307 = vpop.f32.mrf.mxu0
        %7308 = vmatprep.mubr.f32.mxu0 0.0
        %7309 = vmatmul.mubr.f32.gmra.mxu0 %v7115
        %v7310 = vpop.f32.mrf.mxu0
        %v7311 = vadd.f32 0.0, %v7310
        %v7312 = vpop.f32.mrf.mxu0
        %7313 = vmatprep.mubr.f32.mxu0 0.0
        %7314 = vmatmul.mubr.f32.gmra.mxu0 %v7118
        %v7315 = vpop.f32.mrf.mxu0
        %v7316 = vadd.f32 0.0, %v7315
        %v7317 = vpop.f32.mrf.mxu0
        %7318 = vmatprep.mubr.f32.mxu0 0.0
        %7319 = vmatmul.mubr.f32.gmra.mxu0 %v7121
        %v7320 = vpop.f32.mrf.mxu0
        %v7321 = vadd.f32 0.0, %v7320
        %v7322 = vpop.f32.mrf.mxu0
        %7323 = vmatprep.mubr.f32.mxu0 0.0
        %7324 = vmatmul.mubr.f32.gmra.mxu0 %v7124
        %v7325 = vpop.f32.mrf.mxu0
        %v7326 = vadd.f32 0.0, %v7325
        %v7327 = vpop.f32.mrf.mxu0
        %7328 = vmatprep.mubr.f32.mxu0 0.0
        %7329 = vmatmul.mubr.f32.gmra.mxu0 %v7127
        %v7330 = vpop.f32.mrf.mxu0
        %v7331 = vadd.f32 0.0, %v7330
        %v7332 = vpop.f32.mrf.mxu0
        %7333 = vmatprep.mubr.f32.mxu0 0.0
        %7334 = vmatmul.mubr.f32.gmra.mxu0 %v7130
        %v7335 = vpop.f32.mrf.mxu0
        %v7336 = vadd.f32 0.0, %v7335
        %v7337 = vpop.f32.mrf.mxu0
        %7338 = vmatprep.mubr.f32.mxu0 0.0
        %7339 = vmatmul.mubr.f32.gmra.mxu0 %v7133
        %v7340 = vpop.f32.mrf.mxu0
        %v7341 = vadd.f32 0.0, %v7340
        %v7342 = vpop.f32.mrf.mxu0
        %7343 = vmatprep.mubr.f32.mxu0 0.0
        %7344 = vmatmul.mubr.f32.gmra.mxu0 %v7136
        %v7345 = vpop.f32.mrf.mxu0
        %v7346 = vadd.f32 0.0, %v7345
        %v7347 = vpop.f32.mrf.mxu0
        %7348 = vmatprep.mubr.f32.mxu0 0.0
        %7349 = vmatmul.mubr.f32.gmra.mxu0 %v7139
        %v7350 = vpop.f32.mrf.mxu0
        %v7351 = vadd.f32 0.0, %v7350
        %v7352 = vpop.f32.mrf.mxu0
        %7353 = vmatprep.mubr.f32.mxu0 0.0
        %7354 = vmatmul.mubr.f32.gmra.mxu0 %v7142
        %v7355 = vpop.f32.mrf.mxu0
        %v7356 = vadd.f32 0.0, %v7355
        %v7357 = vpop.f32.mrf.mxu0
        %7358 = vmatprep.mubr.f32.mxu0 0.0
        %7359 = vmatmul.mubr.f32.gmra.mxu0 %v7145
        %v7360 = vpop.f32.mrf.mxu0
        %v7361 = vadd.f32 0.0, %v7360
        %v7362 = vpop.f32.mrf.mxu0
        %7363 = vmatprep.mubr.f32.mxu0 0.0
        %7364 = vmatmul.mubr.f32.gmra.mxu0 %v7148
        %v7365 = vpop.f32.mrf.mxu0
        %v7366 = vadd.f32 0.0, %v7365
        %v7367 = vpop.f32.mrf.mxu0
        %7368 = vmatprep.mubr.f32.mxu0 0.0
        %7369 = vmatmul.mubr.f32.gmra.mxu0 %v7151
        %v7370 = vpop.f32.mrf.mxu0
        %v7371 = vadd.f32 0.0, %v7370
        %v7372 = vpop.f32.mrf.mxu0
        %7373 = vmatprep.mubr.f32.mxu0 0.0
        %7374 = vmatmul.mubr.f32.gmra.mxu0 %v7154
        %v7375 = vpop.f32.mrf.mxu0
        %v7376 = vadd.f32 0.0, %v7375
        %v7377 = vpop.f32.mrf.mxu0
        %7378 = vmatprep.mubr.f32.mxu0 0.0
        %7379 = vmatmul.mubr.f32.gmra.mxu0 %v7157
        %v7380 = vpop.f32.mrf.mxu0
        %v7381 = vadd.f32 0.0, %v7380
        %v7382 = vpop.f32.mrf.mxu0
        %7383 = vdwg.mxu0
        %v7384 = vadd.f32 %v6997, %v7226
        %v7385 = vadd.f32 %v6998, %v7231
        %v7386 = vadd.f32 %v6999, %v7236
        %v7387 = vadd.f32 %v7000, %v7241
        %v7388 = vadd.f32 %v7001, %v7246
        %v7389 = vadd.f32 %v7002, %v7251
        %v7390 = vadd.f32 %v7003, %v7256
        %v7391 = vadd.f32 %v7004, %v7261
        %v7392 = vadd.f32 %v7005, %v7266
        %v7393 = vadd.f32 %v7006, %v7271
        %v7394 = vadd.f32 %v7007, %v7276
        %v7395 = vadd.f32 %v7008, %v7281
        %v7396 = vadd.f32 %v7009, %v7286
        %v7397 = vadd.f32 %v7010, %v7291
        %v7398 = vadd.f32 %v7011, %v7296
        %v7399 = vadd.f32 %v7012, %v7301
        %v7400 = vadd.f32 %v7013, %v7306
        %v7401 = vadd.f32 %v7014, %v7311
        %v7402 = vadd.f32 %v7015, %v7316
        %v7403 = vadd.f32 %v7016, %v7321
        %v7404 = vadd.f32 %v7017, %v7326
        %v7405 = vadd.f32 %v7018, %v7331
        %v7406 = vadd.f32 %v7019, %v7336
        %v7407 = vadd.f32 %v7020, %v7341
        %v7408 = vadd.f32 %v7021, %v7346
        %v7409 = vadd.f32 %v7022, %v7351
        %v7410 = vadd.f32 %v7023, %v7356
        %v7411 = vadd.f32 %v7024, %v7361
        %v7412 = vadd.f32 %v7025, %v7366
        %v7413 = vadd.f32 %v7026, %v7371
        %v7414 = vadd.f32 %v7027, %v7376
        %v7415 = vadd.f32 %v7028, %v7381
        %v7416 = vld [vmem:[%s4] sm:$0x1]
        %v7418 = vlaneseq
        %v7419 = vshrl.u32 %v7418, 7
        %v7420 = vsub.s32 0, %v7419
        %v7421 = vrot.slane %v7416, %v7420
        %v7423 = vadd.f32 %v7384, %v7421
        %v7424 = vadd.f32 %v7385, %v7421
        %v7425 = vadd.f32 %v7386, %v7421
        %v7426 = vadd.f32 %v7387, %v7421
        %v7427 = vadd.f32 %v7388, %v7421
        %v7428 = vadd.f32 %v7389, %v7421
        %v7429 = vadd.f32 %v7390, %v7421
        %v7430 = vadd.f32 %v7391, %v7421
        %v7431 = vadd.f32 %v7392, %v7421
        %v7432 = vadd.f32 %v7393, %v7421
        %v7433 = vadd.f32 %v7394, %v7421
        %v7434 = vadd.f32 %v7395, %v7421
        %v7435 = vadd.f32 %v7396, %v7421
        %v7436 = vadd.f32 %v7397, %v7421
        %v7437 = vadd.f32 %v7398, %v7421
        %v7438 = vadd.f32 %v7399, %v7421
        %v7439 = vadd.f32 %v7400, %v7421
        %v7440 = vadd.f32 %v7401, %v7421
        %v7441 = vadd.f32 %v7402, %v7421
        %v7442 = vadd.f32 %v7403, %v7421
        %v7443 = vadd.f32 %v7404, %v7421
        %v7444 = vadd.f32 %v7405, %v7421
        %v7445 = vadd.f32 %v7406, %v7421
        %v7446 = vadd.f32 %v7407, %v7421
        %v7447 = vadd.f32 %v7408, %v7421
        %v7448 = vadd.f32 %v7409, %v7421
        %v7449 = vadd.f32 %v7410, %v7421
        %v7450 = vadd.f32 %v7411, %v7421
        %v7451 = vadd.f32 %v7412, %v7421
        %v7452 = vadd.f32 %v7413, %v7421
        %v7453 = vadd.f32 %v7414, %v7421
        %v7454 = vadd.f32 %v7415, %v7421
        %v7455 = vmax.f32 %v7423, 0.0
        %v7456 = vmax.f32 %v7424, 0.0
        %v7457 = vmax.f32 %v7425, 0.0
        %v7458 = vmax.f32 %v7426, 0.0
        %v7459 = vmax.f32 %v7427, 0.0
        %v7460 = vmax.f32 %v7428, 0.0
        %v7461 = vmax.f32 %v7429, 0.0
        %v7462 = vmax.f32 %v7430, 0.0
        %v7463 = vmax.f32 %v7431, 0.0
        %v7464 = vmax.f32 %v7432, 0.0
        %v7465 = vmax.f32 %v7433, 0.0
        %v7466 = vmax.f32 %v7434, 0.0
        %v7467 = vmax.f32 %v7435, 0.0
        %v7468 = vmax.f32 %v7436, 0.0
        %v7469 = vmax.f32 %v7437, 0.0
        %v7470 = vmax.f32 %v7438, 0.0
        %v7471 = vmax.f32 %v7439, 0.0
        %v7472 = vmax.f32 %v7440, 0.0
        %v7473 = vmax.f32 %v7441, 0.0
        %v7474 = vmax.f32 %v7442, 0.0
        %v7475 = vmax.f32 %v7443, 0.0
        %v7476 = vmax.f32 %v7444, 0.0
        %v7477 = vmax.f32 %v7445, 0.0
        %v7478 = vmax.f32 %v7446, 0.0
        %v7479 = vmax.f32 %v7447, 0.0
        %v7480 = vmax.f32 %v7448, 0.0
        %v7481 = vmax.f32 %v7449, 0.0
        %v7482 = vmax.f32 %v7450, 0.0
        %v7483 = vmax.f32 %v7451, 0.0
        %v7484 = vmax.f32 %v7452, 0.0
        %v7485 = vmax.f32 %v7453, 0.0
        %v7486 = vmax.f32 %v7454, 0.0
        %vm7487 = vcmask 261120
        %v7488 = vsel %vm7487, %v7455, 0.0
        %v7489 = vsel %vm7487, %v7456, 0.0
        %v7490 = vadd.f32 %v7488, %v7489
        %v7491 = vsel %vm7487, %v7457, 0.0
        %v7492 = vadd.f32 %v7490, %v7491
        %v7493 = vsel %vm7487, %v7458, 0.0
        %v7494 = vadd.f32 %v7492, %v7493
        %v7495 = vsel %vm7487, %v7459, 0.0
        %v7496 = vadd.f32 %v7494, %v7495
        %v7497 = vsel %vm7487, %v7460, 0.0
        %v7498 = vadd.f32 %v7496, %v7497
        %v7499 = vsel %vm7487, %v7461, 0.0
        %v7500 = vadd.f32 %v7498, %v7499
        %v7501 = vsel %vm7487, %v7462, 0.0
        %v7502 = vadd.f32 %v7500, %v7501
        %v7503 = vsel %vm7487, %v7463, 0.0
        %v7504 = vadd.f32 %v7502, %v7503
        %v7505 = vsel %vm7487, %v7464, 0.0
        %v7506 = vadd.f32 %v7504, %v7505
        %v7507 = vsel %vm7487, %v7465, 0.0
        %v7508 = vadd.f32 %v7506, %v7507
        %v7509 = vsel %vm7487, %v7466, 0.0
        %v7510 = vadd.f32 %v7508, %v7509
        %v7511 = vsel %vm7487, %v7467, 0.0
        %v7512 = vadd.f32 %v7510, %v7511
        %v7513 = vsel %vm7487, %v7468, 0.0
        %v7514 = vadd.f32 %v7512, %v7513
        %v7515 = vsel %vm7487, %v7469, 0.0
        %v7516 = vadd.f32 %v7514, %v7515
        %v7517 = vsel %vm7487, %v7470, 0.0
        %v7518 = vadd.f32 %v7516, %v7517
        %v7519 = vsel %vm7487, %v7471, 0.0
        %v7520 = vadd.f32 %v7518, %v7519
        %v7521 = vsel %vm7487, %v7472, 0.0
        %v7522 = vadd.f32 %v7520, %v7521
        %v7523 = vsel %vm7487, %v7473, 0.0
        %v7524 = vadd.f32 %v7522, %v7523
        %v7525 = vsel %vm7487, %v7474, 0.0
        %v7526 = vadd.f32 %v7524, %v7525
        %v7527 = vsel %vm7487, %v7475, 0.0
        %v7528 = vadd.f32 %v7526, %v7527
        %v7529 = vsel %vm7487, %v7476, 0.0
        %v7530 = vadd.f32 %v7528, %v7529
        %v7531 = vsel %vm7487, %v7477, 0.0
        %v7532 = vadd.f32 %v7530, %v7531
        %v7533 = vsel %vm7487, %v7478, 0.0
        %v7534 = vadd.f32 %v7532, %v7533
        %v7535 = vsel %vm7487, %v7479, 0.0
        %v7536 = vadd.f32 %v7534, %v7535
        %v7537 = vsel %vm7487, %v7480, 0.0
        %v7538 = vadd.f32 %v7536, %v7537
        %v7539 = vsel %vm7487, %v7481, 0.0
        %v7540 = vadd.f32 %v7538, %v7539
        %v7541 = vsel %vm7487, %v7482, 0.0
        %v7542 = vadd.f32 %v7540, %v7541
        %v7543 = vsel %vm7487, %v7483, 0.0
        %v7544 = vadd.f32 %v7542, %v7543
        %v7545 = vsel %vm7487, %v7484, 0.0
        %v7546 = vadd.f32 %v7544, %v7545
        %v7547 = vsel %vm7487, %v7485, 0.0
        %v7548 = vadd.f32 %v7546, %v7547
        %v7549 = vsel %vm7487, %v7486, 0.0
        %v7550 = vadd.f32 %v7548, %v7549
        %v7551 = vrot.slane %v7550, 4
        %v7552 = vadd.f32 %v7550, %v7551
        %v7553 = vrot.slane %v7552, 2
        %v7554 = vadd.f32 %v7552, %v7553
        %v7555 = vrot.slane %v7554, 1
        %v7556 = vadd.f32 %v7554, %v7555
        %v7557 = vmul.f32 %v7556, 0.00390625
        %v7558 = vld [vmem:[%s5] sm:$0xff]
        %v7559 = vld [vmem:[%s5 + $0x8] sm:$0xff]
        %v7560 = vld [vmem:[%s5 + $0x10] sm:$0xff]
        %v7561 = vld [vmem:[%s5 + $0x18] sm:$0xff]
        %v7562 = vld [vmem:[%s6] sm:$0x1]
        %v7564 = vsel %vm7487, %v7557, 0
        %7566 = vmatprep.subr.mxu0 0.0
        %7567 = vmatpush1.msra.mxu0 0.0
        %7568 = vmatprep.subr.mxu0 0.0
        %7569 = vmatpush1.msra.mxu0 0.0
        %7570 = vmatprep.subr.mxu0 0.0
        %7571 = vmatpush1.msra.mxu0 0.0
        %7572 = vmatprep.subr.mxu0 0.0
        %7573 = vmatpush1.msra.mxu0 0.0
        %7574 = vmatprep.subr.mxu0 0.0
        %7575 = vmatpush1.msra.mxu0 0.0
        %7576 = vmatprep.subr.mxu0 0.0
        %7577 = vmatpush1.msra.mxu0 0.0
        %7578 = vmatprep.subr.mxu0 0.0
        %7579 = vmatpush1.msra.mxu0 0.0
        %7580 = vmatprep.subr.mxu0 0.0
        %7581 = vmatpush1.msra.mxu0 0.0
        %7582 = vmatprep.subr.mxu0 0.0
        %7583 = vmatpush1.msra.mxu0 0.0
        %7584 = vmatprep.subr.mxu0 0.0
        %7585 = vmatpush1.msra.mxu0 0.0
        %7586 = vmatprep.subr.mxu0 0.0
        %7587 = vmatpush1.msra.mxu0 0.0
        %7588 = vmatprep.subr.mxu0 0.0
        %7589 = vmatpush1.msra.mxu0 0.0
        %7590 = vmatprep.subr.mxu0 0.0
        %7591 = vmatpush1.msra.mxu0 %v7561
        %7592 = vmatprep.subr.mxu0 0.0
        %7593 = vmatpush1.msra.mxu0 %v7560
        %7594 = vmatprep.subr.mxu0 0.0
        %7595 = vmatpush1.msra.mxu0 %v7559
        %7596 = vmatprep.subr.mxu0 0.0
        %7597 = vmatpush1.msra.mxu0 %v7558
        %7598 = vmatprep.subr.mxu0 0.0
        %7599 = vmatpush2.msra.mxu0 0.0
        %7600 = vmatprep.subr.mxu0 0.0
        %7601 = vmatpush2.msra.mxu0 0.0
        %7602 = vmatprep.subr.mxu0 0.0
        %7603 = vmatpush2.msra.mxu0 0.0
        %7604 = vmatprep.subr.mxu0 0.0
        %7605 = vmatpush2.msra.mxu0 0.0
        %7606 = vmatprep.subr.mxu0 0.0
        %7607 = vmatpush2.msra.mxu0 0.0
        %7608 = vmatprep.subr.mxu0 0.0
        %7609 = vmatpush2.msra.mxu0 0.0
        %7610 = vmatprep.subr.mxu0 0.0
        %7611 = vmatpush2.msra.mxu0 0.0
        %7612 = vmatprep.subr.mxu0 0.0
        %7613 = vmatpush2.msra.mxu0 0.0
        %7614 = vmatprep.subr.mxu0 0.0
        %7615 = vmatpush2.msra.mxu0 0.0
        %7616 = vmatprep.subr.mxu0 0.0
        %7617 = vmatpush2.msra.mxu0 0.0
        %7618 = vmatprep.subr.mxu0 0.0
        %7619 = vmatpush2.msra.mxu0 0.0
        %7620 = vmatprep.subr.mxu0 0.0
        %7621 = vmatpush2.msra.mxu0 0.0
        %7622 = vmatprep.subr.mxu0 0.0
        %7623 = vmatpush2.msra.mxu0 0.0
        %7624 = vmatprep.subr.mxu0 0.0
        %7625 = vmatpush2.msra.mxu0 0.0
        %7626 = vmatprep.subr.mxu0 0.0
        %7627 = vmatpush2.msra.mxu0 0.0
        %7628 = vmatprep.subr.mxu0 0.0
        %7629 = vmatpush2.msra.mxu0 0.0
        %7630 = vmatprep.mubr.f32.mxu0 0.0
        %7631 = vmatmul.mubr.f32.gmra.mxu0 %v7564
        %v7632 = vpop.f32.mrf.mxu0
        %v7633 = vadd.f32 %v7562, %v7632
        %v7634 = vpop.f32.mrf.mxu0
        %7635 = vdwg.mxu0
        %vm7636 = vcmask 647168
        %7637 = vst.msk [vmem:[%s270] sm:$0x1] %vm7636, %v7633
        %s7638 = sand.u32 %s181, 1
        %s7639 = scalar_lea.sflag [#allocation5], %s7638
        %s7640 = sand.u32 %s181, 1
        %s7641 = scalar_lea.vmem [#allocation4], %s7640
        // Predicated region
        $region49: #{baseline_v1_forward.1} parent=47 // pred_check
          %p7642 = pneg %p191
        $region50: #{baseline_v1_forward.1} parent=47 // pred_check_branch
          %7644 = sbr.rel (%p7642) target = $region52
        $region51: #{baseline_v1_forward.1} parent=47 // pred_region
          %s7646 = ssub.s32 16, 16
          %7647 = vsyncadd %s7639, %s7646
          %s7648 = smul.addr %s21, 16
          %s7649 = scalar_lea.hbm %s7, %s7648
          %s7651 = sshll.u32 %s7641, 4
          %s7652 = int_to_ptr.vmem [resolvable:$true] %s7651
          %7654 = dma.vmem_to_hbm [thread:$0]  %s7652, 16, %s7649, %s7639
        $region52: #{baseline_v1_forward.1} parent=47 // pred_fallthru
          _
      $region48: #{baseline_v1_forward.1} parent=5 // pred_fallthru
        _
      %p7655 = scmp.le.s32.totalorder 2, %s16
      // Predicated region
      $region53: #{baseline_v1_forward.1} parent=5 // pred_check
        %p7656 = pneg %p7655
      $region54: #{baseline_v1_forward.1} parent=5 // pred_check_branch
        %7658 = sbr.rel (%p7656) target = $region56
      $region55: #{baseline_v1_forward.1} parent=5 // pred_region
        %s7659 = ssub.s32 %s16, 2
        // Predicated region
        $region57: #{baseline_v1_forward.1} parent=55 // pred_check
          %p7660 = pneg %p197
        $region58: #{baseline_v1_forward.1} parent=55 // pred_check_branch
          %7662 = sbr.rel (%p7660) target = $region60
        $region59: #{baseline_v1_forward.1} parent=55 // pred_region
          %s7663 = sand.u32 %s182, 1
          %s7664 = scalar_lea.sflag [#allocation5], %s7663
          %s7665 = sand.u32 %s182, 1
          %s7666 = scalar_lea.vmem [#allocation4], %s7665
          %7667 = dma.done %s7664, 16
        $region60: #{baseline_v1_forward.1} parent=55 // pred_fallthru
          _
      $region56: #{baseline_v1_forward.1} parent=5 // pred_fallthru
        _
    $region6: #{baseline_v1_forward.1} parent=1 // loop_footer
      %s20 = sadd.s32 1, %s16
    $region7: #{baseline_v1_forward.1} parent=1 // loop_footer_branch
      %15 = sbr.rel target = $region3
    $region8: #{baseline_v1_forward.1} parent=1 // loop_exit
      _
    %7668 = vsyncpa [#allocation5], 1
    %s7669 = scalar_lea.sflag [#allocation5], 1
    %7670 = vsyncpa %s7669, 1

</llo_original>
